<compile_context>
chip_gen: v7x
topology: tpu7x:2x2x1
jax: 0.10.0
libtpu: 0.0.40
codegen_flags: <defaults>
</compile_context>

<pallas_src>
import functools

import jax
import jax.numpy as jnp
from jax.experimental import pallas as pl
from jax.experimental.pallas import tpu as pltpu

GROUPS = 8
EPS = 1e-5


def _silu(x):
    return x * jax.nn.sigmoid(x)


# --------------------------- in-kernel building blocks ------------------------

def _conv3x3(pad_ref, x_hwc, weight_fn, hp, wp, cin, cout):
    """3x3 same-padding conv as 9 MXU matmuls on a zero-padded VMEM scratch.

    pad_ref : (hp+2, wp+2, cin) VMEM scratch whose border is already zero.
    x_hwc   : (hp, wp, cin) channels-last activation value.
    weight_fn(k) -> (cin, cout) weight matrix for tap k (k = ky*3 + kx).
    Returns (hp*wp, cout) float32 (bias NOT added here).
    """
    pad_ref[1:hp + 1, 1:wp + 1, :] = x_hwc
    acc = jnp.zeros((hp * wp, cout), dtype=jnp.float32)
    for k in range(9):                       # static unroll (9 taps)
        ky, kx = k // 3, k % 3
        win = pad_ref[ky:ky + hp, kx:kx + wp, :]          # (hp, wp, cin)
        acc = acc + jnp.dot(win.reshape(hp * wp, cin), weight_fn(k),
                            preferred_element_type=jnp.float32)
    return acc


def _group_norm(h, gamma, beta, m, mt, hw, groups):
    """GroupNorm(groups) on (hw, C) channels-last activations.

    m: (C, G) one-hot channel->group matrix, mt: (G, C) its transpose.
    Group reductions are tiny matmuls -> no lane-axis reshapes needed.
    """
    c = h.shape[1]
    n = float(hw * (c // groups))
    s_c = jnp.sum(h, axis=0, keepdims=True)                        # (1, C)
    mean_g = jnp.dot(s_c, m, preferred_element_type=jnp.float32) / n
    mean_c = jnp.dot(mean_g, mt, preferred_element_type=jnp.float32)
    d = h - mean_c
    q_c = jnp.sum(d * d, axis=0, keepdims=True)
    var_g = jnp.dot(q_c, m, preferred_element_type=jnp.float32) / n
    inv_g = jax.lax.rsqrt(var_g + EPS)
    inv_c = jnp.dot(inv_g, mt, preferred_element_type=jnp.float32)
    return d * inv_c * gamma + beta


# --------------------------------- kernel ------------------------------------

def down_block_kernel(x_ref, t_ref, wa_ref, wb1_ref, wb2_ref,
                      vin_ref, vout_ref, min_ref, mtin_ref,
                      mout_ref, mtout_ref, wt_ref,
                      o_ref, pad_in, pad_out,
                      *, hp, wp, cin, cout, groups):
    hw = hp * wp
    b = pl.program_id(0)

    # Zero the padded scratches; only interiors are (re)written by the convs,
    # so the zero borders provide the "same" padding for every conv.
    pad_in[...] = jnp.zeros_like(pad_in)
    pad_out[...] = jnp.zeros_like(pad_out)

    x = x_ref[0]                                   # (hp, wp, cin), channels-last
    h0 = x.reshape(hw, cin)

    wa = wa_ref[...]                               # (2, 9, cin, cin)
    wb1 = wb1_ref[...]                             # (9, cin, cout)
    wb2 = wb2_ref[...]                             # (9, cout, cout)
    m_in, mt_in = min_ref[...], mtin_ref[...]
    m_out, mt_out = mout_ref[...], mtout_ref[...]

    # ---- ResBlock 1: residual=True, cin -> cin (mid = cin) -------------------
    y = _conv3x3(pad_in, x, lambda k: wa[0, k], hp, wp, cin, cin) + vin_ref[0]
    y = _group_norm(y, vin_ref[1], vin_ref[2], m_in, mt_in, hw, groups)
    y = _silu(y)
    y = _conv3x3(pad_in, y.reshape(hp, wp, cin), lambda k: wa[1, k],
                 hp, wp, cin, cin) + vin_ref[3]
    y = _group_norm(y, vin_ref[4], vin_ref[5], m_in, mt_in, hw, groups)
    h1 = h0 + y

    # ---- ResBlock 2: residual=False, cin -> cout (mid = cout) ----------------
    z = _conv3x3(pad_in, h1.reshape(hp, wp, cin), lambda k: wb1[k],
                 hp, wp, cin, cout) + vout_ref[0]
    z = _group_norm(z, vout_ref[1], vout_ref[2], m_out, mt_out, hw, groups)
    z = _silu(z)
    z = _conv3x3(pad_out, z.reshape(hp, wp, cout), lambda k: wb2[k],
                 hp, wp, cout, cout) + vout_ref[3]
    z = _group_norm(z, vout_ref[4], vout_ref[5], m_out, mt_out, hw, groups)

    # ---- time embedding: Linear(SiLU(t)) broadcast over spatial --------------
    tt = t_ref[pl.ds(b, 1), :]                                       # (1, t_dim)
    temb = jnp.dot(_silu(tt), wt_ref[...],
                   preferred_element_type=jnp.float32) + vout_ref[6]  # (1, cout)

    out = z + temb                                  # broadcast over hw rows
    o_ref[0] = out.reshape(hp, wp, cout).astype(o_ref.dtype)


# -------------------------------- wrapper ------------------------------------

def _group_matrix(c, groups):
    cg = c // groups
    g_of_c = jnp.arange(c) // cg
    return (g_of_c[:, None] == jnp.arange(groups)[None, :]).astype(jnp.float32)


def down_block_forward(x_nchw, t, params, *, inp_ch, out_ch, t_emb_dim,
                       groups=GROUPS):
    B, C, H, W = x_nchw.shape
    assert C == inp_ch and H % 2 == 0 and W % 2 == 0
    hp, wp = H // 2, W // 2

    # glue (plain JAX): NCHW -> channels-last, MaxPool2d(kernel=2, stride=2)
    x_nhwc = jnp.transpose(x_nchw, (0, 2, 3, 1))
    pooled = jnp.max(x_nhwc.reshape(B, hp, 2, wp, 2, C), axis=(2, 4))

    # pack parameters into kernel layout
    wa = jnp.stack([params["wA1"].reshape(9, inp_ch, inp_ch),
                    params["wA2"].reshape(9, inp_ch, inp_ch)])
    wb1 = params["wB1"].reshape(9, inp_ch, out_ch)
    wb2 = params["wB2"].reshape(9, out_ch, out_ch)
    vin = jnp.stack([params["bA1"], params["gA1"], params["betaA1"],
                     params["bA2"], params["gA2"], params["betaA2"]])[:, None, :]
    vout = jnp.stack([params["bB1"], params["gB1"], params["betaB1"],
                      params["bB2"], params["gB2"], params["betaB2"],
                      params["bt"]])[:, None, :]
    m_in = _group_matrix(inp_ch, groups)
    m_out = _group_matrix(out_ch, groups)

    kernel = functools.partial(down_block_kernel, hp=hp, wp=wp,
                               cin=inp_ch, cout=out_ch, groups=groups)

    out_nhwc = pl.pallas_call(
        kernel,
        out_shape=jax.ShapeDtypeStruct((B, hp, wp, out_ch), jnp.float32),
        grid=(B,),
        in_specs=[
            pl.BlockSpec((1, hp, wp, inp_ch), lambda b: (b, 0, 0, 0)),   # pooled
            pl.BlockSpec((B, t_emb_dim), lambda b: (0, 0)),              # t (all)
            pl.BlockSpec((2, 9, inp_ch, inp_ch), lambda b: (0, 0, 0, 0)),  # wA
            pl.BlockSpec((9, inp_ch, out_ch), lambda b: (0, 0, 0)),      # wB1
            pl.BlockSpec((9, out_ch, out_ch), lambda b: (0, 0, 0)),      # wB2
            pl.BlockSpec((6, 1, inp_ch), lambda b: (0, 0, 0)),           # vin
            pl.BlockSpec((7, 1, out_ch), lambda b: (0, 0, 0)),           # vout
            pl.BlockSpec((inp_ch, groups), lambda b: (0, 0)),            # M_in
            pl.BlockSpec((groups, inp_ch), lambda b: (0, 0)),            # M_in^T
            pl.BlockSpec((out_ch, groups), lambda b: (0, 0)),            # M_out
            pl.BlockSpec((groups, out_ch), lambda b: (0, 0)),            # M_out^T
            pl.BlockSpec((t_emb_dim, out_ch), lambda b: (0, 0)),         # wt
        ],
        out_specs=pl.BlockSpec((1, hp, wp, out_ch), lambda b: (b, 0, 0, 0)),
        scratch_shapes=[
            pltpu.VMEM((hp + 2, wp + 2, inp_ch), jnp.float32),
            pltpu.VMEM((hp + 2, wp + 2, out_ch), jnp.float32),
        ],
        compiler_params=pltpu.CompilerParams(
            dimension_semantics=("parallel",)),
    )(pooled, t, wa, wb1, wb2, vin, vout, m_in, m_in.T, m_out, m_out.T,
      params["wt"])

    return jnp.transpose(out_nhwc, (0, 3, 1, 2))    # back to NCHW


# ---------------------------- pure-JAX reference ------------------------------

def _conv3x3_ref(x, w_hwio, b):
    y = jax.lax.conv_general_dilated(
        x, w_hwio, window_strides=(1, 1), padding="SAME",
        dimension_numbers=("NHWC", "HWIO", "NHWC"))
    return y + b[None, None, None, :]


def _group_norm_ref(x, gamma, beta, groups=GROUPS, eps=EPS):
    B, H, W, C = x.shape
    cg = C // groups
    xr = x.reshape(B, H, W, groups, cg)
    mean = xr.mean(axis=(1, 2, 4), keepdims=True)
    var = ((xr - mean) ** 2).mean(axis=(1, 2, 4), keepdims=True)
    xn = ((xr - mean) / jnp.sqrt(var + eps)).reshape(B, H, W, C)
    return xn * gamma[None, None, None, :] + beta[None, None, None, :]


def down_block_reference(x_nchw, t, params, groups=GROUPS):
    B, C, H, W = x_nchw.shape
    hp, wp = H // 2, W // 2
    x = jnp.transpose(x_nchw, (0, 2, 3, 1))
    h = jnp.max(x.reshape(B, hp, 2, wp, 2, C), axis=(2, 4))

    y = _conv3x3_ref(h, params["wA1"], params["bA1"])
    y = _group_norm_ref(y, params["gA1"], params["betaA1"], groups)
    y = _silu(y)
    y = _conv3x3_ref(y, params["wA2"], params["bA2"])
    y = _group_norm_ref(y, params["gA2"], params["betaA2"], groups)
    h = h + y

    z = _conv3x3_ref(h, params["wB1"], params["bB1"])
    z = _group_norm_ref(z, params["gB1"], params["betaB1"], groups)
    z = _silu(z)
    z = _conv3x3_ref(z, params["wB2"], params["bB2"])
    z = _group_norm_ref(z, params["gB2"], params["betaB2"], groups)

    temb = _silu(t) @ params["wt"] + params["bt"]
    out = z + temb[:, None, None, :]
    return jnp.transpose(out, (0, 3, 1, 2))


# ------------------------------ parameter init --------------------------------

def init_params(key, inp_ch, out_ch, t_emb_dim):
    ks = jax.random.split(key, 18)

    def u(k, shape, fan_in):
        s = 1.0 / float(fan_in) ** 0.5
        return jax.random.uniform(k, shape, jnp.float32, -s, s)

    return {
        # ResBlock 1 (inp_ch -> inp_ch, mid = inp_ch)
        "wA1": u(ks[0], (3, 3, inp_ch, inp_ch), 9 * inp_ch),
        "bA1": u(ks[1], (inp_ch,), 9 * inp_ch),
        "gA1": 1.0 + 0.1 * jax.random.normal(ks[2], (inp_ch,), jnp.float32),
        "betaA1": 0.1 * jax.random.normal(ks[3], (inp_ch,), jnp.float32),
        "wA2": u(ks[4], (3, 3, inp_ch, inp_ch), 9 * inp_ch),
        "bA2": u(ks[5], (inp_ch,), 9 * inp_ch),
        "gA2": 1.0 + 0.1 * jax.random.normal(ks[6], (inp_ch,), jnp.float32),
        "betaA2": 0.1 * jax.random.normal(ks[7], (inp_ch,), jnp.float32),
        # ResBlock 2 (inp_ch -> out_ch, mid = out_ch)
        "wB1": u(ks[8], (3, 3, inp_ch, out_ch), 9 * inp_ch),
        "bB1": u(ks[9], (out_ch,), 9 * inp_ch),
        "gB1": 1.0 + 0.1 * jax.random.normal(ks[10], (out_ch,), jnp.float32),
        "betaB1": 0.1 * jax.random.normal(ks[11], (out_ch,), jnp.float32),
        "wB2": u(ks[12], (3, 3, out_ch, out_ch), 9 * out_ch),
        "bB2": u(ks[13], (out_ch,), 9 * out_ch),
        "gB2": 1.0 + 0.1 * jax.random.normal(ks[14], (out_ch,), jnp.float32),
        "betaB2": 0.1 * jax.random.normal(ks[15], (out_ch,), jnp.float32),
        # t_emb_layers: SiLU -> Linear(t_emb_dim, out_ch)
        "wt": u(ks[16], (t_emb_dim, out_ch), t_emb_dim),
        "bt": u(ks[17], (out_ch,), t_emb_dim),
    }


# ---------------------------------- main --------------------------------------

if __name__ == "__main__":
    B = 2            # batch
    INP_CH = 8       # inp_ch (must be divisible by 8 for GroupNorm(8))
    OUT_CH = 16      # out_ch (must be divisible by 8 for GroupNorm(8))
    H = W = 16       # spatial (pooled to 8x8 inside DownBlock)
    T_DIM = 32       # t_emb_dim (scaled down from 256)

    key = jax.random.PRNGKey(0)
    k_x, k_t, k_p = jax.random.split(key, 3)
    x = jax.random.normal(k_x, (B, INP_CH, H, W), jnp.float32)
    t = jax.random.normal(k_t, (B, T_DIM), jnp.float32)
    params = init_params(k_p, INP_CH, OUT_CH, T_DIM)

    out = down_block_forward(x, t, params, inp_ch=INP_CH, out_ch=OUT_CH,
                             t_emb_dim=T_DIM)
    out = jax.block_until_ready(out)

    ref = down_block_reference(x, t, params)
    assert out.shape == (B, OUT_CH, H // 2, W // 2), out.shape
    max_err = float(jnp.max(jnp.abs(out - ref)))
    assert jnp.allclose(out, ref, rtol=2e-4, atol=2e-4), max_err

    print("KERNEL_OK")
</pallas_src>

<mosaic_0001>
module attributes {stable_mosaic.version = 11 : i64} {
  func.func @down_block_kernel(%arg0: i32, %arg1: memref<1x8x8x8xf32, #tpu.memory_space<vmem>>, %arg2: memref<2x32xf32, #tpu.memory_space<vmem>>, %arg3: memref<2x9x8x8xf32, #tpu.memory_space<vmem>>, %arg4: memref<9x8x16xf32, #tpu.memory_space<vmem>>, %arg5: memref<9x16x16xf32, #tpu.memory_space<vmem>>, %arg6: memref<6x1x8xf32, #tpu.memory_space<vmem>>, %arg7: memref<7x1x16xf32, #tpu.memory_space<vmem>>, %arg8: memref<8x8xf32, #tpu.memory_space<vmem>>, %arg9: memref<8x8xf32, #tpu.memory_space<vmem>>, %arg10: memref<16x8xf32, #tpu.memory_space<vmem>>, %arg11: memref<8x16xf32, #tpu.memory_space<vmem>>, %arg12: memref<32x16xf32, #tpu.memory_space<vmem>>, %arg13: memref<1x8x8x16xf32, #tpu.memory_space<vmem>>, %arg14: memref<10x10x8xf32, #tpu.memory_space<vmem>>, %arg15: memref<10x10x16xf32, #tpu.memory_space<vmem>>) attributes {dimension_semantics = [#tpu.dimension_semantics<parallel>], iteration_bounds = array<i64: 2>, scalar_prefetch = 0 : i64, scratch_operands = 2 : i64, tpu.core_type = #tpu.core_type<tc>, window_params = [{transform_indices = @transform_0, window_bounds = array<i64: 1, 8, 8, 8>}, {pipeline_mode = #tpu.pipeline_mode<synchronous>, transform_indices = @transform_1, window_bounds = array<i64: 2, 32>}, {pipeline_mode = #tpu.pipeline_mode<synchronous>, transform_indices = @transform_2, window_bounds = array<i64: 2, 9, 8, 8>}, {pipeline_mode = #tpu.pipeline_mode<synchronous>, transform_indices = @transform_3, window_bounds = array<i64: 9, 8, 16>}, {pipeline_mode = #tpu.pipeline_mode<synchronous>, transform_indices = @transform_4, window_bounds = array<i64: 9, 16, 16>}, {pipeline_mode = #tpu.pipeline_mode<synchronous>, transform_indices = @transform_5, window_bounds = array<i64: 6, 1, 8>}, {pipeline_mode = #tpu.pipeline_mode<synchronous>, transform_indices = @transform_6, window_bounds = array<i64: 7, 1, 16>}, {pipeline_mode = #tpu.pipeline_mode<synchronous>, transform_indices = @transform_7, window_bounds = array<i64: 8, 8>}, {pipeline_mode = #tpu.pipeline_mode<synchronous>, transform_indices = @transform_8, window_bounds = array<i64: 8, 8>}, {pipeline_mode = #tpu.pipeline_mode<synchronous>, transform_indices = @transform_9, window_bounds = array<i64: 16, 8>}, {pipeline_mode = #tpu.pipeline_mode<synchronous>, transform_indices = @transform_10, window_bounds = array<i64: 8, 16>}, {pipeline_mode = #tpu.pipeline_mode<synchronous>, transform_indices = @transform_11, window_bounds = array<i64: 32, 16>}, {transform_indices = @transform_12, window_bounds = array<i64: 1, 8, 8, 16>}]} {
    %cst = arith.constant 0.000000e+00 : f32
    %0 = vector.broadcast %cst : f32 to vector<10x10x8xf32>
    %c0 = arith.constant 0 : index
    %c0_0 = arith.constant 0 : index
    %c0_1 = arith.constant 0 : index
    %1 = vector.load %arg14[%c0, %c0_0, %c0_1] : memref<10x10x8xf32, #tpu.memory_space<vmem>>, vector<10x10x8xf32>
    tpu.vector_store %arg14[%c0, %c0_0, %c0_1], %0 {strides = array<i32>} : memref<10x10x8xf32, #tpu.memory_space<vmem>>, vector<10x10x8xf32>,
    %cst_2 = arith.constant 0.000000e+00 : f32
    %2 = vector.broadcast %cst_2 : f32 to vector<10x10x16xf32>
    %c0_3 = arith.constant 0 : index
    %c0_4 = arith.constant 0 : index
    %c0_5 = arith.constant 0 : index
    %3 = vector.load %arg15[%c0_3, %c0_4, %c0_5] : memref<10x10x16xf32, #tpu.memory_space<vmem>>, vector<10x10x16xf32>
    tpu.vector_store %arg15[%c0_3, %c0_4, %c0_5], %2 {strides = array<i32>} : memref<10x10x16xf32, #tpu.memory_space<vmem>>, vector<10x10x16xf32>,
    %c0_6 = arith.constant 0 : index
    %c0_7 = arith.constant 0 : index
    %c0_8 = arith.constant 0 : index
    %c0_9 = arith.constant 0 : index
    %4 = vector.load %arg1[%c0_6, %c0_7, %c0_8, %c0_9] : memref<1x8x8x8xf32, #tpu.memory_space<vmem>>, vector<1x8x8x8xf32>
    %5 = vector.shape_cast %4 : vector<1x8x8x8xf32> to vector<8x8x8xf32>
    %6 = vector.shape_cast %5 : vector<8x8x8xf32> to vector<64x8xf32>
    %c0_10 = arith.constant 0 : index
    %c0_11 = arith.constant 0 : index
    %c0_12 = arith.constant 0 : index
    %c0_13 = arith.constant 0 : index
    %7 = vector.load %arg3[%c0_10, %c0_11, %c0_12, %c0_13] : memref<2x9x8x8xf32, #tpu.memory_space<vmem>>, vector<2x9x8x8xf32>
    %c0_14 = arith.constant 0 : index
    %c0_15 = arith.constant 0 : index
    %c0_16 = arith.constant 0 : index
    %8 = vector.load %arg4[%c0_14, %c0_15, %c0_16] : memref<9x8x16xf32, #tpu.memory_space<vmem>>, vector<9x8x16xf32>
    %c0_17 = arith.constant 0 : index
    %c0_18 = arith.constant 0 : index
    %c0_19 = arith.constant 0 : index
    %9 = vector.load %arg5[%c0_17, %c0_18, %c0_19] : memref<9x16x16xf32, #tpu.memory_space<vmem>>, vector<9x16x16xf32>
    %c0_20 = arith.constant 0 : index
    %c0_21 = arith.constant 0 : index
    %10 = vector.load %arg8[%c0_20, %c0_21] : memref<8x8xf32, #tpu.memory_space<vmem>>, vector<8x8xf32>
    %c0_22 = arith.constant 0 : index
    %c0_23 = arith.constant 0 : index
    %11 = vector.load %arg9[%c0_22, %c0_23] : memref<8x8xf32, #tpu.memory_space<vmem>>, vector<8x8xf32>
    %c0_24 = arith.constant 0 : index
    %c0_25 = arith.constant 0 : index
    %12 = vector.load %arg10[%c0_24, %c0_25] : memref<16x8xf32, #tpu.memory_space<vmem>>, vector<16x8xf32>
    %c0_26 = arith.constant 0 : index
    %c0_27 = arith.constant 0 : index
    %13 = vector.load %arg11[%c0_26, %c0_27] : memref<8x16xf32, #tpu.memory_space<vmem>>, vector<8x16xf32>
    %c1 = arith.constant 1 : index
    %c1_28 = arith.constant 1 : index
    %c0_29 = arith.constant 0 : index
    %14 = vector.load %arg14[%c1, %c1_28, %c0_29] : memref<10x10x8xf32, #tpu.memory_space<vmem>>, vector<8x8x8xf32>
    tpu.vector_store %arg14[%c1, %c1_28, %c0_29], %5 {strides = array<i32>} : memref<10x10x8xf32, #tpu.memory_space<vmem>>, vector<8x8x8xf32>,
    %cst_30 = arith.constant 0.000000e+00 : f32
    %15 = vector.broadcast %cst_30 : f32 to vector<64x8xf32>
    %c0_31 = arith.constant 0 : index
    %c0_32 = arith.constant 0 : index
    %c0_33 = arith.constant 0 : index
    %16 = vector.load %arg14[%c0_31, %c0_32, %c0_33] : memref<10x10x8xf32, #tpu.memory_space<vmem>>, vector<8x8x8xf32>
    %17 = vector.shape_cast %16 : vector<8x8x8xf32> to vector<64x8xf32>
    %18 = vector.extract_strided_slice %7 {offsets = [0, 0, 0, 0], sizes = [1, 1, 8, 8], strides = [1, 1, 1, 1]} : vector<2x9x8x8xf32> to vector<1x1x8x8xf32>
    %19 = vector.shape_cast %18 : vector<1x1x8x8xf32> to vector<8x8xf32>
    %cst_34 = arith.constant dense<0.000000e+00> : vector<64x8xf32>
    %20 = tpu.matmul %17, %19, %cst_34 {dimension_numbers = #tpu.dot_dimension_numbers<[1], [0], [0], [1], [0, 0, 1, 1], [], []>} : vector<64x8xf32>, vector<8x8xf32>, vector<64x8xf32> -> vector<64x8xf32>
    %21 = arith.addf %15, %20 : vector<64x8xf32>
    %c0_35 = arith.constant 0 : index
    %c1_36 = arith.constant 1 : index
    %c0_37 = arith.constant 0 : index
    %22 = vector.load %arg14[%c0_35, %c1_36, %c0_37] : memref<10x10x8xf32, #tpu.memory_space<vmem>>, vector<8x8x8xf32>
    %23 = vector.shape_cast %22 : vector<8x8x8xf32> to vector<64x8xf32>
    %24 = vector.extract_strided_slice %7 {offsets = [0, 1, 0, 0], sizes = [1, 1, 8, 8], strides = [1, 1, 1, 1]} : vector<2x9x8x8xf32> to vector<1x1x8x8xf32>
    %25 = vector.shape_cast %24 : vector<1x1x8x8xf32> to vector<8x8xf32>
    %cst_38 = arith.constant dense<0.000000e+00> : vector<64x8xf32>
    %26 = tpu.matmul %23, %25, %cst_38 {dimension_numbers = #tpu.dot_dimension_numbers<[1], [0], [0], [1], [0, 0, 1, 1], [], []>} : vector<64x8xf32>, vector<8x8xf32>, vector<64x8xf32> -> vector<64x8xf32>
    %27 = arith.addf %21, %26 : vector<64x8xf32>
    %c0_39 = arith.constant 0 : index
    %c2 = arith.constant 2 : index
    %c0_40 = arith.constant 0 : index
    %28 = vector.load %arg14[%c0_39, %c2, %c0_40] : memref<10x10x8xf32, #tpu.memory_space<vmem>>, vector<8x8x8xf32>
    %29 = vector.shape_cast %28 : vector<8x8x8xf32> to vector<64x8xf32>
    %30 = vector.extract_strided_slice %7 {offsets = [0, 2, 0, 0], sizes = [1, 1, 8, 8], strides = [1, 1, 1, 1]} : vector<2x9x8x8xf32> to vector<1x1x8x8xf32>
    %31 = vector.shape_cast %30 : vector<1x1x8x8xf32> to vector<8x8xf32>
    %cst_41 = arith.constant dense<0.000000e+00> : vector<64x8xf32>
    %32 = tpu.matmul %29, %31, %cst_41 {dimension_numbers = #tpu.dot_dimension_numbers<[1], [0], [0], [1], [0, 0, 1, 1], [], []>} : vector<64x8xf32>, vector<8x8xf32>, vector<64x8xf32> -> vector<64x8xf32>
    %33 = arith.addf %27, %32 : vector<64x8xf32>
    %c1_42 = arith.constant 1 : index
    %c0_43 = arith.constant 0 : index
    %c0_44 = arith.constant 0 : index
    %34 = vector.load %arg14[%c1_42, %c0_43, %c0_44] : memref<10x10x8xf32, #tpu.memory_space<vmem>>, vector<8x8x8xf32>
    %35 = vector.shape_cast %34 : vector<8x8x8xf32> to vector<64x8xf32>
    %36 = vector.extract_strided_slice %7 {offsets = [0, 3, 0, 0], sizes = [1, 1, 8, 8], strides = [1, 1, 1, 1]} : vector<2x9x8x8xf32> to vector<1x1x8x8xf32>
    %37 = vector.shape_cast %36 : vector<1x1x8x8xf32> to vector<8x8xf32>
    %cst_45 = arith.constant dense<0.000000e+00> : vector<64x8xf32>
    %38 = tpu.matmul %35, %37, %cst_45 {dimension_numbers = #tpu.dot_dimension_numbers<[1], [0], [0], [1], [0, 0, 1, 1], [], []>} : vector<64x8xf32>, vector<8x8xf32>, vector<64x8xf32> -> vector<64x8xf32>
    %39 = arith.addf %33, %38 : vector<64x8xf32>
    %c1_46 = arith.constant 1 : index
    %c1_47 = arith.constant 1 : index
    %c0_48 = arith.constant 0 : index
    %40 = vector.load %arg14[%c1_46, %c1_47, %c0_48] : memref<10x10x8xf32, #tpu.memory_space<vmem>>, vector<8x8x8xf32>
    %41 = vector.shape_cast %40 : vector<8x8x8xf32> to vector<64x8xf32>
    %42 = vector.extract_strided_slice %7 {offsets = [0, 4, 0, 0], sizes = [1, 1, 8, 8], strides = [1, 1, 1, 1]} : vector<2x9x8x8xf32> to vector<1x1x8x8xf32>
    %43 = vector.shape_cast %42 : vector<1x1x8x8xf32> to vector<8x8xf32>
    %cst_49 = arith.constant dense<0.000000e+00> : vector<64x8xf32>
    %44 = tpu.matmul %41, %43, %cst_49 {dimension_numbers = #tpu.dot_dimension_numbers<[1], [0], [0], [1], [0, 0, 1, 1], [], []>} : vector<64x8xf32>, vector<8x8xf32>, vector<64x8xf32> -> vector<64x8xf32>
    %45 = arith.addf %39, %44 : vector<64x8xf32>
    %c1_50 = arith.constant 1 : index
    %c2_51 = arith.constant 2 : index
    %c0_52 = arith.constant 0 : index
    %46 = vector.load %arg14[%c1_50, %c2_51, %c0_52] : memref<10x10x8xf32, #tpu.memory_space<vmem>>, vector<8x8x8xf32>
    %47 = vector.shape_cast %46 : vector<8x8x8xf32> to vector<64x8xf32>
    %48 = vector.extract_strided_slice %7 {offsets = [0, 5, 0, 0], sizes = [1, 1, 8, 8], strides = [1, 1, 1, 1]} : vector<2x9x8x8xf32> to vector<1x1x8x8xf32>
    %49 = vector.shape_cast %48 : vector<1x1x8x8xf32> to vector<8x8xf32>
    %cst_53 = arith.constant dense<0.000000e+00> : vector<64x8xf32>
    %50 = tpu.matmul %47, %49, %cst_53 {dimension_numbers = #tpu.dot_dimension_numbers<[1], [0], [0], [1], [0, 0, 1, 1], [], []>} : vector<64x8xf32>, vector<8x8xf32>, vector<64x8xf32> -> vector<64x8xf32>
    %51 = arith.addf %45, %50 : vector<64x8xf32>
    %c2_54 = arith.constant 2 : index
    %c0_55 = arith.constant 0 : index
    %c0_56 = arith.constant 0 : index
    %52 = vector.load %arg14[%c2_54, %c0_55, %c0_56] : memref<10x10x8xf32, #tpu.memory_space<vmem>>, vector<8x8x8xf32>
    %53 = vector.shape_cast %52 : vector<8x8x8xf32> to vector<64x8xf32>
    %54 = vector.extract_strided_slice %7 {offsets = [0, 6, 0, 0], sizes = [1, 1, 8, 8], strides = [1, 1, 1, 1]} : vector<2x9x8x8xf32> to vector<1x1x8x8xf32>
    %55 = vector.shape_cast %54 : vector<1x1x8x8xf32> to vector<8x8xf32>
    %cst_57 = arith.constant dense<0.000000e+00> : vector<64x8xf32>
    %56 = tpu.matmul %53, %55, %cst_57 {dimension_numbers = #tpu.dot_dimension_numbers<[1], [0], [0], [1], [0, 0, 1, 1], [], []>} : vector<64x8xf32>, vector<8x8xf32>, vector<64x8xf32> -> vector<64x8xf32>
    %57 = arith.addf %51, %56 : vector<64x8xf32>
    %c2_58 = arith.constant 2 : index
    %c1_59 = arith.constant 1 : index
    %c0_60 = arith.constant 0 : index
    %58 = vector.load %arg14[%c2_58, %c1_59, %c0_60] : memref<10x10x8xf32, #tpu.memory_space<vmem>>, vector<8x8x8xf32>
    %59 = vector.shape_cast %58 : vector<8x8x8xf32> to vector<64x8xf32>
    %60 = vector.extract_strided_slice %7 {offsets = [0, 7, 0, 0], sizes = [1, 1, 8, 8], strides = [1, 1, 1, 1]} : vector<2x9x8x8xf32> to vector<1x1x8x8xf32>
    %61 = vector.shape_cast %60 : vector<1x1x8x8xf32> to vector<8x8xf32>
    %cst_61 = arith.constant dense<0.000000e+00> : vector<64x8xf32>
    %62 = tpu.matmul %59, %61, %cst_61 {dimension_numbers = #tpu.dot_dimension_numbers<[1], [0], [0], [1], [0, 0, 1, 1], [], []>} : vector<64x8xf32>, vector<8x8xf32>, vector<64x8xf32> -> vector<64x8xf32>
    %63 = arith.addf %57, %62 : vector<64x8xf32>
    %c2_62 = arith.constant 2 : index
    %c2_63 = arith.constant 2 : index
    %c0_64 = arith.constant 0 : index
    %64 = vector.load %arg14[%c2_62, %c2_63, %c0_64] : memref<10x10x8xf32, #tpu.memory_space<vmem>>, vector<8x8x8xf32>
    %65 = vector.shape_cast %64 : vector<8x8x8xf32> to vector<64x8xf32>
    %66 = vector.extract_strided_slice %7 {offsets = [0, 8, 0, 0], sizes = [1, 1, 8, 8], strides = [1, 1, 1, 1]} : vector<2x9x8x8xf32> to vector<1x1x8x8xf32>
    %67 = vector.shape_cast %66 : vector<1x1x8x8xf32> to vector<8x8xf32>
    %cst_65 = arith.constant dense<0.000000e+00> : vector<64x8xf32>
    %68 = tpu.matmul %65, %67, %cst_65 {dimension_numbers = #tpu.dot_dimension_numbers<[1], [0], [0], [1], [0, 0, 1, 1], [], []>} : vector<64x8xf32>, vector<8x8xf32>, vector<64x8xf32> -> vector<64x8xf32>
    %69 = arith.addf %63, %68 : vector<64x8xf32>
    %c0_66 = arith.constant 0 : index
    %c0_67 = arith.constant 0 : index
    %c0_68 = arith.constant 0 : index
    %70 = vector.load %arg6[%c0_66, %c0_67, %c0_68] : memref<6x1x8xf32, #tpu.memory_space<vmem>>, vector<1x1x8xf32>
    %71 = vector.shape_cast %70 : vector<1x1x8xf32> to vector<1x8xf32>
    %72 = vector.broadcast %71 : vector<1x8xf32> to vector<64x8xf32>
    %73 = arith.addf %69, %72 : vector<64x8xf32>
    %c1_69 = arith.constant 1 : index
    %c0_70 = arith.constant 0 : index
    %c0_71 = arith.constant 0 : index
    %74 = vector.load %arg6[%c1_69, %c0_70, %c0_71] : memref<6x1x8xf32, #tpu.memory_space<vmem>>, vector<1x1x8xf32>
    %75 = vector.shape_cast %74 : vector<1x1x8xf32> to vector<1x8xf32>
    %c2_72 = arith.constant 2 : index
    %c0_73 = arith.constant 0 : index
    %c0_74 = arith.constant 0 : index
    %76 = vector.load %arg6[%c2_72, %c0_73, %c0_74] : memref<6x1x8xf32, #tpu.memory_space<vmem>>, vector<1x1x8xf32>
    %77 = vector.shape_cast %76 : vector<1x1x8xf32> to vector<1x8xf32>
    %cst_75 = arith.constant dense<0.000000e+00> : vector<8xf32>
    %78 = vector.multi_reduction <add>, %73, %cst_75 [0] : vector<64x8xf32> to vector<8xf32>
    %79 = vector.shape_cast %78 : vector<8xf32> to vector<1x8xf32>
    %cst_76 = arith.constant dense<0.000000e+00> : vector<1x8xf32>
    %80 = tpu.matmul %79, %10, %cst_76 {dimension_numbers = #tpu.dot_dimension_numbers<[1], [0], [0], [1], [0, 0, 1, 1], [], []>} : vector<1x8xf32>, vector<8x8xf32>, vector<1x8xf32> -> vector<1x8xf32>
    %cst_77 = arith.constant 6.400000e+01 : f32
    %81 = vector.broadcast %cst_77 : f32 to vector<1x8xf32>
    %82 = arith.divf %80, %81 : vector<1x8xf32>
    %cst_78 = arith.constant dense<0.000000e+00> : vector<1x8xf32>
    %83 = tpu.matmul %82, %11, %cst_78 {dimension_numbers = #tpu.dot_dimension_numbers<[1], [0], [0], [1], [0, 0, 1, 1], [], []>} : vector<1x8xf32>, vector<8x8xf32>, vector<1x8xf32> -> vector<1x8xf32>
    %84 = vector.broadcast %83 : vector<1x8xf32> to vector<64x8xf32>
    %85 = arith.subf %73, %84 : vector<64x8xf32>
    %86 = arith.mulf %85, %85 : vector<64x8xf32>
    %cst_79 = arith.constant dense<0.000000e+00> : vector<8xf32>
    %87 = vector.multi_reduction <add>, %86, %cst_79 [0] : vector<64x8xf32> to vector<8xf32>
    %88 = vector.shape_cast %87 : vector<8xf32> to vector<1x8xf32>
    %cst_80 = arith.constant dense<0.000000e+00> : vector<1x8xf32>
    %89 = tpu.matmul %88, %10, %cst_80 {dimension_numbers = #tpu.dot_dimension_numbers<[1], [0], [0], [1], [0, 0, 1, 1], [], []>} : vector<1x8xf32>, vector<8x8xf32>, vector<1x8xf32> -> vector<1x8xf32>
    %cst_81 = arith.constant 6.400000e+01 : f32
    %90 = vector.broadcast %cst_81 : f32 to vector<1x8xf32>
    %91 = arith.divf %89, %90 : vector<1x8xf32>
    %cst_82 = arith.constant 9.99999974E-6 : f32
    %92 = vector.broadcast %cst_82 : f32 to vector<1x8xf32>
    %93 = arith.addf %91, %92 : vector<1x8xf32>
    %94 = math.rsqrt %93 : vector<1x8xf32>
    %cst_83 = arith.constant dense<0.000000e+00> : vector<1x8xf32>
    %95 = tpu.matmul %94, %11, %cst_83 {dimension_numbers = #tpu.dot_dimension_numbers<[1], [0], [0], [1], [0, 0, 1, 1], [], []>} : vector<1x8xf32>, vector<8x8xf32>, vector<1x8xf32> -> vector<1x8xf32>
    %96 = vector.broadcast %95 : vector<1x8xf32> to vector<64x8xf32>
    %97 = arith.mulf %85, %96 : vector<64x8xf32>
    %98 = vector.broadcast %75 : vector<1x8xf32> to vector<64x8xf32>
    %99 = arith.mulf %97, %98 : vector<64x8xf32>
    %100 = vector.broadcast %77 : vector<1x8xf32> to vector<64x8xf32>
    %101 = arith.addf %99, %100 : vector<64x8xf32>
    %102 = arith.negf %101 : vector<64x8xf32>
    %103 = math.exp %102 : vector<64x8xf32>
    %cst_84 = arith.constant 1.000000e+00 : f32
    %104 = vector.broadcast %cst_84 : f32 to vector<64x8xf32>
    %105 = arith.addf %104, %103 : vector<64x8xf32>
    %106 = arith.divf %104, %105 : vector<64x8xf32>
    %107 = arith.mulf %101, %106 : vector<64x8xf32>
    %108 = vector.shape_cast %107 : vector<64x8xf32> to vector<8x8x8xf32>
    %c1_85 = arith.constant 1 : index
    %c1_86 = arith.constant 1 : index
    %c0_87 = arith.constant 0 : index
    %109 = vector.load %arg14[%c1_85, %c1_86, %c0_87] : memref<10x10x8xf32, #tpu.memory_space<vmem>>, vector<8x8x8xf32>
    tpu.vector_store %arg14[%c1_85, %c1_86, %c0_87], %108 {strides = array<i32>} : memref<10x10x8xf32, #tpu.memory_space<vmem>>, vector<8x8x8xf32>,
    %cst_88 = arith.constant 0.000000e+00 : f32
    %110 = vector.broadcast %cst_88 : f32 to vector<64x8xf32>
    %c0_89 = arith.constant 0 : index
    %c0_90 = arith.constant 0 : index
    %c0_91 = arith.constant 0 : index
    %111 = vector.load %arg14[%c0_89, %c0_90, %c0_91] : memref<10x10x8xf32, #tpu.memory_space<vmem>>, vector<8x8x8xf32>
    %112 = vector.shape_cast %111 : vector<8x8x8xf32> to vector<64x8xf32>
    %113 = vector.extract_strided_slice %7 {offsets = [1, 0, 0, 0], sizes = [1, 1, 8, 8], strides = [1, 1, 1, 1]} : vector<2x9x8x8xf32> to vector<1x1x8x8xf32>
    %114 = vector.shape_cast %113 : vector<1x1x8x8xf32> to vector<8x8xf32>
    %cst_92 = arith.constant dense<0.000000e+00> : vector<64x8xf32>
    %115 = tpu.matmul %112, %114, %cst_92 {dimension_numbers = #tpu.dot_dimension_numbers<[1], [0], [0], [1], [0, 0, 1, 1], [], []>} : vector<64x8xf32>, vector<8x8xf32>, vector<64x8xf32> -> vector<64x8xf32>
    %116 = arith.addf %110, %115 : vector<64x8xf32>
    %c0_93 = arith.constant 0 : index
    %c1_94 = arith.constant 1 : index
    %c0_95 = arith.constant 0 : index
    %117 = vector.load %arg14[%c0_93, %c1_94, %c0_95] : memref<10x10x8xf32, #tpu.memory_space<vmem>>, vector<8x8x8xf32>
    %118 = vector.shape_cast %117 : vector<8x8x8xf32> to vector<64x8xf32>
    %119 = vector.extract_strided_slice %7 {offsets = [1, 1, 0, 0], sizes = [1, 1, 8, 8], strides = [1, 1, 1, 1]} : vector<2x9x8x8xf32> to vector<1x1x8x8xf32>
    %120 = vector.shape_cast %119 : vector<1x1x8x8xf32> to vector<8x8xf32>
    %cst_96 = arith.constant dense<0.000000e+00> : vector<64x8xf32>
    %121 = tpu.matmul %118, %120, %cst_96 {dimension_numbers = #tpu.dot_dimension_numbers<[1], [0], [0], [1], [0, 0, 1, 1], [], []>} : vector<64x8xf32>, vector<8x8xf32>, vector<64x8xf32> -> vector<64x8xf32>
    %122 = arith.addf %116, %121 : vector<64x8xf32>
    %c0_97 = arith.constant 0 : index
    %c2_98 = arith.constant 2 : index
    %c0_99 = arith.constant 0 : index
    %123 = vector.load %arg14[%c0_97, %c2_98, %c0_99] : memref<10x10x8xf32, #tpu.memory_space<vmem>>, vector<8x8x8xf32>
    %124 = vector.shape_cast %123 : vector<8x8x8xf32> to vector<64x8xf32>
    %125 = vector.extract_strided_slice %7 {offsets = [1, 2, 0, 0], sizes = [1, 1, 8, 8], strides = [1, 1, 1, 1]} : vector<2x9x8x8xf32> to vector<1x1x8x8xf32>
    %126 = vector.shape_cast %125 : vector<1x1x8x8xf32> to vector<8x8xf32>
    %cst_100 = arith.constant dense<0.000000e+00> : vector<64x8xf32>
    %127 = tpu.matmul %124, %126, %cst_100 {dimension_numbers = #tpu.dot_dimension_numbers<[1], [0], [0], [1], [0, 0, 1, 1], [], []>} : vector<64x8xf32>, vector<8x8xf32>, vector<64x8xf32> -> vector<64x8xf32>
    %128 = arith.addf %122, %127 : vector<64x8xf32>
    %c1_101 = arith.constant 1 : index
    %c0_102 = arith.constant 0 : index
    %c0_103 = arith.constant 0 : index
    %129 = vector.load %arg14[%c1_101, %c0_102, %c0_103] : memref<10x10x8xf32, #tpu.memory_space<vmem>>, vector<8x8x8xf32>
    %130 = vector.shape_cast %129 : vector<8x8x8xf32> to vector<64x8xf32>
    %131 = vector.extract_strided_slice %7 {offsets = [1, 3, 0, 0], sizes = [1, 1, 8, 8], strides = [1, 1, 1, 1]} : vector<2x9x8x8xf32> to vector<1x1x8x8xf32>
    %132 = vector.shape_cast %131 : vector<1x1x8x8xf32> to vector<8x8xf32>
    %cst_104 = arith.constant dense<0.000000e+00> : vector<64x8xf32>
    %133 = tpu.matmul %130, %132, %cst_104 {dimension_numbers = #tpu.dot_dimension_numbers<[1], [0], [0], [1], [0, 0, 1, 1], [], []>} : vector<64x8xf32>, vector<8x8xf32>, vector<64x8xf32> -> vector<64x8xf32>
    %134 = arith.addf %128, %133 : vector<64x8xf32>
    %c1_105 = arith.constant 1 : index
    %c1_106 = arith.constant 1 : index
    %c0_107 = arith.constant 0 : index
    %135 = vector.load %arg14[%c1_105, %c1_106, %c0_107] : memref<10x10x8xf32, #tpu.memory_space<vmem>>, vector<8x8x8xf32>
    %136 = vector.shape_cast %135 : vector<8x8x8xf32> to vector<64x8xf32>
    %137 = vector.extract_strided_slice %7 {offsets = [1, 4, 0, 0], sizes = [1, 1, 8, 8], strides = [1, 1, 1, 1]} : vector<2x9x8x8xf32> to vector<1x1x8x8xf32>
    %138 = vector.shape_cast %137 : vector<1x1x8x8xf32> to vector<8x8xf32>
    %cst_108 = arith.constant dense<0.000000e+00> : vector<64x8xf32>
    %139 = tpu.matmul %136, %138, %cst_108 {dimension_numbers = #tpu.dot_dimension_numbers<[1], [0], [0], [1], [0, 0, 1, 1], [], []>} : vector<64x8xf32>, vector<8x8xf32>, vector<64x8xf32> -> vector<64x8xf32>
    %140 = arith.addf %134, %139 : vector<64x8xf32>
    %c1_109 = arith.constant 1 : index
    %c2_110 = arith.constant 2 : index
    %c0_111 = arith.constant 0 : index
    %141 = vector.load %arg14[%c1_109, %c2_110, %c0_111] : memref<10x10x8xf32, #tpu.memory_space<vmem>>, vector<8x8x8xf32>
    %142 = vector.shape_cast %141 : vector<8x8x8xf32> to vector<64x8xf32>
    %143 = vector.extract_strided_slice %7 {offsets = [1, 5, 0, 0], sizes = [1, 1, 8, 8], strides = [1, 1, 1, 1]} : vector<2x9x8x8xf32> to vector<1x1x8x8xf32>
    %144 = vector.shape_cast %143 : vector<1x1x8x8xf32> to vector<8x8xf32>
    %cst_112 = arith.constant dense<0.000000e+00> : vector<64x8xf32>
    %145 = tpu.matmul %142, %144, %cst_112 {dimension_numbers = #tpu.dot_dimension_numbers<[1], [0], [0], [1], [0, 0, 1, 1], [], []>} : vector<64x8xf32>, vector<8x8xf32>, vector<64x8xf32> -> vector<64x8xf32>
    %146 = arith.addf %140, %145 : vector<64x8xf32>
    %c2_113 = arith.constant 2 : index
    %c0_114 = arith.constant 0 : index
    %c0_115 = arith.constant 0 : index
    %147 = vector.load %arg14[%c2_113, %c0_114, %c0_115] : memref<10x10x8xf32, #tpu.memory_space<vmem>>, vector<8x8x8xf32>
    %148 = vector.shape_cast %147 : vector<8x8x8xf32> to vector<64x8xf32>
    %149 = vector.extract_strided_slice %7 {offsets = [1, 6, 0, 0], sizes = [1, 1, 8, 8], strides = [1, 1, 1, 1]} : vector<2x9x8x8xf32> to vector<1x1x8x8xf32>
    %150 = vector.shape_cast %149 : vector<1x1x8x8xf32> to vector<8x8xf32>
    %cst_116 = arith.constant dense<0.000000e+00> : vector<64x8xf32>
    %151 = tpu.matmul %148, %150, %cst_116 {dimension_numbers = #tpu.dot_dimension_numbers<[1], [0], [0], [1], [0, 0, 1, 1], [], []>} : vector<64x8xf32>, vector<8x8xf32>, vector<64x8xf32> -> vector<64x8xf32>
    %152 = arith.addf %146, %151 : vector<64x8xf32>
    %c2_117 = arith.constant 2 : index
    %c1_118 = arith.constant 1 : index
    %c0_119 = arith.constant 0 : index
    %153 = vector.load %arg14[%c2_117, %c1_118, %c0_119] : memref<10x10x8xf32, #tpu.memory_space<vmem>>, vector<8x8x8xf32>
    %154 = vector.shape_cast %153 : vector<8x8x8xf32> to vector<64x8xf32>
    %155 = vector.extract_strided_slice %7 {offsets = [1, 7, 0, 0], sizes = [1, 1, 8, 8], strides = [1, 1, 1, 1]} : vector<2x9x8x8xf32> to vector<1x1x8x8xf32>
    %156 = vector.shape_cast %155 : vector<1x1x8x8xf32> to vector<8x8xf32>
    %cst_120 = arith.constant dense<0.000000e+00> : vector<64x8xf32>
    %157 = tpu.matmul %154, %156, %cst_120 {dimension_numbers = #tpu.dot_dimension_numbers<[1], [0], [0], [1], [0, 0, 1, 1], [], []>} : vector<64x8xf32>, vector<8x8xf32>, vector<64x8xf32> -> vector<64x8xf32>
    %158 = arith.addf %152, %157 : vector<64x8xf32>
    %c2_121 = arith.constant 2 : index
    %c2_122 = arith.constant 2 : index
    %c0_123 = arith.constant 0 : index
    %159 = vector.load %arg14[%c2_121, %c2_122, %c0_123] : memref<10x10x8xf32, #tpu.memory_space<vmem>>, vector<8x8x8xf32>
    %160 = vector.shape_cast %159 : vector<8x8x8xf32> to vector<64x8xf32>
    %161 = vector.extract_strided_slice %7 {offsets = [1, 8, 0, 0], sizes = [1, 1, 8, 8], strides = [1, 1, 1, 1]} : vector<2x9x8x8xf32> to vector<1x1x8x8xf32>
    %162 = vector.shape_cast %161 : vector<1x1x8x8xf32> to vector<8x8xf32>
    %cst_124 = arith.constant dense<0.000000e+00> : vector<64x8xf32>
    %163 = tpu.matmul %160, %162, %cst_124 {dimension_numbers = #tpu.dot_dimension_numbers<[1], [0], [0], [1], [0, 0, 1, 1], [], []>} : vector<64x8xf32>, vector<8x8xf32>, vector<64x8xf32> -> vector<64x8xf32>
    %164 = arith.addf %158, %163 : vector<64x8xf32>
    %c3 = arith.constant 3 : index
    %c0_125 = arith.constant 0 : index
    %c0_126 = arith.constant 0 : index
    %165 = vector.load %arg6[%c3, %c0_125, %c0_126] : memref<6x1x8xf32, #tpu.memory_space<vmem>>, vector<1x1x8xf32>
    %166 = vector.shape_cast %165 : vector<1x1x8xf32> to vector<1x8xf32>
    %167 = vector.broadcast %166 : vector<1x8xf32> to vector<64x8xf32>
    %168 = arith.addf %164, %167 : vector<64x8xf32>
    %c4 = arith.constant 4 : index
    %c0_127 = arith.constant 0 : index
    %c0_128 = arith.constant 0 : index
    %169 = vector.load %arg6[%c4, %c0_127, %c0_128] : memref<6x1x8xf32, #tpu.memory_space<vmem>>, vector<1x1x8xf32>
    %170 = vector.shape_cast %169 : vector<1x1x8xf32> to vector<1x8xf32>
    %c5 = arith.constant 5 : index
    %c0_129 = arith.constant 0 : index
    %c0_130 = arith.constant 0 : index
    %171 = vector.load %arg6[%c5, %c0_129, %c0_130] : memref<6x1x8xf32, #tpu.memory_space<vmem>>, vector<1x1x8xf32>
    %172 = vector.shape_cast %171 : vector<1x1x8xf32> to vector<1x8xf32>
    %cst_131 = arith.constant dense<0.000000e+00> : vector<8xf32>
    %173 = vector.multi_reduction <add>, %168, %cst_131 [0] : vector<64x8xf32> to vector<8xf32>
    %174 = vector.shape_cast %173 : vector<8xf32> to vector<1x8xf32>
    %cst_132 = arith.constant dense<0.000000e+00> : vector<1x8xf32>
    %175 = tpu.matmul %174, %10, %cst_132 {dimension_numbers = #tpu.dot_dimension_numbers<[1], [0], [0], [1], [0, 0, 1, 1], [], []>} : vector<1x8xf32>, vector<8x8xf32>, vector<1x8xf32> -> vector<1x8xf32>
    %cst_133 = arith.constant 6.400000e+01 : f32
    %176 = vector.broadcast %cst_133 : f32 to vector<1x8xf32>
    %177 = arith.divf %175, %176 : vector<1x8xf32>
    %cst_134 = arith.constant dense<0.000000e+00> : vector<1x8xf32>
    %178 = tpu.matmul %177, %11, %cst_134 {dimension_numbers = #tpu.dot_dimension_numbers<[1], [0], [0], [1], [0, 0, 1, 1], [], []>} : vector<1x8xf32>, vector<8x8xf32>, vector<1x8xf32> -> vector<1x8xf32>
    %179 = vector.broadcast %178 : vector<1x8xf32> to vector<64x8xf32>
    %180 = arith.subf %168, %179 : vector<64x8xf32>
    %181 = arith.mulf %180, %180 : vector<64x8xf32>
    %cst_135 = arith.constant dense<0.000000e+00> : vector<8xf32>
    %182 = vector.multi_reduction <add>, %181, %cst_135 [0] : vector<64x8xf32> to vector<8xf32>
    %183 = vector.shape_cast %182 : vector<8xf32> to vector<1x8xf32>
    %cst_136 = arith.constant dense<0.000000e+00> : vector<1x8xf32>
    %184 = tpu.matmul %183, %10, %cst_136 {dimension_numbers = #tpu.dot_dimension_numbers<[1], [0], [0], [1], [0, 0, 1, 1], [], []>} : vector<1x8xf32>, vector<8x8xf32>, vector<1x8xf32> -> vector<1x8xf32>
    %cst_137 = arith.constant 6.400000e+01 : f32
    %185 = vector.broadcast %cst_137 : f32 to vector<1x8xf32>
    %186 = arith.divf %184, %185 : vector<1x8xf32>
    %cst_138 = arith.constant 9.99999974E-6 : f32
    %187 = vector.broadcast %cst_138 : f32 to vector<1x8xf32>
    %188 = arith.addf %186, %187 : vector<1x8xf32>
    %189 = math.rsqrt %188 : vector<1x8xf32>
    %cst_139 = arith.constant dense<0.000000e+00> : vector<1x8xf32>
    %190 = tpu.matmul %189, %11, %cst_139 {dimension_numbers = #tpu.dot_dimension_numbers<[1], [0], [0], [1], [0, 0, 1, 1], [], []>} : vector<1x8xf32>, vector<8x8xf32>, vector<1x8xf32> -> vector<1x8xf32>
    %191 = vector.broadcast %190 : vector<1x8xf32> to vector<64x8xf32>
    %192 = arith.mulf %180, %191 : vector<64x8xf32>
    %193 = vector.broadcast %170 : vector<1x8xf32> to vector<64x8xf32>
    %194 = arith.mulf %192, %193 : vector<64x8xf32>
    %195 = vector.broadcast %172 : vector<1x8xf32> to vector<64x8xf32>
    %196 = arith.addf %194, %195 : vector<64x8xf32>
    %197 = arith.addf %6, %196 : vector<64x8xf32>
    %198 = vector.shape_cast %197 : vector<64x8xf32> to vector<8x8x8xf32>
    %c1_140 = arith.constant 1 : index
    %c1_141 = arith.constant 1 : index
    %c0_142 = arith.constant 0 : index
    %199 = vector.load %arg14[%c1_140, %c1_141, %c0_142] : memref<10x10x8xf32, #tpu.memory_space<vmem>>, vector<8x8x8xf32>
    tpu.vector_store %arg14[%c1_140, %c1_141, %c0_142], %198 {strides = array<i32>} : memref<10x10x8xf32, #tpu.memory_space<vmem>>, vector<8x8x8xf32>,
    %cst_143 = arith.constant 0.000000e+00 : f32
    %200 = vector.broadcast %cst_143 : f32 to vector<64x16xf32>
    %c0_144 = arith.constant 0 : index
    %c0_145 = arith.constant 0 : index
    %c0_146 = arith.constant 0 : index
    %201 = vector.load %arg14[%c0_144, %c0_145, %c0_146] : memref<10x10x8xf32, #tpu.memory_space<vmem>>, vector<8x8x8xf32>
    %202 = vector.shape_cast %201 : vector<8x8x8xf32> to vector<64x8xf32>
    %203 = vector.extract_strided_slice %8 {offsets = [0, 0, 0], sizes = [1, 8, 16], strides = [1, 1, 1]} : vector<9x8x16xf32> to vector<1x8x16xf32>
    %204 = vector.shape_cast %203 : vector<1x8x16xf32> to vector<8x16xf32>
    %cst_147 = arith.constant dense<0.000000e+00> : vector<64x16xf32>
    %205 = tpu.matmul %202, %204, %cst_147 {dimension_numbers = #tpu.dot_dimension_numbers<[1], [0], [0], [1], [0, 0, 1, 1], [], []>} : vector<64x8xf32>, vector<8x16xf32>, vector<64x16xf32> -> vector<64x16xf32>
    %206 = arith.addf %200, %205 : vector<64x16xf32>
    %c0_148 = arith.constant 0 : index
    %c1_149 = arith.constant 1 : index
    %c0_150 = arith.constant 0 : index
    %207 = vector.load %arg14[%c0_148, %c1_149, %c0_150] : memref<10x10x8xf32, #tpu.memory_space<vmem>>, vector<8x8x8xf32>
    %208 = vector.shape_cast %207 : vector<8x8x8xf32> to vector<64x8xf32>
    %209 = vector.extract_strided_slice %8 {offsets = [1, 0, 0], sizes = [1, 8, 16], strides = [1, 1, 1]} : vector<9x8x16xf32> to vector<1x8x16xf32>
    %210 = vector.shape_cast %209 : vector<1x8x16xf32> to vector<8x16xf32>
    %cst_151 = arith.constant dense<0.000000e+00> : vector<64x16xf32>
    %211 = tpu.matmul %208, %210, %cst_151 {dimension_numbers = #tpu.dot_dimension_numbers<[1], [0], [0], [1], [0, 0, 1, 1], [], []>} : vector<64x8xf32>, vector<8x16xf32>, vector<64x16xf32> -> vector<64x16xf32>
    %212 = arith.addf %206, %211 : vector<64x16xf32>
    %c0_152 = arith.constant 0 : index
    %c2_153 = arith.constant 2 : index
    %c0_154 = arith.constant 0 : index
    %213 = vector.load %arg14[%c0_152, %c2_153, %c0_154] : memref<10x10x8xf32, #tpu.memory_space<vmem>>, vector<8x8x8xf32>
    %214 = vector.shape_cast %213 : vector<8x8x8xf32> to vector<64x8xf32>
    %215 = vector.extract_strided_slice %8 {offsets = [2, 0, 0], sizes = [1, 8, 16], strides = [1, 1, 1]} : vector<9x8x16xf32> to vector<1x8x16xf32>
    %216 = vector.shape_cast %215 : vector<1x8x16xf32> to vector<8x16xf32>
    %cst_155 = arith.constant dense<0.000000e+00> : vector<64x16xf32>
    %217 = tpu.matmul %214, %216, %cst_155 {dimension_numbers = #tpu.dot_dimension_numbers<[1], [0], [0], [1], [0, 0, 1, 1], [], []>} : vector<64x8xf32>, vector<8x16xf32>, vector<64x16xf32> -> vector<64x16xf32>
    %218 = arith.addf %212, %217 : vector<64x16xf32>
    %c1_156 = arith.constant 1 : index
    %c0_157 = arith.constant 0 : index
    %c0_158 = arith.constant 0 : index
    %219 = vector.load %arg14[%c1_156, %c0_157, %c0_158] : memref<10x10x8xf32, #tpu.memory_space<vmem>>, vector<8x8x8xf32>
    %220 = vector.shape_cast %219 : vector<8x8x8xf32> to vector<64x8xf32>
    %221 = vector.extract_strided_slice %8 {offsets = [3, 0, 0], sizes = [1, 8, 16], strides = [1, 1, 1]} : vector<9x8x16xf32> to vector<1x8x16xf32>
    %222 = vector.shape_cast %221 : vector<1x8x16xf32> to vector<8x16xf32>
    %cst_159 = arith.constant dense<0.000000e+00> : vector<64x16xf32>
    %223 = tpu.matmul %220, %222, %cst_159 {dimension_numbers = #tpu.dot_dimension_numbers<[1], [0], [0], [1], [0, 0, 1, 1], [], []>} : vector<64x8xf32>, vector<8x16xf32>, vector<64x16xf32> -> vector<64x16xf32>
    %224 = arith.addf %218, %223 : vector<64x16xf32>
    %c1_160 = arith.constant 1 : index
    %c1_161 = arith.constant 1 : index
    %c0_162 = arith.constant 0 : index
    %225 = vector.load %arg14[%c1_160, %c1_161, %c0_162] : memref<10x10x8xf32, #tpu.memory_space<vmem>>, vector<8x8x8xf32>
    %226 = vector.shape_cast %225 : vector<8x8x8xf32> to vector<64x8xf32>
    %227 = vector.extract_strided_slice %8 {offsets = [4, 0, 0], sizes = [1, 8, 16], strides = [1, 1, 1]} : vector<9x8x16xf32> to vector<1x8x16xf32>
    %228 = vector.shape_cast %227 : vector<1x8x16xf32> to vector<8x16xf32>
    %cst_163 = arith.constant dense<0.000000e+00> : vector<64x16xf32>
    %229 = tpu.matmul %226, %228, %cst_163 {dimension_numbers = #tpu.dot_dimension_numbers<[1], [0], [0], [1], [0, 0, 1, 1], [], []>} : vector<64x8xf32>, vector<8x16xf32>, vector<64x16xf32> -> vector<64x16xf32>
    %230 = arith.addf %224, %229 : vector<64x16xf32>
    %c1_164 = arith.constant 1 : index
    %c2_165 = arith.constant 2 : index
    %c0_166 = arith.constant 0 : index
    %231 = vector.load %arg14[%c1_164, %c2_165, %c0_166] : memref<10x10x8xf32, #tpu.memory_space<vmem>>, vector<8x8x8xf32>
    %232 = vector.shape_cast %231 : vector<8x8x8xf32> to vector<64x8xf32>
    %233 = vector.extract_strided_slice %8 {offsets = [5, 0, 0], sizes = [1, 8, 16], strides = [1, 1, 1]} : vector<9x8x16xf32> to vector<1x8x16xf32>
    %234 = vector.shape_cast %233 : vector<1x8x16xf32> to vector<8x16xf32>
    %cst_167 = arith.constant dense<0.000000e+00> : vector<64x16xf32>
    %235 = tpu.matmul %232, %234, %cst_167 {dimension_numbers = #tpu.dot_dimension_numbers<[1], [0], [0], [1], [0, 0, 1, 1], [], []>} : vector<64x8xf32>, vector<8x16xf32>, vector<64x16xf32> -> vector<64x16xf32>
    %236 = arith.addf %230, %235 : vector<64x16xf32>
    %c2_168 = arith.constant 2 : index
    %c0_169 = arith.constant 0 : index
    %c0_170 = arith.constant 0 : index
    %237 = vector.load %arg14[%c2_168, %c0_169, %c0_170] : memref<10x10x8xf32, #tpu.memory_space<vmem>>, vector<8x8x8xf32>
    %238 = vector.shape_cast %237 : vector<8x8x8xf32> to vector<64x8xf32>
    %239 = vector.extract_strided_slice %8 {offsets = [6, 0, 0], sizes = [1, 8, 16], strides = [1, 1, 1]} : vector<9x8x16xf32> to vector<1x8x16xf32>
    %240 = vector.shape_cast %239 : vector<1x8x16xf32> to vector<8x16xf32>
    %cst_171 = arith.constant dense<0.000000e+00> : vector<64x16xf32>
    %241 = tpu.matmul %238, %240, %cst_171 {dimension_numbers = #tpu.dot_dimension_numbers<[1], [0], [0], [1], [0, 0, 1, 1], [], []>} : vector<64x8xf32>, vector<8x16xf32>, vector<64x16xf32> -> vector<64x16xf32>
    %242 = arith.addf %236, %241 : vector<64x16xf32>
    %c2_172 = arith.constant 2 : index
    %c1_173 = arith.constant 1 : index
    %c0_174 = arith.constant 0 : index
    %243 = vector.load %arg14[%c2_172, %c1_173, %c0_174] : memref<10x10x8xf32, #tpu.memory_space<vmem>>, vector<8x8x8xf32>
    %244 = vector.shape_cast %243 : vector<8x8x8xf32> to vector<64x8xf32>
    %245 = vector.extract_strided_slice %8 {offsets = [7, 0, 0], sizes = [1, 8, 16], strides = [1, 1, 1]} : vector<9x8x16xf32> to vector<1x8x16xf32>
    %246 = vector.shape_cast %245 : vector<1x8x16xf32> to vector<8x16xf32>
    %cst_175 = arith.constant dense<0.000000e+00> : vector<64x16xf32>
    %247 = tpu.matmul %244, %246, %cst_175 {dimension_numbers = #tpu.dot_dimension_numbers<[1], [0], [0], [1], [0, 0, 1, 1], [], []>} : vector<64x8xf32>, vector<8x16xf32>, vector<64x16xf32> -> vector<64x16xf32>
    %248 = arith.addf %242, %247 : vector<64x16xf32>
    %c2_176 = arith.constant 2 : index
    %c2_177 = arith.constant 2 : index
    %c0_178 = arith.constant 0 : index
    %249 = vector.load %arg14[%c2_176, %c2_177, %c0_178] : memref<10x10x8xf32, #tpu.memory_space<vmem>>, vector<8x8x8xf32>
    %250 = vector.shape_cast %249 : vector<8x8x8xf32> to vector<64x8xf32>
    %251 = vector.extract_strided_slice %8 {offsets = [8, 0, 0], sizes = [1, 8, 16], strides = [1, 1, 1]} : vector<9x8x16xf32> to vector<1x8x16xf32>
    %252 = vector.shape_cast %251 : vector<1x8x16xf32> to vector<8x16xf32>
    %cst_179 = arith.constant dense<0.000000e+00> : vector<64x16xf32>
    %253 = tpu.matmul %250, %252, %cst_179 {dimension_numbers = #tpu.dot_dimension_numbers<[1], [0], [0], [1], [0, 0, 1, 1], [], []>} : vector<64x8xf32>, vector<8x16xf32>, vector<64x16xf32> -> vector<64x16xf32>
    %254 = arith.addf %248, %253 : vector<64x16xf32>
    %c0_180 = arith.constant 0 : index
    %c0_181 = arith.constant 0 : index
    %c0_182 = arith.constant 0 : index
    %255 = vector.load %arg7[%c0_180, %c0_181, %c0_182] : memref<7x1x16xf32, #tpu.memory_space<vmem>>, vector<1x1x16xf32>
    %256 = vector.shape_cast %255 : vector<1x1x16xf32> to vector<1x16xf32>
    %257 = vector.broadcast %256 : vector<1x16xf32> to vector<64x16xf32>
    %258 = arith.addf %254, %257 : vector<64x16xf32>
    %c1_183 = arith.constant 1 : index
    %c0_184 = arith.constant 0 : index
    %c0_185 = arith.constant 0 : index
    %259 = vector.load %arg7[%c1_183, %c0_184, %c0_185] : memref<7x1x16xf32, #tpu.memory_space<vmem>>, vector<1x1x16xf32>
    %260 = vector.shape_cast %259 : vector<1x1x16xf32> to vector<1x16xf32>
    %c2_186 = arith.constant 2 : index
    %c0_187 = arith.constant 0 : index
    %c0_188 = arith.constant 0 : index
    %261 = vector.load %arg7[%c2_186, %c0_187, %c0_188] : memref<7x1x16xf32, #tpu.memory_space<vmem>>, vector<1x1x16xf32>
    %262 = vector.shape_cast %261 : vector<1x1x16xf32> to vector<1x16xf32>
    %cst_189 = arith.constant dense<0.000000e+00> : vector<16xf32>
    %263 = vector.multi_reduction <add>, %258, %cst_189 [0] : vector<64x16xf32> to vector<16xf32>
    %264 = vector.shape_cast %263 : vector<16xf32> to vector<1x16xf32>
    %cst_190 = arith.constant dense<0.000000e+00> : vector<1x8xf32>
    %265 = tpu.matmul %264, %12, %cst_190 {dimension_numbers = #tpu.dot_dimension_numbers<[1], [0], [0], [1], [0, 0, 1, 1], [], []>} : vector<1x16xf32>, vector<16x8xf32>, vector<1x8xf32> -> vector<1x8xf32>
    %cst_191 = arith.constant 1.280000e+02 : f32
    %266 = vector.broadcast %cst_191 : f32 to vector<1x8xf32>
    %267 = arith.divf %265, %266 : vector<1x8xf32>
    %cst_192 = arith.constant dense<0.000000e+00> : vector<1x16xf32>
    %268 = tpu.matmul %267, %13, %cst_192 {dimension_numbers = #tpu.dot_dimension_numbers<[1], [0], [0], [1], [0, 0, 1, 1], [], []>} : vector<1x8xf32>, vector<8x16xf32>, vector<1x16xf32> -> vector<1x16xf32>
    %269 = vector.broadcast %268 : vector<1x16xf32> to vector<64x16xf32>
    %270 = arith.subf %258, %269 : vector<64x16xf32>
    %271 = arith.mulf %270, %270 : vector<64x16xf32>
    %cst_193 = arith.constant dense<0.000000e+00> : vector<16xf32>
    %272 = vector.multi_reduction <add>, %271, %cst_193 [0] : vector<64x16xf32> to vector<16xf32>
    %273 = vector.shape_cast %272 : vector<16xf32> to vector<1x16xf32>
    %cst_194 = arith.constant dense<0.000000e+00> : vector<1x8xf32>
    %274 = tpu.matmul %273, %12, %cst_194 {dimension_numbers = #tpu.dot_dimension_numbers<[1], [0], [0], [1], [0, 0, 1, 1], [], []>} : vector<1x16xf32>, vector<16x8xf32>, vector<1x8xf32> -> vector<1x8xf32>
    %cst_195 = arith.constant 1.280000e+02 : f32
    %275 = vector.broadcast %cst_195 : f32 to vector<1x8xf32>
    %276 = arith.divf %274, %275 : vector<1x8xf32>
    %cst_196 = arith.constant 9.99999974E-6 : f32
    %277 = vector.broadcast %cst_196 : f32 to vector<1x8xf32>
    %278 = arith.addf %276, %277 : vector<1x8xf32>
    %279 = math.rsqrt %278 : vector<1x8xf32>
    %cst_197 = arith.constant dense<0.000000e+00> : vector<1x16xf32>
    %280 = tpu.matmul %279, %13, %cst_197 {dimension_numbers = #tpu.dot_dimension_numbers<[1], [0], [0], [1], [0, 0, 1, 1], [], []>} : vector<1x8xf32>, vector<8x16xf32>, vector<1x16xf32> -> vector<1x16xf32>
    %281 = vector.broadcast %280 : vector<1x16xf32> to vector<64x16xf32>
    %282 = arith.mulf %270, %281 : vector<64x16xf32>
    %283 = vector.broadcast %260 : vector<1x16xf32> to vector<64x16xf32>
    %284 = arith.mulf %282, %283 : vector<64x16xf32>
    %285 = vector.broadcast %262 : vector<1x16xf32> to vector<64x16xf32>
    %286 = arith.addf %284, %285 : vector<64x16xf32>
    %287 = arith.negf %286 : vector<64x16xf32>
    %288 = math.exp %287 : vector<64x16xf32>
    %cst_198 = arith.constant 1.000000e+00 : f32
    %289 = vector.broadcast %cst_198 : f32 to vector<64x16xf32>
    %290 = arith.addf %289, %288 : vector<64x16xf32>
    %291 = arith.divf %289, %290 : vector<64x16xf32>
    %292 = arith.mulf %286, %291 : vector<64x16xf32>
    %293 = vector.shape_cast %292 : vector<64x16xf32> to vector<8x8x16xf32>
    %c1_199 = arith.constant 1 : index
    %c1_200 = arith.constant 1 : index
    %c0_201 = arith.constant 0 : index
    %294 = vector.load %arg15[%c1_199, %c1_200, %c0_201] : memref<10x10x16xf32, #tpu.memory_space<vmem>>, vector<8x8x16xf32>
    tpu.vector_store %arg15[%c1_199, %c1_200, %c0_201], %293 {strides = array<i32>} : memref<10x10x16xf32, #tpu.memory_space<vmem>>, vector<8x8x16xf32>,
    %cst_202 = arith.constant 0.000000e+00 : f32
    %295 = vector.broadcast %cst_202 : f32 to vector<64x16xf32>
    %c0_203 = arith.constant 0 : index
    %c0_204 = arith.constant 0 : index
    %c0_205 = arith.constant 0 : index
    %296 = vector.load %arg15[%c0_203, %c0_204, %c0_205] : memref<10x10x16xf32, #tpu.memory_space<vmem>>, vector<8x8x16xf32>
    %297 = vector.shape_cast %296 : vector<8x8x16xf32> to vector<64x16xf32>
    %298 = vector.extract_strided_slice %9 {offsets = [0, 0, 0], sizes = [1, 16, 16], strides = [1, 1, 1]} : vector<9x16x16xf32> to vector<1x16x16xf32>
    %299 = vector.shape_cast %298 : vector<1x16x16xf32> to vector<16x16xf32>
    %cst_206 = arith.constant dense<0.000000e+00> : vector<64x16xf32>
    %300 = tpu.matmul %297, %299, %cst_206 {dimension_numbers = #tpu.dot_dimension_numbers<[1], [0], [0], [1], [0, 0, 1, 1], [], []>} : vector<64x16xf32>, vector<16x16xf32>, vector<64x16xf32> -> vector<64x16xf32>
    %301 = arith.addf %295, %300 : vector<64x16xf32>
    %c0_207 = arith.constant 0 : index
    %c1_208 = arith.constant 1 : index
    %c0_209 = arith.constant 0 : index
    %302 = vector.load %arg15[%c0_207, %c1_208, %c0_209] : memref<10x10x16xf32, #tpu.memory_space<vmem>>, vector<8x8x16xf32>
    %303 = vector.shape_cast %302 : vector<8x8x16xf32> to vector<64x16xf32>
    %304 = vector.extract_strided_slice %9 {offsets = [1, 0, 0], sizes = [1, 16, 16], strides = [1, 1, 1]} : vector<9x16x16xf32> to vector<1x16x16xf32>
    %305 = vector.shape_cast %304 : vector<1x16x16xf32> to vector<16x16xf32>
    %cst_210 = arith.constant dense<0.000000e+00> : vector<64x16xf32>
    %306 = tpu.matmul %303, %305, %cst_210 {dimension_numbers = #tpu.dot_dimension_numbers<[1], [0], [0], [1], [0, 0, 1, 1], [], []>} : vector<64x16xf32>, vector<16x16xf32>, vector<64x16xf32> -> vector<64x16xf32>
    %307 = arith.addf %301, %306 : vector<64x16xf32>
    %c0_211 = arith.constant 0 : index
    %c2_212 = arith.constant 2 : index
    %c0_213 = arith.constant 0 : index
    %308 = vector.load %arg15[%c0_211, %c2_212, %c0_213] : memref<10x10x16xf32, #tpu.memory_space<vmem>>, vector<8x8x16xf32>
    %309 = vector.shape_cast %308 : vector<8x8x16xf32> to vector<64x16xf32>
    %310 = vector.extract_strided_slice %9 {offsets = [2, 0, 0], sizes = [1, 16, 16], strides = [1, 1, 1]} : vector<9x16x16xf32> to vector<1x16x16xf32>
    %311 = vector.shape_cast %310 : vector<1x16x16xf32> to vector<16x16xf32>
    %cst_214 = arith.constant dense<0.000000e+00> : vector<64x16xf32>
    %312 = tpu.matmul %309, %311, %cst_214 {dimension_numbers = #tpu.dot_dimension_numbers<[1], [0], [0], [1], [0, 0, 1, 1], [], []>} : vector<64x16xf32>, vector<16x16xf32>, vector<64x16xf32> -> vector<64x16xf32>
    %313 = arith.addf %307, %312 : vector<64x16xf32>
    %c1_215 = arith.constant 1 : index
    %c0_216 = arith.constant 0 : index
    %c0_217 = arith.constant 0 : index
    %314 = vector.load %arg15[%c1_215, %c0_216, %c0_217] : memref<10x10x16xf32, #tpu.memory_space<vmem>>, vector<8x8x16xf32>
    %315 = vector.shape_cast %314 : vector<8x8x16xf32> to vector<64x16xf32>
    %316 = vector.extract_strided_slice %9 {offsets = [3, 0, 0], sizes = [1, 16, 16], strides = [1, 1, 1]} : vector<9x16x16xf32> to vector<1x16x16xf32>
    %317 = vector.shape_cast %316 : vector<1x16x16xf32> to vector<16x16xf32>
    %cst_218 = arith.constant dense<0.000000e+00> : vector<64x16xf32>
    %318 = tpu.matmul %315, %317, %cst_218 {dimension_numbers = #tpu.dot_dimension_numbers<[1], [0], [0], [1], [0, 0, 1, 1], [], []>} : vector<64x16xf32>, vector<16x16xf32>, vector<64x16xf32> -> vector<64x16xf32>
    %319 = arith.addf %313, %318 : vector<64x16xf32>
    %c1_219 = arith.constant 1 : index
    %c1_220 = arith.constant 1 : index
    %c0_221 = arith.constant 0 : index
    %320 = vector.load %arg15[%c1_219, %c1_220, %c0_221] : memref<10x10x16xf32, #tpu.memory_space<vmem>>, vector<8x8x16xf32>
    %321 = vector.shape_cast %320 : vector<8x8x16xf32> to vector<64x16xf32>
    %322 = vector.extract_strided_slice %9 {offsets = [4, 0, 0], sizes = [1, 16, 16], strides = [1, 1, 1]} : vector<9x16x16xf32> to vector<1x16x16xf32>
    %323 = vector.shape_cast %322 : vector<1x16x16xf32> to vector<16x16xf32>
    %cst_222 = arith.constant dense<0.000000e+00> : vector<64x16xf32>
    %324 = tpu.matmul %321, %323, %cst_222 {dimension_numbers = #tpu.dot_dimension_numbers<[1], [0], [0], [1], [0, 0, 1, 1], [], []>} : vector<64x16xf32>, vector<16x16xf32>, vector<64x16xf32> -> vector<64x16xf32>
    %325 = arith.addf %319, %324 : vector<64x16xf32>
    %c1_223 = arith.constant 1 : index
    %c2_224 = arith.constant 2 : index
    %c0_225 = arith.constant 0 : index
    %326 = vector.load %arg15[%c1_223, %c2_224, %c0_225] : memref<10x10x16xf32, #tpu.memory_space<vmem>>, vector<8x8x16xf32>
    %327 = vector.shape_cast %326 : vector<8x8x16xf32> to vector<64x16xf32>
    %328 = vector.extract_strided_slice %9 {offsets = [5, 0, 0], sizes = [1, 16, 16], strides = [1, 1, 1]} : vector<9x16x16xf32> to vector<1x16x16xf32>
    %329 = vector.shape_cast %328 : vector<1x16x16xf32> to vector<16x16xf32>
    %cst_226 = arith.constant dense<0.000000e+00> : vector<64x16xf32>
    %330 = tpu.matmul %327, %329, %cst_226 {dimension_numbers = #tpu.dot_dimension_numbers<[1], [0], [0], [1], [0, 0, 1, 1], [], []>} : vector<64x16xf32>, vector<16x16xf32>, vector<64x16xf32> -> vector<64x16xf32>
    %331 = arith.addf %325, %330 : vector<64x16xf32>
    %c2_227 = arith.constant 2 : index
    %c0_228 = arith.constant 0 : index
    %c0_229 = arith.constant 0 : index
    %332 = vector.load %arg15[%c2_227, %c0_228, %c0_229] : memref<10x10x16xf32, #tpu.memory_space<vmem>>, vector<8x8x16xf32>
    %333 = vector.shape_cast %332 : vector<8x8x16xf32> to vector<64x16xf32>
    %334 = vector.extract_strided_slice %9 {offsets = [6, 0, 0], sizes = [1, 16, 16], strides = [1, 1, 1]} : vector<9x16x16xf32> to vector<1x16x16xf32>
    %335 = vector.shape_cast %334 : vector<1x16x16xf32> to vector<16x16xf32>
    %cst_230 = arith.constant dense<0.000000e+00> : vector<64x16xf32>
    %336 = tpu.matmul %333, %335, %cst_230 {dimension_numbers = #tpu.dot_dimension_numbers<[1], [0], [0], [1], [0, 0, 1, 1], [], []>} : vector<64x16xf32>, vector<16x16xf32>, vector<64x16xf32> -> vector<64x16xf32>
    %337 = arith.addf %331, %336 : vector<64x16xf32>
    %c2_231 = arith.constant 2 : index
    %c1_232 = arith.constant 1 : index
    %c0_233 = arith.constant 0 : index
    %338 = vector.load %arg15[%c2_231, %c1_232, %c0_233] : memref<10x10x16xf32, #tpu.memory_space<vmem>>, vector<8x8x16xf32>
    %339 = vector.shape_cast %338 : vector<8x8x16xf32> to vector<64x16xf32>
    %340 = vector.extract_strided_slice %9 {offsets = [7, 0, 0], sizes = [1, 16, 16], strides = [1, 1, 1]} : vector<9x16x16xf32> to vector<1x16x16xf32>
    %341 = vector.shape_cast %340 : vector<1x16x16xf32> to vector<16x16xf32>
    %cst_234 = arith.constant dense<0.000000e+00> : vector<64x16xf32>
    %342 = tpu.matmul %339, %341, %cst_234 {dimension_numbers = #tpu.dot_dimension_numbers<[1], [0], [0], [1], [0, 0, 1, 1], [], []>} : vector<64x16xf32>, vector<16x16xf32>, vector<64x16xf32> -> vector<64x16xf32>
    %343 = arith.addf %337, %342 : vector<64x16xf32>
    %c2_235 = arith.constant 2 : index
    %c2_236 = arith.constant 2 : index
    %c0_237 = arith.constant 0 : index
    %344 = vector.load %arg15[%c2_235, %c2_236, %c0_237] : memref<10x10x16xf32, #tpu.memory_space<vmem>>, vector<8x8x16xf32>
    %345 = vector.shape_cast %344 : vector<8x8x16xf32> to vector<64x16xf32>
    %346 = vector.extract_strided_slice %9 {offsets = [8, 0, 0], sizes = [1, 16, 16], strides = [1, 1, 1]} : vector<9x16x16xf32> to vector<1x16x16xf32>
    %347 = vector.shape_cast %346 : vector<1x16x16xf32> to vector<16x16xf32>
    %cst_238 = arith.constant dense<0.000000e+00> : vector<64x16xf32>
    %348 = tpu.matmul %345, %347, %cst_238 {dimension_numbers = #tpu.dot_dimension_numbers<[1], [0], [0], [1], [0, 0, 1, 1], [], []>} : vector<64x16xf32>, vector<16x16xf32>, vector<64x16xf32> -> vector<64x16xf32>
    %349 = arith.addf %343, %348 : vector<64x16xf32>
    %c3_239 = arith.constant 3 : index
    %c0_240 = arith.constant 0 : index
    %c0_241 = arith.constant 0 : index
    %350 = vector.load %arg7[%c3_239, %c0_240, %c0_241] : memref<7x1x16xf32, #tpu.memory_space<vmem>>, vector<1x1x16xf32>
    %351 = vector.shape_cast %350 : vector<1x1x16xf32> to vector<1x16xf32>
    %352 = vector.broadcast %351 : vector<1x16xf32> to vector<64x16xf32>
    %353 = arith.addf %349, %352 : vector<64x16xf32>
    %c4_242 = arith.constant 4 : index
    %c0_243 = arith.constant 0 : index
    %c0_244 = arith.constant 0 : index
    %354 = vector.load %arg7[%c4_242, %c0_243, %c0_244] : memref<7x1x16xf32, #tpu.memory_space<vmem>>, vector<1x1x16xf32>
    %355 = vector.shape_cast %354 : vector<1x1x16xf32> to vector<1x16xf32>
    %c5_245 = arith.constant 5 : index
    %c0_246 = arith.constant 0 : index
    %c0_247 = arith.constant 0 : index
    %356 = vector.load %arg7[%c5_245, %c0_246, %c0_247] : memref<7x1x16xf32, #tpu.memory_space<vmem>>, vector<1x1x16xf32>
    %357 = vector.shape_cast %356 : vector<1x1x16xf32> to vector<1x16xf32>
    %cst_248 = arith.constant dense<0.000000e+00> : vector<16xf32>
    %358 = vector.multi_reduction <add>, %353, %cst_248 [0] : vector<64x16xf32> to vector<16xf32>
    %359 = vector.shape_cast %358 : vector<16xf32> to vector<1x16xf32>
    %cst_249 = arith.constant dense<0.000000e+00> : vector<1x8xf32>
    %360 = tpu.matmul %359, %12, %cst_249 {dimension_numbers = #tpu.dot_dimension_numbers<[1], [0], [0], [1], [0, 0, 1, 1], [], []>} : vector<1x16xf32>, vector<16x8xf32>, vector<1x8xf32> -> vector<1x8xf32>
    %cst_250 = arith.constant 1.280000e+02 : f32
    %361 = vector.broadcast %cst_250 : f32 to vector<1x8xf32>
    %362 = arith.divf %360, %361 : vector<1x8xf32>
    %cst_251 = arith.constant dense<0.000000e+00> : vector<1x16xf32>
    %363 = tpu.matmul %362, %13, %cst_251 {dimension_numbers = #tpu.dot_dimension_numbers<[1], [0], [0], [1], [0, 0, 1, 1], [], []>} : vector<1x8xf32>, vector<8x16xf32>, vector<1x16xf32> -> vector<1x16xf32>
    %364 = vector.broadcast %363 : vector<1x16xf32> to vector<64x16xf32>
    %365 = arith.subf %353, %364 : vector<64x16xf32>
    %366 = arith.mulf %365, %365 : vector<64x16xf32>
    %cst_252 = arith.constant dense<0.000000e+00> : vector<16xf32>
    %367 = vector.multi_reduction <add>, %366, %cst_252 [0] : vector<64x16xf32> to vector<16xf32>
    %368 = vector.shape_cast %367 : vector<16xf32> to vector<1x16xf32>
    %cst_253 = arith.constant dense<0.000000e+00> : vector<1x8xf32>
    %369 = tpu.matmul %368, %12, %cst_253 {dimension_numbers = #tpu.dot_dimension_numbers<[1], [0], [0], [1], [0, 0, 1, 1], [], []>} : vector<1x16xf32>, vector<16x8xf32>, vector<1x8xf32> -> vector<1x8xf32>
    %cst_254 = arith.constant 1.280000e+02 : f32
    %370 = vector.broadcast %cst_254 : f32 to vector<1x8xf32>
    %371 = arith.divf %369, %370 : vector<1x8xf32>
    %cst_255 = arith.constant 9.99999974E-6 : f32
    %372 = vector.broadcast %cst_255 : f32 to vector<1x8xf32>
    %373 = arith.addf %371, %372 : vector<1x8xf32>
    %374 = math.rsqrt %373 : vector<1x8xf32>
    %cst_256 = arith.constant dense<0.000000e+00> : vector<1x16xf32>
    %375 = tpu.matmul %374, %13, %cst_256 {dimension_numbers = #tpu.dot_dimension_numbers<[1], [0], [0], [1], [0, 0, 1, 1], [], []>} : vector<1x8xf32>, vector<8x16xf32>, vector<1x16xf32> -> vector<1x16xf32>
    %376 = vector.broadcast %375 : vector<1x16xf32> to vector<64x16xf32>
    %377 = arith.mulf %365, %376 : vector<64x16xf32>
    %378 = vector.broadcast %355 : vector<1x16xf32> to vector<64x16xf32>
    %379 = arith.mulf %377, %378 : vector<64x16xf32>
    %380 = vector.broadcast %357 : vector<1x16xf32> to vector<64x16xf32>
    %381 = arith.addf %379, %380 : vector<64x16xf32>
    %382 = arith.index_cast %arg0 : i32 to index
    %c0_257 = arith.constant 0 : index
    %383 = vector.load %arg2[%382, %c0_257] : memref<2x32xf32, #tpu.memory_space<vmem>>, vector<1x32xf32>
    %384 = arith.negf %383 : vector<1x32xf32>
    %385 = math.exp %384 : vector<1x32xf32>
    %cst_258 = arith.constant 1.000000e+00 : f32
    %386 = vector.broadcast %cst_258 : f32 to vector<1x32xf32>
    %387 = arith.addf %386, %385 : vector<1x32xf32>
    %388 = arith.divf %386, %387 : vector<1x32xf32>
    %389 = arith.mulf %383, %388 : vector<1x32xf32>
    %c0_259 = arith.constant 0 : index
    %c0_260 = arith.constant 0 : index
    %390 = vector.load %arg12[%c0_259, %c0_260] : memref<32x16xf32, #tpu.memory_space<vmem>>, vector<32x16xf32>
    %cst_261 = arith.constant dense<0.000000e+00> : vector<1x16xf32>
    %391 = tpu.matmul %389, %390, %cst_261 {dimension_numbers = #tpu.dot_dimension_numbers<[1], [0], [0], [1], [0, 0, 1, 1], [], []>} : vector<1x32xf32>, vector<32x16xf32>, vector<1x16xf32> -> vector<1x16xf32>
    %c6 = arith.constant 6 : index
    %c0_262 = arith.constant 0 : index
    %c0_263 = arith.constant 0 : index
    %392 = vector.load %arg7[%c6, %c0_262, %c0_263] : memref<7x1x16xf32, #tpu.memory_space<vmem>>, vector<1x1x16xf32>
    %393 = vector.shape_cast %392 : vector<1x1x16xf32> to vector<1x16xf32>
    %394 = arith.addf %391, %393 : vector<1x16xf32>
    %395 = vector.broadcast %394 : vector<1x16xf32> to vector<64x16xf32>
    %396 = arith.addf %381, %395 : vector<64x16xf32>
    %397 = vector.shape_cast %396 : vector<64x16xf32> to vector<8x8x16xf32>
    %c0_264 = arith.constant 0 : index
    %c0_265 = arith.constant 0 : index
    %c0_266 = arith.constant 0 : index
    %c0_267 = arith.constant 0 : index
    %398 = vector.load %arg13[%c0_264, %c0_265, %c0_266, %c0_267] : memref<1x8x8x16xf32, #tpu.memory_space<vmem>>, vector<1x8x8x16xf32>
    %399 = vector.shape_cast %398 : vector<1x8x8x16xf32> to vector<8x8x16xf32>
    %400 = vector.shape_cast %397 : vector<8x8x16xf32> to vector<1x8x8x16xf32>
    tpu.vector_store %arg13[%c0_264, %c0_265, %c0_266, %c0_267], %400 {strides = array<i32>} : memref<1x8x8x16xf32, #tpu.memory_space<vmem>>, vector<1x8x8x16xf32>,
    return
  }
  func.func @transform_0(%arg0: i32) -> (i32, i32, i32, i32) {
    %c0_i32 = arith.constant 0 : i32
    %c0_i32_0 = arith.constant 0 : i32
    %c0_i32_1 = arith.constant 0 : i32
    %c0_i32_2 = arith.constant 0 : i32
    return %arg0, %c0_i32, %c0_i32_0, %c0_i32_1 : i32, i32, i32, i32
  }
  func.func @transform_1(%arg0: i32) -> (i32, i32) {
    %c0_i32 = arith.constant 0 : i32
    %c0_i32_0 = arith.constant 0 : i32
    %c0_i32_1 = arith.constant 0 : i32
    return %c0_i32, %c0_i32_0 : i32, i32
  }
  func.func @transform_2(%arg0: i32) -> (i32, i32, i32, i32) {
    %c0_i32 = arith.constant 0 : i32
    %c0_i32_0 = arith.constant 0 : i32
    %c0_i32_1 = arith.constant 0 : i32
    %c0_i32_2 = arith.constant 0 : i32
    %c0_i32_3 = arith.constant 0 : i32
    return %c0_i32, %c0_i32_0, %c0_i32_1, %c0_i32_2 : i32, i32, i32, i32
  }
  func.func @transform_3(%arg0: i32) -> (i32, i32, i32) {
    %c0_i32 = arith.constant 0 : i32
    %c0_i32_0 = arith.constant 0 : i32
    %c0_i32_1 = arith.constant 0 : i32
    %c0_i32_2 = arith.constant 0 : i32
    return %c0_i32, %c0_i32_0, %c0_i32_1 : i32, i32, i32
  }
  func.func @transform_4(%arg0: i32) -> (i32, i32, i32) {
    %c0_i32 = arith.constant 0 : i32
    %c0_i32_0 = arith.constant 0 : i32
    %c0_i32_1 = arith.constant 0 : i32
    %c0_i32_2 = arith.constant 0 : i32
    return %c0_i32, %c0_i32_0, %c0_i32_1 : i32, i32, i32
  }
  func.func @transform_5(%arg0: i32) -> (i32, i32, i32) {
    %c0_i32 = arith.constant 0 : i32
    %c0_i32_0 = arith.constant 0 : i32
    %c0_i32_1 = arith.constant 0 : i32
    %c0_i32_2 = arith.constant 0 : i32
    return %c0_i32, %c0_i32_0, %c0_i32_1 : i32, i32, i32
  }
  func.func @transform_6(%arg0: i32) -> (i32, i32, i32) {
    %c0_i32 = arith.constant 0 : i32
    %c0_i32_0 = arith.constant 0 : i32
    %c0_i32_1 = arith.constant 0 : i32
    %c0_i32_2 = arith.constant 0 : i32
    return %c0_i32, %c0_i32_0, %c0_i32_1 : i32, i32, i32
  }
  func.func @transform_7(%arg0: i32) -> (i32, i32) {
    %c0_i32 = arith.constant 0 : i32
    %c0_i32_0 = arith.constant 0 : i32
    %c0_i32_1 = arith.constant 0 : i32
    return %c0_i32, %c0_i32_0 : i32, i32
  }
  func.func @transform_8(%arg0: i32) -> (i32, i32) {
    %c0_i32 = arith.constant 0 : i32
    %c0_i32_0 = arith.constant 0 : i32
    %c0_i32_1 = arith.constant 0 : i32
    return %c0_i32, %c0_i32_0 : i32, i32
  }
  func.func @transform_9(%arg0: i32) -> (i32, i32) {
    %c0_i32 = arith.constant 0 : i32
    %c0_i32_0 = arith.constant 0 : i32
    %c0_i32_1 = arith.constant 0 : i32
    return %c0_i32, %c0_i32_0 : i32, i32
  }
  func.func @transform_10(%arg0: i32) -> (i32, i32) {
    %c0_i32 = arith.constant 0 : i32
    %c0_i32_0 = arith.constant 0 : i32
    %c0_i32_1 = arith.constant 0 : i32
    return %c0_i32, %c0_i32_0 : i32, i32
  }
  func.func @transform_11(%arg0: i32) -> (i32, i32) {
    %c0_i32 = arith.constant 0 : i32
    %c0_i32_0 = arith.constant 0 : i32
    %c0_i32_1 = arith.constant 0 : i32
    return %c0_i32, %c0_i32_0 : i32, i32
  }
  func.func @transform_12(%arg0: i32) -> (i32, i32, i32, i32) {
    %c0_i32 = arith.constant 0 : i32
    %c0_i32_0 = arith.constant 0 : i32
    %c0_i32_1 = arith.constant 0 : i32
    %c0_i32_2 = arith.constant 0 : i32
    return %arg0, %c0_i32, %c0_i32_0, %c0_i32_1 : i32, i32, i32, i32
  }
}

</mosaic_0001>

<llo_original>
// kernel: tpu_custom_call.1
$region0: #{tpu_custom_call.1}
  #allocation0 [shape = 'u32[]', space=smem, size = 0x4, offset = 0x4, fixed_abs, tag = 'smem constant byte address 0x4 - core index']
  #allocation1 [shape = 'u32[144,128]{1,0:T(1,128)}', space=vmem, size = 0x12000, scoped, tag = 'internal scratch']
  #allocation2 [shape = 'f32[10,10,8]{2,1,0:T(8,128)}', space=vmem, size = 0x14000, scoped, tag = 'scratch operand']
  #allocation3 [shape = 'f32[10,10,16]{2,1,0:T(8,128)}', space=vmem, size = 0x14000, scoped, tag = 'scratch operand']
  %s0 = inlined_call_operand.vmem [shape: f32[2,8,8,8], index: 0, kind: input, shape index: {}]
  %s1 = inlined_call_operand.vmem [shape: f32[2,32], index: 1, kind: input, shape index: {}]
  %s2 = inlined_call_operand.vmem [shape: f32[2,9,8,8], index: 2, kind: input, shape index: {}]
  %s3 = inlined_call_operand.vmem [shape: f32[9,8,16], index: 3, kind: input, shape index: {}]
  %s4 = inlined_call_operand.vmem [shape: f32[9,16,16], index: 4, kind: input, shape index: {}]
  %s5 = inlined_call_operand.hbm [shape: f32[6,1,8], index: 5, kind: input, shape index: {}]
  %s6 = inlined_call_operand.hbm [shape: f32[7,1,16], index: 6, kind: input, shape index: {}]
  %s7 = inlined_call_operand.vmem [shape: f32[8,8], index: 7, kind: input, shape index: {}]
  %s8 = inlined_call_operand.hbm [shape: f32[8,8], index: 8, kind: input, shape index: {}]
  %s9 = inlined_call_operand.vmem [shape: f32[16,8], index: 9, kind: input, shape index: {}]
  %s10 = inlined_call_operand.vmem [shape: f32[8,16], index: 10, kind: input, shape index: {}]
  %s11 = inlined_call_operand.vmem [shape: f32[32,16], index: 11, kind: input, shape index: {}]
  %s12 = inlined_call_operand.hbm [shape: f32[2,8,8,16], index: 12, kind: output, shape index: {}]
  %s13 = sld [smem:[#allocation0]]
  $region93: #{tpu_custom_call.1} parent=0
    _
  %s15 = ssub.s32 1, %s13
  %s16 = scalar_select 0, %s15, %s13
  $region1: #{tpu_custom_call.1} parent=0
    #allocation4 [shape = 'u8[3072]{0}', space=vmem, size = 0xc00, scoped, tag = 'input window, operand 5, single buffered']
    #allocation5 [shape = 's32[2]{0}', space=sflag, size = 0x8, scoped, tag = 'scoped memory for tpu_custom_call.1']
    #allocation6 [shape = 's32[2]{0}', space=sflag, size = 0x8, scoped, tag = 'scoped memory for tpu_custom_call.1']
    #allocation7 [shape = 'u8[3584]{0}', space=vmem, size = 0x1000, scoped, tag = 'input window, operand 6, single buffered']
    #allocation8 [shape = 's32[1]{0}', space=sflag, size = 0x4, scoped, tag = 'scoped memory for tpu_custom_call.1']
    #allocation9 [shape = 'u8[4096]{0}', space=vmem, size = 0x1000, scoped, tag = 'input window, operand 8, single buffered']
    #allocation10 [shape = 'u8[65536]{0}', space=vmem, size = 0x10000, scoped, tag = 'output window, operand 0']
    %17 = vsyncpa [#allocation5], 0
    %18 = vsyncpa [#allocation8], 0
    %19 = vsyncpa [#allocation6], 0
    %s20 = scalar_lea.sflag [#allocation6], 1
    %21 = vsyncpa %s20, 0
    loop: start=0, step=1, limit=4
    $region2: #{tpu_custom_call.1} parent=1 // loop_pre_header
      _
    $region3: #{tpu_custom_call.1} parent=1 // loop_header
      %s23 = sphi 0, %s27
      %p24 = scmp.ge.s32.totalorder %s23, 4
      %s33 = sphi 0, %s35
      %s36 = sphi 0, %s33
      %s37 = sphi 0, %s36
      %s53 = sphi 0, %s37
      %s57 = sphi 0, %s57
      %s59 = sphi 0, %s57
      %s60 = sphi 0, %s59
      %s74 = sphi 0, %s60
      %s78 = sphi 0, %s78
      %s80 = sphi 0, %s78
      %s81 = sphi 0, %s80
      %s95 = sphi 0, %s81
      %s99 = sphi 0, %s99
      %s101 = sphi 0, %s99
      %s102 = sphi 0, %s101
      %s116 = sphi 0, %s102
      %s120 = sphi 0, %s120
      %s122 = sphi 0, %s120
      %s123 = sphi 0, %s122
      %s137 = sphi 0, %s123
      %s141 = sphi 0, %s141
      %s143 = sphi 0, %s141
      %s144 = sphi 0, %s143
      %s158 = sphi 0, %s144
      %s162 = sphi 0, %s162
      %s164 = sphi 0, %s162
      %s165 = sphi 0, %s164
      %s179 = sphi 0, %s165
      %s183 = sphi 0, %s183
      %s185 = sphi 0, %s183
      %s186 = sphi 0, %s185
      %s200 = sphi 0, %s186
      %s204 = sphi 0, %s204
      %s206 = sphi 0, %s204
      %s207 = sphi 0, %s206
      %s221 = sphi 0, %s207
      %s225 = sphi 0, %s225
      %s227 = sphi 0, %s225
      %s228 = sphi 0, %s227
      %s242 = sphi 0, %s228
      %s246 = sphi 0, %s246
      %s248 = sphi 0, %s246
      %s249 = sphi 0, %s248
      %s263 = sphi 0, %s249
      %s267 = sphi 0, %s267
      %s269 = sphi 0, %s267
      %s270 = sphi 0, %s269
      %s284 = sphi 0, %s270
      %s290 = sphi 0, %s292
      %s293 = sphi 0, %s290
      %s294 = sphi 0, %s293
      %s310 = sphi 0, %s294
    $region4: #{tpu_custom_call.1} parent=1 // loop_header_branch
      %26 = sbr.rel (%p24) target = $region8
    $region5: #{tpu_custom_call.1} parent=1 // loop_body
      %s28 = ssub.s32 %s23, 1
      %s29 = ssub.s32 %s23, 2
      %s30 = sadd.s32 %s23, 1
      %s31 = ssub.s32 %s23, %s30
      %p32 = scmp.eq.s32.totalorder %s31, 0
      %s34 = sadd.s32 %s33, 1
      %s35 = scalar_select %p32, %s33, %s34
      %p38 = pneg %p32
      %p39 = scmp.eq.s32.totalorder %s23, 1
      %p40 = por %p38, %p39
      %p41 = scmp.ne.s32.totalorder %s33, %s36
      %p42 = scmp.eq.s32.totalorder %s23, 0
      %p43 = por %p41, %p42
      %p44 = scmp.ne.s32.totalorder %s33, %s36
      %p45 = scmp.eq.s32.totalorder %s28, 1
      %p46 = por %p44, %p45
      %p47 = scmp.ne.s32.totalorder %s36, %s37
      %p48 = scmp.eq.s32.totalorder %s28, 0
      %p49 = por %p47, %p48
      %p50 = scmp.ne.s32.totalorder %s36, %s37
      %p51 = scmp.eq.s32.totalorder %s29, 1
      %p52 = por %p50, %p51
      %p54 = scmp.ne.s32.totalorder %s37, %s53
      %p55 = scmp.eq.s32.totalorder %s29, 0
      %p56 = por %p54, %p55
      %s58 = sadd.s32 %s57, 1
      %p61 = scmp.eq.s32.totalorder %s23, 1
      %p62 = scmp.ne.s32.totalorder %s57, %s59
      %p63 = scmp.eq.s32.totalorder %s23, 0
      %p64 = por %p62, %p63
      %p65 = scmp.ne.s32.totalorder %s57, %s59
      %p66 = scmp.eq.s32.totalorder %s28, 1
      %p67 = por %p65, %p66
      %p68 = scmp.ne.s32.totalorder %s59, %s60
      %p69 = scmp.eq.s32.totalorder %s28, 0
      %p70 = por %p68, %p69
      %p71 = scmp.ne.s32.totalorder %s59, %s60
      %p72 = scmp.eq.s32.totalorder %s29, 1
      %p73 = por %p71, %p72
      %p75 = scmp.ne.s32.totalorder %s60, %s74
      %p76 = scmp.eq.s32.totalorder %s29, 0
      %p77 = por %p75, %p76
      %s79 = sadd.s32 %s78, 1
      %p82 = scmp.eq.s32.totalorder %s23, 1
      %p83 = scmp.ne.s32.totalorder %s78, %s80
      %p84 = scmp.eq.s32.totalorder %s23, 0
      %p85 = por %p83, %p84
      %p86 = scmp.ne.s32.totalorder %s78, %s80
      %p87 = scmp.eq.s32.totalorder %s28, 1
      %p88 = por %p86, %p87
      %p89 = scmp.ne.s32.totalorder %s80, %s81
      %p90 = scmp.eq.s32.totalorder %s28, 0
      %p91 = por %p89, %p90
      %p92 = scmp.ne.s32.totalorder %s80, %s81
      %p93 = scmp.eq.s32.totalorder %s29, 1
      %p94 = por %p92, %p93
      %p96 = scmp.ne.s32.totalorder %s81, %s95
      %p97 = scmp.eq.s32.totalorder %s29, 0
      %p98 = por %p96, %p97
      %s100 = sadd.s32 %s99, 1
      %p103 = scmp.eq.s32.totalorder %s23, 1
      %p104 = scmp.ne.s32.totalorder %s99, %s101
      %p105 = scmp.eq.s32.totalorder %s23, 0
      %p106 = por %p104, %p105
      %p107 = scmp.ne.s32.totalorder %s99, %s101
      %p108 = scmp.eq.s32.totalorder %s28, 1
      %p109 = por %p107, %p108
      %p110 = scmp.ne.s32.totalorder %s101, %s102
      %p111 = scmp.eq.s32.totalorder %s28, 0
      %p112 = por %p110, %p111
      %p113 = scmp.ne.s32.totalorder %s101, %s102
      %p114 = scmp.eq.s32.totalorder %s29, 1
      %p115 = por %p113, %p114
      %p117 = scmp.ne.s32.totalorder %s102, %s116
      %p118 = scmp.eq.s32.totalorder %s29, 0
      %p119 = por %p117, %p118
      %s121 = sadd.s32 %s120, 1
      %p124 = scmp.eq.s32.totalorder %s23, 1
      %p125 = scmp.ne.s32.totalorder %s120, %s122
      %p126 = scmp.eq.s32.totalorder %s23, 0
      %p127 = por %p125, %p126
      %p128 = scmp.ne.s32.totalorder %s120, %s122
      %p129 = scmp.eq.s32.totalorder %s28, 1
      %p130 = por %p128, %p129
      %p131 = scmp.ne.s32.totalorder %s122, %s123
      %p132 = scmp.eq.s32.totalorder %s28, 0
      %p133 = por %p131, %p132
      %p134 = scmp.ne.s32.totalorder %s122, %s123
      %p135 = scmp.eq.s32.totalorder %s29, 1
      %p136 = por %p134, %p135
      %p138 = scmp.ne.s32.totalorder %s123, %s137
      %p139 = scmp.eq.s32.totalorder %s29, 0
      %p140 = por %p138, %p139
      %s142 = sadd.s32 %s141, 1
      %p145 = scmp.eq.s32.totalorder %s23, 1
      %p146 = scmp.ne.s32.totalorder %s141, %s143
      %p147 = scmp.eq.s32.totalorder %s23, 0
      %p148 = por %p146, %p147
      %p149 = scmp.ne.s32.totalorder %s141, %s143
      %p150 = scmp.eq.s32.totalorder %s28, 1
      %p151 = por %p149, %p150
      %p152 = scmp.ne.s32.totalorder %s143, %s144
      %p153 = scmp.eq.s32.totalorder %s28, 0
      %p154 = por %p152, %p153
      %p155 = scmp.ne.s32.totalorder %s143, %s144
      %p156 = scmp.eq.s32.totalorder %s29, 1
      %p157 = por %p155, %p156
      %p159 = scmp.ne.s32.totalorder %s144, %s158
      %p160 = scmp.eq.s32.totalorder %s29, 0
      %p161 = por %p159, %p160
      %s163 = sadd.s32 %s162, 1
      %p166 = scmp.eq.s32.totalorder %s23, 1
      %p167 = scmp.ne.s32.totalorder %s162, %s164
      %p168 = scmp.eq.s32.totalorder %s23, 0
      %p169 = por %p167, %p168
      %p170 = scmp.ne.s32.totalorder %s162, %s164
      %p171 = scmp.eq.s32.totalorder %s28, 1
      %p172 = por %p170, %p171
      %p173 = scmp.ne.s32.totalorder %s164, %s165
      %p174 = scmp.eq.s32.totalorder %s28, 0
      %p175 = por %p173, %p174
      %p176 = scmp.ne.s32.totalorder %s164, %s165
      %p177 = scmp.eq.s32.totalorder %s29, 1
      %p178 = por %p176, %p177
      %p180 = scmp.ne.s32.totalorder %s165, %s179
      %p181 = scmp.eq.s32.totalorder %s29, 0
      %p182 = por %p180, %p181
      %s184 = sadd.s32 %s183, 1
      %p187 = scmp.eq.s32.totalorder %s23, 1
      %p188 = scmp.ne.s32.totalorder %s183, %s185
      %p189 = scmp.eq.s32.totalorder %s23, 0
      %p190 = por %p188, %p189
      %p191 = scmp.ne.s32.totalorder %s183, %s185
      %p192 = scmp.eq.s32.totalorder %s28, 1
      %p193 = por %p191, %p192
      %p194 = scmp.ne.s32.totalorder %s185, %s186
      %p195 = scmp.eq.s32.totalorder %s28, 0
      %p196 = por %p194, %p195
      %p197 = scmp.ne.s32.totalorder %s185, %s186
      %p198 = scmp.eq.s32.totalorder %s29, 1
      %p199 = por %p197, %p198
      %p201 = scmp.ne.s32.totalorder %s186, %s200
      %p202 = scmp.eq.s32.totalorder %s29, 0
      %p203 = por %p201, %p202
      %s205 = sadd.s32 %s204, 1
      %p208 = scmp.eq.s32.totalorder %s23, 1
      %p209 = scmp.ne.s32.totalorder %s204, %s206
      %p210 = scmp.eq.s32.totalorder %s23, 0
      %p211 = por %p209, %p210
      %p212 = scmp.ne.s32.totalorder %s204, %s206
      %p213 = scmp.eq.s32.totalorder %s28, 1
      %p214 = por %p212, %p213
      %p215 = scmp.ne.s32.totalorder %s206, %s207
      %p216 = scmp.eq.s32.totalorder %s28, 0
      %p217 = por %p215, %p216
      %p218 = scmp.ne.s32.totalorder %s206, %s207
      %p219 = scmp.eq.s32.totalorder %s29, 1
      %p220 = por %p218, %p219
      %p222 = scmp.ne.s32.totalorder %s207, %s221
      %p223 = scmp.eq.s32.totalorder %s29, 0
      %p224 = por %p222, %p223
      %s226 = sadd.s32 %s225, 1
      %p229 = scmp.eq.s32.totalorder %s23, 1
      %p230 = scmp.ne.s32.totalorder %s225, %s227
      %p231 = scmp.eq.s32.totalorder %s23, 0
      %p232 = por %p230, %p231
      %p233 = scmp.ne.s32.totalorder %s225, %s227
      %p234 = scmp.eq.s32.totalorder %s28, 1
      %p235 = por %p233, %p234
      %p236 = scmp.ne.s32.totalorder %s227, %s228
      %p237 = scmp.eq.s32.totalorder %s28, 0
      %p238 = por %p236, %p237
      %p239 = scmp.ne.s32.totalorder %s227, %s228
      %p240 = scmp.eq.s32.totalorder %s29, 1
      %p241 = por %p239, %p240
      %p243 = scmp.ne.s32.totalorder %s228, %s242
      %p244 = scmp.eq.s32.totalorder %s29, 0
      %p245 = por %p243, %p244
      %s247 = sadd.s32 %s246, 1
      %p250 = scmp.eq.s32.totalorder %s23, 1
      %p251 = scmp.ne.s32.totalorder %s246, %s248
      %p252 = scmp.eq.s32.totalorder %s23, 0
      %p253 = por %p251, %p252
      %p254 = scmp.ne.s32.totalorder %s246, %s248
      %p255 = scmp.eq.s32.totalorder %s28, 1
      %p256 = por %p254, %p255
      %p257 = scmp.ne.s32.totalorder %s248, %s249
      %p258 = scmp.eq.s32.totalorder %s28, 0
      %p259 = por %p257, %p258
      %p260 = scmp.ne.s32.totalorder %s248, %s249
      %p261 = scmp.eq.s32.totalorder %s29, 1
      %p262 = por %p260, %p261
      %p264 = scmp.ne.s32.totalorder %s249, %s263
      %p265 = scmp.eq.s32.totalorder %s29, 0
      %p266 = por %p264, %p265
      %s268 = sadd.s32 %s267, 1
      %p271 = scmp.eq.s32.totalorder %s23, 1
      %p272 = scmp.ne.s32.totalorder %s267, %s269
      %p273 = scmp.eq.s32.totalorder %s23, 0
      %p274 = por %p272, %p273
      %p275 = scmp.ne.s32.totalorder %s267, %s269
      %p276 = scmp.eq.s32.totalorder %s28, 1
      %p277 = por %p275, %p276
      %p278 = scmp.ne.s32.totalorder %s269, %s270
      %p279 = scmp.eq.s32.totalorder %s28, 0
      %p280 = por %p278, %p279
      %p281 = scmp.ne.s32.totalorder %s269, %s270
      %p282 = scmp.eq.s32.totalorder %s29, 1
      %p283 = por %p281, %p282
      %p285 = scmp.ne.s32.totalorder %s270, %s284
      %p286 = scmp.eq.s32.totalorder %s29, 0
      %p287 = por %p285, %p286
      %s288 = ssub.s32 %s23, %s30
      %p289 = scmp.eq.s32.totalorder %s288, 0
      %s291 = sadd.s32 %s290, 1
      %s292 = scalar_select %p289, %s290, %s291
      %p295 = pneg %p289
      %p296 = scmp.eq.s32.totalorder %s23, 1
      %p297 = por %p295, %p296
      %p298 = scmp.ne.s32.totalorder %s290, %s293
      %p299 = scmp.eq.s32.totalorder %s23, 0
      %p300 = por %p298, %p299
      %p301 = scmp.ne.s32.totalorder %s290, %s293
      %p302 = scmp.eq.s32.totalorder %s28, 1
      %p303 = por %p301, %p302
      %p304 = scmp.ne.s32.totalorder %s293, %s294
      %p305 = scmp.eq.s32.totalorder %s28, 0
      %p306 = por %p304, %p305
      %p307 = scmp.ne.s32.totalorder %s293, %s294
      %p308 = scmp.eq.s32.totalorder %s29, 1
      %p309 = por %p307, %p308
      %p311 = scmp.ne.s32.totalorder %s294, %s310
      %p312 = scmp.eq.s32.totalorder %s29, 0
      %p313 = por %p311, %p312
      %p314 = scmp.le.s32.totalorder 1, %s23
      %p315 = scmp.lt.s32.totalorder %s23, 3
      %p316 = pnand %p314, %p315
      %p317 = pneg %p316
      // Predicated region
      $region9: #{tpu_custom_call.1} parent=5 // pred_check
        _
      $region10: #{tpu_custom_call.1} parent=5 // pred_check_branch
        %319 = sbr.rel (%p316) target = $region12
      $region11: #{tpu_custom_call.1} parent=5 // pred_region
        %s320 = ssub.s32 %s23, 1
        // Predicated region
        $region13: #{tpu_custom_call.1} parent=11 // pred_check
          %p321 = pneg %p70
        $region14: #{tpu_custom_call.1} parent=11 // pred_check_branch
          %323 = sbr.rel (%p321) target = $region16
        $region15: #{tpu_custom_call.1} parent=11 // pred_region
          _
        $region16: #{tpu_custom_call.1} parent=11 // pred_fallthru
          _
        // Predicated region
        $region17: #{tpu_custom_call.1} parent=11 // pred_check
          %p324 = pneg %p91
        $region18: #{tpu_custom_call.1} parent=11 // pred_check_branch
          %326 = sbr.rel (%p324) target = $region20
        $region19: #{tpu_custom_call.1} parent=11 // pred_region
          _
        $region20: #{tpu_custom_call.1} parent=11 // pred_fallthru
          _
        // Predicated region
        $region21: #{tpu_custom_call.1} parent=11 // pred_check
          %p327 = pneg %p112
        $region22: #{tpu_custom_call.1} parent=11 // pred_check_branch
          %329 = sbr.rel (%p327) target = $region24
        $region23: #{tpu_custom_call.1} parent=11 // pred_region
          _
        $region24: #{tpu_custom_call.1} parent=11 // pred_fallthru
          _
        // Predicated region
        $region25: #{tpu_custom_call.1} parent=11 // pred_check
          %p330 = pneg %p133
        $region26: #{tpu_custom_call.1} parent=11 // pred_check_branch
          %332 = sbr.rel (%p330) target = $region28
        $region27: #{tpu_custom_call.1} parent=11 // pred_region
          _
        $region28: #{tpu_custom_call.1} parent=11 // pred_fallthru
          _
        // Predicated region
        $region29: #{tpu_custom_call.1} parent=11 // pred_check
          %p333 = pneg %p154
        $region30: #{tpu_custom_call.1} parent=11 // pred_check_branch
          %335 = sbr.rel (%p333) target = $region32
        $region31: #{tpu_custom_call.1} parent=11 // pred_region
          %s337 = ssub.s32 96, 96
          %338 = vsyncadd [#allocation5], %s337
          %s339 = sshll.u32 [#allocation4], 4
          %s340 = int_to_ptr.vmem [resolvable:$true] %s339
          %345 = dma.hbm_to_vmem [thread:$0]  %s5, 96, %s340, [#allocation5], 16, 16, 1
        $region32: #{tpu_custom_call.1} parent=11 // pred_fallthru
          _
        // Predicated region
        $region33: #{tpu_custom_call.1} parent=11 // pred_check
          %p346 = pneg %p175
        $region34: #{tpu_custom_call.1} parent=11 // pred_check_branch
          %348 = sbr.rel (%p346) target = $region36
        $region35: #{tpu_custom_call.1} parent=11 // pred_region
          %s350 = ssub.s32 112, 112
          %351 = vsyncadd [#allocation8], %s350
          %s352 = sshll.u32 [#allocation7], 4
          %s353 = int_to_ptr.vmem [resolvable:$true] %s352
          %358 = dma.hbm_to_vmem [thread:$0]  %s6, 112, %s353, [#allocation8], 16, 16, 1
        $region36: #{tpu_custom_call.1} parent=11 // pred_fallthru
          _
        // Predicated region
        $region37: #{tpu_custom_call.1} parent=11 // pred_check
          %p359 = pneg %p196
        $region38: #{tpu_custom_call.1} parent=11 // pred_check_branch
          %361 = sbr.rel (%p359) target = $region40
        $region39: #{tpu_custom_call.1} parent=11 // pred_region
          _
        $region40: #{tpu_custom_call.1} parent=11 // pred_fallthru
          _
        // Predicated region
        $region41: #{tpu_custom_call.1} parent=11 // pred_check
          %p362 = pneg %p217
        $region42: #{tpu_custom_call.1} parent=11 // pred_check_branch
          %364 = sbr.rel (%p362) target = $region44
        $region43: #{tpu_custom_call.1} parent=11 // pred_region
          %s366 = ssub.s32 128, 128
          %367 = vsyncadd [#allocation8], %s366
          %s369 = sshll.u32 [#allocation9], 4
          %s370 = int_to_ptr.vmem [resolvable:$true] %s369
          %372 = dma.hbm_to_vmem [thread:$0]  %s8, 128, %s370, [#allocation8]
        $region44: #{tpu_custom_call.1} parent=11 // pred_fallthru
          _
        // Predicated region
        $region45: #{tpu_custom_call.1} parent=11 // pred_check
          %p373 = pneg %p238
        $region46: #{tpu_custom_call.1} parent=11 // pred_check_branch
          %375 = sbr.rel (%p373) target = $region48
        $region47: #{tpu_custom_call.1} parent=11 // pred_region
          _
        $region48: #{tpu_custom_call.1} parent=11 // pred_fallthru
          _
        // Predicated region
        $region49: #{tpu_custom_call.1} parent=11 // pred_check
          %p376 = pneg %p259
        $region50: #{tpu_custom_call.1} parent=11 // pred_check_branch
          %378 = sbr.rel (%p376) target = $region52
        $region51: #{tpu_custom_call.1} parent=11 // pred_region
          _
        $region52: #{tpu_custom_call.1} parent=11 // pred_fallthru
          _
        // Predicated region
        $region53: #{tpu_custom_call.1} parent=11 // pred_check
          %p379 = pneg %p280
        $region54: #{tpu_custom_call.1} parent=11 // pred_check_branch
          %381 = sbr.rel (%p379) target = $region56
        $region55: #{tpu_custom_call.1} parent=11 // pred_region
          _
        $region56: #{tpu_custom_call.1} parent=11 // pred_fallthru
          _
      $region12: #{tpu_custom_call.1} parent=5 // pred_fallthru
        _
      %p382 = scmp.lt.s32.totalorder %s23, 2
      // Predicated region
      $region57: #{tpu_custom_call.1} parent=5 // pred_check
        %p383 = pneg %p382
      $region58: #{tpu_custom_call.1} parent=5 // pred_check_branch
        %385 = sbr.rel (%p383) target = $region60
      $region59: #{tpu_custom_call.1} parent=5 // pred_region
        // Predicated region
        $region61: #{tpu_custom_call.1} parent=59 // pred_check
          %p386 = pneg %p43
        $region62: #{tpu_custom_call.1} parent=59 // pred_check_branch
          %388 = sbr.rel (%p386) target = $region64
        $region63: #{tpu_custom_call.1} parent=59 // pred_region
          %p389 = scmp.lt.s32.totalorder %s23, 1
          %s390 = scalar_select %p389, %s23, 1
          %s391 = smul.addr %s390, 8
          %s392 = smul.addr %s391, 8
          %s393 = scalar_lea.vmem %s0, %s392
        $region64: #{tpu_custom_call.1} parent=59 // pred_fallthru
          _
      $region60: #{tpu_custom_call.1} parent=5 // pred_fallthru
        _
      %p394 = scmp.le.s32.totalorder 1, %s23
      %p395 = scmp.lt.s32.totalorder %s23, 3
      %p396 = pnand %p394, %p395
      %p397 = pneg %p396
      // Predicated region
      $region65: #{tpu_custom_call.1} parent=5 // pred_check
        _
      $region66: #{tpu_custom_call.1} parent=5 // pred_check_branch
        %399 = sbr.rel (%p396) target = $region68
      $region67: #{tpu_custom_call.1} parent=5 // pred_region
        %s400 = ssub.s32 %s23, 1
        // Predicated region
        $region69: #{tpu_custom_call.1} parent=67 // pred_check
          %p401 = pneg %p154
        $region70: #{tpu_custom_call.1} parent=67 // pred_check_branch
          %403 = sbr.rel (%p401) target = $region72
        $region71: #{tpu_custom_call.1} parent=67 // pred_region
          %404 = dma.done [#allocation5], 96
        $region72: #{tpu_custom_call.1} parent=67 // pred_fallthru
          _
        // Predicated region
        $region73: #{tpu_custom_call.1} parent=67 // pred_check
          %p405 = pneg %p175
        $region74: #{tpu_custom_call.1} parent=67 // pred_check_branch
          %407 = sbr.rel (%p405) target = $region76
        $region75: #{tpu_custom_call.1} parent=67 // pred_region
          %408 = dma.done [#allocation8], 112
        $region76: #{tpu_custom_call.1} parent=67 // pred_fallthru
          _
        // Predicated region
        $region77: #{tpu_custom_call.1} parent=67 // pred_check
          %p409 = pneg %p217
        $region78: #{tpu_custom_call.1} parent=67 // pred_check_branch
          %411 = sbr.rel (%p409) target = $region80
        $region79: #{tpu_custom_call.1} parent=67 // pred_region
          %412 = dma.done [#allocation8], 128
        $region80: #{tpu_custom_call.1} parent=67 // pred_fallthru
          _
        %p413 = scmp.lt.s32.totalorder %s28, 1
        %s414 = scalar_select %p413, %s28, 1
        %s415 = smul.addr %s414, 8
        %s416 = smul.addr %s415, 8
        %s417 = scalar_lea.vmem %s0, %s416
        %p418 = pneg %p49
        %p419 = pneg %p46
        %p420 = pneg %p70
        %p421 = pneg %p67
        %p422 = pneg %p91
        %p423 = pneg %p88
        %p424 = pneg %p112
        %p425 = pneg %p109
        %p426 = pneg %p133
        %p427 = pneg %p130
        %p428 = pneg %p154
        %p429 = pneg %p151
        %p430 = pneg %p175
        %p431 = pneg %p172
        %p432 = pneg %p196
        %p433 = pneg %p193
        %p434 = pneg %p217
        %p435 = pneg %p214
        %p436 = pneg %p238
        %p437 = pneg %p235
        %p438 = pneg %p259
        %p439 = pneg %p256
        %p440 = pneg %p280
        %p441 = pneg %p277
        %p442 = pneg %p306
        %p443 = pneg %p303
        %s444 = sand.u32 %s293, 1
        %s445 = scalar_lea.sflag [#allocation6], %s444
        %s446 = sand.u32 %s293, 1
        %s447 = smul.addr %s446, 64
        %s448 = scalar_lea.vmem [#allocation10], %s447
        %p449 = scmp.lt.s32.totalorder %s28, 1
        %s450 = scalar_select %p449, %s28, 1
        %s451 = smul.addr %s450, 8
        %s452 = smul.addr %s451, 8
        %s453 = scalar_lea.vmem %s0, %s452
        %vm454 = vcmask 64512
        %455 = vst.msk [vmem:[#allocation2] sm:$0xff] %vm454, 0.0
        %vm456 = vcmask 58368
        %457 = vst.msk [vmem:[#allocation2 + $0x8] sm:$0x3] %vm456, 0.0
        %458 = vst.msk [vmem:[#allocation2 + $0x10] sm:$0xff] %vm454, 0.0
        %459 = vst.msk [vmem:[#allocation2 + $0x18] sm:$0x3] %vm456, 0.0
        %460 = vst.msk [vmem:[#allocation2 + $0x20] sm:$0xff] %vm454, 0.0
        %461 = vst.msk [vmem:[#allocation2 + $0x28] sm:$0x3] %vm456, 0.0
        %462 = vst.msk [vmem:[#allocation2 + $0x30] sm:$0xff] %vm454, 0.0
        %463 = vst.msk [vmem:[#allocation2 + $0x38] sm:$0x3] %vm456, 0.0
        %464 = vst.msk [vmem:[#allocation2 + $0x40] sm:$0xff] %vm454, 0.0
        %465 = vst.msk [vmem:[#allocation2 + $0x48] sm:$0x3] %vm456, 0.0
        %466 = vst.msk [vmem:[#allocation2 + $0x50] sm:$0xff] %vm454, 0.0
        %467 = vst.msk [vmem:[#allocation2 + $0x58] sm:$0x3] %vm456, 0.0
        %468 = vst.msk [vmem:[#allocation2 + $0x60] sm:$0xff] %vm454, 0.0
        %469 = vst.msk [vmem:[#allocation2 + $0x68] sm:$0x3] %vm456, 0.0
        %470 = vst.msk [vmem:[#allocation2 + $0x70] sm:$0xff] %vm454, 0.0
        %471 = vst.msk [vmem:[#allocation2 + $0x78] sm:$0x3] %vm456, 0.0
        %472 = vst.msk [vmem:[#allocation2 + $0x80] sm:$0xff] %vm454, 0.0
        %473 = vst.msk [vmem:[#allocation2 + $0x88] sm:$0x3] %vm456, 0.0
        %474 = vst.msk [vmem:[#allocation2 + $0x90] sm:$0xff] %vm454, 0.0
        %475 = vst.msk [vmem:[#allocation2 + $0x98] sm:$0x3] %vm456, 0.0
        %vm476 = vcmask 130048
        %477 = vst.msk [vmem:[#allocation3] sm:$0xff] %vm476, 0.0
        %vm478 = vcmask 123904
        %479 = vst.msk [vmem:[#allocation3 + $0x8] sm:$0x3] %vm478, 0.0
        %480 = vst.msk [vmem:[#allocation3 + $0x10] sm:$0xff] %vm476, 0.0
        %481 = vst.msk [vmem:[#allocation3 + $0x18] sm:$0x3] %vm478, 0.0
        %482 = vst.msk [vmem:[#allocation3 + $0x20] sm:$0xff] %vm476, 0.0
        %483 = vst.msk [vmem:[#allocation3 + $0x28] sm:$0x3] %vm478, 0.0
        %484 = vst.msk [vmem:[#allocation3 + $0x30] sm:$0xff] %vm476, 0.0
        %485 = vst.msk [vmem:[#allocation3 + $0x38] sm:$0x3] %vm478, 0.0
        %486 = vst.msk [vmem:[#allocation3 + $0x40] sm:$0xff] %vm476, 0.0
        %487 = vst.msk [vmem:[#allocation3 + $0x48] sm:$0x3] %vm478, 0.0
        %488 = vst.msk [vmem:[#allocation3 + $0x50] sm:$0xff] %vm476, 0.0
        %489 = vst.msk [vmem:[#allocation3 + $0x58] sm:$0x3] %vm478, 0.0
        %490 = vst.msk [vmem:[#allocation3 + $0x60] sm:$0xff] %vm476, 0.0
        %491 = vst.msk [vmem:[#allocation3 + $0x68] sm:$0x3] %vm478, 0.0
        %492 = vst.msk [vmem:[#allocation3 + $0x70] sm:$0xff] %vm476, 0.0
        %493 = vst.msk [vmem:[#allocation3 + $0x78] sm:$0x3] %vm478, 0.0
        %494 = vst.msk [vmem:[#allocation3 + $0x80] sm:$0xff] %vm476, 0.0
        %495 = vst.msk [vmem:[#allocation3 + $0x88] sm:$0x3] %vm478, 0.0
        %496 = vst.msk [vmem:[#allocation3 + $0x90] sm:$0xff] %vm476, 0.0
        %497 = vst.msk [vmem:[#allocation3 + $0x98] sm:$0x3] %vm478, 0.0
        %v498 = vld [vmem:[%s453] sm:$0xff]
        %v499 = vld [vmem:[%s453 + $0x8] sm:$0xff]
        %v500 = vld [vmem:[%s453 + $0x10] sm:$0xff]
        %v501 = vld [vmem:[%s453 + $0x18] sm:$0xff]
        %v502 = vld [vmem:[%s453 + $0x20] sm:$0xff]
        %v503 = vld [vmem:[%s453 + $0x28] sm:$0xff]
        %v504 = vld [vmem:[%s453 + $0x30] sm:$0xff]
        %v505 = vld [vmem:[%s453 + $0x38] sm:$0xff]
        %v506 = vld [vmem:[%s2] sm:$0xff]
        %v507 = vld [vmem:[%s2 + $0x8] sm:$0xff]
        %v508 = vld [vmem:[%s2 + $0x10] sm:$0xff]
        %v509 = vld [vmem:[%s2 + $0x18] sm:$0xff]
        %v510 = vld [vmem:[%s2 + $0x20] sm:$0xff]
        %v511 = vld [vmem:[%s2 + $0x28] sm:$0xff]
        %v512 = vld [vmem:[%s2 + $0x30] sm:$0xff]
        %v513 = vld [vmem:[%s2 + $0x38] sm:$0xff]
        %v514 = vld [vmem:[%s2 + $0x40] sm:$0xff]
        %v515 = vld [vmem:[%s2 + $0x48] sm:$0xff]
        %v516 = vld [vmem:[%s2 + $0x50] sm:$0xff]
        %v517 = vld [vmem:[%s2 + $0x58] sm:$0xff]
        %v518 = vld [vmem:[%s2 + $0x60] sm:$0xff]
        %v519 = vld [vmem:[%s2 + $0x68] sm:$0xff]
        %v520 = vld [vmem:[%s2 + $0x70] sm:$0xff]
        %v521 = vld [vmem:[%s2 + $0x78] sm:$0xff]
        %v522 = vld [vmem:[%s2 + $0x80] sm:$0xff]
        %v523 = vld [vmem:[%s2 + $0x88] sm:$0xff]
        %v524 = vld [vmem:[%s3] sm:$0xff]
        %v525 = vld [vmem:[%s3 + $0x8] sm:$0xff]
        %v526 = vld [vmem:[%s3 + $0x10] sm:$0xff]
        %v527 = vld [vmem:[%s3 + $0x18] sm:$0xff]
        %v528 = vld [vmem:[%s3 + $0x20] sm:$0xff]
        %v529 = vld [vmem:[%s3 + $0x28] sm:$0xff]
        %v530 = vld [vmem:[%s3 + $0x30] sm:$0xff]
        %v531 = vld [vmem:[%s3 + $0x38] sm:$0xff]
        %v532 = vld [vmem:[%s3 + $0x40] sm:$0xff]
        %v533 = vld [vmem:[%s4] sm:$0xff]
        %v534 = vld [vmem:[%s4 + $0x8] sm:$0xff]
        %v535 = vld [vmem:[%s4 + $0x10] sm:$0xff]
        %v536 = vld [vmem:[%s4 + $0x18] sm:$0xff]
        %v537 = vld [vmem:[%s4 + $0x20] sm:$0xff]
        %v538 = vld [vmem:[%s4 + $0x28] sm:$0xff]
        %v539 = vld [vmem:[%s4 + $0x30] sm:$0xff]
        %v540 = vld [vmem:[%s4 + $0x38] sm:$0xff]
        %v541 = vld [vmem:[%s4 + $0x40] sm:$0xff]
        %v542 = vld [vmem:[%s4 + $0x48] sm:$0xff]
        %v543 = vld [vmem:[%s4 + $0x50] sm:$0xff]
        %v544 = vld [vmem:[%s4 + $0x58] sm:$0xff]
        %v545 = vld [vmem:[%s4 + $0x60] sm:$0xff]
        %v546 = vld [vmem:[%s4 + $0x68] sm:$0xff]
        %v547 = vld [vmem:[%s4 + $0x70] sm:$0xff]
        %v548 = vld [vmem:[%s4 + $0x78] sm:$0xff]
        %v549 = vld [vmem:[%s4 + $0x80] sm:$0xff]
        %v550 = vld [vmem:[%s4 + $0x88] sm:$0xff]
        %v551 = vld [vmem:[%s7] sm:$0xff]
        %v552 = vld [vmem:[#allocation9] sm:$0xff]
        %v553 = vld [vmem:[%s9] sm:$0xff]
        %v554 = vld [vmem:[%s9 + $0x8] sm:$0xff]
        %v555 = vld [vmem:[%s10] sm:$0xff]
        %s556 = scalar_lea.vmem [#allocation2], 16
        %557 = vst.msk [vmem:[%s556 + $0x1] sm:$0xff] %vm454, %v498
        %558 = vst.msk [vmem:[%s556 + $0x11] sm:$0xff] %vm454, %v499
        %559 = vst.msk [vmem:[%s556 + $0x21] sm:$0xff] %vm454, %v500
        %560 = vst.msk [vmem:[%s556 + $0x31] sm:$0xff] %vm454, %v501
        %561 = vst.msk [vmem:[%s556 + $0x41] sm:$0xff] %vm454, %v502
        %562 = vst.msk [vmem:[%s556 + $0x51] sm:$0xff] %vm454, %v503
        %563 = vst.msk [vmem:[%s556 + $0x61] sm:$0xff] %vm454, %v504
        %564 = vst.msk [vmem:[%s556 + $0x71] sm:$0xff] %vm454, %v505
        %v565 = vld [vmem:[#allocation2] sm:$0xff]
        %v566 = vld [vmem:[#allocation2 + $0x10] sm:$0xff]
        %v567 = vld [vmem:[#allocation2 + $0x20] sm:$0xff]
        %v568 = vld [vmem:[#allocation2 + $0x30] sm:$0xff]
        %v569 = vld [vmem:[#allocation2 + $0x40] sm:$0xff]
        %v570 = vld [vmem:[#allocation2 + $0x50] sm:$0xff]
        %v571 = vld [vmem:[#allocation2 + $0x60] sm:$0xff]
        %v572 = vld [vmem:[#allocation2 + $0x70] sm:$0xff]
        %v573 = vld [vmem:[#allocation2 + $0x1] sm:$0xff]
        %v574 = vld [vmem:[#allocation2 + $0x11] sm:$0xff]
        %v575 = vld [vmem:[#allocation2 + $0x21] sm:$0xff]
        %v576 = vld [vmem:[#allocation2 + $0x31] sm:$0xff]
        %v577 = vld [vmem:[#allocation2 + $0x41] sm:$0xff]
        %v578 = vld [vmem:[#allocation2 + $0x51] sm:$0xff]
        %v579 = vld [vmem:[#allocation2 + $0x61] sm:$0xff]
        %v580 = vld [vmem:[#allocation2 + $0x71] sm:$0xff]
        %v582 = vsel %vm454, %v573, 0
        %v585 = vsel %vm454, %v574, 0
        %v588 = vsel %vm454, %v575, 0
        %v591 = vsel %vm454, %v576, 0
        %v594 = vsel %vm454, %v577, 0
        %v597 = vsel %vm454, %v578, 0
        %v600 = vsel %vm454, %v579, 0
        %v603 = vsel %vm454, %v580, 0
        %605 = vmatprep.subr.mxu0 0.0
        %606 = vmatpush1.msra.mxu0 %v507
        %607 = vmatprep.subr.mxu0 0.0
        %608 = vmatpush1.msra.mxu0 0.0
        %609 = vmatprep.subr.mxu0 0.0
        %610 = vmatpush1.msra.mxu0 0.0
        %611 = vmatprep.subr.mxu0 0.0
        %612 = vmatpush1.msra.mxu0 0.0
        %613 = vmatprep.subr.mxu0 0.0
        %614 = vmatpush1.msra.mxu0 0.0
        %615 = vmatprep.subr.mxu0 0.0
        %616 = vmatpush1.msra.mxu0 0.0
        %617 = vmatprep.subr.mxu0 0.0
        %618 = vmatpush1.msra.mxu0 0.0
        %619 = vmatprep.subr.mxu0 0.0
        %620 = vmatpush1.msra.mxu0 0.0
        %621 = vmatprep.subr.mxu0 0.0
        %622 = vmatpush1.msra.mxu0 0.0
        %623 = vmatprep.subr.mxu0 0.0
        %624 = vmatpush1.msra.mxu0 0.0
        %625 = vmatprep.subr.mxu0 0.0
        %626 = vmatpush1.msra.mxu0 0.0
        %627 = vmatprep.subr.mxu0 0.0
        %628 = vmatpush1.msra.mxu0 0.0
        %629 = vmatprep.subr.mxu0 0.0
        %630 = vmatpush1.msra.mxu0 0.0
        %631 = vmatprep.subr.mxu0 0.0
        %632 = vmatpush1.msra.mxu0 0.0
        %633 = vmatprep.subr.mxu0 0.0
        %634 = vmatpush1.msra.mxu0 0.0
        %635 = vmatprep.subr.mxu0 0.0
        %636 = vmatpush1.msra.mxu0 0.0
        %637 = vmatprep.subr.mxu0 0.0
        %638 = vmatpush1.msra.mxu0 0.0
        %639 = vmatprep.subr.mxu0 0.0
        %640 = vmatpush1.msra.mxu0 0.0
        %641 = vmatprep.subr.mxu0 0.0
        %642 = vmatpush1.msra.mxu0 0.0
        %643 = vmatprep.subr.mxu0 0.0
        %644 = vmatpush1.msra.mxu0 0.0
        %645 = vmatprep.subr.mxu0 0.0
        %646 = vmatpush1.msra.mxu0 0.0
        %647 = vmatprep.subr.mxu0 0.0
        %648 = vmatpush1.msra.mxu0 0.0
        %649 = vmatprep.subr.mxu0 0.0
        %650 = vmatpush1.msra.mxu0 0.0
        %651 = vmatprep.subr.mxu0 0.0
        %652 = vmatpush1.msra.mxu0 0.0
        %653 = vmatprep.subr.mxu0 0.0
        %654 = vmatpush1.msra.mxu0 0.0
        %655 = vmatprep.subr.mxu0 0.0
        %656 = vmatpush1.msra.mxu0 0.0
        %657 = vmatprep.subr.mxu0 0.0
        %658 = vmatpush1.msra.mxu0 0.0
        %659 = vmatprep.subr.mxu0 0.0
        %660 = vmatpush1.msra.mxu0 0.0
        %661 = vmatprep.subr.mxu0 0.0
        %662 = vmatpush1.msra.mxu0 0.0
        %663 = vmatprep.subr.mxu0 0.0
        %664 = vmatpush1.msra.mxu0 0.0
        %665 = vmatprep.subr.mxu0 0.0
        %666 = vmatpush1.msra.mxu0 0.0
        %667 = vmatprep.subr.mxu0 0.0
        %668 = vmatpush1.msra.mxu0 0.0
        %669 = vmatprep.mubr.f32.mxu0 0.0
        %670 = vmatmul.mubr.f32.gmra.mrb[0].mxu0 %v582
        %v671 = vpop.f32.mrb[0].mxu0
        %v672 = vadd.f32 0.0, %v671
        %v673 = vpop.f32.mrb[0].mxu0
        %674 = vmatprep.mubr.f32.mxu0 0.0
        %675 = vmatmul.mubr.f32.gmra.mrb[0].mxu0 %v585
        %v676 = vpop.f32.mrb[0].mxu0
        %v677 = vadd.f32 0.0, %v676
        %v678 = vpop.f32.mrb[0].mxu0
        %679 = vmatprep.mubr.f32.mxu0 0.0
        %680 = vmatmul.mubr.f32.gmra.mrb[0].mxu0 %v588
        %v681 = vpop.f32.mrb[0].mxu0
        %v682 = vadd.f32 0.0, %v681
        %v683 = vpop.f32.mrb[0].mxu0
        %684 = vmatprep.mubr.f32.mxu0 0.0
        %685 = vmatmul.mubr.f32.gmra.mrb[0].mxu0 %v591
        %v686 = vpop.f32.mrb[0].mxu0
        %v687 = vadd.f32 0.0, %v686
        %v688 = vpop.f32.mrb[0].mxu0
        %689 = vmatprep.mubr.f32.mxu0 0.0
        %690 = vmatmul.mubr.f32.gmra.mrb[0].mxu0 %v594
        %v691 = vpop.f32.mrb[0].mxu0
        %v692 = vadd.f32 0.0, %v691
        %v693 = vpop.f32.mrb[0].mxu0
        %694 = vmatprep.mubr.f32.mxu0 0.0
        %695 = vmatmul.mubr.f32.gmra.mrb[0].mxu0 %v597
        %v696 = vpop.f32.mrb[0].mxu0
        %v697 = vadd.f32 0.0, %v696
        %v698 = vpop.f32.mrb[0].mxu0
        %699 = vmatprep.mubr.f32.mxu0 0.0
        %700 = vmatmul.mubr.f32.gmra.mrb[0].mxu0 %v600
        %v701 = vpop.f32.mrb[0].mxu0
        %v702 = vadd.f32 0.0, %v701
        %v703 = vpop.f32.mrb[0].mxu0
        %704 = vmatprep.mubr.f32.mxu0 0.0
        %705 = vmatmul.mubr.f32.gmra.mrb[0].mxu0 %v603
        %v706 = vpop.f32.mrb[0].mxu0
        %v707 = vadd.f32 0.0, %v706
        %v708 = vpop.f32.mrb[0].mxu0
        %709 = vdwg.mxu0
        %v711 = vsel %vm454, %v565, 0
        %v714 = vsel %vm454, %v566, 0
        %v717 = vsel %vm454, %v567, 0
        %v720 = vsel %vm454, %v568, 0
        %v723 = vsel %vm454, %v569, 0
        %v726 = vsel %vm454, %v570, 0
        %v729 = vsel %vm454, %v571, 0
        %v732 = vsel %vm454, %v572, 0
        %734 = vmatprep.subr.mxu0 0.0
        %735 = vmatpush1.msra.mxu0 %v506
        %736 = vmatprep.subr.mxu0 0.0
        %737 = vmatpush1.msra.mxu0 0.0
        %738 = vmatprep.subr.mxu0 0.0
        %739 = vmatpush1.msra.mxu0 0.0
        %740 = vmatprep.subr.mxu0 0.0
        %741 = vmatpush1.msra.mxu0 0.0
        %742 = vmatprep.subr.mxu0 0.0
        %743 = vmatpush1.msra.mxu0 0.0
        %744 = vmatprep.subr.mxu0 0.0
        %745 = vmatpush1.msra.mxu0 0.0
        %746 = vmatprep.subr.mxu0 0.0
        %747 = vmatpush1.msra.mxu0 0.0
        %748 = vmatprep.subr.mxu0 0.0
        %749 = vmatpush1.msra.mxu0 0.0
        %750 = vmatprep.subr.mxu0 0.0
        %751 = vmatpush1.msra.mxu0 0.0
        %752 = vmatprep.subr.mxu0 0.0
        %753 = vmatpush1.msra.mxu0 0.0
        %754 = vmatprep.subr.mxu0 0.0
        %755 = vmatpush1.msra.mxu0 0.0
        %756 = vmatprep.subr.mxu0 0.0
        %757 = vmatpush1.msra.mxu0 0.0
        %758 = vmatprep.subr.mxu0 0.0
        %759 = vmatpush1.msra.mxu0 0.0
        %760 = vmatprep.subr.mxu0 0.0
        %761 = vmatpush1.msra.mxu0 0.0
        %762 = vmatprep.subr.mxu0 0.0
        %763 = vmatpush1.msra.mxu0 0.0
        %764 = vmatprep.subr.mxu0 0.0
        %765 = vmatpush1.msra.mxu0 0.0
        %766 = vmatprep.subr.mxu0 0.0
        %767 = vmatpush1.msra.mxu0 0.0
        %768 = vmatprep.subr.mxu0 0.0
        %769 = vmatpush1.msra.mxu0 0.0
        %770 = vmatprep.subr.mxu0 0.0
        %771 = vmatpush1.msra.mxu0 0.0
        %772 = vmatprep.subr.mxu0 0.0
        %773 = vmatpush1.msra.mxu0 0.0
        %774 = vmatprep.subr.mxu0 0.0
        %775 = vmatpush1.msra.mxu0 0.0
        %776 = vmatprep.subr.mxu0 0.0
        %777 = vmatpush1.msra.mxu0 0.0
        %778 = vmatprep.subr.mxu0 0.0
        %779 = vmatpush1.msra.mxu0 0.0
        %780 = vmatprep.subr.mxu0 0.0
        %781 = vmatpush1.msra.mxu0 0.0
        %782 = vmatprep.subr.mxu0 0.0
        %783 = vmatpush1.msra.mxu0 0.0
        %784 = vmatprep.subr.mxu0 0.0
        %785 = vmatpush1.msra.mxu0 0.0
        %786 = vmatprep.subr.mxu0 0.0
        %787 = vmatpush1.msra.mxu0 0.0
        %788 = vmatprep.subr.mxu0 0.0
        %789 = vmatpush1.msra.mxu0 0.0
        %790 = vmatprep.subr.mxu0 0.0
        %791 = vmatpush1.msra.mxu0 0.0
        %792 = vmatprep.subr.mxu0 0.0
        %793 = vmatpush1.msra.mxu0 0.0
        %794 = vmatprep.subr.mxu0 0.0
        %795 = vmatpush1.msra.mxu0 0.0
        %796 = vmatprep.subr.mxu0 0.0
        %797 = vmatpush1.msra.mxu0 0.0
        %798 = vmatprep.mubr.f32.mxu0 0.0
        %799 = vmatmul.mubr.f32.gmra.mrb[0].mxu0 %v711
        %v800 = vpop.f32.mrb[0].mxu0
        %v801 = vadd.f32 %v672, %v800
        %v802 = vpop.f32.mrb[0].mxu0
        %803 = vmatprep.mubr.f32.mxu0 0.0
        %804 = vmatmul.mubr.f32.gmra.mrb[0].mxu0 %v714
        %v805 = vpop.f32.mrb[0].mxu0
        %v806 = vadd.f32 %v677, %v805
        %v807 = vpop.f32.mrb[0].mxu0
        %808 = vmatprep.mubr.f32.mxu0 0.0
        %809 = vmatmul.mubr.f32.gmra.mrb[0].mxu0 %v717
        %v810 = vpop.f32.mrb[0].mxu0
        %v811 = vadd.f32 %v682, %v810
        %v812 = vpop.f32.mrb[0].mxu0
        %813 = vmatprep.mubr.f32.mxu0 0.0
        %814 = vmatmul.mubr.f32.gmra.mrb[0].mxu0 %v720
        %v815 = vpop.f32.mrb[0].mxu0
        %v816 = vadd.f32 %v687, %v815
        %v817 = vpop.f32.mrb[0].mxu0
        %818 = vmatprep.mubr.f32.mxu0 0.0
        %819 = vmatmul.mubr.f32.gmra.mrb[0].mxu0 %v723
        %v820 = vpop.f32.mrb[0].mxu0
        %v821 = vadd.f32 %v692, %v820
        %v822 = vpop.f32.mrb[0].mxu0
        %823 = vmatprep.mubr.f32.mxu0 0.0
        %824 = vmatmul.mubr.f32.gmra.mrb[0].mxu0 %v726
        %v825 = vpop.f32.mrb[0].mxu0
        %v826 = vadd.f32 %v697, %v825
        %v827 = vpop.f32.mrb[0].mxu0
        %828 = vmatprep.mubr.f32.mxu0 0.0
        %829 = vmatmul.mubr.f32.gmra.mrb[0].mxu0 %v729
        %v830 = vpop.f32.mrb[0].mxu0
        %v831 = vadd.f32 %v702, %v830
        %v832 = vpop.f32.mrb[0].mxu0
        %833 = vmatprep.mubr.f32.mxu0 0.0
        %834 = vmatmul.mubr.f32.gmra.mrb[0].mxu0 %v732
        %v835 = vpop.f32.mrb[0].mxu0
        %v836 = vadd.f32 %v707, %v835
        %v837 = vpop.f32.mrb[0].mxu0
        %838 = vdwg.mxu0
        %v839 = vld [vmem:[#allocation2 + $0x2] sm:$0xff]
        %v840 = vld [vmem:[#allocation2 + $0x12] sm:$0xff]
        %v841 = vld [vmem:[#allocation2 + $0x22] sm:$0xff]
        %v842 = vld [vmem:[#allocation2 + $0x32] sm:$0xff]
        %v843 = vld [vmem:[#allocation2 + $0x42] sm:$0xff]
        %v844 = vld [vmem:[#allocation2 + $0x52] sm:$0xff]
        %v845 = vld [vmem:[#allocation2 + $0x62] sm:$0xff]
        %v846 = vld [vmem:[#allocation2 + $0x72] sm:$0xff]
        %v848 = vsel %vm454, %v839, 0
        %v851 = vsel %vm454, %v840, 0
        %v854 = vsel %vm454, %v841, 0
        %v857 = vsel %vm454, %v842, 0
        %v860 = vsel %vm454, %v843, 0
        %v863 = vsel %vm454, %v844, 0
        %v866 = vsel %vm454, %v845, 0
        %v869 = vsel %vm454, %v846, 0
        %871 = vmatprep.subr.mxu0 0.0
        %872 = vmatpush1.msra.mxu0 %v508
        %873 = vmatprep.subr.mxu0 0.0
        %874 = vmatpush1.msra.mxu0 0.0
        %875 = vmatprep.subr.mxu0 0.0
        %876 = vmatpush1.msra.mxu0 0.0
        %877 = vmatprep.subr.mxu0 0.0
        %878 = vmatpush1.msra.mxu0 0.0
        %879 = vmatprep.subr.mxu0 0.0
        %880 = vmatpush1.msra.mxu0 0.0
        %881 = vmatprep.subr.mxu0 0.0
        %882 = vmatpush1.msra.mxu0 0.0
        %883 = vmatprep.subr.mxu0 0.0
        %884 = vmatpush1.msra.mxu0 0.0
        %885 = vmatprep.subr.mxu0 0.0
        %886 = vmatpush1.msra.mxu0 0.0
        %887 = vmatprep.subr.mxu0 0.0
        %888 = vmatpush1.msra.mxu0 0.0
        %889 = vmatprep.subr.mxu0 0.0
        %890 = vmatpush1.msra.mxu0 0.0
        %891 = vmatprep.subr.mxu0 0.0
        %892 = vmatpush1.msra.mxu0 0.0
        %893 = vmatprep.subr.mxu0 0.0
        %894 = vmatpush1.msra.mxu0 0.0
        %895 = vmatprep.subr.mxu0 0.0
        %896 = vmatpush1.msra.mxu0 0.0
        %897 = vmatprep.subr.mxu0 0.0
        %898 = vmatpush1.msra.mxu0 0.0
        %899 = vmatprep.subr.mxu0 0.0
        %900 = vmatpush1.msra.mxu0 0.0
        %901 = vmatprep.subr.mxu0 0.0
        %902 = vmatpush1.msra.mxu0 0.0
        %903 = vmatprep.subr.mxu0 0.0
        %904 = vmatpush1.msra.mxu0 0.0
        %905 = vmatprep.subr.mxu0 0.0
        %906 = vmatpush1.msra.mxu0 0.0
        %907 = vmatprep.subr.mxu0 0.0
        %908 = vmatpush1.msra.mxu0 0.0
        %909 = vmatprep.subr.mxu0 0.0
        %910 = vmatpush1.msra.mxu0 0.0
        %911 = vmatprep.subr.mxu0 0.0
        %912 = vmatpush1.msra.mxu0 0.0
        %913 = vmatprep.subr.mxu0 0.0
        %914 = vmatpush1.msra.mxu0 0.0
        %915 = vmatprep.subr.mxu0 0.0
        %916 = vmatpush1.msra.mxu0 0.0
        %917 = vmatprep.subr.mxu0 0.0
        %918 = vmatpush1.msra.mxu0 0.0
        %919 = vmatprep.subr.mxu0 0.0
        %920 = vmatpush1.msra.mxu0 0.0
        %921 = vmatprep.subr.mxu0 0.0
        %922 = vmatpush1.msra.mxu0 0.0
        %923 = vmatprep.subr.mxu0 0.0
        %924 = vmatpush1.msra.mxu0 0.0
        %925 = vmatprep.subr.mxu0 0.0
        %926 = vmatpush1.msra.mxu0 0.0
        %927 = vmatprep.subr.mxu0 0.0
        %928 = vmatpush1.msra.mxu0 0.0
        %929 = vmatprep.subr.mxu0 0.0
        %930 = vmatpush1.msra.mxu0 0.0
        %931 = vmatprep.subr.mxu0 0.0
        %932 = vmatpush1.msra.mxu0 0.0
        %933 = vmatprep.subr.mxu0 0.0
        %934 = vmatpush1.msra.mxu0 0.0
        %935 = vmatprep.mubr.f32.mxu0 0.0
        %936 = vmatmul.mubr.f32.gmra.mrb[0].mxu0 %v848
        %v937 = vpop.f32.mrb[0].mxu0
        %v938 = vadd.f32 0.0, %v937
        %v939 = vpop.f32.mrb[0].mxu0
        %940 = vmatprep.mubr.f32.mxu0 0.0
        %941 = vmatmul.mubr.f32.gmra.mrb[0].mxu0 %v851
        %v942 = vpop.f32.mrb[0].mxu0
        %v943 = vadd.f32 0.0, %v942
        %v944 = vpop.f32.mrb[0].mxu0
        %945 = vmatprep.mubr.f32.mxu0 0.0
        %946 = vmatmul.mubr.f32.gmra.mrb[0].mxu0 %v854
        %v947 = vpop.f32.mrb[0].mxu0
        %v948 = vadd.f32 0.0, %v947
        %v949 = vpop.f32.mrb[0].mxu0
        %950 = vmatprep.mubr.f32.mxu0 0.0
        %951 = vmatmul.mubr.f32.gmra.mrb[0].mxu0 %v857
        %v952 = vpop.f32.mrb[0].mxu0
        %v953 = vadd.f32 0.0, %v952
        %v954 = vpop.f32.mrb[0].mxu0
        %955 = vmatprep.mubr.f32.mxu0 0.0
        %956 = vmatmul.mubr.f32.gmra.mrb[0].mxu0 %v860
        %v957 = vpop.f32.mrb[0].mxu0
        %v958 = vadd.f32 0.0, %v957
        %v959 = vpop.f32.mrb[0].mxu0
        %960 = vmatprep.mubr.f32.mxu0 0.0
        %961 = vmatmul.mubr.f32.gmra.mrb[0].mxu0 %v863
        %v962 = vpop.f32.mrb[0].mxu0
        %v963 = vadd.f32 0.0, %v962
        %v964 = vpop.f32.mrb[0].mxu0
        %965 = vmatprep.mubr.f32.mxu0 0.0
        %966 = vmatmul.mubr.f32.gmra.mrb[0].mxu0 %v866
        %v967 = vpop.f32.mrb[0].mxu0
        %v968 = vadd.f32 0.0, %v967
        %v969 = vpop.f32.mrb[0].mxu0
        %970 = vmatprep.mubr.f32.mxu0 0.0
        %971 = vmatmul.mubr.f32.gmra.mrb[0].mxu0 %v869
        %v972 = vpop.f32.mrb[0].mxu0
        %v973 = vadd.f32 0.0, %v972
        %v974 = vpop.f32.mrb[0].mxu0
        %975 = vdwg.mxu0
        %v976 = vadd.f32 %v801, %v938
        %v977 = vadd.f32 %v806, %v943
        %v978 = vadd.f32 %v811, %v948
        %v979 = vadd.f32 %v816, %v953
        %v980 = vadd.f32 %v821, %v958
        %v981 = vadd.f32 %v826, %v963
        %v982 = vadd.f32 %v831, %v968
        %v983 = vadd.f32 %v836, %v973
        %v984 = vld [vmem:[%s556] sm:$0xff]
        %v985 = vld [vmem:[%s556 + $0x10] sm:$0xff]
        %v986 = vld [vmem:[%s556 + $0x20] sm:$0xff]
        %v987 = vld [vmem:[%s556 + $0x30] sm:$0xff]
        %v988 = vld [vmem:[%s556 + $0x40] sm:$0xff]
        %v989 = vld [vmem:[%s556 + $0x50] sm:$0xff]
        %v990 = vld [vmem:[%s556 + $0x60] sm:$0xff]
        %v991 = vld [vmem:[%s556 + $0x70] sm:$0xff]
        %v993 = vsel %vm454, %v984, 0
        %v996 = vsel %vm454, %v985, 0
        %v999 = vsel %vm454, %v986, 0
        %v1002 = vsel %vm454, %v987, 0
        %v1005 = vsel %vm454, %v988, 0
        %v1008 = vsel %vm454, %v989, 0
        %v1011 = vsel %vm454, %v990, 0
        %v1014 = vsel %vm454, %v991, 0
        %1016 = vmatprep.subr.mxu0 0.0
        %1017 = vmatpush1.msra.mxu0 %v509
        %1018 = vmatprep.subr.mxu0 0.0
        %1019 = vmatpush1.msra.mxu0 0.0
        %1020 = vmatprep.subr.mxu0 0.0
        %1021 = vmatpush1.msra.mxu0 0.0
        %1022 = vmatprep.subr.mxu0 0.0
        %1023 = vmatpush1.msra.mxu0 0.0
        %1024 = vmatprep.subr.mxu0 0.0
        %1025 = vmatpush1.msra.mxu0 0.0
        %1026 = vmatprep.subr.mxu0 0.0
        %1027 = vmatpush1.msra.mxu0 0.0
        %1028 = vmatprep.subr.mxu0 0.0
        %1029 = vmatpush1.msra.mxu0 0.0
        %1030 = vmatprep.subr.mxu0 0.0
        %1031 = vmatpush1.msra.mxu0 0.0
        %1032 = vmatprep.subr.mxu0 0.0
        %1033 = vmatpush1.msra.mxu0 0.0
        %1034 = vmatprep.subr.mxu0 0.0
        %1035 = vmatpush1.msra.mxu0 0.0
        %1036 = vmatprep.subr.mxu0 0.0
        %1037 = vmatpush1.msra.mxu0 0.0
        %1038 = vmatprep.subr.mxu0 0.0
        %1039 = vmatpush1.msra.mxu0 0.0
        %1040 = vmatprep.subr.mxu0 0.0
        %1041 = vmatpush1.msra.mxu0 0.0
        %1042 = vmatprep.subr.mxu0 0.0
        %1043 = vmatpush1.msra.mxu0 0.0
        %1044 = vmatprep.subr.mxu0 0.0
        %1045 = vmatpush1.msra.mxu0 0.0
        %1046 = vmatprep.subr.mxu0 0.0
        %1047 = vmatpush1.msra.mxu0 0.0
        %1048 = vmatprep.subr.mxu0 0.0
        %1049 = vmatpush1.msra.mxu0 0.0
        %1050 = vmatprep.subr.mxu0 0.0
        %1051 = vmatpush1.msra.mxu0 0.0
        %1052 = vmatprep.subr.mxu0 0.0
        %1053 = vmatpush1.msra.mxu0 0.0
        %1054 = vmatprep.subr.mxu0 0.0
        %1055 = vmatpush1.msra.mxu0 0.0
        %1056 = vmatprep.subr.mxu0 0.0
        %1057 = vmatpush1.msra.mxu0 0.0
        %1058 = vmatprep.subr.mxu0 0.0
        %1059 = vmatpush1.msra.mxu0 0.0
        %1060 = vmatprep.subr.mxu0 0.0
        %1061 = vmatpush1.msra.mxu0 0.0
        %1062 = vmatprep.subr.mxu0 0.0
        %1063 = vmatpush1.msra.mxu0 0.0
        %1064 = vmatprep.subr.mxu0 0.0
        %1065 = vmatpush1.msra.mxu0 0.0
        %1066 = vmatprep.subr.mxu0 0.0
        %1067 = vmatpush1.msra.mxu0 0.0
        %1068 = vmatprep.subr.mxu0 0.0
        %1069 = vmatpush1.msra.mxu0 0.0
        %1070 = vmatprep.subr.mxu0 0.0
        %1071 = vmatpush1.msra.mxu0 0.0
        %1072 = vmatprep.subr.mxu0 0.0
        %1073 = vmatpush1.msra.mxu0 0.0
        %1074 = vmatprep.subr.mxu0 0.0
        %1075 = vmatpush1.msra.mxu0 0.0
        %1076 = vmatprep.subr.mxu0 0.0
        %1077 = vmatpush1.msra.mxu0 0.0
        %1078 = vmatprep.subr.mxu0 0.0
        %1079 = vmatpush1.msra.mxu0 0.0
        %1080 = vmatprep.mubr.f32.mxu0 0.0
        %1081 = vmatmul.mubr.f32.gmra.mrb[0].mxu0 %v993
        %v1082 = vpop.f32.mrb[0].mxu0
        %v1083 = vadd.f32 0.0, %v1082
        %v1084 = vpop.f32.mrb[0].mxu0
        %1085 = vmatprep.mubr.f32.mxu0 0.0
        %1086 = vmatmul.mubr.f32.gmra.mrb[0].mxu0 %v996
        %v1087 = vpop.f32.mrb[0].mxu0
        %v1088 = vadd.f32 0.0, %v1087
        %v1089 = vpop.f32.mrb[0].mxu0
        %1090 = vmatprep.mubr.f32.mxu0 0.0
        %1091 = vmatmul.mubr.f32.gmra.mrb[0].mxu0 %v999
        %v1092 = vpop.f32.mrb[0].mxu0
        %v1093 = vadd.f32 0.0, %v1092
        %v1094 = vpop.f32.mrb[0].mxu0
        %1095 = vmatprep.mubr.f32.mxu0 0.0
        %1096 = vmatmul.mubr.f32.gmra.mrb[0].mxu0 %v1002
        %v1097 = vpop.f32.mrb[0].mxu0
        %v1098 = vadd.f32 0.0, %v1097
        %v1099 = vpop.f32.mrb[0].mxu0
        %1100 = vmatprep.mubr.f32.mxu0 0.0
        %1101 = vmatmul.mubr.f32.gmra.mrb[0].mxu0 %v1005
        %v1102 = vpop.f32.mrb[0].mxu0
        %v1103 = vadd.f32 0.0, %v1102
        %v1104 = vpop.f32.mrb[0].mxu0
        %1105 = vmatprep.mubr.f32.mxu0 0.0
        %1106 = vmatmul.mubr.f32.gmra.mrb[0].mxu0 %v1008
        %v1107 = vpop.f32.mrb[0].mxu0
        %v1108 = vadd.f32 0.0, %v1107
        %v1109 = vpop.f32.mrb[0].mxu0
        %1110 = vmatprep.mubr.f32.mxu0 0.0
        %1111 = vmatmul.mubr.f32.gmra.mrb[0].mxu0 %v1011
        %v1112 = vpop.f32.mrb[0].mxu0
        %v1113 = vadd.f32 0.0, %v1112
        %v1114 = vpop.f32.mrb[0].mxu0
        %1115 = vmatprep.mubr.f32.mxu0 0.0
        %1116 = vmatmul.mubr.f32.gmra.mrb[0].mxu0 %v1014
        %v1117 = vpop.f32.mrb[0].mxu0
        %v1118 = vadd.f32 0.0, %v1117
        %v1119 = vpop.f32.mrb[0].mxu0
        %1120 = vdwg.mxu0
        %v1121 = vadd.f32 %v976, %v1083
        %v1122 = vadd.f32 %v977, %v1088
        %v1123 = vadd.f32 %v978, %v1093
        %v1124 = vadd.f32 %v979, %v1098
        %v1125 = vadd.f32 %v980, %v1103
        %v1126 = vadd.f32 %v981, %v1108
        %v1127 = vadd.f32 %v982, %v1113
        %v1128 = vadd.f32 %v983, %v1118
        %v1129 = vld [vmem:[%s556 + $0x1] sm:$0xff]
        %v1130 = vld [vmem:[%s556 + $0x11] sm:$0xff]
        %v1131 = vld [vmem:[%s556 + $0x21] sm:$0xff]
        %v1132 = vld [vmem:[%s556 + $0x31] sm:$0xff]
        %v1133 = vld [vmem:[%s556 + $0x41] sm:$0xff]
        %v1134 = vld [vmem:[%s556 + $0x51] sm:$0xff]
        %v1135 = vld [vmem:[%s556 + $0x61] sm:$0xff]
        %v1136 = vld [vmem:[%s556 + $0x71] sm:$0xff]
        %v1138 = vsel %vm454, %v1129, 0
        %v1141 = vsel %vm454, %v1130, 0
        %v1144 = vsel %vm454, %v1131, 0
        %v1147 = vsel %vm454, %v1132, 0
        %v1150 = vsel %vm454, %v1133, 0
        %v1153 = vsel %vm454, %v1134, 0
        %v1156 = vsel %vm454, %v1135, 0
        %v1159 = vsel %vm454, %v1136, 0
        %1161 = vmatprep.subr.mxu0 0.0
        %1162 = vmatpush1.msra.mxu0 %v510
        %1163 = vmatprep.subr.mxu0 0.0
        %1164 = vmatpush1.msra.mxu0 0.0
        %1165 = vmatprep.subr.mxu0 0.0
        %1166 = vmatpush1.msra.mxu0 0.0
        %1167 = vmatprep.subr.mxu0 0.0
        %1168 = vmatpush1.msra.mxu0 0.0
        %1169 = vmatprep.subr.mxu0 0.0
        %1170 = vmatpush1.msra.mxu0 0.0
        %1171 = vmatprep.subr.mxu0 0.0
        %1172 = vmatpush1.msra.mxu0 0.0
        %1173 = vmatprep.subr.mxu0 0.0
        %1174 = vmatpush1.msra.mxu0 0.0
        %1175 = vmatprep.subr.mxu0 0.0
        %1176 = vmatpush1.msra.mxu0 0.0
        %1177 = vmatprep.subr.mxu0 0.0
        %1178 = vmatpush1.msra.mxu0 0.0
        %1179 = vmatprep.subr.mxu0 0.0
        %1180 = vmatpush1.msra.mxu0 0.0
        %1181 = vmatprep.subr.mxu0 0.0
        %1182 = vmatpush1.msra.mxu0 0.0
        %1183 = vmatprep.subr.mxu0 0.0
        %1184 = vmatpush1.msra.mxu0 0.0
        %1185 = vmatprep.subr.mxu0 0.0
        %1186 = vmatpush1.msra.mxu0 0.0
        %1187 = vmatprep.subr.mxu0 0.0
        %1188 = vmatpush1.msra.mxu0 0.0
        %1189 = vmatprep.subr.mxu0 0.0
        %1190 = vmatpush1.msra.mxu0 0.0
        %1191 = vmatprep.subr.mxu0 0.0
        %1192 = vmatpush1.msra.mxu0 0.0
        %1193 = vmatprep.subr.mxu0 0.0
        %1194 = vmatpush1.msra.mxu0 0.0
        %1195 = vmatprep.subr.mxu0 0.0
        %1196 = vmatpush1.msra.mxu0 0.0
        %1197 = vmatprep.subr.mxu0 0.0
        %1198 = vmatpush1.msra.mxu0 0.0
        %1199 = vmatprep.subr.mxu0 0.0
        %1200 = vmatpush1.msra.mxu0 0.0
        %1201 = vmatprep.subr.mxu0 0.0
        %1202 = vmatpush1.msra.mxu0 0.0
        %1203 = vmatprep.subr.mxu0 0.0
        %1204 = vmatpush1.msra.mxu0 0.0
        %1205 = vmatprep.subr.mxu0 0.0
        %1206 = vmatpush1.msra.mxu0 0.0
        %1207 = vmatprep.subr.mxu0 0.0
        %1208 = vmatpush1.msra.mxu0 0.0
        %1209 = vmatprep.subr.mxu0 0.0
        %1210 = vmatpush1.msra.mxu0 0.0
        %1211 = vmatprep.subr.mxu0 0.0
        %1212 = vmatpush1.msra.mxu0 0.0
        %1213 = vmatprep.subr.mxu0 0.0
        %1214 = vmatpush1.msra.mxu0 0.0
        %1215 = vmatprep.subr.mxu0 0.0
        %1216 = vmatpush1.msra.mxu0 0.0
        %1217 = vmatprep.subr.mxu0 0.0
        %1218 = vmatpush1.msra.mxu0 0.0
        %1219 = vmatprep.subr.mxu0 0.0
        %1220 = vmatpush1.msra.mxu0 0.0
        %1221 = vmatprep.subr.mxu0 0.0
        %1222 = vmatpush1.msra.mxu0 0.0
        %1223 = vmatprep.subr.mxu0 0.0
        %1224 = vmatpush1.msra.mxu0 0.0
        %1225 = vmatprep.mubr.f32.mxu0 0.0
        %1226 = vmatmul.mubr.f32.gmra.mrb[0].mxu0 %v1138
        %v1227 = vpop.f32.mrb[0].mxu0
        %v1228 = vadd.f32 0.0, %v1227
        %v1229 = vpop.f32.mrb[0].mxu0
        %1230 = vmatprep.mubr.f32.mxu0 0.0
        %1231 = vmatmul.mubr.f32.gmra.mrb[0].mxu0 %v1141
        %v1232 = vpop.f32.mrb[0].mxu0
        %v1233 = vadd.f32 0.0, %v1232
        %v1234 = vpop.f32.mrb[0].mxu0
        %1235 = vmatprep.mubr.f32.mxu0 0.0
        %1236 = vmatmul.mubr.f32.gmra.mrb[0].mxu0 %v1144
        %v1237 = vpop.f32.mrb[0].mxu0
        %v1238 = vadd.f32 0.0, %v1237
        %v1239 = vpop.f32.mrb[0].mxu0
        %1240 = vmatprep.mubr.f32.mxu0 0.0
        %1241 = vmatmul.mubr.f32.gmra.mrb[0].mxu0 %v1147
        %v1242 = vpop.f32.mrb[0].mxu0
        %v1243 = vadd.f32 0.0, %v1242
        %v1244 = vpop.f32.mrb[0].mxu0
        %1245 = vmatprep.mubr.f32.mxu0 0.0
        %1246 = vmatmul.mubr.f32.gmra.mrb[0].mxu0 %v1150
        %v1247 = vpop.f32.mrb[0].mxu0
        %v1248 = vadd.f32 0.0, %v1247
        %v1249 = vpop.f32.mrb[0].mxu0
        %1250 = vmatprep.mubr.f32.mxu0 0.0
        %1251 = vmatmul.mubr.f32.gmra.mrb[0].mxu0 %v1153
        %v1252 = vpop.f32.mrb[0].mxu0
        %v1253 = vadd.f32 0.0, %v1252
        %v1254 = vpop.f32.mrb[0].mxu0
        %1255 = vmatprep.mubr.f32.mxu0 0.0
        %1256 = vmatmul.mubr.f32.gmra.mrb[0].mxu0 %v1156
        %v1257 = vpop.f32.mrb[0].mxu0
        %v1258 = vadd.f32 0.0, %v1257
        %v1259 = vpop.f32.mrb[0].mxu0
        %1260 = vmatprep.mubr.f32.mxu0 0.0
        %1261 = vmatmul.mubr.f32.gmra.mrb[0].mxu0 %v1159
        %v1262 = vpop.f32.mrb[0].mxu0
        %v1263 = vadd.f32 0.0, %v1262
        %v1264 = vpop.f32.mrb[0].mxu0
        %1265 = vdwg.mxu0
        %v1266 = vadd.f32 %v1121, %v1228
        %v1267 = vadd.f32 %v1122, %v1233
        %v1268 = vadd.f32 %v1123, %v1238
        %v1269 = vadd.f32 %v1124, %v1243
        %v1270 = vadd.f32 %v1125, %v1248
        %v1271 = vadd.f32 %v1126, %v1253
        %v1272 = vadd.f32 %v1127, %v1258
        %v1273 = vadd.f32 %v1128, %v1263
        %v1274 = vld [vmem:[%s556 + $0x2] sm:$0xff]
        %v1275 = vld [vmem:[%s556 + $0x12] sm:$0xff]
        %v1276 = vld [vmem:[%s556 + $0x22] sm:$0xff]
        %v1277 = vld [vmem:[%s556 + $0x32] sm:$0xff]
        %v1278 = vld [vmem:[%s556 + $0x42] sm:$0xff]
        %v1279 = vld [vmem:[%s556 + $0x52] sm:$0xff]
        %v1280 = vld [vmem:[%s556 + $0x62] sm:$0xff]
        %v1281 = vld [vmem:[%s556 + $0x72] sm:$0xff]
        %v1283 = vsel %vm454, %v1274, 0
        %v1286 = vsel %vm454, %v1275, 0
        %v1289 = vsel %vm454, %v1276, 0
        %v1292 = vsel %vm454, %v1277, 0
        %v1295 = vsel %vm454, %v1278, 0
        %v1298 = vsel %vm454, %v1279, 0
        %v1301 = vsel %vm454, %v1280, 0
        %v1304 = vsel %vm454, %v1281, 0
        %1306 = vmatprep.subr.mxu0 0.0
        %1307 = vmatpush1.msra.mxu0 %v511
        %1308 = vmatprep.subr.mxu0 0.0
        %1309 = vmatpush1.msra.mxu0 0.0
        %1310 = vmatprep.subr.mxu0 0.0
        %1311 = vmatpush1.msra.mxu0 0.0
        %1312 = vmatprep.subr.mxu0 0.0
        %1313 = vmatpush1.msra.mxu0 0.0
        %1314 = vmatprep.subr.mxu0 0.0
        %1315 = vmatpush1.msra.mxu0 0.0
        %1316 = vmatprep.subr.mxu0 0.0
        %1317 = vmatpush1.msra.mxu0 0.0
        %1318 = vmatprep.subr.mxu0 0.0
        %1319 = vmatpush1.msra.mxu0 0.0
        %1320 = vmatprep.subr.mxu0 0.0
        %1321 = vmatpush1.msra.mxu0 0.0
        %1322 = vmatprep.subr.mxu0 0.0
        %1323 = vmatpush1.msra.mxu0 0.0
        %1324 = vmatprep.subr.mxu0 0.0
        %1325 = vmatpush1.msra.mxu0 0.0
        %1326 = vmatprep.subr.mxu0 0.0
        %1327 = vmatpush1.msra.mxu0 0.0
        %1328 = vmatprep.subr.mxu0 0.0
        %1329 = vmatpush1.msra.mxu0 0.0
        %1330 = vmatprep.subr.mxu0 0.0
        %1331 = vmatpush1.msra.mxu0 0.0
        %1332 = vmatprep.subr.mxu0 0.0
        %1333 = vmatpush1.msra.mxu0 0.0
        %1334 = vmatprep.subr.mxu0 0.0
        %1335 = vmatpush1.msra.mxu0 0.0
        %1336 = vmatprep.subr.mxu0 0.0
        %1337 = vmatpush1.msra.mxu0 0.0
        %1338 = vmatprep.subr.mxu0 0.0
        %1339 = vmatpush1.msra.mxu0 0.0
        %1340 = vmatprep.subr.mxu0 0.0
        %1341 = vmatpush1.msra.mxu0 0.0
        %1342 = vmatprep.subr.mxu0 0.0
        %1343 = vmatpush1.msra.mxu0 0.0
        %1344 = vmatprep.subr.mxu0 0.0
        %1345 = vmatpush1.msra.mxu0 0.0
        %1346 = vmatprep.subr.mxu0 0.0
        %1347 = vmatpush1.msra.mxu0 0.0
        %1348 = vmatprep.subr.mxu0 0.0
        %1349 = vmatpush1.msra.mxu0 0.0
        %1350 = vmatprep.subr.mxu0 0.0
        %1351 = vmatpush1.msra.mxu0 0.0
        %1352 = vmatprep.subr.mxu0 0.0
        %1353 = vmatpush1.msra.mxu0 0.0
        %1354 = vmatprep.subr.mxu0 0.0
        %1355 = vmatpush1.msra.mxu0 0.0
        %1356 = vmatprep.subr.mxu0 0.0
        %1357 = vmatpush1.msra.mxu0 0.0
        %1358 = vmatprep.subr.mxu0 0.0
        %1359 = vmatpush1.msra.mxu0 0.0
        %1360 = vmatprep.subr.mxu0 0.0
        %1361 = vmatpush1.msra.mxu0 0.0
        %1362 = vmatprep.subr.mxu0 0.0
        %1363 = vmatpush1.msra.mxu0 0.0
        %1364 = vmatprep.subr.mxu0 0.0
        %1365 = vmatpush1.msra.mxu0 0.0
        %1366 = vmatprep.subr.mxu0 0.0
        %1367 = vmatpush1.msra.mxu0 0.0
        %1368 = vmatprep.subr.mxu0 0.0
        %1369 = vmatpush1.msra.mxu0 0.0
        %1370 = vmatprep.mubr.f32.mxu0 0.0
        %1371 = vmatmul.mubr.f32.gmra.mrb[0].mxu0 %v1283
        %v1372 = vpop.f32.mrb[0].mxu0
        %v1373 = vadd.f32 0.0, %v1372
        %v1374 = vpop.f32.mrb[0].mxu0
        %1375 = vmatprep.mubr.f32.mxu0 0.0
        %1376 = vmatmul.mubr.f32.gmra.mrb[0].mxu0 %v1286
        %v1377 = vpop.f32.mrb[0].mxu0
        %v1378 = vadd.f32 0.0, %v1377
        %v1379 = vpop.f32.mrb[0].mxu0
        %1380 = vmatprep.mubr.f32.mxu0 0.0
        %1381 = vmatmul.mubr.f32.gmra.mrb[0].mxu0 %v1289
        %v1382 = vpop.f32.mrb[0].mxu0
        %v1383 = vadd.f32 0.0, %v1382
        %v1384 = vpop.f32.mrb[0].mxu0
        %1385 = vmatprep.mubr.f32.mxu0 0.0
        %1386 = vmatmul.mubr.f32.gmra.mrb[0].mxu0 %v1292
        %v1387 = vpop.f32.mrb[0].mxu0
        %v1388 = vadd.f32 0.0, %v1387
        %v1389 = vpop.f32.mrb[0].mxu0
        %1390 = vmatprep.mubr.f32.mxu0 0.0
        %1391 = vmatmul.mubr.f32.gmra.mrb[0].mxu0 %v1295
        %v1392 = vpop.f32.mrb[0].mxu0
        %v1393 = vadd.f32 0.0, %v1392
        %v1394 = vpop.f32.mrb[0].mxu0
        %1395 = vmatprep.mubr.f32.mxu0 0.0
        %1396 = vmatmul.mubr.f32.gmra.mrb[0].mxu0 %v1298
        %v1397 = vpop.f32.mrb[0].mxu0
        %v1398 = vadd.f32 0.0, %v1397
        %v1399 = vpop.f32.mrb[0].mxu0
        %1400 = vmatprep.mubr.f32.mxu0 0.0
        %1401 = vmatmul.mubr.f32.gmra.mrb[0].mxu0 %v1301
        %v1402 = vpop.f32.mrb[0].mxu0
        %v1403 = vadd.f32 0.0, %v1402
        %v1404 = vpop.f32.mrb[0].mxu0
        %1405 = vmatprep.mubr.f32.mxu0 0.0
        %1406 = vmatmul.mubr.f32.gmra.mrb[0].mxu0 %v1304
        %v1407 = vpop.f32.mrb[0].mxu0
        %v1408 = vadd.f32 0.0, %v1407
        %v1409 = vpop.f32.mrb[0].mxu0
        %1410 = vdwg.mxu0
        %v1411 = vadd.f32 %v1266, %v1373
        %v1412 = vadd.f32 %v1267, %v1378
        %v1413 = vadd.f32 %v1268, %v1383
        %v1414 = vadd.f32 %v1269, %v1388
        %v1415 = vadd.f32 %v1270, %v1393
        %v1416 = vadd.f32 %v1271, %v1398
        %v1417 = vadd.f32 %v1272, %v1403
        %v1418 = vadd.f32 %v1273, %v1408
        %s1419 = scalar_lea.vmem [#allocation2], 32
        %v1420 = vld [vmem:[%s1419] sm:$0xff]
        %v1421 = vld [vmem:[%s1419 + $0x10] sm:$0xff]
        %v1422 = vld [vmem:[%s1419 + $0x20] sm:$0xff]
        %v1423 = vld [vmem:[%s1419 + $0x30] sm:$0xff]
        %v1424 = vld [vmem:[%s1419 + $0x40] sm:$0xff]
        %v1425 = vld [vmem:[%s1419 + $0x50] sm:$0xff]
        %v1426 = vld [vmem:[%s1419 + $0x60] sm:$0xff]
        %v1427 = vld [vmem:[%s1419 + $0x70] sm:$0xff]
        %v1429 = vsel %vm454, %v1420, 0
        %v1432 = vsel %vm454, %v1421, 0
        %v1435 = vsel %vm454, %v1422, 0
        %v1438 = vsel %vm454, %v1423, 0
        %v1441 = vsel %vm454, %v1424, 0
        %v1444 = vsel %vm454, %v1425, 0
        %v1447 = vsel %vm454, %v1426, 0
        %v1450 = vsel %vm454, %v1427, 0
        %1452 = vmatprep.subr.mxu0 0.0
        %1453 = vmatpush1.msra.mxu0 %v512
        %1454 = vmatprep.subr.mxu0 0.0
        %1455 = vmatpush1.msra.mxu0 0.0
        %1456 = vmatprep.subr.mxu0 0.0
        %1457 = vmatpush1.msra.mxu0 0.0
        %1458 = vmatprep.subr.mxu0 0.0
        %1459 = vmatpush1.msra.mxu0 0.0
        %1460 = vmatprep.subr.mxu0 0.0
        %1461 = vmatpush1.msra.mxu0 0.0
        %1462 = vmatprep.subr.mxu0 0.0
        %1463 = vmatpush1.msra.mxu0 0.0
        %1464 = vmatprep.subr.mxu0 0.0
        %1465 = vmatpush1.msra.mxu0 0.0
        %1466 = vmatprep.subr.mxu0 0.0
        %1467 = vmatpush1.msra.mxu0 0.0
        %1468 = vmatprep.subr.mxu0 0.0
        %1469 = vmatpush1.msra.mxu0 0.0
        %1470 = vmatprep.subr.mxu0 0.0
        %1471 = vmatpush1.msra.mxu0 0.0
        %1472 = vmatprep.subr.mxu0 0.0
        %1473 = vmatpush1.msra.mxu0 0.0
        %1474 = vmatprep.subr.mxu0 0.0
        %1475 = vmatpush1.msra.mxu0 0.0
        %1476 = vmatprep.subr.mxu0 0.0
        %1477 = vmatpush1.msra.mxu0 0.0
        %1478 = vmatprep.subr.mxu0 0.0
        %1479 = vmatpush1.msra.mxu0 0.0
        %1480 = vmatprep.subr.mxu0 0.0
        %1481 = vmatpush1.msra.mxu0 0.0
        %1482 = vmatprep.subr.mxu0 0.0
        %1483 = vmatpush1.msra.mxu0 0.0
        %1484 = vmatprep.subr.mxu0 0.0
        %1485 = vmatpush1.msra.mxu0 0.0
        %1486 = vmatprep.subr.mxu0 0.0
        %1487 = vmatpush1.msra.mxu0 0.0
        %1488 = vmatprep.subr.mxu0 0.0
        %1489 = vmatpush1.msra.mxu0 0.0
        %1490 = vmatprep.subr.mxu0 0.0
        %1491 = vmatpush1.msra.mxu0 0.0
        %1492 = vmatprep.subr.mxu0 0.0
        %1493 = vmatpush1.msra.mxu0 0.0
        %1494 = vmatprep.subr.mxu0 0.0
        %1495 = vmatpush1.msra.mxu0 0.0
        %1496 = vmatprep.subr.mxu0 0.0
        %1497 = vmatpush1.msra.mxu0 0.0
        %1498 = vmatprep.subr.mxu0 0.0
        %1499 = vmatpush1.msra.mxu0 0.0
        %1500 = vmatprep.subr.mxu0 0.0
        %1501 = vmatpush1.msra.mxu0 0.0
        %1502 = vmatprep.subr.mxu0 0.0
        %1503 = vmatpush1.msra.mxu0 0.0
        %1504 = vmatprep.subr.mxu0 0.0
        %1505 = vmatpush1.msra.mxu0 0.0
        %1506 = vmatprep.subr.mxu0 0.0
        %1507 = vmatpush1.msra.mxu0 0.0
        %1508 = vmatprep.subr.mxu0 0.0
        %1509 = vmatpush1.msra.mxu0 0.0
        %1510 = vmatprep.subr.mxu0 0.0
        %1511 = vmatpush1.msra.mxu0 0.0
        %1512 = vmatprep.subr.mxu0 0.0
        %1513 = vmatpush1.msra.mxu0 0.0
        %1514 = vmatprep.subr.mxu0 0.0
        %1515 = vmatpush1.msra.mxu0 0.0
        %1516 = vmatprep.mubr.f32.mxu0 0.0
        %1517 = vmatmul.mubr.f32.gmra.mrb[0].mxu0 %v1429
        %v1518 = vpop.f32.mrb[0].mxu0
        %v1519 = vadd.f32 0.0, %v1518
        %v1520 = vpop.f32.mrb[0].mxu0
        %1521 = vmatprep.mubr.f32.mxu0 0.0
        %1522 = vmatmul.mubr.f32.gmra.mrb[0].mxu0 %v1432
        %v1523 = vpop.f32.mrb[0].mxu0
        %v1524 = vadd.f32 0.0, %v1523
        %v1525 = vpop.f32.mrb[0].mxu0
        %1526 = vmatprep.mubr.f32.mxu0 0.0
        %1527 = vmatmul.mubr.f32.gmra.mrb[0].mxu0 %v1435
        %v1528 = vpop.f32.mrb[0].mxu0
        %v1529 = vadd.f32 0.0, %v1528
        %v1530 = vpop.f32.mrb[0].mxu0
        %1531 = vmatprep.mubr.f32.mxu0 0.0
        %1532 = vmatmul.mubr.f32.gmra.mrb[0].mxu0 %v1438
        %v1533 = vpop.f32.mrb[0].mxu0
        %v1534 = vadd.f32 0.0, %v1533
        %v1535 = vpop.f32.mrb[0].mxu0
        %1536 = vmatprep.mubr.f32.mxu0 0.0
        %1537 = vmatmul.mubr.f32.gmra.mrb[0].mxu0 %v1441
        %v1538 = vpop.f32.mrb[0].mxu0
        %v1539 = vadd.f32 0.0, %v1538
        %v1540 = vpop.f32.mrb[0].mxu0
        %1541 = vmatprep.mubr.f32.mxu0 0.0
        %1542 = vmatmul.mubr.f32.gmra.mrb[0].mxu0 %v1444
        %v1543 = vpop.f32.mrb[0].mxu0
        %v1544 = vadd.f32 0.0, %v1543
        %v1545 = vpop.f32.mrb[0].mxu0
        %1546 = vmatprep.mubr.f32.mxu0 0.0
        %1547 = vmatmul.mubr.f32.gmra.mrb[0].mxu0 %v1447
        %v1548 = vpop.f32.mrb[0].mxu0
        %v1549 = vadd.f32 0.0, %v1548
        %v1550 = vpop.f32.mrb[0].mxu0
        %1551 = vmatprep.mubr.f32.mxu0 0.0
        %1552 = vmatmul.mubr.f32.gmra.mrb[0].mxu0 %v1450
        %v1553 = vpop.f32.mrb[0].mxu0
        %v1554 = vadd.f32 0.0, %v1553
        %v1555 = vpop.f32.mrb[0].mxu0
        %1556 = vdwg.mxu0
        %v1557 = vadd.f32 %v1411, %v1519
        %v1558 = vadd.f32 %v1412, %v1524
        %v1559 = vadd.f32 %v1413, %v1529
        %v1560 = vadd.f32 %v1414, %v1534
        %v1561 = vadd.f32 %v1415, %v1539
        %v1562 = vadd.f32 %v1416, %v1544
        %v1563 = vadd.f32 %v1417, %v1549
        %v1564 = vadd.f32 %v1418, %v1554
        %v1565 = vld [vmem:[%s1419 + $0x1] sm:$0xff]
        %v1566 = vld [vmem:[%s1419 + $0x11] sm:$0xff]
        %v1567 = vld [vmem:[%s1419 + $0x21] sm:$0xff]
        %v1568 = vld [vmem:[%s1419 + $0x31] sm:$0xff]
        %v1569 = vld [vmem:[%s1419 + $0x41] sm:$0xff]
        %v1570 = vld [vmem:[%s1419 + $0x51] sm:$0xff]
        %v1571 = vld [vmem:[%s1419 + $0x61] sm:$0xff]
        %v1572 = vld [vmem:[%s1419 + $0x71] sm:$0xff]
        %v1574 = vsel %vm454, %v1565, 0
        %v1577 = vsel %vm454, %v1566, 0
        %v1580 = vsel %vm454, %v1567, 0
        %v1583 = vsel %vm454, %v1568, 0
        %v1586 = vsel %vm454, %v1569, 0
        %v1589 = vsel %vm454, %v1570, 0
        %v1592 = vsel %vm454, %v1571, 0
        %v1595 = vsel %vm454, %v1572, 0
        %1597 = vmatprep.subr.mxu0 0.0
        %1598 = vmatpush1.msra.mxu0 %v513
        %1599 = vmatprep.subr.mxu0 0.0
        %1600 = vmatpush1.msra.mxu0 0.0
        %1601 = vmatprep.subr.mxu0 0.0
        %1602 = vmatpush1.msra.mxu0 0.0
        %1603 = vmatprep.subr.mxu0 0.0
        %1604 = vmatpush1.msra.mxu0 0.0
        %1605 = vmatprep.subr.mxu0 0.0
        %1606 = vmatpush1.msra.mxu0 0.0
        %1607 = vmatprep.subr.mxu0 0.0
        %1608 = vmatpush1.msra.mxu0 0.0
        %1609 = vmatprep.subr.mxu0 0.0
        %1610 = vmatpush1.msra.mxu0 0.0
        %1611 = vmatprep.subr.mxu0 0.0
        %1612 = vmatpush1.msra.mxu0 0.0
        %1613 = vmatprep.subr.mxu0 0.0
        %1614 = vmatpush1.msra.mxu0 0.0
        %1615 = vmatprep.subr.mxu0 0.0
        %1616 = vmatpush1.msra.mxu0 0.0
        %1617 = vmatprep.subr.mxu0 0.0
        %1618 = vmatpush1.msra.mxu0 0.0
        %1619 = vmatprep.subr.mxu0 0.0
        %1620 = vmatpush1.msra.mxu0 0.0
        %1621 = vmatprep.subr.mxu0 0.0
        %1622 = vmatpush1.msra.mxu0 0.0
        %1623 = vmatprep.subr.mxu0 0.0
        %1624 = vmatpush1.msra.mxu0 0.0
        %1625 = vmatprep.subr.mxu0 0.0
        %1626 = vmatpush1.msra.mxu0 0.0
        %1627 = vmatprep.subr.mxu0 0.0
        %1628 = vmatpush1.msra.mxu0 0.0
        %1629 = vmatprep.subr.mxu0 0.0
        %1630 = vmatpush1.msra.mxu0 0.0
        %1631 = vmatprep.subr.mxu0 0.0
        %1632 = vmatpush1.msra.mxu0 0.0
        %1633 = vmatprep.subr.mxu0 0.0
        %1634 = vmatpush1.msra.mxu0 0.0
        %1635 = vmatprep.subr.mxu0 0.0
        %1636 = vmatpush1.msra.mxu0 0.0
        %1637 = vmatprep.subr.mxu0 0.0
        %1638 = vmatpush1.msra.mxu0 0.0
        %1639 = vmatprep.subr.mxu0 0.0
        %1640 = vmatpush1.msra.mxu0 0.0
        %1641 = vmatprep.subr.mxu0 0.0
        %1642 = vmatpush1.msra.mxu0 0.0
        %1643 = vmatprep.subr.mxu0 0.0
        %1644 = vmatpush1.msra.mxu0 0.0
        %1645 = vmatprep.subr.mxu0 0.0
        %1646 = vmatpush1.msra.mxu0 0.0
        %1647 = vmatprep.subr.mxu0 0.0
        %1648 = vmatpush1.msra.mxu0 0.0
        %1649 = vmatprep.subr.mxu0 0.0
        %1650 = vmatpush1.msra.mxu0 0.0
        %1651 = vmatprep.subr.mxu0 0.0
        %1652 = vmatpush1.msra.mxu0 0.0
        %1653 = vmatprep.subr.mxu0 0.0
        %1654 = vmatpush1.msra.mxu0 0.0
        %1655 = vmatprep.subr.mxu0 0.0
        %1656 = vmatpush1.msra.mxu0 0.0
        %1657 = vmatprep.subr.mxu0 0.0
        %1658 = vmatpush1.msra.mxu0 0.0
        %1659 = vmatprep.subr.mxu0 0.0
        %1660 = vmatpush1.msra.mxu0 0.0
        %1661 = vmatprep.mubr.f32.mxu0 0.0
        %1662 = vmatmul.mubr.f32.gmra.mrb[0].mxu0 %v1574
        %v1663 = vpop.f32.mrb[0].mxu0
        %v1664 = vadd.f32 0.0, %v1663
        %v1665 = vpop.f32.mrb[0].mxu0
        %1666 = vmatprep.mubr.f32.mxu0 0.0
        %1667 = vmatmul.mubr.f32.gmra.mrb[0].mxu0 %v1577
        %v1668 = vpop.f32.mrb[0].mxu0
        %v1669 = vadd.f32 0.0, %v1668
        %v1670 = vpop.f32.mrb[0].mxu0
        %1671 = vmatprep.mubr.f32.mxu0 0.0
        %1672 = vmatmul.mubr.f32.gmra.mrb[0].mxu0 %v1580
        %v1673 = vpop.f32.mrb[0].mxu0
        %v1674 = vadd.f32 0.0, %v1673
        %v1675 = vpop.f32.mrb[0].mxu0
        %1676 = vmatprep.mubr.f32.mxu0 0.0
        %1677 = vmatmul.mubr.f32.gmra.mrb[0].mxu0 %v1583
        %v1678 = vpop.f32.mrb[0].mxu0
        %v1679 = vadd.f32 0.0, %v1678
        %v1680 = vpop.f32.mrb[0].mxu0
        %1681 = vmatprep.mubr.f32.mxu0 0.0
        %1682 = vmatmul.mubr.f32.gmra.mrb[0].mxu0 %v1586
        %v1683 = vpop.f32.mrb[0].mxu0
        %v1684 = vadd.f32 0.0, %v1683
        %v1685 = vpop.f32.mrb[0].mxu0
        %1686 = vmatprep.mubr.f32.mxu0 0.0
        %1687 = vmatmul.mubr.f32.gmra.mrb[0].mxu0 %v1589
        %v1688 = vpop.f32.mrb[0].mxu0
        %v1689 = vadd.f32 0.0, %v1688
        %v1690 = vpop.f32.mrb[0].mxu0
        %1691 = vmatprep.mubr.f32.mxu0 0.0
        %1692 = vmatmul.mubr.f32.gmra.mrb[0].mxu0 %v1592
        %v1693 = vpop.f32.mrb[0].mxu0
        %v1694 = vadd.f32 0.0, %v1693
        %v1695 = vpop.f32.mrb[0].mxu0
        %1696 = vmatprep.mubr.f32.mxu0 0.0
        %1697 = vmatmul.mubr.f32.gmra.mrb[0].mxu0 %v1595
        %v1698 = vpop.f32.mrb[0].mxu0
        %v1699 = vadd.f32 0.0, %v1698
        %v1700 = vpop.f32.mrb[0].mxu0
        %1701 = vdwg.mxu0
        %v1702 = vadd.f32 %v1557, %v1664
        %v1703 = vadd.f32 %v1558, %v1669
        %v1704 = vadd.f32 %v1559, %v1674
        %v1705 = vadd.f32 %v1560, %v1679
        %v1706 = vadd.f32 %v1561, %v1684
        %v1707 = vadd.f32 %v1562, %v1689
        %v1708 = vadd.f32 %v1563, %v1694
        %v1709 = vadd.f32 %v1564, %v1699
        %v1710 = vld [vmem:[%s1419 + $0x2] sm:$0xff]
        %v1711 = vld [vmem:[%s1419 + $0x12] sm:$0xff]
        %v1712 = vld [vmem:[%s1419 + $0x22] sm:$0xff]
        %v1713 = vld [vmem:[%s1419 + $0x32] sm:$0xff]
        %v1714 = vld [vmem:[%s1419 + $0x42] sm:$0xff]
        %v1715 = vld [vmem:[%s1419 + $0x52] sm:$0xff]
        %v1716 = vld [vmem:[%s1419 + $0x62] sm:$0xff]
        %v1717 = vld [vmem:[%s1419 + $0x72] sm:$0xff]
        %v1719 = vsel %vm454, %v1710, 0
        %v1722 = vsel %vm454, %v1711, 0
        %v1725 = vsel %vm454, %v1712, 0
        %v1728 = vsel %vm454, %v1713, 0
        %v1731 = vsel %vm454, %v1714, 0
        %v1734 = vsel %vm454, %v1715, 0
        %v1737 = vsel %vm454, %v1716, 0
        %v1740 = vsel %vm454, %v1717, 0
        %1742 = vmatprep.subr.mxu0 0.0
        %1743 = vmatpush1.msra.mxu0 %v514
        %1744 = vmatprep.subr.mxu0 0.0
        %1745 = vmatpush1.msra.mxu0 0.0
        %1746 = vmatprep.subr.mxu0 0.0
        %1747 = vmatpush1.msra.mxu0 0.0
        %1748 = vmatprep.subr.mxu0 0.0
        %1749 = vmatpush1.msra.mxu0 0.0
        %1750 = vmatprep.subr.mxu0 0.0
        %1751 = vmatpush1.msra.mxu0 0.0
        %1752 = vmatprep.subr.mxu0 0.0
        %1753 = vmatpush1.msra.mxu0 0.0
        %1754 = vmatprep.subr.mxu0 0.0
        %1755 = vmatpush1.msra.mxu0 0.0
        %1756 = vmatprep.subr.mxu0 0.0
        %1757 = vmatpush1.msra.mxu0 0.0
        %1758 = vmatprep.subr.mxu0 0.0
        %1759 = vmatpush1.msra.mxu0 0.0
        %1760 = vmatprep.subr.mxu0 0.0
        %1761 = vmatpush1.msra.mxu0 0.0
        %1762 = vmatprep.subr.mxu0 0.0
        %1763 = vmatpush1.msra.mxu0 0.0
        %1764 = vmatprep.subr.mxu0 0.0
        %1765 = vmatpush1.msra.mxu0 0.0
        %1766 = vmatprep.subr.mxu0 0.0
        %1767 = vmatpush1.msra.mxu0 0.0
        %1768 = vmatprep.subr.mxu0 0.0
        %1769 = vmatpush1.msra.mxu0 0.0
        %1770 = vmatprep.subr.mxu0 0.0
        %1771 = vmatpush1.msra.mxu0 0.0
        %1772 = vmatprep.subr.mxu0 0.0
        %1773 = vmatpush1.msra.mxu0 0.0
        %1774 = vmatprep.subr.mxu0 0.0
        %1775 = vmatpush1.msra.mxu0 0.0
        %1776 = vmatprep.subr.mxu0 0.0
        %1777 = vmatpush1.msra.mxu0 0.0
        %1778 = vmatprep.subr.mxu0 0.0
        %1779 = vmatpush1.msra.mxu0 0.0
        %1780 = vmatprep.subr.mxu0 0.0
        %1781 = vmatpush1.msra.mxu0 0.0
        %1782 = vmatprep.subr.mxu0 0.0
        %1783 = vmatpush1.msra.mxu0 0.0
        %1784 = vmatprep.subr.mxu0 0.0
        %1785 = vmatpush1.msra.mxu0 0.0
        %1786 = vmatprep.subr.mxu0 0.0
        %1787 = vmatpush1.msra.mxu0 0.0
        %1788 = vmatprep.subr.mxu0 0.0
        %1789 = vmatpush1.msra.mxu0 0.0
        %1790 = vmatprep.subr.mxu0 0.0
        %1791 = vmatpush1.msra.mxu0 0.0
        %1792 = vmatprep.subr.mxu0 0.0
        %1793 = vmatpush1.msra.mxu0 0.0
        %1794 = vmatprep.subr.mxu0 0.0
        %1795 = vmatpush1.msra.mxu0 0.0
        %1796 = vmatprep.subr.mxu0 0.0
        %1797 = vmatpush1.msra.mxu0 0.0
        %1798 = vmatprep.subr.mxu0 0.0
        %1799 = vmatpush1.msra.mxu0 0.0
        %1800 = vmatprep.subr.mxu0 0.0
        %1801 = vmatpush1.msra.mxu0 0.0
        %1802 = vmatprep.subr.mxu0 0.0
        %1803 = vmatpush1.msra.mxu0 0.0
        %1804 = vmatprep.subr.mxu0 0.0
        %1805 = vmatpush1.msra.mxu0 0.0
        %1806 = vmatprep.mubr.f32.mxu0 0.0
        %1807 = vmatmul.mubr.f32.gmra.mrb[0].mxu0 %v1719
        %v1808 = vpop.f32.mrb[0].mxu0
        %v1809 = vadd.f32 0.0, %v1808
        %v1810 = vpop.f32.mrb[0].mxu0
        %1811 = vmatprep.mubr.f32.mxu0 0.0
        %1812 = vmatmul.mubr.f32.gmra.mrb[0].mxu0 %v1722
        %v1813 = vpop.f32.mrb[0].mxu0
        %v1814 = vadd.f32 0.0, %v1813
        %v1815 = vpop.f32.mrb[0].mxu0
        %1816 = vmatprep.mubr.f32.mxu0 0.0
        %1817 = vmatmul.mubr.f32.gmra.mrb[0].mxu0 %v1725
        %v1818 = vpop.f32.mrb[0].mxu0
        %v1819 = vadd.f32 0.0, %v1818
        %v1820 = vpop.f32.mrb[0].mxu0
        %1821 = vmatprep.mubr.f32.mxu0 0.0
        %1822 = vmatmul.mubr.f32.gmra.mrb[0].mxu0 %v1728
        %v1823 = vpop.f32.mrb[0].mxu0
        %v1824 = vadd.f32 0.0, %v1823
        %v1825 = vpop.f32.mrb[0].mxu0
        %1826 = vmatprep.mubr.f32.mxu0 0.0
        %1827 = vmatmul.mubr.f32.gmra.mrb[0].mxu0 %v1731
        %v1828 = vpop.f32.mrb[0].mxu0
        %v1829 = vadd.f32 0.0, %v1828
        %v1830 = vpop.f32.mrb[0].mxu0
        %1831 = vmatprep.mubr.f32.mxu0 0.0
        %1832 = vmatmul.mubr.f32.gmra.mrb[0].mxu0 %v1734
        %v1833 = vpop.f32.mrb[0].mxu0
        %v1834 = vadd.f32 0.0, %v1833
        %v1835 = vpop.f32.mrb[0].mxu0
        %1836 = vmatprep.mubr.f32.mxu0 0.0
        %1837 = vmatmul.mubr.f32.gmra.mrb[0].mxu0 %v1737
        %v1838 = vpop.f32.mrb[0].mxu0
        %v1839 = vadd.f32 0.0, %v1838
        %v1840 = vpop.f32.mrb[0].mxu0
        %1841 = vmatprep.mubr.f32.mxu0 0.0
        %1842 = vmatmul.mubr.f32.gmra.mrb[0].mxu0 %v1740
        %v1843 = vpop.f32.mrb[0].mxu0
        %v1844 = vadd.f32 0.0, %v1843
        %v1845 = vpop.f32.mrb[0].mxu0
        %1846 = vdwg.mxu0
        %v1847 = vadd.f32 %v1702, %v1809
        %v1848 = vadd.f32 %v1703, %v1814
        %v1849 = vadd.f32 %v1704, %v1819
        %v1850 = vadd.f32 %v1705, %v1824
        %v1851 = vadd.f32 %v1706, %v1829
        %v1852 = vadd.f32 %v1707, %v1834
        %v1853 = vadd.f32 %v1708, %v1839
        %v1854 = vadd.f32 %v1709, %v1844
        %v1855 = vld [vmem:[#allocation4] sm:$0x1]
        %v1857 = vlaneseq
        %v1858 = vshrl.u32 %v1857, 7
        %v1859 = vsub.s32 0, %v1858
        %v1860 = vrot.slane %v1855, %v1859
        %v1862 = vadd.f32 %v1847, %v1860
        %v1863 = vadd.f32 %v1848, %v1860
        %v1864 = vadd.f32 %v1849, %v1860
        %v1865 = vadd.f32 %v1850, %v1860
        %v1866 = vadd.f32 %v1851, %v1860
        %v1867 = vadd.f32 %v1852, %v1860
        %v1868 = vadd.f32 %v1853, %v1860
        %v1869 = vadd.f32 %v1854, %v1860
        %s1870 = scalar_lea.vmem [#allocation4], 1
        %v1871 = vld [vmem:[%s1870] sm:$0x1]
        %s1872 = scalar_lea.vmem [#allocation4], 2
        %v1873 = vld [vmem:[%s1872] sm:$0x1]
        %v1874 = vsel %vm454, %v1862, 0.0
        %v1875 = vsel %vm454, %v1863, 0.0
        %v1876 = vadd.f32 %v1874, %v1875
        %v1877 = vsel %vm454, %v1864, 0.0
        %v1878 = vadd.f32 %v1876, %v1877
        %v1879 = vsel %vm454, %v1865, 0.0
        %v1880 = vadd.f32 %v1878, %v1879
        %v1881 = vsel %vm454, %v1866, 0.0
        %v1882 = vadd.f32 %v1880, %v1881
        %v1883 = vsel %vm454, %v1867, 0.0
        %v1884 = vadd.f32 %v1882, %v1883
        %v1885 = vsel %vm454, %v1868, 0.0
        %v1886 = vadd.f32 %v1884, %v1885
        %v1887 = vsel %vm454, %v1869, 0.0
        %v1888 = vadd.f32 %v1886, %v1887
        %v1889 = vrot.slane %v1888, 4
        %v1890 = vadd.f32 %v1888, %v1889
        %v1891 = vrot.slane %v1890, 2
        %v1892 = vadd.f32 %v1890, %v1891
        %v1893 = vrot.slane %v1892, 1
        %v1894 = vadd.f32 %v1892, %v1893
        %v1896 = vsel %vm454, %v1894, 0
        %1898 = vmatprep.subr.mxu0 0.0
        %1899 = vmatpush1.msra.mxu0 %v551
        %1900 = vmatprep.subr.mxu0 0.0
        %1901 = vmatpush1.msra.mxu0 0.0
        %1902 = vmatprep.subr.mxu0 0.0
        %1903 = vmatpush1.msra.mxu0 0.0
        %1904 = vmatprep.subr.mxu0 0.0
        %1905 = vmatpush1.msra.mxu0 0.0
        %1906 = vmatprep.subr.mxu0 0.0
        %1907 = vmatpush1.msra.mxu0 0.0
        %1908 = vmatprep.subr.mxu0 0.0
        %1909 = vmatpush1.msra.mxu0 0.0
        %1910 = vmatprep.subr.mxu0 0.0
        %1911 = vmatpush1.msra.mxu0 0.0
        %1912 = vmatprep.subr.mxu0 0.0
        %1913 = vmatpush1.msra.mxu0 0.0
        %1914 = vmatprep.subr.mxu0 0.0
        %1915 = vmatpush1.msra.mxu0 0.0
        %1916 = vmatprep.subr.mxu0 0.0
        %1917 = vmatpush1.msra.mxu0 0.0
        %1918 = vmatprep.subr.mxu0 0.0
        %1919 = vmatpush1.msra.mxu0 0.0
        %1920 = vmatprep.subr.mxu0 0.0
        %1921 = vmatpush1.msra.mxu0 0.0
        %1922 = vmatprep.subr.mxu0 0.0
        %1923 = vmatpush1.msra.mxu0 0.0
        %1924 = vmatprep.subr.mxu0 0.0
        %1925 = vmatpush1.msra.mxu0 0.0
        %1926 = vmatprep.subr.mxu0 0.0
        %1927 = vmatpush1.msra.mxu0 0.0
        %1928 = vmatprep.subr.mxu0 0.0
        %1929 = vmatpush1.msra.mxu0 0.0
        %1930 = vmatprep.subr.mxu0 0.0
        %1931 = vmatpush1.msra.mxu0 0.0
        %1932 = vmatprep.subr.mxu0 0.0
        %1933 = vmatpush1.msra.mxu0 0.0
        %1934 = vmatprep.subr.mxu0 0.0
        %1935 = vmatpush1.msra.mxu0 0.0
        %1936 = vmatprep.subr.mxu0 0.0
        %1937 = vmatpush1.msra.mxu0 0.0
        %1938 = vmatprep.subr.mxu0 0.0
        %1939 = vmatpush1.msra.mxu0 0.0
        %1940 = vmatprep.subr.mxu0 0.0
        %1941 = vmatpush1.msra.mxu0 0.0
        %1942 = vmatprep.subr.mxu0 0.0
        %1943 = vmatpush1.msra.mxu0 0.0
        %1944 = vmatprep.subr.mxu0 0.0
        %1945 = vmatpush1.msra.mxu0 0.0
        %1946 = vmatprep.subr.mxu0 0.0
        %1947 = vmatpush1.msra.mxu0 0.0
        %1948 = vmatprep.subr.mxu0 0.0
        %1949 = vmatpush1.msra.mxu0 0.0
        %1950 = vmatprep.subr.mxu0 0.0
        %1951 = vmatpush1.msra.mxu0 0.0
        %1952 = vmatprep.subr.mxu0 0.0
        %1953 = vmatpush1.msra.mxu0 0.0
        %1954 = vmatprep.subr.mxu0 0.0
        %1955 = vmatpush1.msra.mxu0 0.0
        %1956 = vmatprep.subr.mxu0 0.0
        %1957 = vmatpush1.msra.mxu0 0.0
        %1958 = vmatprep.subr.mxu0 0.0
        %1959 = vmatpush1.msra.mxu0 0.0
        %1960 = vmatprep.subr.mxu0 0.0
        %1961 = vmatpush1.msra.mxu0 0.0
        %1962 = vmatprep.mubr.f32.mxu0 0.0
        %1963 = vmatmul.mubr.f32.gmra.mrb[0].mxu0 %v1896
        %v1964 = vpop.f32.mrb[0].mxu0
        %v1965 = vadd.f32 0.0, %v1964
        %v1966 = vpop.f32.mrb[0].mxu0
        %1967 = vdwg.mxu0
        %v1968 = vrcp.pop 64.0
        %v1969 = vmul.f32 %v1965, %v1968
        %v1971 = vsel %vm454, %v1969, 0
        %1973 = vmatprep.subr.mxu0 0.0
        %1974 = vmatpush1.msra.mxu0 %v552
        %1975 = vmatprep.subr.mxu0 0.0
        %1976 = vmatpush1.msra.mxu0 0.0
        %1977 = vmatprep.subr.mxu0 0.0
        %1978 = vmatpush1.msra.mxu0 0.0
        %1979 = vmatprep.subr.mxu0 0.0
        %1980 = vmatpush1.msra.mxu0 0.0
        %1981 = vmatprep.subr.mxu0 0.0
        %1982 = vmatpush1.msra.mxu0 0.0
        %1983 = vmatprep.subr.mxu0 0.0
        %1984 = vmatpush1.msra.mxu0 0.0
        %1985 = vmatprep.subr.mxu0 0.0
        %1986 = vmatpush1.msra.mxu0 0.0
        %1987 = vmatprep.subr.mxu0 0.0
        %1988 = vmatpush1.msra.mxu0 0.0
        %1989 = vmatprep.subr.mxu0 0.0
        %1990 = vmatpush1.msra.mxu0 0.0
        %1991 = vmatprep.subr.mxu0 0.0
        %1992 = vmatpush1.msra.mxu0 0.0
        %1993 = vmatprep.subr.mxu0 0.0
        %1994 = vmatpush1.msra.mxu0 0.0
        %1995 = vmatprep.subr.mxu0 0.0
        %1996 = vmatpush1.msra.mxu0 0.0
        %1997 = vmatprep.subr.mxu0 0.0
        %1998 = vmatpush1.msra.mxu0 0.0
        %1999 = vmatprep.subr.mxu0 0.0
        %2000 = vmatpush1.msra.mxu0 0.0
        %2001 = vmatprep.subr.mxu0 0.0
        %2002 = vmatpush1.msra.mxu0 0.0
        %2003 = vmatprep.subr.mxu0 0.0
        %2004 = vmatpush1.msra.mxu0 0.0
        %2005 = vmatprep.subr.mxu0 0.0
        %2006 = vmatpush1.msra.mxu0 0.0
        %2007 = vmatprep.subr.mxu0 0.0
        %2008 = vmatpush1.msra.mxu0 0.0
        %2009 = vmatprep.subr.mxu0 0.0
        %2010 = vmatpush1.msra.mxu0 0.0
        %2011 = vmatprep.subr.mxu0 0.0
        %2012 = vmatpush1.msra.mxu0 0.0
        %2013 = vmatprep.subr.mxu0 0.0
        %2014 = vmatpush1.msra.mxu0 0.0
        %2015 = vmatprep.subr.mxu0 0.0
        %2016 = vmatpush1.msra.mxu0 0.0
        %2017 = vmatprep.subr.mxu0 0.0
        %2018 = vmatpush1.msra.mxu0 0.0
        %2019 = vmatprep.subr.mxu0 0.0
        %2020 = vmatpush1.msra.mxu0 0.0
        %2021 = vmatprep.subr.mxu0 0.0
        %2022 = vmatpush1.msra.mxu0 0.0
        %2023 = vmatprep.subr.mxu0 0.0
        %2024 = vmatpush1.msra.mxu0 0.0
        %2025 = vmatprep.subr.mxu0 0.0
        %2026 = vmatpush1.msra.mxu0 0.0
        %2027 = vmatprep.subr.mxu0 0.0
        %2028 = vmatpush1.msra.mxu0 0.0
        %2029 = vmatprep.subr.mxu0 0.0
        %2030 = vmatpush1.msra.mxu0 0.0
        %2031 = vmatprep.subr.mxu0 0.0
        %2032 = vmatpush1.msra.mxu0 0.0
        %2033 = vmatprep.subr.mxu0 0.0
        %2034 = vmatpush1.msra.mxu0 0.0
        %2035 = vmatprep.subr.mxu0 0.0
        %2036 = vmatpush1.msra.mxu0 0.0
        %2037 = vmatprep.mubr.f32.mxu0 0.0
        %2038 = vmatmul.mubr.f32.gmra.mrb[0].mxu0 %v1971
        %v2039 = vpop.f32.mrb[0].mxu0
        %v2040 = vadd.f32 0.0, %v2039
        %v2041 = vpop.f32.mrb[0].mxu0
        %2042 = vdwg.mxu0
        %v2043 = vlaneseq
        %v2044 = vshrl.u32 %v2043, 7
        %v2045 = vsub.s32 0, %v2044
        %v2046 = vrot.slane %v2040, %v2045
        %v2047 = vsub.f32 %v1862, %v2046
        %v2048 = vsub.f32 %v1863, %v2046
        %v2049 = vsub.f32 %v1864, %v2046
        %v2050 = vsub.f32 %v1865, %v2046
        %v2051 = vsub.f32 %v1866, %v2046
        %v2052 = vsub.f32 %v1867, %v2046
        %v2053 = vsub.f32 %v1868, %v2046
        %v2054 = vsub.f32 %v1869, %v2046
        %v2055 = vmul.f32 %v2047, %v2047
        %v2056 = vmul.f32 %v2048, %v2048
        %v2057 = vmul.f32 %v2049, %v2049
        %v2058 = vmul.f32 %v2050, %v2050
        %v2059 = vmul.f32 %v2051, %v2051
        %v2060 = vmul.f32 %v2052, %v2052
        %v2061 = vmul.f32 %v2053, %v2053
        %v2062 = vmul.f32 %v2054, %v2054
        %v2063 = vsel %vm454, %v2055, 0.0
        %v2064 = vsel %vm454, %v2056, 0.0
        %v2065 = vadd.f32 %v2063, %v2064
        %v2066 = vsel %vm454, %v2057, 0.0
        %v2067 = vadd.f32 %v2065, %v2066
        %v2068 = vsel %vm454, %v2058, 0.0
        %v2069 = vadd.f32 %v2067, %v2068
        %v2070 = vsel %vm454, %v2059, 0.0
        %v2071 = vadd.f32 %v2069, %v2070
        %v2072 = vsel %vm454, %v2060, 0.0
        %v2073 = vadd.f32 %v2071, %v2072
        %v2074 = vsel %vm454, %v2061, 0.0
        %v2075 = vadd.f32 %v2073, %v2074
        %v2076 = vsel %vm454, %v2062, 0.0
        %v2077 = vadd.f32 %v2075, %v2076
        %v2078 = vrot.slane %v2077, 4
        %v2079 = vadd.f32 %v2077, %v2078
        %v2080 = vrot.slane %v2079, 2
        %v2081 = vadd.f32 %v2079, %v2080
        %v2082 = vrot.slane %v2081, 1
        %v2083 = vadd.f32 %v2081, %v2082
        %v2085 = vsel %vm454, %v2083, 0
        %2087 = vmatprep.subr.mxu0 0.0
        %2088 = vmatpush1.msra.mxu0 %v551
        %2089 = vmatprep.subr.mxu0 0.0
        %2090 = vmatpush1.msra.mxu0 0.0
        %2091 = vmatprep.subr.mxu0 0.0
        %2092 = vmatpush1.msra.mxu0 0.0
        %2093 = vmatprep.subr.mxu0 0.0
        %2094 = vmatpush1.msra.mxu0 0.0
        %2095 = vmatprep.subr.mxu0 0.0
        %2096 = vmatpush1.msra.mxu0 0.0
        %2097 = vmatprep.subr.mxu0 0.0
        %2098 = vmatpush1.msra.mxu0 0.0
        %2099 = vmatprep.subr.mxu0 0.0
        %2100 = vmatpush1.msra.mxu0 0.0
        %2101 = vmatprep.subr.mxu0 0.0
        %2102 = vmatpush1.msra.mxu0 0.0
        %2103 = vmatprep.subr.mxu0 0.0
        %2104 = vmatpush1.msra.mxu0 0.0
        %2105 = vmatprep.subr.mxu0 0.0
        %2106 = vmatpush1.msra.mxu0 0.0
        %2107 = vmatprep.subr.mxu0 0.0
        %2108 = vmatpush1.msra.mxu0 0.0
        %2109 = vmatprep.subr.mxu0 0.0
        %2110 = vmatpush1.msra.mxu0 0.0
        %2111 = vmatprep.subr.mxu0 0.0
        %2112 = vmatpush1.msra.mxu0 0.0
        %2113 = vmatprep.subr.mxu0 0.0
        %2114 = vmatpush1.msra.mxu0 0.0
        %2115 = vmatprep.subr.mxu0 0.0
        %2116 = vmatpush1.msra.mxu0 0.0
        %2117 = vmatprep.subr.mxu0 0.0
        %2118 = vmatpush1.msra.mxu0 0.0
        %2119 = vmatprep.subr.mxu0 0.0
        %2120 = vmatpush1.msra.mxu0 0.0
        %2121 = vmatprep.subr.mxu0 0.0
        %2122 = vmatpush1.msra.mxu0 0.0
        %2123 = vmatprep.subr.mxu0 0.0
        %2124 = vmatpush1.msra.mxu0 0.0
        %2125 = vmatprep.subr.mxu0 0.0
        %2126 = vmatpush1.msra.mxu0 0.0
        %2127 = vmatprep.subr.mxu0 0.0
        %2128 = vmatpush1.msra.mxu0 0.0
        %2129 = vmatprep.subr.mxu0 0.0
        %2130 = vmatpush1.msra.mxu0 0.0
        %2131 = vmatprep.subr.mxu0 0.0
        %2132 = vmatpush1.msra.mxu0 0.0
        %2133 = vmatprep.subr.mxu0 0.0
        %2134 = vmatpush1.msra.mxu0 0.0
        %2135 = vmatprep.subr.mxu0 0.0
        %2136 = vmatpush1.msra.mxu0 0.0
        %2137 = vmatprep.subr.mxu0 0.0
        %2138 = vmatpush1.msra.mxu0 0.0
        %2139 = vmatprep.subr.mxu0 0.0
        %2140 = vmatpush1.msra.mxu0 0.0
        %2141 = vmatprep.subr.mxu0 0.0
        %2142 = vmatpush1.msra.mxu0 0.0
        %2143 = vmatprep.subr.mxu0 0.0
        %2144 = vmatpush1.msra.mxu0 0.0
        %2145 = vmatprep.subr.mxu0 0.0
        %2146 = vmatpush1.msra.mxu0 0.0
        %2147 = vmatprep.subr.mxu0 0.0
        %2148 = vmatpush1.msra.mxu0 0.0
        %2149 = vmatprep.subr.mxu0 0.0
        %2150 = vmatpush1.msra.mxu0 0.0
        %2151 = vmatprep.mubr.f32.mxu0 0.0
        %2152 = vmatmul.mubr.f32.gmra.mrb[0].mxu0 %v2085
        %v2153 = vpop.f32.mrb[0].mxu0
        %v2154 = vadd.f32 0.0, %v2153
        %v2155 = vpop.f32.mrb[0].mxu0
        %2156 = vdwg.mxu0
        %v2157 = vmul.f32 %v2154, %v1968
        %v2158 = vadd.f32 %v2157, 1e-05
        %v2159 = vrsqrt.pop %v2158
        %v2161 = vsel %vm454, %v2159, 0
        %2163 = vmatprep.subr.mxu0 0.0
        %2164 = vmatpush1.msra.mxu0 %v552
        %2165 = vmatprep.subr.mxu0 0.0
        %2166 = vmatpush1.msra.mxu0 0.0
        %2167 = vmatprep.subr.mxu0 0.0
        %2168 = vmatpush1.msra.mxu0 0.0
        %2169 = vmatprep.subr.mxu0 0.0
        %2170 = vmatpush1.msra.mxu0 0.0
        %2171 = vmatprep.subr.mxu0 0.0
        %2172 = vmatpush1.msra.mxu0 0.0
        %2173 = vmatprep.subr.mxu0 0.0
        %2174 = vmatpush1.msra.mxu0 0.0
        %2175 = vmatprep.subr.mxu0 0.0
        %2176 = vmatpush1.msra.mxu0 0.0
        %2177 = vmatprep.subr.mxu0 0.0
        %2178 = vmatpush1.msra.mxu0 0.0
        %2179 = vmatprep.subr.mxu0 0.0
        %2180 = vmatpush1.msra.mxu0 0.0
        %2181 = vmatprep.subr.mxu0 0.0
        %2182 = vmatpush1.msra.mxu0 0.0
        %2183 = vmatprep.subr.mxu0 0.0
        %2184 = vmatpush1.msra.mxu0 0.0
        %2185 = vmatprep.subr.mxu0 0.0
        %2186 = vmatpush1.msra.mxu0 0.0
        %2187 = vmatprep.subr.mxu0 0.0
        %2188 = vmatpush1.msra.mxu0 0.0
        %2189 = vmatprep.subr.mxu0 0.0
        %2190 = vmatpush1.msra.mxu0 0.0
        %2191 = vmatprep.subr.mxu0 0.0
        %2192 = vmatpush1.msra.mxu0 0.0
        %2193 = vmatprep.subr.mxu0 0.0
        %2194 = vmatpush1.msra.mxu0 0.0
        %2195 = vmatprep.subr.mxu0 0.0
        %2196 = vmatpush1.msra.mxu0 0.0
        %2197 = vmatprep.subr.mxu0 0.0
        %2198 = vmatpush1.msra.mxu0 0.0
        %2199 = vmatprep.subr.mxu0 0.0
        %2200 = vmatpush1.msra.mxu0 0.0
        %2201 = vmatprep.subr.mxu0 0.0
        %2202 = vmatpush1.msra.mxu0 0.0
        %2203 = vmatprep.subr.mxu0 0.0
        %2204 = vmatpush1.msra.mxu0 0.0
        %2205 = vmatprep.subr.mxu0 0.0
        %2206 = vmatpush1.msra.mxu0 0.0
        %2207 = vmatprep.subr.mxu0 0.0
        %2208 = vmatpush1.msra.mxu0 0.0
        %2209 = vmatprep.subr.mxu0 0.0
        %2210 = vmatpush1.msra.mxu0 0.0
        %2211 = vmatprep.subr.mxu0 0.0
        %2212 = vmatpush1.msra.mxu0 0.0
        %2213 = vmatprep.subr.mxu0 0.0
        %2214 = vmatpush1.msra.mxu0 0.0
        %2215 = vmatprep.subr.mxu0 0.0
        %2216 = vmatpush1.msra.mxu0 0.0
        %2217 = vmatprep.subr.mxu0 0.0
        %2218 = vmatpush1.msra.mxu0 0.0
        %2219 = vmatprep.subr.mxu0 0.0
        %2220 = vmatpush1.msra.mxu0 0.0
        %2221 = vmatprep.subr.mxu0 0.0
        %2222 = vmatpush1.msra.mxu0 0.0
        %2223 = vmatprep.subr.mxu0 0.0
        %2224 = vmatpush1.msra.mxu0 0.0
        %2225 = vmatprep.subr.mxu0 0.0
        %2226 = vmatpush1.msra.mxu0 0.0
        %2227 = vmatprep.mubr.f32.mxu0 0.0
        %2228 = vmatmul.mubr.f32.gmra.mrb[0].mxu0 %v2161
        %v2229 = vpop.f32.mrb[0].mxu0
        %v2230 = vadd.f32 0.0, %v2229
        %v2231 = vpop.f32.mrb[0].mxu0
        %2232 = vdwg.mxu0
        %v2233 = vlaneseq
        %v2234 = vshrl.u32 %v2233, 7
        %v2235 = vsub.s32 0, %v2234
        %v2236 = vrot.slane %v2230, %v2235
        %v2237 = vmul.f32 %v2047, %v2236
        %v2238 = vmul.f32 %v2048, %v2236
        %v2239 = vmul.f32 %v2049, %v2236
        %v2240 = vmul.f32 %v2050, %v2236
        %v2241 = vmul.f32 %v2051, %v2236
        %v2242 = vmul.f32 %v2052, %v2236
        %v2243 = vmul.f32 %v2053, %v2236
        %v2244 = vmul.f32 %v2054, %v2236
        %v2246 = vlaneseq
        %v2247 = vshrl.u32 %v2246, 7
        %v2248 = vsub.s32 0, %v2247
        %v2249 = vrot.slane %v1871, %v2248
        %v2251 = vmul.f32 %v2237, %v2249
        %v2252 = vmul.f32 %v2238, %v2249
        %v2253 = vmul.f32 %v2239, %v2249
        %v2254 = vmul.f32 %v2240, %v2249
        %v2255 = vmul.f32 %v2241, %v2249
        %v2256 = vmul.f32 %v2242, %v2249
        %v2257 = vmul.f32 %v2243, %v2249
        %v2258 = vmul.f32 %v2244, %v2249
        %v2260 = vlaneseq
        %v2261 = vshrl.u32 %v2260, 7
        %v2262 = vsub.s32 0, %v2261
        %v2263 = vrot.slane %v1873, %v2262
        %v2265 = vadd.f32 %v2251, %v2263
        %v2266 = vadd.f32 %v2252, %v2263
        %v2267 = vadd.f32 %v2253, %v2263
        %v2268 = vadd.f32 %v2254, %v2263
        %v2269 = vadd.f32 %v2255, %v2263
        %v2270 = vadd.f32 %v2256, %v2263
        %v2271 = vadd.f32 %v2257, %v2263
        %v2272 = vadd.f32 %v2258, %v2263
        %v2273 = vxor.u32 %v2265, 2147483648
        %v2274 = vxor.u32 %v2266, 2147483648
        %v2275 = vxor.u32 %v2267, 2147483648
        %v2276 = vxor.u32 %v2268, 2147483648
        %v2277 = vxor.u32 %v2269, 2147483648
        %v2278 = vxor.u32 %v2270, 2147483648
        %v2279 = vxor.u32 %v2271, 2147483648
        %v2280 = vxor.u32 %v2272, 2147483648
        %v2281 = vmul.f32 %v2273, 1.442695
        %v2282 = vpow.pop %v2281
        %v2283 = vmul.f32 %v2274, 1.442695
        %v2284 = vpow.pop %v2283
        %v2285 = vmul.f32 %v2275, 1.442695
        %v2286 = vpow.pop %v2285
        %v2287 = vmul.f32 %v2276, 1.442695
        %v2288 = vpow.pop %v2287
        %v2289 = vmul.f32 %v2277, 1.442695
        %v2290 = vpow.pop %v2289
        %v2291 = vmul.f32 %v2278, 1.442695
        %v2292 = vpow.pop %v2291
        %v2293 = vmul.f32 %v2279, 1.442695
        %v2294 = vpow.pop %v2293
        %v2295 = vmul.f32 %v2280, 1.442695
        %v2296 = vpow.pop %v2295
        %v2297 = vadd.f32 %v2282, 1.0
        %v2298 = vadd.f32 %v2284, 1.0
        %v2299 = vadd.f32 %v2286, 1.0
        %v2300 = vadd.f32 %v2288, 1.0
        %v2301 = vadd.f32 %v2290, 1.0
        %v2302 = vadd.f32 %v2292, 1.0
        %v2303 = vadd.f32 %v2294, 1.0
        %v2304 = vadd.f32 %v2296, 1.0
        %v2305 = vrcp.pop %v2297
        %v2306 = vmul.f32 1.0, %v2305
        %v2307 = vrcp.pop %v2298
        %v2308 = vmul.f32 1.0, %v2307
        %v2309 = vrcp.pop %v2299
        %v2310 = vmul.f32 1.0, %v2309
        %v2311 = vrcp.pop %v2300
        %v2312 = vmul.f32 1.0, %v2311
        %v2313 = vrcp.pop %v2301
        %v2314 = vmul.f32 1.0, %v2313
        %v2315 = vrcp.pop %v2302
        %v2316 = vmul.f32 1.0, %v2315
        %v2317 = vrcp.pop %v2303
        %v2318 = vmul.f32 1.0, %v2317
        %v2319 = vrcp.pop %v2304
        %v2320 = vmul.f32 1.0, %v2319
        %v2321 = vmul.f32 %v2265, %v2306
        %v2322 = vmul.f32 %v2266, %v2308
        %v2323 = vmul.f32 %v2267, %v2310
        %v2324 = vmul.f32 %v2268, %v2312
        %v2325 = vmul.f32 %v2269, %v2314
        %v2326 = vmul.f32 %v2270, %v2316
        %v2327 = vmul.f32 %v2271, %v2318
        %v2328 = vmul.f32 %v2272, %v2320
        %2329 = vst.msk [vmem:[%s556 + $0x1] sm:$0xff] %vm454, %v2321
        %2330 = vst.msk [vmem:[%s556 + $0x11] sm:$0xff] %vm454, %v2322
        %2331 = vst.msk [vmem:[%s556 + $0x21] sm:$0xff] %vm454, %v2323
        %2332 = vst.msk [vmem:[%s556 + $0x31] sm:$0xff] %vm454, %v2324
        %2333 = vst.msk [vmem:[%s556 + $0x41] sm:$0xff] %vm454, %v2325
        %2334 = vst.msk [vmem:[%s556 + $0x51] sm:$0xff] %vm454, %v2326
        %2335 = vst.msk [vmem:[%s556 + $0x61] sm:$0xff] %vm454, %v2327
        %2336 = vst.msk [vmem:[%s556 + $0x71] sm:$0xff] %vm454, %v2328
        %v2337 = vld [vmem:[#allocation2] sm:$0xff]
        %v2338 = vld [vmem:[#allocation2 + $0x10] sm:$0xff]
        %v2339 = vld [vmem:[#allocation2 + $0x20] sm:$0xff]
        %v2340 = vld [vmem:[#allocation2 + $0x30] sm:$0xff]
        %v2341 = vld [vmem:[#allocation2 + $0x40] sm:$0xff]
        %v2342 = vld [vmem:[#allocation2 + $0x50] sm:$0xff]
        %v2343 = vld [vmem:[#allocation2 + $0x60] sm:$0xff]
        %v2344 = vld [vmem:[#allocation2 + $0x70] sm:$0xff]
        %v2345 = vld [vmem:[#allocation2 + $0x1] sm:$0xff]
        %v2346 = vld [vmem:[#allocation2 + $0x11] sm:$0xff]
        %v2347 = vld [vmem:[#allocation2 + $0x21] sm:$0xff]
        %v2348 = vld [vmem:[#allocation2 + $0x31] sm:$0xff]
        %v2349 = vld [vmem:[#allocation2 + $0x41] sm:$0xff]
        %v2350 = vld [vmem:[#allocation2 + $0x51] sm:$0xff]
        %v2351 = vld [vmem:[#allocation2 + $0x61] sm:$0xff]
        %v2352 = vld [vmem:[#allocation2 + $0x71] sm:$0xff]
        %v2354 = vsel %vm454, %v2345, 0
        %v2357 = vsel %vm454, %v2346, 0
        %v2360 = vsel %vm454, %v2347, 0
        %v2363 = vsel %vm454, %v2348, 0
        %v2366 = vsel %vm454, %v2349, 0
        %v2369 = vsel %vm454, %v2350, 0
        %v2372 = vsel %vm454, %v2351, 0
        %v2375 = vsel %vm454, %v2352, 0
        %2377 = vmatprep.subr.mxu0 0.0
        %2378 = vmatpush1.msra.mxu0 %v516
        %2379 = vmatprep.subr.mxu0 0.0
        %2380 = vmatpush1.msra.mxu0 0.0
        %2381 = vmatprep.subr.mxu0 0.0
        %2382 = vmatpush1.msra.mxu0 0.0
        %2383 = vmatprep.subr.mxu0 0.0
        %2384 = vmatpush1.msra.mxu0 0.0
        %2385 = vmatprep.subr.mxu0 0.0
        %2386 = vmatpush1.msra.mxu0 0.0
        %2387 = vmatprep.subr.mxu0 0.0
        %2388 = vmatpush1.msra.mxu0 0.0
        %2389 = vmatprep.subr.mxu0 0.0
        %2390 = vmatpush1.msra.mxu0 0.0
        %2391 = vmatprep.subr.mxu0 0.0
        %2392 = vmatpush1.msra.mxu0 0.0
        %2393 = vmatprep.subr.mxu0 0.0
        %2394 = vmatpush1.msra.mxu0 0.0
        %2395 = vmatprep.subr.mxu0 0.0
        %2396 = vmatpush1.msra.mxu0 0.0
        %2397 = vmatprep.subr.mxu0 0.0
        %2398 = vmatpush1.msra.mxu0 0.0
        %2399 = vmatprep.subr.mxu0 0.0
        %2400 = vmatpush1.msra.mxu0 0.0
        %2401 = vmatprep.subr.mxu0 0.0
        %2402 = vmatpush1.msra.mxu0 0.0
        %2403 = vmatprep.subr.mxu0 0.0
        %2404 = vmatpush1.msra.mxu0 0.0
        %2405 = vmatprep.subr.mxu0 0.0
        %2406 = vmatpush1.msra.mxu0 0.0
        %2407 = vmatprep.subr.mxu0 0.0
        %2408 = vmatpush1.msra.mxu0 0.0
        %2409 = vmatprep.subr.mxu0 0.0
        %2410 = vmatpush1.msra.mxu0 0.0
        %2411 = vmatprep.subr.mxu0 0.0
        %2412 = vmatpush1.msra.mxu0 0.0
        %2413 = vmatprep.subr.mxu0 0.0
        %2414 = vmatpush1.msra.mxu0 0.0
        %2415 = vmatprep.subr.mxu0 0.0
        %2416 = vmatpush1.msra.mxu0 0.0
        %2417 = vmatprep.subr.mxu0 0.0
        %2418 = vmatpush1.msra.mxu0 0.0
        %2419 = vmatprep.subr.mxu0 0.0
        %2420 = vmatpush1.msra.mxu0 0.0
        %2421 = vmatprep.subr.mxu0 0.0
        %2422 = vmatpush1.msra.mxu0 0.0
        %2423 = vmatprep.subr.mxu0 0.0
        %2424 = vmatpush1.msra.mxu0 0.0
        %2425 = vmatprep.subr.mxu0 0.0
        %2426 = vmatpush1.msra.mxu0 0.0
        %2427 = vmatprep.subr.mxu0 0.0
        %2428 = vmatpush1.msra.mxu0 0.0
        %2429 = vmatprep.subr.mxu0 0.0
        %2430 = vmatpush1.msra.mxu0 0.0
        %2431 = vmatprep.subr.mxu0 0.0
        %2432 = vmatpush1.msra.mxu0 0.0
        %2433 = vmatprep.subr.mxu0 0.0
        %2434 = vmatpush1.msra.mxu0 0.0
        %2435 = vmatprep.subr.mxu0 0.0
        %2436 = vmatpush1.msra.mxu0 0.0
        %2437 = vmatprep.subr.mxu0 0.0
        %2438 = vmatpush1.msra.mxu0 0.0
        %2439 = vmatprep.subr.mxu0 0.0
        %2440 = vmatpush1.msra.mxu0 0.0
        %2441 = vmatprep.mubr.f32.mxu0 0.0
        %2442 = vmatmul.mubr.f32.gmra.mrb[0].mxu0 %v2354
        %v2443 = vpop.f32.mrb[0].mxu0
        %v2444 = vadd.f32 0.0, %v2443
        %v2445 = vpop.f32.mrb[0].mxu0
        %2446 = vmatprep.mubr.f32.mxu0 0.0
        %2447 = vmatmul.mubr.f32.gmra.mrb[0].mxu0 %v2357
        %v2448 = vpop.f32.mrb[0].mxu0
        %v2449 = vadd.f32 0.0, %v2448
        %v2450 = vpop.f32.mrb[0].mxu0
        %2451 = vmatprep.mubr.f32.mxu0 0.0
        %2452 = vmatmul.mubr.f32.gmra.mrb[0].mxu0 %v2360
        %v2453 = vpop.f32.mrb[0].mxu0
        %v2454 = vadd.f32 0.0, %v2453
        %v2455 = vpop.f32.mrb[0].mxu0
        %2456 = vmatprep.mubr.f32.mxu0 0.0
        %2457 = vmatmul.mubr.f32.gmra.mrb[0].mxu0 %v2363
        %v2458 = vpop.f32.mrb[0].mxu0
        %v2459 = vadd.f32 0.0, %v2458
        %v2460 = vpop.f32.mrb[0].mxu0
        %2461 = vmatprep.mubr.f32.mxu0 0.0
        %2462 = vmatmul.mubr.f32.gmra.mrb[0].mxu0 %v2366
        %v2463 = vpop.f32.mrb[0].mxu0
        %v2464 = vadd.f32 0.0, %v2463
        %v2465 = vpop.f32.mrb[0].mxu0
        %2466 = vmatprep.mubr.f32.mxu0 0.0
        %2467 = vmatmul.mubr.f32.gmra.mrb[0].mxu0 %v2369
        %v2468 = vpop.f32.mrb[0].mxu0
        %v2469 = vadd.f32 0.0, %v2468
        %v2470 = vpop.f32.mrb[0].mxu0
        %2471 = vmatprep.mubr.f32.mxu0 0.0
        %2472 = vmatmul.mubr.f32.gmra.mrb[0].mxu0 %v2372
        %v2473 = vpop.f32.mrb[0].mxu0
        %v2474 = vadd.f32 0.0, %v2473
        %v2475 = vpop.f32.mrb[0].mxu0
        %2476 = vmatprep.mubr.f32.mxu0 0.0
        %2477 = vmatmul.mubr.f32.gmra.mrb[0].mxu0 %v2375
        %v2478 = vpop.f32.mrb[0].mxu0
        %v2479 = vadd.f32 0.0, %v2478
        %v2480 = vpop.f32.mrb[0].mxu0
        %2481 = vdwg.mxu0
        %v2483 = vsel %vm454, %v2337, 0
        %v2486 = vsel %vm454, %v2338, 0
        %v2489 = vsel %vm454, %v2339, 0
        %v2492 = vsel %vm454, %v2340, 0
        %v2495 = vsel %vm454, %v2341, 0
        %v2498 = vsel %vm454, %v2342, 0
        %v2501 = vsel %vm454, %v2343, 0
        %v2504 = vsel %vm454, %v2344, 0
        %2506 = vmatprep.subr.mxu0 0.0
        %2507 = vmatpush1.msra.mxu0 %v515
        %2508 = vmatprep.subr.mxu0 0.0
        %2509 = vmatpush1.msra.mxu0 0.0
        %2510 = vmatprep.subr.mxu0 0.0
        %2511 = vmatpush1.msra.mxu0 0.0
        %2512 = vmatprep.subr.mxu0 0.0
        %2513 = vmatpush1.msra.mxu0 0.0
        %2514 = vmatprep.subr.mxu0 0.0
        %2515 = vmatpush1.msra.mxu0 0.0
        %2516 = vmatprep.subr.mxu0 0.0
        %2517 = vmatpush1.msra.mxu0 0.0
        %2518 = vmatprep.subr.mxu0 0.0
        %2519 = vmatpush1.msra.mxu0 0.0
        %2520 = vmatprep.subr.mxu0 0.0
        %2521 = vmatpush1.msra.mxu0 0.0
        %2522 = vmatprep.subr.mxu0 0.0
        %2523 = vmatpush1.msra.mxu0 0.0
        %2524 = vmatprep.subr.mxu0 0.0
        %2525 = vmatpush1.msra.mxu0 0.0
        %2526 = vmatprep.subr.mxu0 0.0
        %2527 = vmatpush1.msra.mxu0 0.0
        %2528 = vmatprep.subr.mxu0 0.0
        %2529 = vmatpush1.msra.mxu0 0.0
        %2530 = vmatprep.subr.mxu0 0.0
        %2531 = vmatpush1.msra.mxu0 0.0
        %2532 = vmatprep.subr.mxu0 0.0
        %2533 = vmatpush1.msra.mxu0 0.0
        %2534 = vmatprep.subr.mxu0 0.0
        %2535 = vmatpush1.msra.mxu0 0.0
        %2536 = vmatprep.subr.mxu0 0.0
        %2537 = vmatpush1.msra.mxu0 0.0
        %2538 = vmatprep.subr.mxu0 0.0
        %2539 = vmatpush1.msra.mxu0 0.0
        %2540 = vmatprep.subr.mxu0 0.0
        %2541 = vmatpush1.msra.mxu0 0.0
        %2542 = vmatprep.subr.mxu0 0.0
        %2543 = vmatpush1.msra.mxu0 0.0
        %2544 = vmatprep.subr.mxu0 0.0
        %2545 = vmatpush1.msra.mxu0 0.0
        %2546 = vmatprep.subr.mxu0 0.0
        %2547 = vmatpush1.msra.mxu0 0.0
        %2548 = vmatprep.subr.mxu0 0.0
        %2549 = vmatpush1.msra.mxu0 0.0
        %2550 = vmatprep.subr.mxu0 0.0
        %2551 = vmatpush1.msra.mxu0 0.0
        %2552 = vmatprep.subr.mxu0 0.0
        %2553 = vmatpush1.msra.mxu0 0.0
        %2554 = vmatprep.subr.mxu0 0.0
        %2555 = vmatpush1.msra.mxu0 0.0
        %2556 = vmatprep.subr.mxu0 0.0
        %2557 = vmatpush1.msra.mxu0 0.0
        %2558 = vmatprep.subr.mxu0 0.0
        %2559 = vmatpush1.msra.mxu0 0.0
        %2560 = vmatprep.subr.mxu0 0.0
        %2561 = vmatpush1.msra.mxu0 0.0
        %2562 = vmatprep.subr.mxu0 0.0
        %2563 = vmatpush1.msra.mxu0 0.0
        %2564 = vmatprep.subr.mxu0 0.0
        %2565 = vmatpush1.msra.mxu0 0.0
        %2566 = vmatprep.subr.mxu0 0.0
        %2567 = vmatpush1.msra.mxu0 0.0
        %2568 = vmatprep.subr.mxu0 0.0
        %2569 = vmatpush1.msra.mxu0 0.0
        %2570 = vmatprep.mubr.f32.mxu0 0.0
        %2571 = vmatmul.mubr.f32.gmra.mrb[0].mxu0 %v2483
        %v2572 = vpop.f32.mrb[0].mxu0
        %v2573 = vadd.f32 %v2444, %v2572
        %v2574 = vpop.f32.mrb[0].mxu0
        %2575 = vmatprep.mubr.f32.mxu0 0.0
        %2576 = vmatmul.mubr.f32.gmra.mrb[0].mxu0 %v2486
        %v2577 = vpop.f32.mrb[0].mxu0
        %v2578 = vadd.f32 %v2449, %v2577
        %v2579 = vpop.f32.mrb[0].mxu0
        %2580 = vmatprep.mubr.f32.mxu0 0.0
        %2581 = vmatmul.mubr.f32.gmra.mrb[0].mxu0 %v2489
        %v2582 = vpop.f32.mrb[0].mxu0
        %v2583 = vadd.f32 %v2454, %v2582
        %v2584 = vpop.f32.mrb[0].mxu0
        %2585 = vmatprep.mubr.f32.mxu0 0.0
        %2586 = vmatmul.mubr.f32.gmra.mrb[0].mxu0 %v2492
        %v2587 = vpop.f32.mrb[0].mxu0
        %v2588 = vadd.f32 %v2459, %v2587
        %v2589 = vpop.f32.mrb[0].mxu0
        %2590 = vmatprep.mubr.f32.mxu0 0.0
        %2591 = vmatmul.mubr.f32.gmra.mrb[0].mxu0 %v2495
        %v2592 = vpop.f32.mrb[0].mxu0
        %v2593 = vadd.f32 %v2464, %v2592
        %v2594 = vpop.f32.mrb[0].mxu0
        %2595 = vmatprep.mubr.f32.mxu0 0.0
        %2596 = vmatmul.mubr.f32.gmra.mrb[0].mxu0 %v2498
        %v2597 = vpop.f32.mrb[0].mxu0
        %v2598 = vadd.f32 %v2469, %v2597
        %v2599 = vpop.f32.mrb[0].mxu0
        %2600 = vmatprep.mubr.f32.mxu0 0.0
        %2601 = vmatmul.mubr.f32.gmra.mrb[0].mxu0 %v2501
        %v2602 = vpop.f32.mrb[0].mxu0
        %v2603 = vadd.f32 %v2474, %v2602
        %v2604 = vpop.f32.mrb[0].mxu0
        %2605 = vmatprep.mubr.f32.mxu0 0.0
        %2606 = vmatmul.mubr.f32.gmra.mrb[0].mxu0 %v2504
        %v2607 = vpop.f32.mrb[0].mxu0
        %v2608 = vadd.f32 %v2479, %v2607
        %v2609 = vpop.f32.mrb[0].mxu0
        %2610 = vdwg.mxu0
        %v2611 = vld [vmem:[#allocation2 + $0x2] sm:$0xff]
        %v2612 = vld [vmem:[#allocation2 + $0x12] sm:$0xff]
        %v2613 = vld [vmem:[#allocation2 + $0x22] sm:$0xff]
        %v2614 = vld [vmem:[#allocation2 + $0x32] sm:$0xff]
        %v2615 = vld [vmem:[#allocation2 + $0x42] sm:$0xff]
        %v2616 = vld [vmem:[#allocation2 + $0x52] sm:$0xff]
        %v2617 = vld [vmem:[#allocation2 + $0x62] sm:$0xff]
        %v2618 = vld [vmem:[#allocation2 + $0x72] sm:$0xff]
        %v2620 = vsel %vm454, %v2611, 0
        %v2623 = vsel %vm454, %v2612, 0
        %v2626 = vsel %vm454, %v2613, 0
        %v2629 = vsel %vm454, %v2614, 0
        %v2632 = vsel %vm454, %v2615, 0
        %v2635 = vsel %vm454, %v2616, 0
        %v2638 = vsel %vm454, %v2617, 0
        %v2641 = vsel %vm454, %v2618, 0
        %2643 = vmatprep.subr.mxu0 0.0
        %2644 = vmatpush1.msra.mxu0 %v517
        %2645 = vmatprep.subr.mxu0 0.0
        %2646 = vmatpush1.msra.mxu0 0.0
        %2647 = vmatprep.subr.mxu0 0.0
        %2648 = vmatpush1.msra.mxu0 0.0
        %2649 = vmatprep.subr.mxu0 0.0
        %2650 = vmatpush1.msra.mxu0 0.0
        %2651 = vmatprep.subr.mxu0 0.0
        %2652 = vmatpush1.msra.mxu0 0.0
        %2653 = vmatprep.subr.mxu0 0.0
        %2654 = vmatpush1.msra.mxu0 0.0
        %2655 = vmatprep.subr.mxu0 0.0
        %2656 = vmatpush1.msra.mxu0 0.0
        %2657 = vmatprep.subr.mxu0 0.0
        %2658 = vmatpush1.msra.mxu0 0.0
        %2659 = vmatprep.subr.mxu0 0.0
        %2660 = vmatpush1.msra.mxu0 0.0
        %2661 = vmatprep.subr.mxu0 0.0
        %2662 = vmatpush1.msra.mxu0 0.0
        %2663 = vmatprep.subr.mxu0 0.0
        %2664 = vmatpush1.msra.mxu0 0.0
        %2665 = vmatprep.subr.mxu0 0.0
        %2666 = vmatpush1.msra.mxu0 0.0
        %2667 = vmatprep.subr.mxu0 0.0
        %2668 = vmatpush1.msra.mxu0 0.0
        %2669 = vmatprep.subr.mxu0 0.0
        %2670 = vmatpush1.msra.mxu0 0.0
        %2671 = vmatprep.subr.mxu0 0.0
        %2672 = vmatpush1.msra.mxu0 0.0
        %2673 = vmatprep.subr.mxu0 0.0
        %2674 = vmatpush1.msra.mxu0 0.0
        %2675 = vmatprep.subr.mxu0 0.0
        %2676 = vmatpush1.msra.mxu0 0.0
        %2677 = vmatprep.subr.mxu0 0.0
        %2678 = vmatpush1.msra.mxu0 0.0
        %2679 = vmatprep.subr.mxu0 0.0
        %2680 = vmatpush1.msra.mxu0 0.0
        %2681 = vmatprep.subr.mxu0 0.0
        %2682 = vmatpush1.msra.mxu0 0.0
        %2683 = vmatprep.subr.mxu0 0.0
        %2684 = vmatpush1.msra.mxu0 0.0
        %2685 = vmatprep.subr.mxu0 0.0
        %2686 = vmatpush1.msra.mxu0 0.0
        %2687 = vmatprep.subr.mxu0 0.0
        %2688 = vmatpush1.msra.mxu0 0.0
        %2689 = vmatprep.subr.mxu0 0.0
        %2690 = vmatpush1.msra.mxu0 0.0
        %2691 = vmatprep.subr.mxu0 0.0
        %2692 = vmatpush1.msra.mxu0 0.0
        %2693 = vmatprep.subr.mxu0 0.0
        %2694 = vmatpush1.msra.mxu0 0.0
        %2695 = vmatprep.subr.mxu0 0.0
        %2696 = vmatpush1.msra.mxu0 0.0
        %2697 = vmatprep.subr.mxu0 0.0
        %2698 = vmatpush1.msra.mxu0 0.0
        %2699 = vmatprep.subr.mxu0 0.0
        %2700 = vmatpush1.msra.mxu0 0.0
        %2701 = vmatprep.subr.mxu0 0.0
        %2702 = vmatpush1.msra.mxu0 0.0
        %2703 = vmatprep.subr.mxu0 0.0
        %2704 = vmatpush1.msra.mxu0 0.0
        %2705 = vmatprep.subr.mxu0 0.0
        %2706 = vmatpush1.msra.mxu0 0.0
        %2707 = vmatprep.mubr.f32.mxu0 0.0
        %2708 = vmatmul.mubr.f32.gmra.mrb[0].mxu0 %v2620
        %v2709 = vpop.f32.mrb[0].mxu0
        %v2710 = vadd.f32 0.0, %v2709
        %v2711 = vpop.f32.mrb[0].mxu0
        %2712 = vmatprep.mubr.f32.mxu0 0.0
        %2713 = vmatmul.mubr.f32.gmra.mrb[0].mxu0 %v2623
        %v2714 = vpop.f32.mrb[0].mxu0
        %v2715 = vadd.f32 0.0, %v2714
        %v2716 = vpop.f32.mrb[0].mxu0
        %2717 = vmatprep.mubr.f32.mxu0 0.0
        %2718 = vmatmul.mubr.f32.gmra.mrb[0].mxu0 %v2626
        %v2719 = vpop.f32.mrb[0].mxu0
        %v2720 = vadd.f32 0.0, %v2719
        %v2721 = vpop.f32.mrb[0].mxu0
        %2722 = vmatprep.mubr.f32.mxu0 0.0
        %2723 = vmatmul.mubr.f32.gmra.mrb[0].mxu0 %v2629
        %v2724 = vpop.f32.mrb[0].mxu0
        %v2725 = vadd.f32 0.0, %v2724
        %v2726 = vpop.f32.mrb[0].mxu0
        %2727 = vmatprep.mubr.f32.mxu0 0.0
        %2728 = vmatmul.mubr.f32.gmra.mrb[0].mxu0 %v2632
        %v2729 = vpop.f32.mrb[0].mxu0
        %v2730 = vadd.f32 0.0, %v2729
        %v2731 = vpop.f32.mrb[0].mxu0
        %2732 = vmatprep.mubr.f32.mxu0 0.0
        %2733 = vmatmul.mubr.f32.gmra.mrb[0].mxu0 %v2635
        %v2734 = vpop.f32.mrb[0].mxu0
        %v2735 = vadd.f32 0.0, %v2734
        %v2736 = vpop.f32.mrb[0].mxu0
        %2737 = vmatprep.mubr.f32.mxu0 0.0
        %2738 = vmatmul.mubr.f32.gmra.mrb[0].mxu0 %v2638
        %v2739 = vpop.f32.mrb[0].mxu0
        %v2740 = vadd.f32 0.0, %v2739
        %v2741 = vpop.f32.mrb[0].mxu0
        %2742 = vmatprep.mubr.f32.mxu0 0.0
        %2743 = vmatmul.mubr.f32.gmra.mrb[0].mxu0 %v2641
        %v2744 = vpop.f32.mrb[0].mxu0
        %v2745 = vadd.f32 0.0, %v2744
        %v2746 = vpop.f32.mrb[0].mxu0
        %2747 = vdwg.mxu0
        %v2748 = vadd.f32 %v2573, %v2710
        %v2749 = vadd.f32 %v2578, %v2715
        %v2750 = vadd.f32 %v2583, %v2720
        %v2751 = vadd.f32 %v2588, %v2725
        %v2752 = vadd.f32 %v2593, %v2730
        %v2753 = vadd.f32 %v2598, %v2735
        %v2754 = vadd.f32 %v2603, %v2740
        %v2755 = vadd.f32 %v2608, %v2745
        %v2756 = vld [vmem:[%s556] sm:$0xff]
        %v2757 = vld [vmem:[%s556 + $0x10] sm:$0xff]
        %v2758 = vld [vmem:[%s556 + $0x20] sm:$0xff]
        %v2759 = vld [vmem:[%s556 + $0x30] sm:$0xff]
        %v2760 = vld [vmem:[%s556 + $0x40] sm:$0xff]
        %v2761 = vld [vmem:[%s556 + $0x50] sm:$0xff]
        %v2762 = vld [vmem:[%s556 + $0x60] sm:$0xff]
        %v2763 = vld [vmem:[%s556 + $0x70] sm:$0xff]
        %v2765 = vsel %vm454, %v2756, 0
        %v2768 = vsel %vm454, %v2757, 0
        %v2771 = vsel %vm454, %v2758, 0
        %v2774 = vsel %vm454, %v2759, 0
        %v2777 = vsel %vm454, %v2760, 0
        %v2780 = vsel %vm454, %v2761, 0
        %v2783 = vsel %vm454, %v2762, 0
        %v2786 = vsel %vm454, %v2763, 0
        %2788 = vmatprep.subr.mxu0 0.0
        %2789 = vmatpush1.msra.mxu0 %v518
        %2790 = vmatprep.subr.mxu0 0.0
        %2791 = vmatpush1.msra.mxu0 0.0
        %2792 = vmatprep.subr.mxu0 0.0
        %2793 = vmatpush1.msra.mxu0 0.0
        %2794 = vmatprep.subr.mxu0 0.0
        %2795 = vmatpush1.msra.mxu0 0.0
        %2796 = vmatprep.subr.mxu0 0.0
        %2797 = vmatpush1.msra.mxu0 0.0
        %2798 = vmatprep.subr.mxu0 0.0
        %2799 = vmatpush1.msra.mxu0 0.0
        %2800 = vmatprep.subr.mxu0 0.0
        %2801 = vmatpush1.msra.mxu0 0.0
        %2802 = vmatprep.subr.mxu0 0.0
        %2803 = vmatpush1.msra.mxu0 0.0
        %2804 = vmatprep.subr.mxu0 0.0
        %2805 = vmatpush1.msra.mxu0 0.0
        %2806 = vmatprep.subr.mxu0 0.0
        %2807 = vmatpush1.msra.mxu0 0.0
        %2808 = vmatprep.subr.mxu0 0.0
        %2809 = vmatpush1.msra.mxu0 0.0
        %2810 = vmatprep.subr.mxu0 0.0
        %2811 = vmatpush1.msra.mxu0 0.0
        %2812 = vmatprep.subr.mxu0 0.0
        %2813 = vmatpush1.msra.mxu0 0.0
        %2814 = vmatprep.subr.mxu0 0.0
        %2815 = vmatpush1.msra.mxu0 0.0
        %2816 = vmatprep.subr.mxu0 0.0
        %2817 = vmatpush1.msra.mxu0 0.0
        %2818 = vmatprep.subr.mxu0 0.0
        %2819 = vmatpush1.msra.mxu0 0.0
        %2820 = vmatprep.subr.mxu0 0.0
        %2821 = vmatpush1.msra.mxu0 0.0
        %2822 = vmatprep.subr.mxu0 0.0
        %2823 = vmatpush1.msra.mxu0 0.0
        %2824 = vmatprep.subr.mxu0 0.0
        %2825 = vmatpush1.msra.mxu0 0.0
        %2826 = vmatprep.subr.mxu0 0.0
        %2827 = vmatpush1.msra.mxu0 0.0
        %2828 = vmatprep.subr.mxu0 0.0
        %2829 = vmatpush1.msra.mxu0 0.0
        %2830 = vmatprep.subr.mxu0 0.0
        %2831 = vmatpush1.msra.mxu0 0.0
        %2832 = vmatprep.subr.mxu0 0.0
        %2833 = vmatpush1.msra.mxu0 0.0
        %2834 = vmatprep.subr.mxu0 0.0
        %2835 = vmatpush1.msra.mxu0 0.0
        %2836 = vmatprep.subr.mxu0 0.0
        %2837 = vmatpush1.msra.mxu0 0.0
        %2838 = vmatprep.subr.mxu0 0.0
        %2839 = vmatpush1.msra.mxu0 0.0
        %2840 = vmatprep.subr.mxu0 0.0
        %2841 = vmatpush1.msra.mxu0 0.0
        %2842 = vmatprep.subr.mxu0 0.0
        %2843 = vmatpush1.msra.mxu0 0.0
        %2844 = vmatprep.subr.mxu0 0.0
        %2845 = vmatpush1.msra.mxu0 0.0
        %2846 = vmatprep.subr.mxu0 0.0
        %2847 = vmatpush1.msra.mxu0 0.0
        %2848 = vmatprep.subr.mxu0 0.0
        %2849 = vmatpush1.msra.mxu0 0.0
        %2850 = vmatprep.subr.mxu0 0.0
        %2851 = vmatpush1.msra.mxu0 0.0
        %2852 = vmatprep.mubr.f32.mxu0 0.0
        %2853 = vmatmul.mubr.f32.gmra.mrb[0].mxu0 %v2765
        %v2854 = vpop.f32.mrb[0].mxu0
        %v2855 = vadd.f32 0.0, %v2854
        %v2856 = vpop.f32.mrb[0].mxu0
        %2857 = vmatprep.mubr.f32.mxu0 0.0
        %2858 = vmatmul.mubr.f32.gmra.mrb[0].mxu0 %v2768
        %v2859 = vpop.f32.mrb[0].mxu0
        %v2860 = vadd.f32 0.0, %v2859
        %v2861 = vpop.f32.mrb[0].mxu0
        %2862 = vmatprep.mubr.f32.mxu0 0.0
        %2863 = vmatmul.mubr.f32.gmra.mrb[0].mxu0 %v2771
        %v2864 = vpop.f32.mrb[0].mxu0
        %v2865 = vadd.f32 0.0, %v2864
        %v2866 = vpop.f32.mrb[0].mxu0
        %2867 = vmatprep.mubr.f32.mxu0 0.0
        %2868 = vmatmul.mubr.f32.gmra.mrb[0].mxu0 %v2774
        %v2869 = vpop.f32.mrb[0].mxu0
        %v2870 = vadd.f32 0.0, %v2869
        %v2871 = vpop.f32.mrb[0].mxu0
        %2872 = vmatprep.mubr.f32.mxu0 0.0
        %2873 = vmatmul.mubr.f32.gmra.mrb[0].mxu0 %v2777
        %v2874 = vpop.f32.mrb[0].mxu0
        %v2875 = vadd.f32 0.0, %v2874
        %v2876 = vpop.f32.mrb[0].mxu0
        %2877 = vmatprep.mubr.f32.mxu0 0.0
        %2878 = vmatmul.mubr.f32.gmra.mrb[0].mxu0 %v2780
        %v2879 = vpop.f32.mrb[0].mxu0
        %v2880 = vadd.f32 0.0, %v2879
        %v2881 = vpop.f32.mrb[0].mxu0
        %2882 = vmatprep.mubr.f32.mxu0 0.0
        %2883 = vmatmul.mubr.f32.gmra.mrb[0].mxu0 %v2783
        %v2884 = vpop.f32.mrb[0].mxu0
        %v2885 = vadd.f32 0.0, %v2884
        %v2886 = vpop.f32.mrb[0].mxu0
        %2887 = vmatprep.mubr.f32.mxu0 0.0
        %2888 = vmatmul.mubr.f32.gmra.mrb[0].mxu0 %v2786
        %v2889 = vpop.f32.mrb[0].mxu0
        %v2890 = vadd.f32 0.0, %v2889
        %v2891 = vpop.f32.mrb[0].mxu0
        %2892 = vdwg.mxu0
        %v2893 = vadd.f32 %v2748, %v2855
        %v2894 = vadd.f32 %v2749, %v2860
        %v2895 = vadd.f32 %v2750, %v2865
        %v2896 = vadd.f32 %v2751, %v2870
        %v2897 = vadd.f32 %v2752, %v2875
        %v2898 = vadd.f32 %v2753, %v2880
        %v2899 = vadd.f32 %v2754, %v2885
        %v2900 = vadd.f32 %v2755, %v2890
        %v2901 = vld [vmem:[%s556 + $0x1] sm:$0xff]
        %v2902 = vld [vmem:[%s556 + $0x11] sm:$0xff]
        %v2903 = vld [vmem:[%s556 + $0x21] sm:$0xff]
        %v2904 = vld [vmem:[%s556 + $0x31] sm:$0xff]
        %v2905 = vld [vmem:[%s556 + $0x41] sm:$0xff]
        %v2906 = vld [vmem:[%s556 + $0x51] sm:$0xff]
        %v2907 = vld [vmem:[%s556 + $0x61] sm:$0xff]
        %v2908 = vld [vmem:[%s556 + $0x71] sm:$0xff]
        %v2910 = vsel %vm454, %v2901, 0
        %v2913 = vsel %vm454, %v2902, 0
        %v2916 = vsel %vm454, %v2903, 0
        %v2919 = vsel %vm454, %v2904, 0
        %v2922 = vsel %vm454, %v2905, 0
        %v2925 = vsel %vm454, %v2906, 0
        %v2928 = vsel %vm454, %v2907, 0
        %v2931 = vsel %vm454, %v2908, 0
        %2933 = vmatprep.subr.mxu0 0.0
        %2934 = vmatpush1.msra.mxu0 %v519
        %2935 = vmatprep.subr.mxu0 0.0
        %2936 = vmatpush1.msra.mxu0 0.0
        %2937 = vmatprep.subr.mxu0 0.0
        %2938 = vmatpush1.msra.mxu0 0.0
        %2939 = vmatprep.subr.mxu0 0.0
        %2940 = vmatpush1.msra.mxu0 0.0
        %2941 = vmatprep.subr.mxu0 0.0
        %2942 = vmatpush1.msra.mxu0 0.0
        %2943 = vmatprep.subr.mxu0 0.0
        %2944 = vmatpush1.msra.mxu0 0.0
        %2945 = vmatprep.subr.mxu0 0.0
        %2946 = vmatpush1.msra.mxu0 0.0
        %2947 = vmatprep.subr.mxu0 0.0
        %2948 = vmatpush1.msra.mxu0 0.0
        %2949 = vmatprep.subr.mxu0 0.0
        %2950 = vmatpush1.msra.mxu0 0.0
        %2951 = vmatprep.subr.mxu0 0.0
        %2952 = vmatpush1.msra.mxu0 0.0
        %2953 = vmatprep.subr.mxu0 0.0
        %2954 = vmatpush1.msra.mxu0 0.0
        %2955 = vmatprep.subr.mxu0 0.0
        %2956 = vmatpush1.msra.mxu0 0.0
        %2957 = vmatprep.subr.mxu0 0.0
        %2958 = vmatpush1.msra.mxu0 0.0
        %2959 = vmatprep.subr.mxu0 0.0
        %2960 = vmatpush1.msra.mxu0 0.0
        %2961 = vmatprep.subr.mxu0 0.0
        %2962 = vmatpush1.msra.mxu0 0.0
        %2963 = vmatprep.subr.mxu0 0.0
        %2964 = vmatpush1.msra.mxu0 0.0
        %2965 = vmatprep.subr.mxu0 0.0
        %2966 = vmatpush1.msra.mxu0 0.0
        %2967 = vmatprep.subr.mxu0 0.0
        %2968 = vmatpush1.msra.mxu0 0.0
        %2969 = vmatprep.subr.mxu0 0.0
        %2970 = vmatpush1.msra.mxu0 0.0
        %2971 = vmatprep.subr.mxu0 0.0
        %2972 = vmatpush1.msra.mxu0 0.0
        %2973 = vmatprep.subr.mxu0 0.0
        %2974 = vmatpush1.msra.mxu0 0.0
        %2975 = vmatprep.subr.mxu0 0.0
        %2976 = vmatpush1.msra.mxu0 0.0
        %2977 = vmatprep.subr.mxu0 0.0
        %2978 = vmatpush1.msra.mxu0 0.0
        %2979 = vmatprep.subr.mxu0 0.0
        %2980 = vmatpush1.msra.mxu0 0.0
        %2981 = vmatprep.subr.mxu0 0.0
        %2982 = vmatpush1.msra.mxu0 0.0
        %2983 = vmatprep.subr.mxu0 0.0
        %2984 = vmatpush1.msra.mxu0 0.0
        %2985 = vmatprep.subr.mxu0 0.0
        %2986 = vmatpush1.msra.mxu0 0.0
        %2987 = vmatprep.subr.mxu0 0.0
        %2988 = vmatpush1.msra.mxu0 0.0
        %2989 = vmatprep.subr.mxu0 0.0
        %2990 = vmatpush1.msra.mxu0 0.0
        %2991 = vmatprep.subr.mxu0 0.0
        %2992 = vmatpush1.msra.mxu0 0.0
        %2993 = vmatprep.subr.mxu0 0.0
        %2994 = vmatpush1.msra.mxu0 0.0
        %2995 = vmatprep.subr.mxu0 0.0
        %2996 = vmatpush1.msra.mxu0 0.0
        %2997 = vmatprep.mubr.f32.mxu0 0.0
        %2998 = vmatmul.mubr.f32.gmra.mrb[0].mxu0 %v2910
        %v2999 = vpop.f32.mrb[0].mxu0
        %v3000 = vadd.f32 0.0, %v2999
        %v3001 = vpop.f32.mrb[0].mxu0
        %3002 = vmatprep.mubr.f32.mxu0 0.0
        %3003 = vmatmul.mubr.f32.gmra.mrb[0].mxu0 %v2913
        %v3004 = vpop.f32.mrb[0].mxu0
        %v3005 = vadd.f32 0.0, %v3004
        %v3006 = vpop.f32.mrb[0].mxu0
        %3007 = vmatprep.mubr.f32.mxu0 0.0
        %3008 = vmatmul.mubr.f32.gmra.mrb[0].mxu0 %v2916
        %v3009 = vpop.f32.mrb[0].mxu0
        %v3010 = vadd.f32 0.0, %v3009
        %v3011 = vpop.f32.mrb[0].mxu0
        %3012 = vmatprep.mubr.f32.mxu0 0.0
        %3013 = vmatmul.mubr.f32.gmra.mrb[0].mxu0 %v2919
        %v3014 = vpop.f32.mrb[0].mxu0
        %v3015 = vadd.f32 0.0, %v3014
        %v3016 = vpop.f32.mrb[0].mxu0
        %3017 = vmatprep.mubr.f32.mxu0 0.0
        %3018 = vmatmul.mubr.f32.gmra.mrb[0].mxu0 %v2922
        %v3019 = vpop.f32.mrb[0].mxu0
        %v3020 = vadd.f32 0.0, %v3019
        %v3021 = vpop.f32.mrb[0].mxu0
        %3022 = vmatprep.mubr.f32.mxu0 0.0
        %3023 = vmatmul.mubr.f32.gmra.mrb[0].mxu0 %v2925
        %v3024 = vpop.f32.mrb[0].mxu0
        %v3025 = vadd.f32 0.0, %v3024
        %v3026 = vpop.f32.mrb[0].mxu0
        %3027 = vmatprep.mubr.f32.mxu0 0.0
        %3028 = vmatmul.mubr.f32.gmra.mrb[0].mxu0 %v2928
        %v3029 = vpop.f32.mrb[0].mxu0
        %v3030 = vadd.f32 0.0, %v3029
        %v3031 = vpop.f32.mrb[0].mxu0
        %3032 = vmatprep.mubr.f32.mxu0 0.0
        %3033 = vmatmul.mubr.f32.gmra.mrb[0].mxu0 %v2931
        %v3034 = vpop.f32.mrb[0].mxu0
        %v3035 = vadd.f32 0.0, %v3034
        %v3036 = vpop.f32.mrb[0].mxu0
        %3037 = vdwg.mxu0
        %v3038 = vadd.f32 %v2893, %v3000
        %v3039 = vadd.f32 %v2894, %v3005
        %v3040 = vadd.f32 %v2895, %v3010
        %v3041 = vadd.f32 %v2896, %v3015
        %v3042 = vadd.f32 %v2897, %v3020
        %v3043 = vadd.f32 %v2898, %v3025
        %v3044 = vadd.f32 %v2899, %v3030
        %v3045 = vadd.f32 %v2900, %v3035
        %v3046 = vld [vmem:[%s556 + $0x2] sm:$0xff]
        %v3047 = vld [vmem:[%s556 + $0x12] sm:$0xff]
        %v3048 = vld [vmem:[%s556 + $0x22] sm:$0xff]
        %v3049 = vld [vmem:[%s556 + $0x32] sm:$0xff]
        %v3050 = vld [vmem:[%s556 + $0x42] sm:$0xff]
        %v3051 = vld [vmem:[%s556 + $0x52] sm:$0xff]
        %v3052 = vld [vmem:[%s556 + $0x62] sm:$0xff]
        %v3053 = vld [vmem:[%s556 + $0x72] sm:$0xff]
        %v3055 = vsel %vm454, %v3046, 0
        %v3058 = vsel %vm454, %v3047, 0
        %v3061 = vsel %vm454, %v3048, 0
        %v3064 = vsel %vm454, %v3049, 0
        %v3067 = vsel %vm454, %v3050, 0
        %v3070 = vsel %vm454, %v3051, 0
        %v3073 = vsel %vm454, %v3052, 0
        %v3076 = vsel %vm454, %v3053, 0
        %3078 = vmatprep.subr.mxu0 0.0
        %3079 = vmatpush1.msra.mxu0 %v520
        %3080 = vmatprep.subr.mxu0 0.0
        %3081 = vmatpush1.msra.mxu0 0.0
        %3082 = vmatprep.subr.mxu0 0.0
        %3083 = vmatpush1.msra.mxu0 0.0
        %3084 = vmatprep.subr.mxu0 0.0
        %3085 = vmatpush1.msra.mxu0 0.0
        %3086 = vmatprep.subr.mxu0 0.0
        %3087 = vmatpush1.msra.mxu0 0.0
        %3088 = vmatprep.subr.mxu0 0.0
        %3089 = vmatpush1.msra.mxu0 0.0
        %3090 = vmatprep.subr.mxu0 0.0
        %3091 = vmatpush1.msra.mxu0 0.0
        %3092 = vmatprep.subr.mxu0 0.0
        %3093 = vmatpush1.msra.mxu0 0.0
        %3094 = vmatprep.subr.mxu0 0.0
        %3095 = vmatpush1.msra.mxu0 0.0
        %3096 = vmatprep.subr.mxu0 0.0
        %3097 = vmatpush1.msra.mxu0 0.0
        %3098 = vmatprep.subr.mxu0 0.0
        %3099 = vmatpush1.msra.mxu0 0.0
        %3100 = vmatprep.subr.mxu0 0.0
        %3101 = vmatpush1.msra.mxu0 0.0
        %3102 = vmatprep.subr.mxu0 0.0
        %3103 = vmatpush1.msra.mxu0 0.0
        %3104 = vmatprep.subr.mxu0 0.0
        %3105 = vmatpush1.msra.mxu0 0.0
        %3106 = vmatprep.subr.mxu0 0.0
        %3107 = vmatpush1.msra.mxu0 0.0
        %3108 = vmatprep.subr.mxu0 0.0
        %3109 = vmatpush1.msra.mxu0 0.0
        %3110 = vmatprep.subr.mxu0 0.0
        %3111 = vmatpush1.msra.mxu0 0.0
        %3112 = vmatprep.subr.mxu0 0.0
        %3113 = vmatpush1.msra.mxu0 0.0
        %3114 = vmatprep.subr.mxu0 0.0
        %3115 = vmatpush1.msra.mxu0 0.0
        %3116 = vmatprep.subr.mxu0 0.0
        %3117 = vmatpush1.msra.mxu0 0.0
        %3118 = vmatprep.subr.mxu0 0.0
        %3119 = vmatpush1.msra.mxu0 0.0
        %3120 = vmatprep.subr.mxu0 0.0
        %3121 = vmatpush1.msra.mxu0 0.0
        %3122 = vmatprep.subr.mxu0 0.0
        %3123 = vmatpush1.msra.mxu0 0.0
        %3124 = vmatprep.subr.mxu0 0.0
        %3125 = vmatpush1.msra.mxu0 0.0
        %3126 = vmatprep.subr.mxu0 0.0
        %3127 = vmatpush1.msra.mxu0 0.0
        %3128 = vmatprep.subr.mxu0 0.0
        %3129 = vmatpush1.msra.mxu0 0.0
        %3130 = vmatprep.subr.mxu0 0.0
        %3131 = vmatpush1.msra.mxu0 0.0
        %3132 = vmatprep.subr.mxu0 0.0
        %3133 = vmatpush1.msra.mxu0 0.0
        %3134 = vmatprep.subr.mxu0 0.0
        %3135 = vmatpush1.msra.mxu0 0.0
        %3136 = vmatprep.subr.mxu0 0.0
        %3137 = vmatpush1.msra.mxu0 0.0
        %3138 = vmatprep.subr.mxu0 0.0
        %3139 = vmatpush1.msra.mxu0 0.0
        %3140 = vmatprep.subr.mxu0 0.0
        %3141 = vmatpush1.msra.mxu0 0.0
        %3142 = vmatprep.mubr.f32.mxu0 0.0
        %3143 = vmatmul.mubr.f32.gmra.mrb[0].mxu0 %v3055
        %v3144 = vpop.f32.mrb[0].mxu0
        %v3145 = vadd.f32 0.0, %v3144
        %v3146 = vpop.f32.mrb[0].mxu0
        %3147 = vmatprep.mubr.f32.mxu0 0.0
        %3148 = vmatmul.mubr.f32.gmra.mrb[0].mxu0 %v3058
        %v3149 = vpop.f32.mrb[0].mxu0
        %v3150 = vadd.f32 0.0, %v3149
        %v3151 = vpop.f32.mrb[0].mxu0
        %3152 = vmatprep.mubr.f32.mxu0 0.0
        %3153 = vmatmul.mubr.f32.gmra.mrb[0].mxu0 %v3061
        %v3154 = vpop.f32.mrb[0].mxu0
        %v3155 = vadd.f32 0.0, %v3154
        %v3156 = vpop.f32.mrb[0].mxu0
        %3157 = vmatprep.mubr.f32.mxu0 0.0
        %3158 = vmatmul.mubr.f32.gmra.mrb[0].mxu0 %v3064
        %v3159 = vpop.f32.mrb[0].mxu0
        %v3160 = vadd.f32 0.0, %v3159
        %v3161 = vpop.f32.mrb[0].mxu0
        %3162 = vmatprep.mubr.f32.mxu0 0.0
        %3163 = vmatmul.mubr.f32.gmra.mrb[0].mxu0 %v3067
        %v3164 = vpop.f32.mrb[0].mxu0
        %v3165 = vadd.f32 0.0, %v3164
        %v3166 = vpop.f32.mrb[0].mxu0
        %3167 = vmatprep.mubr.f32.mxu0 0.0
        %3168 = vmatmul.mubr.f32.gmra.mrb[0].mxu0 %v3070
        %v3169 = vpop.f32.mrb[0].mxu0
        %v3170 = vadd.f32 0.0, %v3169
        %v3171 = vpop.f32.mrb[0].mxu0
        %3172 = vmatprep.mubr.f32.mxu0 0.0
        %3173 = vmatmul.mubr.f32.gmra.mrb[0].mxu0 %v3073
        %v3174 = vpop.f32.mrb[0].mxu0
        %v3175 = vadd.f32 0.0, %v3174
        %v3176 = vpop.f32.mrb[0].mxu0
        %3177 = vmatprep.mubr.f32.mxu0 0.0
        %3178 = vmatmul.mubr.f32.gmra.mrb[0].mxu0 %v3076
        %v3179 = vpop.f32.mrb[0].mxu0
        %v3180 = vadd.f32 0.0, %v3179
        %v3181 = vpop.f32.mrb[0].mxu0
        %3182 = vdwg.mxu0
        %v3183 = vadd.f32 %v3038, %v3145
        %v3184 = vadd.f32 %v3039, %v3150
        %v3185 = vadd.f32 %v3040, %v3155
        %v3186 = vadd.f32 %v3041, %v3160
        %v3187 = vadd.f32 %v3042, %v3165
        %v3188 = vadd.f32 %v3043, %v3170
        %v3189 = vadd.f32 %v3044, %v3175
        %v3190 = vadd.f32 %v3045, %v3180
        %v3191 = vld [vmem:[%s1419] sm:$0xff]
        %v3192 = vld [vmem:[%s1419 + $0x10] sm:$0xff]
        %v3193 = vld [vmem:[%s1419 + $0x20] sm:$0xff]
        %v3194 = vld [vmem:[%s1419 + $0x30] sm:$0xff]
        %v3195 = vld [vmem:[%s1419 + $0x40] sm:$0xff]
        %v3196 = vld [vmem:[%s1419 + $0x50] sm:$0xff]
        %v3197 = vld [vmem:[%s1419 + $0x60] sm:$0xff]
        %v3198 = vld [vmem:[%s1419 + $0x70] sm:$0xff]
        %v3200 = vsel %vm454, %v3191, 0
        %v3203 = vsel %vm454, %v3192, 0
        %v3206 = vsel %vm454, %v3193, 0
        %v3209 = vsel %vm454, %v3194, 0
        %v3212 = vsel %vm454, %v3195, 0
        %v3215 = vsel %vm454, %v3196, 0
        %v3218 = vsel %vm454, %v3197, 0
        %v3221 = vsel %vm454, %v3198, 0
        %3223 = vmatprep.subr.mxu0 0.0
        %3224 = vmatpush1.msra.mxu0 %v521
        %3225 = vmatprep.subr.mxu0 0.0
        %3226 = vmatpush1.msra.mxu0 0.0
        %3227 = vmatprep.subr.mxu0 0.0
        %3228 = vmatpush1.msra.mxu0 0.0
        %3229 = vmatprep.subr.mxu0 0.0
        %3230 = vmatpush1.msra.mxu0 0.0
        %3231 = vmatprep.subr.mxu0 0.0
        %3232 = vmatpush1.msra.mxu0 0.0
        %3233 = vmatprep.subr.mxu0 0.0
        %3234 = vmatpush1.msra.mxu0 0.0
        %3235 = vmatprep.subr.mxu0 0.0
        %3236 = vmatpush1.msra.mxu0 0.0
        %3237 = vmatprep.subr.mxu0 0.0
        %3238 = vmatpush1.msra.mxu0 0.0
        %3239 = vmatprep.subr.mxu0 0.0
        %3240 = vmatpush1.msra.mxu0 0.0
        %3241 = vmatprep.subr.mxu0 0.0
        %3242 = vmatpush1.msra.mxu0 0.0
        %3243 = vmatprep.subr.mxu0 0.0
        %3244 = vmatpush1.msra.mxu0 0.0
        %3245 = vmatprep.subr.mxu0 0.0
        %3246 = vmatpush1.msra.mxu0 0.0
        %3247 = vmatprep.subr.mxu0 0.0
        %3248 = vmatpush1.msra.mxu0 0.0
        %3249 = vmatprep.subr.mxu0 0.0
        %3250 = vmatpush1.msra.mxu0 0.0
        %3251 = vmatprep.subr.mxu0 0.0
        %3252 = vmatpush1.msra.mxu0 0.0
        %3253 = vmatprep.subr.mxu0 0.0
        %3254 = vmatpush1.msra.mxu0 0.0
        %3255 = vmatprep.subr.mxu0 0.0
        %3256 = vmatpush1.msra.mxu0 0.0
        %3257 = vmatprep.subr.mxu0 0.0
        %3258 = vmatpush1.msra.mxu0 0.0
        %3259 = vmatprep.subr.mxu0 0.0
        %3260 = vmatpush1.msra.mxu0 0.0
        %3261 = vmatprep.subr.mxu0 0.0
        %3262 = vmatpush1.msra.mxu0 0.0
        %3263 = vmatprep.subr.mxu0 0.0
        %3264 = vmatpush1.msra.mxu0 0.0
        %3265 = vmatprep.subr.mxu0 0.0
        %3266 = vmatpush1.msra.mxu0 0.0
        %3267 = vmatprep.subr.mxu0 0.0
        %3268 = vmatpush1.msra.mxu0 0.0
        %3269 = vmatprep.subr.mxu0 0.0
        %3270 = vmatpush1.msra.mxu0 0.0
        %3271 = vmatprep.subr.mxu0 0.0
        %3272 = vmatpush1.msra.mxu0 0.0
        %3273 = vmatprep.subr.mxu0 0.0
        %3274 = vmatpush1.msra.mxu0 0.0
        %3275 = vmatprep.subr.mxu0 0.0
        %3276 = vmatpush1.msra.mxu0 0.0
        %3277 = vmatprep.subr.mxu0 0.0
        %3278 = vmatpush1.msra.mxu0 0.0
        %3279 = vmatprep.subr.mxu0 0.0
        %3280 = vmatpush1.msra.mxu0 0.0
        %3281 = vmatprep.subr.mxu0 0.0
        %3282 = vmatpush1.msra.mxu0 0.0
        %3283 = vmatprep.subr.mxu0 0.0
        %3284 = vmatpush1.msra.mxu0 0.0
        %3285 = vmatprep.subr.mxu0 0.0
        %3286 = vmatpush1.msra.mxu0 0.0
        %3287 = vmatprep.mubr.f32.mxu0 0.0
        %3288 = vmatmul.mubr.f32.gmra.mrb[0].mxu0 %v3200
        %v3289 = vpop.f32.mrb[0].mxu0
        %v3290 = vadd.f32 0.0, %v3289
        %v3291 = vpop.f32.mrb[0].mxu0
        %3292 = vmatprep.mubr.f32.mxu0 0.0
        %3293 = vmatmul.mubr.f32.gmra.mrb[0].mxu0 %v3203
        %v3294 = vpop.f32.mrb[0].mxu0
        %v3295 = vadd.f32 0.0, %v3294
        %v3296 = vpop.f32.mrb[0].mxu0
        %3297 = vmatprep.mubr.f32.mxu0 0.0
        %3298 = vmatmul.mubr.f32.gmra.mrb[0].mxu0 %v3206
        %v3299 = vpop.f32.mrb[0].mxu0
        %v3300 = vadd.f32 0.0, %v3299
        %v3301 = vpop.f32.mrb[0].mxu0
        %3302 = vmatprep.mubr.f32.mxu0 0.0
        %3303 = vmatmul.mubr.f32.gmra.mrb[0].mxu0 %v3209
        %v3304 = vpop.f32.mrb[0].mxu0
        %v3305 = vadd.f32 0.0, %v3304
        %v3306 = vpop.f32.mrb[0].mxu0
        %3307 = vmatprep.mubr.f32.mxu0 0.0
        %3308 = vmatmul.mubr.f32.gmra.mrb[0].mxu0 %v3212
        %v3309 = vpop.f32.mrb[0].mxu0
        %v3310 = vadd.f32 0.0, %v3309
        %v3311 = vpop.f32.mrb[0].mxu0
        %3312 = vmatprep.mubr.f32.mxu0 0.0
        %3313 = vmatmul.mubr.f32.gmra.mrb[0].mxu0 %v3215
        %v3314 = vpop.f32.mrb[0].mxu0
        %v3315 = vadd.f32 0.0, %v3314
        %v3316 = vpop.f32.mrb[0].mxu0
        %3317 = vmatprep.mubr.f32.mxu0 0.0
        %3318 = vmatmul.mubr.f32.gmra.mrb[0].mxu0 %v3218
        %v3319 = vpop.f32.mrb[0].mxu0
        %v3320 = vadd.f32 0.0, %v3319
        %v3321 = vpop.f32.mrb[0].mxu0
        %3322 = vmatprep.mubr.f32.mxu0 0.0
        %3323 = vmatmul.mubr.f32.gmra.mrb[0].mxu0 %v3221
        %v3324 = vpop.f32.mrb[0].mxu0
        %v3325 = vadd.f32 0.0, %v3324
        %v3326 = vpop.f32.mrb[0].mxu0
        %3327 = vdwg.mxu0
        %v3328 = vadd.f32 %v3183, %v3290
        %v3329 = vadd.f32 %v3184, %v3295
        %v3330 = vadd.f32 %v3185, %v3300
        %v3331 = vadd.f32 %v3186, %v3305
        %v3332 = vadd.f32 %v3187, %v3310
        %v3333 = vadd.f32 %v3188, %v3315
        %v3334 = vadd.f32 %v3189, %v3320
        %v3335 = vadd.f32 %v3190, %v3325
        %v3336 = vld [vmem:[%s1419 + $0x1] sm:$0xff]
        %v3337 = vld [vmem:[%s1419 + $0x11] sm:$0xff]
        %v3338 = vld [vmem:[%s1419 + $0x21] sm:$0xff]
        %v3339 = vld [vmem:[%s1419 + $0x31] sm:$0xff]
        %v3340 = vld [vmem:[%s1419 + $0x41] sm:$0xff]
        %v3341 = vld [vmem:[%s1419 + $0x51] sm:$0xff]
        %v3342 = vld [vmem:[%s1419 + $0x61] sm:$0xff]
        %v3343 = vld [vmem:[%s1419 + $0x71] sm:$0xff]
        %v3345 = vsel %vm454, %v3336, 0
        %v3348 = vsel %vm454, %v3337, 0
        %v3351 = vsel %vm454, %v3338, 0
        %v3354 = vsel %vm454, %v3339, 0
        %v3357 = vsel %vm454, %v3340, 0
        %v3360 = vsel %vm454, %v3341, 0
        %v3363 = vsel %vm454, %v3342, 0
        %v3366 = vsel %vm454, %v3343, 0
        %3368 = vmatprep.subr.mxu0 0.0
        %3369 = vmatpush1.msra.mxu0 %v522
        %3370 = vmatprep.subr.mxu0 0.0
        %3371 = vmatpush1.msra.mxu0 0.0
        %3372 = vmatprep.subr.mxu0 0.0
        %3373 = vmatpush1.msra.mxu0 0.0
        %3374 = vmatprep.subr.mxu0 0.0
        %3375 = vmatpush1.msra.mxu0 0.0
        %3376 = vmatprep.subr.mxu0 0.0
        %3377 = vmatpush1.msra.mxu0 0.0
        %3378 = vmatprep.subr.mxu0 0.0
        %3379 = vmatpush1.msra.mxu0 0.0
        %3380 = vmatprep.subr.mxu0 0.0
        %3381 = vmatpush1.msra.mxu0 0.0
        %3382 = vmatprep.subr.mxu0 0.0
        %3383 = vmatpush1.msra.mxu0 0.0
        %3384 = vmatprep.subr.mxu0 0.0
        %3385 = vmatpush1.msra.mxu0 0.0
        %3386 = vmatprep.subr.mxu0 0.0
        %3387 = vmatpush1.msra.mxu0 0.0
        %3388 = vmatprep.subr.mxu0 0.0
        %3389 = vmatpush1.msra.mxu0 0.0
        %3390 = vmatprep.subr.mxu0 0.0
        %3391 = vmatpush1.msra.mxu0 0.0
        %3392 = vmatprep.subr.mxu0 0.0
        %3393 = vmatpush1.msra.mxu0 0.0
        %3394 = vmatprep.subr.mxu0 0.0
        %3395 = vmatpush1.msra.mxu0 0.0
        %3396 = vmatprep.subr.mxu0 0.0
        %3397 = vmatpush1.msra.mxu0 0.0
        %3398 = vmatprep.subr.mxu0 0.0
        %3399 = vmatpush1.msra.mxu0 0.0
        %3400 = vmatprep.subr.mxu0 0.0
        %3401 = vmatpush1.msra.mxu0 0.0
        %3402 = vmatprep.subr.mxu0 0.0
        %3403 = vmatpush1.msra.mxu0 0.0
        %3404 = vmatprep.subr.mxu0 0.0
        %3405 = vmatpush1.msra.mxu0 0.0
        %3406 = vmatprep.subr.mxu0 0.0
        %3407 = vmatpush1.msra.mxu0 0.0
        %3408 = vmatprep.subr.mxu0 0.0
        %3409 = vmatpush1.msra.mxu0 0.0
        %3410 = vmatprep.subr.mxu0 0.0
        %3411 = vmatpush1.msra.mxu0 0.0
        %3412 = vmatprep.subr.mxu0 0.0
        %3413 = vmatpush1.msra.mxu0 0.0
        %3414 = vmatprep.subr.mxu0 0.0
        %3415 = vmatpush1.msra.mxu0 0.0
        %3416 = vmatprep.subr.mxu0 0.0
        %3417 = vmatpush1.msra.mxu0 0.0
        %3418 = vmatprep.subr.mxu0 0.0
        %3419 = vmatpush1.msra.mxu0 0.0
        %3420 = vmatprep.subr.mxu0 0.0
        %3421 = vmatpush1.msra.mxu0 0.0
        %3422 = vmatprep.subr.mxu0 0.0
        %3423 = vmatpush1.msra.mxu0 0.0
        %3424 = vmatprep.subr.mxu0 0.0
        %3425 = vmatpush1.msra.mxu0 0.0
        %3426 = vmatprep.subr.mxu0 0.0
        %3427 = vmatpush1.msra.mxu0 0.0
        %3428 = vmatprep.subr.mxu0 0.0
        %3429 = vmatpush1.msra.mxu0 0.0
        %3430 = vmatprep.subr.mxu0 0.0
        %3431 = vmatpush1.msra.mxu0 0.0
        %3432 = vmatprep.mubr.f32.mxu0 0.0
        %3433 = vmatmul.mubr.f32.gmra.mrb[0].mxu0 %v3345
        %v3434 = vpop.f32.mrb[0].mxu0
        %v3435 = vadd.f32 0.0, %v3434
        %v3436 = vpop.f32.mrb[0].mxu0
        %3437 = vmatprep.mubr.f32.mxu0 0.0
        %3438 = vmatmul.mubr.f32.gmra.mrb[0].mxu0 %v3348
        %v3439 = vpop.f32.mrb[0].mxu0
        %v3440 = vadd.f32 0.0, %v3439
        %v3441 = vpop.f32.mrb[0].mxu0
        %3442 = vmatprep.mubr.f32.mxu0 0.0
        %3443 = vmatmul.mubr.f32.gmra.mrb[0].mxu0 %v3351
        %v3444 = vpop.f32.mrb[0].mxu0
        %v3445 = vadd.f32 0.0, %v3444
        %v3446 = vpop.f32.mrb[0].mxu0
        %3447 = vmatprep.mubr.f32.mxu0 0.0
        %3448 = vmatmul.mubr.f32.gmra.mrb[0].mxu0 %v3354
        %v3449 = vpop.f32.mrb[0].mxu0
        %v3450 = vadd.f32 0.0, %v3449
        %v3451 = vpop.f32.mrb[0].mxu0
        %3452 = vmatprep.mubr.f32.mxu0 0.0
        %3453 = vmatmul.mubr.f32.gmra.mrb[0].mxu0 %v3357
        %v3454 = vpop.f32.mrb[0].mxu0
        %v3455 = vadd.f32 0.0, %v3454
        %v3456 = vpop.f32.mrb[0].mxu0
        %3457 = vmatprep.mubr.f32.mxu0 0.0
        %3458 = vmatmul.mubr.f32.gmra.mrb[0].mxu0 %v3360
        %v3459 = vpop.f32.mrb[0].mxu0
        %v3460 = vadd.f32 0.0, %v3459
        %v3461 = vpop.f32.mrb[0].mxu0
        %3462 = vmatprep.mubr.f32.mxu0 0.0
        %3463 = vmatmul.mubr.f32.gmra.mrb[0].mxu0 %v3363
        %v3464 = vpop.f32.mrb[0].mxu0
        %v3465 = vadd.f32 0.0, %v3464
        %v3466 = vpop.f32.mrb[0].mxu0
        %3467 = vmatprep.mubr.f32.mxu0 0.0
        %3468 = vmatmul.mubr.f32.gmra.mrb[0].mxu0 %v3366
        %v3469 = vpop.f32.mrb[0].mxu0
        %v3470 = vadd.f32 0.0, %v3469
        %v3471 = vpop.f32.mrb[0].mxu0
        %3472 = vdwg.mxu0
        %v3473 = vadd.f32 %v3328, %v3435
        %v3474 = vadd.f32 %v3329, %v3440
        %v3475 = vadd.f32 %v3330, %v3445
        %v3476 = vadd.f32 %v3331, %v3450
        %v3477 = vadd.f32 %v3332, %v3455
        %v3478 = vadd.f32 %v3333, %v3460
        %v3479 = vadd.f32 %v3334, %v3465
        %v3480 = vadd.f32 %v3335, %v3470
        %v3481 = vld [vmem:[%s1419 + $0x2] sm:$0xff]
        %v3482 = vld [vmem:[%s1419 + $0x12] sm:$0xff]
        %v3483 = vld [vmem:[%s1419 + $0x22] sm:$0xff]
        %v3484 = vld [vmem:[%s1419 + $0x32] sm:$0xff]
        %v3485 = vld [vmem:[%s1419 + $0x42] sm:$0xff]
        %v3486 = vld [vmem:[%s1419 + $0x52] sm:$0xff]
        %v3487 = vld [vmem:[%s1419 + $0x62] sm:$0xff]
        %v3488 = vld [vmem:[%s1419 + $0x72] sm:$0xff]
        %v3490 = vsel %vm454, %v3481, 0
        %v3493 = vsel %vm454, %v3482, 0
        %v3496 = vsel %vm454, %v3483, 0
        %v3499 = vsel %vm454, %v3484, 0
        %v3502 = vsel %vm454, %v3485, 0
        %v3505 = vsel %vm454, %v3486, 0
        %v3508 = vsel %vm454, %v3487, 0
        %v3511 = vsel %vm454, %v3488, 0
        %3513 = vmatprep.subr.mxu0 0.0
        %3514 = vmatpush1.msra.mxu0 %v523
        %3515 = vmatprep.subr.mxu0 0.0
        %3516 = vmatpush1.msra.mxu0 0.0
        %3517 = vmatprep.subr.mxu0 0.0
        %3518 = vmatpush1.msra.mxu0 0.0
        %3519 = vmatprep.subr.mxu0 0.0
        %3520 = vmatpush1.msra.mxu0 0.0
        %3521 = vmatprep.subr.mxu0 0.0
        %3522 = vmatpush1.msra.mxu0 0.0
        %3523 = vmatprep.subr.mxu0 0.0
        %3524 = vmatpush1.msra.mxu0 0.0
        %3525 = vmatprep.subr.mxu0 0.0
        %3526 = vmatpush1.msra.mxu0 0.0
        %3527 = vmatprep.subr.mxu0 0.0
        %3528 = vmatpush1.msra.mxu0 0.0
        %3529 = vmatprep.subr.mxu0 0.0
        %3530 = vmatpush1.msra.mxu0 0.0
        %3531 = vmatprep.subr.mxu0 0.0
        %3532 = vmatpush1.msra.mxu0 0.0
        %3533 = vmatprep.subr.mxu0 0.0
        %3534 = vmatpush1.msra.mxu0 0.0
        %3535 = vmatprep.subr.mxu0 0.0
        %3536 = vmatpush1.msra.mxu0 0.0
        %3537 = vmatprep.subr.mxu0 0.0
        %3538 = vmatpush1.msra.mxu0 0.0
        %3539 = vmatprep.subr.mxu0 0.0
        %3540 = vmatpush1.msra.mxu0 0.0
        %3541 = vmatprep.subr.mxu0 0.0
        %3542 = vmatpush1.msra.mxu0 0.0
        %3543 = vmatprep.subr.mxu0 0.0
        %3544 = vmatpush1.msra.mxu0 0.0
        %3545 = vmatprep.subr.mxu0 0.0
        %3546 = vmatpush1.msra.mxu0 0.0
        %3547 = vmatprep.subr.mxu0 0.0
        %3548 = vmatpush1.msra.mxu0 0.0
        %3549 = vmatprep.subr.mxu0 0.0
        %3550 = vmatpush1.msra.mxu0 0.0
        %3551 = vmatprep.subr.mxu0 0.0
        %3552 = vmatpush1.msra.mxu0 0.0
        %3553 = vmatprep.subr.mxu0 0.0
        %3554 = vmatpush1.msra.mxu0 0.0
        %3555 = vmatprep.subr.mxu0 0.0
        %3556 = vmatpush1.msra.mxu0 0.0
        %3557 = vmatprep.subr.mxu0 0.0
        %3558 = vmatpush1.msra.mxu0 0.0
        %3559 = vmatprep.subr.mxu0 0.0
        %3560 = vmatpush1.msra.mxu0 0.0
        %3561 = vmatprep.subr.mxu0 0.0
        %3562 = vmatpush1.msra.mxu0 0.0
        %3563 = vmatprep.subr.mxu0 0.0
        %3564 = vmatpush1.msra.mxu0 0.0
        %3565 = vmatprep.subr.mxu0 0.0
        %3566 = vmatpush1.msra.mxu0 0.0
        %3567 = vmatprep.subr.mxu0 0.0
        %3568 = vmatpush1.msra.mxu0 0.0
        %3569 = vmatprep.subr.mxu0 0.0
        %3570 = vmatpush1.msra.mxu0 0.0
        %3571 = vmatprep.subr.mxu0 0.0
        %3572 = vmatpush1.msra.mxu0 0.0
        %3573 = vmatprep.subr.mxu0 0.0
        %3574 = vmatpush1.msra.mxu0 0.0
        %3575 = vmatprep.subr.mxu0 0.0
        %3576 = vmatpush1.msra.mxu0 0.0
        %3577 = vmatprep.mubr.f32.mxu0 0.0
        %3578 = vmatmul.mubr.f32.gmra.mrb[0].mxu0 %v3490
        %v3579 = vpop.f32.mrb[0].mxu0
        %v3580 = vadd.f32 0.0, %v3579
        %v3581 = vpop.f32.mrb[0].mxu0
        %3582 = vmatprep.mubr.f32.mxu0 0.0
        %3583 = vmatmul.mubr.f32.gmra.mrb[0].mxu0 %v3493
        %v3584 = vpop.f32.mrb[0].mxu0
        %v3585 = vadd.f32 0.0, %v3584
        %v3586 = vpop.f32.mrb[0].mxu0
        %3587 = vmatprep.mubr.f32.mxu0 0.0
        %3588 = vmatmul.mubr.f32.gmra.mrb[0].mxu0 %v3496
        %v3589 = vpop.f32.mrb[0].mxu0
        %v3590 = vadd.f32 0.0, %v3589
        %v3591 = vpop.f32.mrb[0].mxu0
        %3592 = vmatprep.mubr.f32.mxu0 0.0
        %3593 = vmatmul.mubr.f32.gmra.mrb[0].mxu0 %v3499
        %v3594 = vpop.f32.mrb[0].mxu0
        %v3595 = vadd.f32 0.0, %v3594
        %v3596 = vpop.f32.mrb[0].mxu0
        %3597 = vmatprep.mubr.f32.mxu0 0.0
        %3598 = vmatmul.mubr.f32.gmra.mrb[0].mxu0 %v3502
        %v3599 = vpop.f32.mrb[0].mxu0
        %v3600 = vadd.f32 0.0, %v3599
        %v3601 = vpop.f32.mrb[0].mxu0
        %3602 = vmatprep.mubr.f32.mxu0 0.0
        %3603 = vmatmul.mubr.f32.gmra.mrb[0].mxu0 %v3505
        %v3604 = vpop.f32.mrb[0].mxu0
        %v3605 = vadd.f32 0.0, %v3604
        %v3606 = vpop.f32.mrb[0].mxu0
        %3607 = vmatprep.mubr.f32.mxu0 0.0
        %3608 = vmatmul.mubr.f32.gmra.mrb[0].mxu0 %v3508
        %v3609 = vpop.f32.mrb[0].mxu0
        %v3610 = vadd.f32 0.0, %v3609
        %v3611 = vpop.f32.mrb[0].mxu0
        %3612 = vmatprep.mubr.f32.mxu0 0.0
        %3613 = vmatmul.mubr.f32.gmra.mrb[0].mxu0 %v3511
        %v3614 = vpop.f32.mrb[0].mxu0
        %v3615 = vadd.f32 0.0, %v3614
        %v3616 = vpop.f32.mrb[0].mxu0
        %3617 = vdwg.mxu0
        %v3618 = vadd.f32 %v3473, %v3580
        %v3619 = vadd.f32 %v3474, %v3585
        %v3620 = vadd.f32 %v3475, %v3590
        %v3621 = vadd.f32 %v3476, %v3595
        %v3622 = vadd.f32 %v3477, %v3600
        %v3623 = vadd.f32 %v3478, %v3605
        %v3624 = vadd.f32 %v3479, %v3610
        %v3625 = vadd.f32 %v3480, %v3615
        %s3626 = scalar_lea.vmem [#allocation4], 3
        %v3627 = vld [vmem:[%s3626] sm:$0x1]
        %v3629 = vlaneseq
        %v3630 = vshrl.u32 %v3629, 7
        %v3631 = vsub.s32 0, %v3630
        %v3632 = vrot.slane %v3627, %v3631
        %v3634 = vadd.f32 %v3618, %v3632
        %v3635 = vadd.f32 %v3619, %v3632
        %v3636 = vadd.f32 %v3620, %v3632
        %v3637 = vadd.f32 %v3621, %v3632
        %v3638 = vadd.f32 %v3622, %v3632
        %v3639 = vadd.f32 %v3623, %v3632
        %v3640 = vadd.f32 %v3624, %v3632
        %v3641 = vadd.f32 %v3625, %v3632
        %s3642 = scalar_lea.vmem [#allocation4], 4
        %v3643 = vld [vmem:[%s3642] sm:$0x1]
        %s3644 = scalar_lea.vmem [#allocation4], 5
        %v3645 = vld [vmem:[%s3644] sm:$0x1]
        %v3646 = vsel %vm454, %v3634, 0.0
        %v3647 = vsel %vm454, %v3635, 0.0
        %v3648 = vadd.f32 %v3646, %v3647
        %v3649 = vsel %vm454, %v3636, 0.0
        %v3650 = vadd.f32 %v3648, %v3649
        %v3651 = vsel %vm454, %v3637, 0.0
        %v3652 = vadd.f32 %v3650, %v3651
        %v3653 = vsel %vm454, %v3638, 0.0
        %v3654 = vadd.f32 %v3652, %v3653
        %v3655 = vsel %vm454, %v3639, 0.0
        %v3656 = vadd.f32 %v3654, %v3655
        %v3657 = vsel %vm454, %v3640, 0.0
        %v3658 = vadd.f32 %v3656, %v3657
        %v3659 = vsel %vm454, %v3641, 0.0
        %v3660 = vadd.f32 %v3658, %v3659
        %v3661 = vrot.slane %v3660, 4
        %v3662 = vadd.f32 %v3660, %v3661
        %v3663 = vrot.slane %v3662, 2
        %v3664 = vadd.f32 %v3662, %v3663
        %v3665 = vrot.slane %v3664, 1
        %v3666 = vadd.f32 %v3664, %v3665
        %v3668 = vsel %vm454, %v3666, 0
        %3670 = vmatprep.subr.mxu0 0.0
        %3671 = vmatpush1.msra.mxu0 %v551
        %3672 = vmatprep.subr.mxu0 0.0
        %3673 = vmatpush1.msra.mxu0 0.0
        %3674 = vmatprep.subr.mxu0 0.0
        %3675 = vmatpush1.msra.mxu0 0.0
        %3676 = vmatprep.subr.mxu0 0.0
        %3677 = vmatpush1.msra.mxu0 0.0
        %3678 = vmatprep.subr.mxu0 0.0
        %3679 = vmatpush1.msra.mxu0 0.0
        %3680 = vmatprep.subr.mxu0 0.0
        %3681 = vmatpush1.msra.mxu0 0.0
        %3682 = vmatprep.subr.mxu0 0.0
        %3683 = vmatpush1.msra.mxu0 0.0
        %3684 = vmatprep.subr.mxu0 0.0
        %3685 = vmatpush1.msra.mxu0 0.0
        %3686 = vmatprep.subr.mxu0 0.0
        %3687 = vmatpush1.msra.mxu0 0.0
        %3688 = vmatprep.subr.mxu0 0.0
        %3689 = vmatpush1.msra.mxu0 0.0
        %3690 = vmatprep.subr.mxu0 0.0
        %3691 = vmatpush1.msra.mxu0 0.0
        %3692 = vmatprep.subr.mxu0 0.0
        %3693 = vmatpush1.msra.mxu0 0.0
        %3694 = vmatprep.subr.mxu0 0.0
        %3695 = vmatpush1.msra.mxu0 0.0
        %3696 = vmatprep.subr.mxu0 0.0
        %3697 = vmatpush1.msra.mxu0 0.0
        %3698 = vmatprep.subr.mxu0 0.0
        %3699 = vmatpush1.msra.mxu0 0.0
        %3700 = vmatprep.subr.mxu0 0.0
        %3701 = vmatpush1.msra.mxu0 0.0
        %3702 = vmatprep.subr.mxu0 0.0
        %3703 = vmatpush1.msra.mxu0 0.0
        %3704 = vmatprep.subr.mxu0 0.0
        %3705 = vmatpush1.msra.mxu0 0.0
        %3706 = vmatprep.subr.mxu0 0.0
        %3707 = vmatpush1.msra.mxu0 0.0
        %3708 = vmatprep.subr.mxu0 0.0
        %3709 = vmatpush1.msra.mxu0 0.0
        %3710 = vmatprep.subr.mxu0 0.0
        %3711 = vmatpush1.msra.mxu0 0.0
        %3712 = vmatprep.subr.mxu0 0.0
        %3713 = vmatpush1.msra.mxu0 0.0
        %3714 = vmatprep.subr.mxu0 0.0
        %3715 = vmatpush1.msra.mxu0 0.0
        %3716 = vmatprep.subr.mxu0 0.0
        %3717 = vmatpush1.msra.mxu0 0.0
        %3718 = vmatprep.subr.mxu0 0.0
        %3719 = vmatpush1.msra.mxu0 0.0
        %3720 = vmatprep.subr.mxu0 0.0
        %3721 = vmatpush1.msra.mxu0 0.0
        %3722 = vmatprep.subr.mxu0 0.0
        %3723 = vmatpush1.msra.mxu0 0.0
        %3724 = vmatprep.subr.mxu0 0.0
        %3725 = vmatpush1.msra.mxu0 0.0
        %3726 = vmatprep.subr.mxu0 0.0
        %3727 = vmatpush1.msra.mxu0 0.0
        %3728 = vmatprep.subr.mxu0 0.0
        %3729 = vmatpush1.msra.mxu0 0.0
        %3730 = vmatprep.subr.mxu0 0.0
        %3731 = vmatpush1.msra.mxu0 0.0
        %3732 = vmatprep.subr.mxu0 0.0
        %3733 = vmatpush1.msra.mxu0 0.0
        %3734 = vmatprep.mubr.f32.mxu0 0.0
        %3735 = vmatmul.mubr.f32.gmra.mrb[0].mxu0 %v3668
        %v3736 = vpop.f32.mrb[0].mxu0
        %v3737 = vadd.f32 0.0, %v3736
        %v3738 = vpop.f32.mrb[0].mxu0
        %3739 = vdwg.mxu0
        %v3740 = vmul.f32 %v3737, %v1968
        %v3742 = vsel %vm454, %v3740, 0
        %3744 = vmatprep.subr.mxu0 0.0
        %3745 = vmatpush1.msra.mxu0 %v552
        %3746 = vmatprep.subr.mxu0 0.0
        %3747 = vmatpush1.msra.mxu0 0.0
        %3748 = vmatprep.subr.mxu0 0.0
        %3749 = vmatpush1.msra.mxu0 0.0
        %3750 = vmatprep.subr.mxu0 0.0
        %3751 = vmatpush1.msra.mxu0 0.0
        %3752 = vmatprep.subr.mxu0 0.0
        %3753 = vmatpush1.msra.mxu0 0.0
        %3754 = vmatprep.subr.mxu0 0.0
        %3755 = vmatpush1.msra.mxu0 0.0
        %3756 = vmatprep.subr.mxu0 0.0
        %3757 = vmatpush1.msra.mxu0 0.0
        %3758 = vmatprep.subr.mxu0 0.0
        %3759 = vmatpush1.msra.mxu0 0.0
        %3760 = vmatprep.subr.mxu0 0.0
        %3761 = vmatpush1.msra.mxu0 0.0
        %3762 = vmatprep.subr.mxu0 0.0
        %3763 = vmatpush1.msra.mxu0 0.0
        %3764 = vmatprep.subr.mxu0 0.0
        %3765 = vmatpush1.msra.mxu0 0.0
        %3766 = vmatprep.subr.mxu0 0.0
        %3767 = vmatpush1.msra.mxu0 0.0
        %3768 = vmatprep.subr.mxu0 0.0
        %3769 = vmatpush1.msra.mxu0 0.0
        %3770 = vmatprep.subr.mxu0 0.0
        %3771 = vmatpush1.msra.mxu0 0.0
        %3772 = vmatprep.subr.mxu0 0.0
        %3773 = vmatpush1.msra.mxu0 0.0
        %3774 = vmatprep.subr.mxu0 0.0
        %3775 = vmatpush1.msra.mxu0 0.0
        %3776 = vmatprep.subr.mxu0 0.0
        %3777 = vmatpush1.msra.mxu0 0.0
        %3778 = vmatprep.subr.mxu0 0.0
        %3779 = vmatpush1.msra.mxu0 0.0
        %3780 = vmatprep.subr.mxu0 0.0
        %3781 = vmatpush1.msra.mxu0 0.0
        %3782 = vmatprep.subr.mxu0 0.0
        %3783 = vmatpush1.msra.mxu0 0.0
        %3784 = vmatprep.subr.mxu0 0.0
        %3785 = vmatpush1.msra.mxu0 0.0
        %3786 = vmatprep.subr.mxu0 0.0
        %3787 = vmatpush1.msra.mxu0 0.0
        %3788 = vmatprep.subr.mxu0 0.0
        %3789 = vmatpush1.msra.mxu0 0.0
        %3790 = vmatprep.subr.mxu0 0.0
        %3791 = vmatpush1.msra.mxu0 0.0
        %3792 = vmatprep.subr.mxu0 0.0
        %3793 = vmatpush1.msra.mxu0 0.0
        %3794 = vmatprep.subr.mxu0 0.0
        %3795 = vmatpush1.msra.mxu0 0.0
        %3796 = vmatprep.subr.mxu0 0.0
        %3797 = vmatpush1.msra.mxu0 0.0
        %3798 = vmatprep.subr.mxu0 0.0
        %3799 = vmatpush1.msra.mxu0 0.0
        %3800 = vmatprep.subr.mxu0 0.0
        %3801 = vmatpush1.msra.mxu0 0.0
        %3802 = vmatprep.subr.mxu0 0.0
        %3803 = vmatpush1.msra.mxu0 0.0
        %3804 = vmatprep.subr.mxu0 0.0
        %3805 = vmatpush1.msra.mxu0 0.0
        %3806 = vmatprep.subr.mxu0 0.0
        %3807 = vmatpush1.msra.mxu0 0.0
        %3808 = vmatprep.mubr.f32.mxu0 0.0
        %3809 = vmatmul.mubr.f32.gmra.mrb[0].mxu0 %v3742
        %v3810 = vpop.f32.mrb[0].mxu0
        %v3811 = vadd.f32 0.0, %v3810
        %v3812 = vpop.f32.mrb[0].mxu0
        %3813 = vdwg.mxu0
        %v3814 = vlaneseq
        %v3815 = vshrl.u32 %v3814, 7
        %v3816 = vsub.s32 0, %v3815
        %v3817 = vrot.slane %v3811, %v3816
        %v3818 = vsub.f32 %v3634, %v3817
        %v3819 = vsub.f32 %v3635, %v3817
        %v3820 = vsub.f32 %v3636, %v3817
        %v3821 = vsub.f32 %v3637, %v3817
        %v3822 = vsub.f32 %v3638, %v3817
        %v3823 = vsub.f32 %v3639, %v3817
        %v3824 = vsub.f32 %v3640, %v3817
        %v3825 = vsub.f32 %v3641, %v3817
        %v3826 = vmul.f32 %v3818, %v3818
        %v3827 = vmul.f32 %v3819, %v3819
        %v3828 = vmul.f32 %v3820, %v3820
        %v3829 = vmul.f32 %v3821, %v3821
        %v3830 = vmul.f32 %v3822, %v3822
        %v3831 = vmul.f32 %v3823, %v3823
        %v3832 = vmul.f32 %v3824, %v3824
        %v3833 = vmul.f32 %v3825, %v3825
        %v3834 = vsel %vm454, %v3826, 0.0
        %v3835 = vsel %vm454, %v3827, 0.0
        %v3836 = vadd.f32 %v3834, %v3835
        %v3837 = vsel %vm454, %v3828, 0.0
        %v3838 = vadd.f32 %v3836, %v3837
        %v3839 = vsel %vm454, %v3829, 0.0
        %v3840 = vadd.f32 %v3838, %v3839
        %v3841 = vsel %vm454, %v3830, 0.0
        %v3842 = vadd.f32 %v3840, %v3841
        %v3843 = vsel %vm454, %v3831, 0.0
        %v3844 = vadd.f32 %v3842, %v3843
        %v3845 = vsel %vm454, %v3832, 0.0
        %v3846 = vadd.f32 %v3844, %v3845
        %v3847 = vsel %vm454, %v3833, 0.0
        %v3848 = vadd.f32 %v3846, %v3847
        %v3849 = vrot.slane %v3848, 4
        %v3850 = vadd.f32 %v3848, %v3849
        %v3851 = vrot.slane %v3850, 2
        %v3852 = vadd.f32 %v3850, %v3851
        %v3853 = vrot.slane %v3852, 1
        %v3854 = vadd.f32 %v3852, %v3853
        %v3856 = vsel %vm454, %v3854, 0
        %3858 = vmatprep.subr.mxu0 0.0
        %3859 = vmatpush1.msra.mxu0 %v551
        %3860 = vmatprep.subr.mxu0 0.0
        %3861 = vmatpush1.msra.mxu0 0.0
        %3862 = vmatprep.subr.mxu0 0.0
        %3863 = vmatpush1.msra.mxu0 0.0
        %3864 = vmatprep.subr.mxu0 0.0
        %3865 = vmatpush1.msra.mxu0 0.0
        %3866 = vmatprep.subr.mxu0 0.0
        %3867 = vmatpush1.msra.mxu0 0.0
        %3868 = vmatprep.subr.mxu0 0.0
        %3869 = vmatpush1.msra.mxu0 0.0
        %3870 = vmatprep.subr.mxu0 0.0
        %3871 = vmatpush1.msra.mxu0 0.0
        %3872 = vmatprep.subr.mxu0 0.0
        %3873 = vmatpush1.msra.mxu0 0.0
        %3874 = vmatprep.subr.mxu0 0.0
        %3875 = vmatpush1.msra.mxu0 0.0
        %3876 = vmatprep.subr.mxu0 0.0
        %3877 = vmatpush1.msra.mxu0 0.0
        %3878 = vmatprep.subr.mxu0 0.0
        %3879 = vmatpush1.msra.mxu0 0.0
        %3880 = vmatprep.subr.mxu0 0.0
        %3881 = vmatpush1.msra.mxu0 0.0
        %3882 = vmatprep.subr.mxu0 0.0
        %3883 = vmatpush1.msra.mxu0 0.0
        %3884 = vmatprep.subr.mxu0 0.0
        %3885 = vmatpush1.msra.mxu0 0.0
        %3886 = vmatprep.subr.mxu0 0.0
        %3887 = vmatpush1.msra.mxu0 0.0
        %3888 = vmatprep.subr.mxu0 0.0
        %3889 = vmatpush1.msra.mxu0 0.0
        %3890 = vmatprep.subr.mxu0 0.0
        %3891 = vmatpush1.msra.mxu0 0.0
        %3892 = vmatprep.subr.mxu0 0.0
        %3893 = vmatpush1.msra.mxu0 0.0
        %3894 = vmatprep.subr.mxu0 0.0
        %3895 = vmatpush1.msra.mxu0 0.0
        %3896 = vmatprep.subr.mxu0 0.0
        %3897 = vmatpush1.msra.mxu0 0.0
        %3898 = vmatprep.subr.mxu0 0.0
        %3899 = vmatpush1.msra.mxu0 0.0
        %3900 = vmatprep.subr.mxu0 0.0
        %3901 = vmatpush1.msra.mxu0 0.0
        %3902 = vmatprep.subr.mxu0 0.0
        %3903 = vmatpush1.msra.mxu0 0.0
        %3904 = vmatprep.subr.mxu0 0.0
        %3905 = vmatpush1.msra.mxu0 0.0
        %3906 = vmatprep.subr.mxu0 0.0
        %3907 = vmatpush1.msra.mxu0 0.0
        %3908 = vmatprep.subr.mxu0 0.0
        %3909 = vmatpush1.msra.mxu0 0.0
        %3910 = vmatprep.subr.mxu0 0.0
        %3911 = vmatpush1.msra.mxu0 0.0
        %3912 = vmatprep.subr.mxu0 0.0
        %3913 = vmatpush1.msra.mxu0 0.0
        %3914 = vmatprep.subr.mxu0 0.0
        %3915 = vmatpush1.msra.mxu0 0.0
        %3916 = vmatprep.subr.mxu0 0.0
        %3917 = vmatpush1.msra.mxu0 0.0
        %3918 = vmatprep.subr.mxu0 0.0
        %3919 = vmatpush1.msra.mxu0 0.0
        %3920 = vmatprep.subr.mxu0 0.0
        %3921 = vmatpush1.msra.mxu0 0.0
        %3922 = vmatprep.mubr.f32.mxu0 0.0
        %3923 = vmatmul.mubr.f32.gmra.mrb[0].mxu0 %v3856
        %v3924 = vpop.f32.mrb[0].mxu0
        %v3925 = vadd.f32 0.0, %v3924
        %v3926 = vpop.f32.mrb[0].mxu0
        %3927 = vdwg.mxu0
        %v3928 = vmul.f32 %v3925, %v1968
        %v3929 = vadd.f32 %v3928, 1e-05
        %v3930 = vrsqrt.pop %v3929
        %v3932 = vsel %vm454, %v3930, 0
        %3934 = vmatprep.subr.mxu0 0.0
        %3935 = vmatpush1.msra.mxu0 %v552
        %3936 = vmatprep.subr.mxu0 0.0
        %3937 = vmatpush1.msra.mxu0 0.0
        %3938 = vmatprep.subr.mxu0 0.0
        %3939 = vmatpush1.msra.mxu0 0.0
        %3940 = vmatprep.subr.mxu0 0.0
        %3941 = vmatpush1.msra.mxu0 0.0
        %3942 = vmatprep.subr.mxu0 0.0
        %3943 = vmatpush1.msra.mxu0 0.0
        %3944 = vmatprep.subr.mxu0 0.0
        %3945 = vmatpush1.msra.mxu0 0.0
        %3946 = vmatprep.subr.mxu0 0.0
        %3947 = vmatpush1.msra.mxu0 0.0
        %3948 = vmatprep.subr.mxu0 0.0
        %3949 = vmatpush1.msra.mxu0 0.0
        %3950 = vmatprep.subr.mxu0 0.0
        %3951 = vmatpush1.msra.mxu0 0.0
        %3952 = vmatprep.subr.mxu0 0.0
        %3953 = vmatpush1.msra.mxu0 0.0
        %3954 = vmatprep.subr.mxu0 0.0
        %3955 = vmatpush1.msra.mxu0 0.0
        %3956 = vmatprep.subr.mxu0 0.0
        %3957 = vmatpush1.msra.mxu0 0.0
        %3958 = vmatprep.subr.mxu0 0.0
        %3959 = vmatpush1.msra.mxu0 0.0
        %3960 = vmatprep.subr.mxu0 0.0
        %3961 = vmatpush1.msra.mxu0 0.0
        %3962 = vmatprep.subr.mxu0 0.0
        %3963 = vmatpush1.msra.mxu0 0.0
        %3964 = vmatprep.subr.mxu0 0.0
        %3965 = vmatpush1.msra.mxu0 0.0
        %3966 = vmatprep.subr.mxu0 0.0
        %3967 = vmatpush1.msra.mxu0 0.0
        %3968 = vmatprep.subr.mxu0 0.0
        %3969 = vmatpush1.msra.mxu0 0.0
        %3970 = vmatprep.subr.mxu0 0.0
        %3971 = vmatpush1.msra.mxu0 0.0
        %3972 = vmatprep.subr.mxu0 0.0
        %3973 = vmatpush1.msra.mxu0 0.0
        %3974 = vmatprep.subr.mxu0 0.0
        %3975 = vmatpush1.msra.mxu0 0.0
        %3976 = vmatprep.subr.mxu0 0.0
        %3977 = vmatpush1.msra.mxu0 0.0
        %3978 = vmatprep.subr.mxu0 0.0
        %3979 = vmatpush1.msra.mxu0 0.0
        %3980 = vmatprep.subr.mxu0 0.0
        %3981 = vmatpush1.msra.mxu0 0.0
        %3982 = vmatprep.subr.mxu0 0.0
        %3983 = vmatpush1.msra.mxu0 0.0
        %3984 = vmatprep.subr.mxu0 0.0
        %3985 = vmatpush1.msra.mxu0 0.0
        %3986 = vmatprep.subr.mxu0 0.0
        %3987 = vmatpush1.msra.mxu0 0.0
        %3988 = vmatprep.subr.mxu0 0.0
        %3989 = vmatpush1.msra.mxu0 0.0
        %3990 = vmatprep.subr.mxu0 0.0
        %3991 = vmatpush1.msra.mxu0 0.0
        %3992 = vmatprep.subr.mxu0 0.0
        %3993 = vmatpush1.msra.mxu0 0.0
        %3994 = vmatprep.subr.mxu0 0.0
        %3995 = vmatpush1.msra.mxu0 0.0
        %3996 = vmatprep.subr.mxu0 0.0
        %3997 = vmatpush1.msra.mxu0 0.0
        %3998 = vmatprep.mubr.f32.mxu0 0.0
        %3999 = vmatmul.mubr.f32.gmra.mrb[0].mxu0 %v3932
        %v4000 = vpop.f32.mrb[0].mxu0
        %v4001 = vadd.f32 0.0, %v4000
        %v4002 = vpop.f32.mrb[0].mxu0
        %4003 = vdwg.mxu0
        %v4004 = vlaneseq
        %v4005 = vshrl.u32 %v4004, 7
        %v4006 = vsub.s32 0, %v4005
        %v4007 = vrot.slane %v4001, %v4006
        %v4008 = vmul.f32 %v3818, %v4007
        %v4009 = vmul.f32 %v3819, %v4007
        %v4010 = vmul.f32 %v3820, %v4007
        %v4011 = vmul.f32 %v3821, %v4007
        %v4012 = vmul.f32 %v3822, %v4007
        %v4013 = vmul.f32 %v3823, %v4007
        %v4014 = vmul.f32 %v3824, %v4007
        %v4015 = vmul.f32 %v3825, %v4007
        %v4017 = vlaneseq
        %v4018 = vshrl.u32 %v4017, 7
        %v4019 = vsub.s32 0, %v4018
        %v4020 = vrot.slane %v3643, %v4019
        %v4022 = vmul.f32 %v4008, %v4020
        %v4023 = vmul.f32 %v4009, %v4020
        %v4024 = vmul.f32 %v4010, %v4020
        %v4025 = vmul.f32 %v4011, %v4020
        %v4026 = vmul.f32 %v4012, %v4020
        %v4027 = vmul.f32 %v4013, %v4020
        %v4028 = vmul.f32 %v4014, %v4020
        %v4029 = vmul.f32 %v4015, %v4020
        %v4031 = vlaneseq
        %v4032 = vshrl.u32 %v4031, 7
        %v4033 = vsub.s32 0, %v4032
        %v4034 = vrot.slane %v3645, %v4033
        %v4036 = vadd.f32 %v4022, %v4034
        %v4037 = vadd.f32 %v4023, %v4034
        %v4038 = vadd.f32 %v4024, %v4034
        %v4039 = vadd.f32 %v4025, %v4034
        %v4040 = vadd.f32 %v4026, %v4034
        %v4041 = vadd.f32 %v4027, %v4034
        %v4042 = vadd.f32 %v4028, %v4034
        %v4043 = vadd.f32 %v4029, %v4034
        %v4044 = vadd.f32 %v498, %v4036
        %v4045 = vadd.f32 %v499, %v4037
        %v4046 = vadd.f32 %v500, %v4038
        %v4047 = vadd.f32 %v501, %v4039
        %v4048 = vadd.f32 %v502, %v4040
        %v4049 = vadd.f32 %v503, %v4041
        %v4050 = vadd.f32 %v504, %v4042
        %v4051 = vadd.f32 %v505, %v4043
        %4052 = vst.msk [vmem:[%s556 + $0x1] sm:$0xff] %vm454, %v4044
        %4053 = vst.msk [vmem:[%s556 + $0x11] sm:$0xff] %vm454, %v4045
        %4054 = vst.msk [vmem:[%s556 + $0x21] sm:$0xff] %vm454, %v4046
        %4055 = vst.msk [vmem:[%s556 + $0x31] sm:$0xff] %vm454, %v4047
        %4056 = vst.msk [vmem:[%s556 + $0x41] sm:$0xff] %vm454, %v4048
        %4057 = vst.msk [vmem:[%s556 + $0x51] sm:$0xff] %vm454, %v4049
        %4058 = vst.msk [vmem:[%s556 + $0x61] sm:$0xff] %vm454, %v4050
        %4059 = vst.msk [vmem:[%s556 + $0x71] sm:$0xff] %vm454, %v4051
        %v4060 = vld [vmem:[#allocation2] sm:$0xff]
        %v4061 = vld [vmem:[#allocation2 + $0x10] sm:$0xff]
        %v4062 = vld [vmem:[#allocation2 + $0x20] sm:$0xff]
        %v4063 = vld [vmem:[#allocation2 + $0x30] sm:$0xff]
        %v4064 = vld [vmem:[#allocation2 + $0x40] sm:$0xff]
        %v4065 = vld [vmem:[#allocation2 + $0x50] sm:$0xff]
        %v4066 = vld [vmem:[#allocation2 + $0x60] sm:$0xff]
        %v4067 = vld [vmem:[#allocation2 + $0x70] sm:$0xff]
        %v4068 = vld [vmem:[#allocation2 + $0x1] sm:$0xff]
        %v4069 = vld [vmem:[#allocation2 + $0x11] sm:$0xff]
        %v4070 = vld [vmem:[#allocation2 + $0x21] sm:$0xff]
        %v4071 = vld [vmem:[#allocation2 + $0x31] sm:$0xff]
        %v4072 = vld [vmem:[#allocation2 + $0x41] sm:$0xff]
        %v4073 = vld [vmem:[#allocation2 + $0x51] sm:$0xff]
        %v4074 = vld [vmem:[#allocation2 + $0x61] sm:$0xff]
        %v4075 = vld [vmem:[#allocation2 + $0x71] sm:$0xff]
        %v4077 = vsel %vm454, %v4068, 0
        %v4080 = vsel %vm454, %v4069, 0
        %v4083 = vsel %vm454, %v4070, 0
        %v4086 = vsel %vm454, %v4071, 0
        %v4089 = vsel %vm454, %v4072, 0
        %v4092 = vsel %vm454, %v4073, 0
        %v4095 = vsel %vm454, %v4074, 0
        %v4098 = vsel %vm454, %v4075, 0
        %4100 = vmatprep.subr.mxu0 0.0
        %4101 = vmatpush1.msra.mxu0 %v525
        %4102 = vmatprep.subr.mxu0 0.0
        %4103 = vmatpush1.msra.mxu0 0.0
        %4104 = vmatprep.subr.mxu0 0.0
        %4105 = vmatpush1.msra.mxu0 0.0
        %4106 = vmatprep.subr.mxu0 0.0
        %4107 = vmatpush1.msra.mxu0 0.0
        %4108 = vmatprep.subr.mxu0 0.0
        %4109 = vmatpush1.msra.mxu0 0.0
        %4110 = vmatprep.subr.mxu0 0.0
        %4111 = vmatpush1.msra.mxu0 0.0
        %4112 = vmatprep.subr.mxu0 0.0
        %4113 = vmatpush1.msra.mxu0 0.0
        %4114 = vmatprep.subr.mxu0 0.0
        %4115 = vmatpush1.msra.mxu0 0.0
        %4116 = vmatprep.subr.mxu0 0.0
        %4117 = vmatpush1.msra.mxu0 0.0
        %4118 = vmatprep.subr.mxu0 0.0
        %4119 = vmatpush1.msra.mxu0 0.0
        %4120 = vmatprep.subr.mxu0 0.0
        %4121 = vmatpush1.msra.mxu0 0.0
        %4122 = vmatprep.subr.mxu0 0.0
        %4123 = vmatpush1.msra.mxu0 0.0
        %4124 = vmatprep.subr.mxu0 0.0
        %4125 = vmatpush1.msra.mxu0 0.0
        %4126 = vmatprep.subr.mxu0 0.0
        %4127 = vmatpush1.msra.mxu0 0.0
        %4128 = vmatprep.subr.mxu0 0.0
        %4129 = vmatpush1.msra.mxu0 0.0
        %4130 = vmatprep.subr.mxu0 0.0
        %4131 = vmatpush1.msra.mxu0 0.0
        %4132 = vmatprep.subr.mxu0 0.0
        %4133 = vmatpush1.msra.mxu0 0.0
        %4134 = vmatprep.subr.mxu0 0.0
        %4135 = vmatpush1.msra.mxu0 0.0
        %4136 = vmatprep.subr.mxu0 0.0
        %4137 = vmatpush1.msra.mxu0 0.0
        %4138 = vmatprep.subr.mxu0 0.0
        %4139 = vmatpush1.msra.mxu0 0.0
        %4140 = vmatprep.subr.mxu0 0.0
        %4141 = vmatpush1.msra.mxu0 0.0
        %4142 = vmatprep.subr.mxu0 0.0
        %4143 = vmatpush1.msra.mxu0 0.0
        %4144 = vmatprep.subr.mxu0 0.0
        %4145 = vmatpush1.msra.mxu0 0.0
        %4146 = vmatprep.subr.mxu0 0.0
        %4147 = vmatpush1.msra.mxu0 0.0
        %4148 = vmatprep.subr.mxu0 0.0
        %4149 = vmatpush1.msra.mxu0 0.0
        %4150 = vmatprep.subr.mxu0 0.0
        %4151 = vmatpush1.msra.mxu0 0.0
        %4152 = vmatprep.subr.mxu0 0.0
        %4153 = vmatpush1.msra.mxu0 0.0
        %4154 = vmatprep.subr.mxu0 0.0
        %4155 = vmatpush1.msra.mxu0 0.0
        %4156 = vmatprep.subr.mxu0 0.0
        %4157 = vmatpush1.msra.mxu0 0.0
        %4158 = vmatprep.subr.mxu0 0.0
        %4159 = vmatpush1.msra.mxu0 0.0
        %4160 = vmatprep.subr.mxu0 0.0
        %4161 = vmatpush1.msra.mxu0 0.0
        %4162 = vmatprep.subr.mxu0 0.0
        %4163 = vmatpush1.msra.mxu0 0.0
        %4164 = vmatprep.mubr.f32.mxu0 0.0
        %4165 = vmatmul.mubr.f32.gmra.mrb[0].mxu0 %v4077
        %v4166 = vpop.f32.mrb[0].mxu0
        %v4167 = vadd.f32 0.0, %v4166
        %v4168 = vpop.f32.mrb[0].mxu0
        %4169 = vmatprep.mubr.f32.mxu0 0.0
        %4170 = vmatmul.mubr.f32.gmra.mrb[0].mxu0 %v4080
        %v4171 = vpop.f32.mrb[0].mxu0
        %v4172 = vadd.f32 0.0, %v4171
        %v4173 = vpop.f32.mrb[0].mxu0
        %4174 = vmatprep.mubr.f32.mxu0 0.0
        %4175 = vmatmul.mubr.f32.gmra.mrb[0].mxu0 %v4083
        %v4176 = vpop.f32.mrb[0].mxu0
        %v4177 = vadd.f32 0.0, %v4176
        %v4178 = vpop.f32.mrb[0].mxu0
        %4179 = vmatprep.mubr.f32.mxu0 0.0
        %4180 = vmatmul.mubr.f32.gmra.mrb[0].mxu0 %v4086
        %v4181 = vpop.f32.mrb[0].mxu0
        %v4182 = vadd.f32 0.0, %v4181
        %v4183 = vpop.f32.mrb[0].mxu0
        %4184 = vmatprep.mubr.f32.mxu0 0.0
        %4185 = vmatmul.mubr.f32.gmra.mrb[0].mxu0 %v4089
        %v4186 = vpop.f32.mrb[0].mxu0
        %v4187 = vadd.f32 0.0, %v4186
        %v4188 = vpop.f32.mrb[0].mxu0
        %4189 = vmatprep.mubr.f32.mxu0 0.0
        %4190 = vmatmul.mubr.f32.gmra.mrb[0].mxu0 %v4092
        %v4191 = vpop.f32.mrb[0].mxu0
        %v4192 = vadd.f32 0.0, %v4191
        %v4193 = vpop.f32.mrb[0].mxu0
        %4194 = vmatprep.mubr.f32.mxu0 0.0
        %4195 = vmatmul.mubr.f32.gmra.mrb[0].mxu0 %v4095
        %v4196 = vpop.f32.mrb[0].mxu0
        %v4197 = vadd.f32 0.0, %v4196
        %v4198 = vpop.f32.mrb[0].mxu0
        %4199 = vmatprep.mubr.f32.mxu0 0.0
        %4200 = vmatmul.mubr.f32.gmra.mrb[0].mxu0 %v4098
        %v4201 = vpop.f32.mrb[0].mxu0
        %v4202 = vadd.f32 0.0, %v4201
        %v4203 = vpop.f32.mrb[0].mxu0
        %4204 = vdwg.mxu0
        %v4206 = vsel %vm454, %v4060, 0
        %v4209 = vsel %vm454, %v4061, 0
        %v4212 = vsel %vm454, %v4062, 0
        %v4215 = vsel %vm454, %v4063, 0
        %v4218 = vsel %vm454, %v4064, 0
        %v4221 = vsel %vm454, %v4065, 0
        %v4224 = vsel %vm454, %v4066, 0
        %v4227 = vsel %vm454, %v4067, 0
        %4229 = vmatprep.subr.mxu0 0.0
        %4230 = vmatpush1.msra.mxu0 %v524
        %4231 = vmatprep.subr.mxu0 0.0
        %4232 = vmatpush1.msra.mxu0 0.0
        %4233 = vmatprep.subr.mxu0 0.0
        %4234 = vmatpush1.msra.mxu0 0.0
        %4235 = vmatprep.subr.mxu0 0.0
        %4236 = vmatpush1.msra.mxu0 0.0
        %4237 = vmatprep.subr.mxu0 0.0
        %4238 = vmatpush1.msra.mxu0 0.0
        %4239 = vmatprep.subr.mxu0 0.0
        %4240 = vmatpush1.msra.mxu0 0.0
        %4241 = vmatprep.subr.mxu0 0.0
        %4242 = vmatpush1.msra.mxu0 0.0
        %4243 = vmatprep.subr.mxu0 0.0
        %4244 = vmatpush1.msra.mxu0 0.0
        %4245 = vmatprep.subr.mxu0 0.0
        %4246 = vmatpush1.msra.mxu0 0.0
        %4247 = vmatprep.subr.mxu0 0.0
        %4248 = vmatpush1.msra.mxu0 0.0
        %4249 = vmatprep.subr.mxu0 0.0
        %4250 = vmatpush1.msra.mxu0 0.0
        %4251 = vmatprep.subr.mxu0 0.0
        %4252 = vmatpush1.msra.mxu0 0.0
        %4253 = vmatprep.subr.mxu0 0.0
        %4254 = vmatpush1.msra.mxu0 0.0
        %4255 = vmatprep.subr.mxu0 0.0
        %4256 = vmatpush1.msra.mxu0 0.0
        %4257 = vmatprep.subr.mxu0 0.0
        %4258 = vmatpush1.msra.mxu0 0.0
        %4259 = vmatprep.subr.mxu0 0.0
        %4260 = vmatpush1.msra.mxu0 0.0
        %4261 = vmatprep.subr.mxu0 0.0
        %4262 = vmatpush1.msra.mxu0 0.0
        %4263 = vmatprep.subr.mxu0 0.0
        %4264 = vmatpush1.msra.mxu0 0.0
        %4265 = vmatprep.subr.mxu0 0.0
        %4266 = vmatpush1.msra.mxu0 0.0
        %4267 = vmatprep.subr.mxu0 0.0
        %4268 = vmatpush1.msra.mxu0 0.0
        %4269 = vmatprep.subr.mxu0 0.0
        %4270 = vmatpush1.msra.mxu0 0.0
        %4271 = vmatprep.subr.mxu0 0.0
        %4272 = vmatpush1.msra.mxu0 0.0
        %4273 = vmatprep.subr.mxu0 0.0
        %4274 = vmatpush1.msra.mxu0 0.0
        %4275 = vmatprep.subr.mxu0 0.0
        %4276 = vmatpush1.msra.mxu0 0.0
        %4277 = vmatprep.subr.mxu0 0.0
        %4278 = vmatpush1.msra.mxu0 0.0
        %4279 = vmatprep.subr.mxu0 0.0
        %4280 = vmatpush1.msra.mxu0 0.0
        %4281 = vmatprep.subr.mxu0 0.0
        %4282 = vmatpush1.msra.mxu0 0.0
        %4283 = vmatprep.subr.mxu0 0.0
        %4284 = vmatpush1.msra.mxu0 0.0
        %4285 = vmatprep.subr.mxu0 0.0
        %4286 = vmatpush1.msra.mxu0 0.0
        %4287 = vmatprep.subr.mxu0 0.0
        %4288 = vmatpush1.msra.mxu0 0.0
        %4289 = vmatprep.subr.mxu0 0.0
        %4290 = vmatpush1.msra.mxu0 0.0
        %4291 = vmatprep.subr.mxu0 0.0
        %4292 = vmatpush1.msra.mxu0 0.0
        %4293 = vmatprep.mubr.f32.mxu0 0.0
        %4294 = vmatmul.mubr.f32.gmra.mrb[0].mxu0 %v4206
        %v4295 = vpop.f32.mrb[0].mxu0
        %v4296 = vadd.f32 %v4167, %v4295
        %v4297 = vpop.f32.mrb[0].mxu0
        %4298 = vmatprep.mubr.f32.mxu0 0.0
        %4299 = vmatmul.mubr.f32.gmra.mrb[0].mxu0 %v4209
        %v4300 = vpop.f32.mrb[0].mxu0
        %v4301 = vadd.f32 %v4172, %v4300
        %v4302 = vpop.f32.mrb[0].mxu0
        %4303 = vmatprep.mubr.f32.mxu0 0.0
        %4304 = vmatmul.mubr.f32.gmra.mrb[0].mxu0 %v4212
        %v4305 = vpop.f32.mrb[0].mxu0
        %v4306 = vadd.f32 %v4177, %v4305
        %v4307 = vpop.f32.mrb[0].mxu0
        %4308 = vmatprep.mubr.f32.mxu0 0.0
        %4309 = vmatmul.mubr.f32.gmra.mrb[0].mxu0 %v4215
        %v4310 = vpop.f32.mrb[0].mxu0
        %v4311 = vadd.f32 %v4182, %v4310
        %v4312 = vpop.f32.mrb[0].mxu0
        %4313 = vmatprep.mubr.f32.mxu0 0.0
        %4314 = vmatmul.mubr.f32.gmra.mrb[0].mxu0 %v4218
        %v4315 = vpop.f32.mrb[0].mxu0
        %v4316 = vadd.f32 %v4187, %v4315
        %v4317 = vpop.f32.mrb[0].mxu0
        %4318 = vmatprep.mubr.f32.mxu0 0.0
        %4319 = vmatmul.mubr.f32.gmra.mrb[0].mxu0 %v4221
        %v4320 = vpop.f32.mrb[0].mxu0
        %v4321 = vadd.f32 %v4192, %v4320
        %v4322 = vpop.f32.mrb[0].mxu0
        %4323 = vmatprep.mubr.f32.mxu0 0.0
        %4324 = vmatmul.mubr.f32.gmra.mrb[0].mxu0 %v4224
        %v4325 = vpop.f32.mrb[0].mxu0
        %v4326 = vadd.f32 %v4197, %v4325
        %v4327 = vpop.f32.mrb[0].mxu0
        %4328 = vmatprep.mubr.f32.mxu0 0.0
        %4329 = vmatmul.mubr.f32.gmra.mrb[0].mxu0 %v4227
        %v4330 = vpop.f32.mrb[0].mxu0
        %v4331 = vadd.f32 %v4202, %v4330
        %v4332 = vpop.f32.mrb[0].mxu0
        %4333 = vdwg.mxu0
        %v4334 = vld [vmem:[#allocation2 + $0x2] sm:$0xff]
        %v4335 = vld [vmem:[#allocation2 + $0x12] sm:$0xff]
        %v4336 = vld [vmem:[#allocation2 + $0x22] sm:$0xff]
        %v4337 = vld [vmem:[#allocation2 + $0x32] sm:$0xff]
        %v4338 = vld [vmem:[#allocation2 + $0x42] sm:$0xff]
        %v4339 = vld [vmem:[#allocation2 + $0x52] sm:$0xff]
        %v4340 = vld [vmem:[#allocation2 + $0x62] sm:$0xff]
        %v4341 = vld [vmem:[#allocation2 + $0x72] sm:$0xff]
        %v4343 = vsel %vm454, %v4334, 0
        %v4346 = vsel %vm454, %v4335, 0
        %v4349 = vsel %vm454, %v4336, 0
        %v4352 = vsel %vm454, %v4337, 0
        %v4355 = vsel %vm454, %v4338, 0
        %v4358 = vsel %vm454, %v4339, 0
        %v4361 = vsel %vm454, %v4340, 0
        %v4364 = vsel %vm454, %v4341, 0
        %4366 = vmatprep.subr.mxu0 0.0
        %4367 = vmatpush1.msra.mxu0 %v526
        %4368 = vmatprep.subr.mxu0 0.0
        %4369 = vmatpush1.msra.mxu0 0.0
        %4370 = vmatprep.subr.mxu0 0.0
        %4371 = vmatpush1.msra.mxu0 0.0
        %4372 = vmatprep.subr.mxu0 0.0
        %4373 = vmatpush1.msra.mxu0 0.0
        %4374 = vmatprep.subr.mxu0 0.0
        %4375 = vmatpush1.msra.mxu0 0.0
        %4376 = vmatprep.subr.mxu0 0.0
        %4377 = vmatpush1.msra.mxu0 0.0
        %4378 = vmatprep.subr.mxu0 0.0
        %4379 = vmatpush1.msra.mxu0 0.0
        %4380 = vmatprep.subr.mxu0 0.0
        %4381 = vmatpush1.msra.mxu0 0.0
        %4382 = vmatprep.subr.mxu0 0.0
        %4383 = vmatpush1.msra.mxu0 0.0
        %4384 = vmatprep.subr.mxu0 0.0
        %4385 = vmatpush1.msra.mxu0 0.0
        %4386 = vmatprep.subr.mxu0 0.0
        %4387 = vmatpush1.msra.mxu0 0.0
        %4388 = vmatprep.subr.mxu0 0.0
        %4389 = vmatpush1.msra.mxu0 0.0
        %4390 = vmatprep.subr.mxu0 0.0
        %4391 = vmatpush1.msra.mxu0 0.0
        %4392 = vmatprep.subr.mxu0 0.0
        %4393 = vmatpush1.msra.mxu0 0.0
        %4394 = vmatprep.subr.mxu0 0.0
        %4395 = vmatpush1.msra.mxu0 0.0
        %4396 = vmatprep.subr.mxu0 0.0
        %4397 = vmatpush1.msra.mxu0 0.0
        %4398 = vmatprep.subr.mxu0 0.0
        %4399 = vmatpush1.msra.mxu0 0.0
        %4400 = vmatprep.subr.mxu0 0.0
        %4401 = vmatpush1.msra.mxu0 0.0
        %4402 = vmatprep.subr.mxu0 0.0
        %4403 = vmatpush1.msra.mxu0 0.0
        %4404 = vmatprep.subr.mxu0 0.0
        %4405 = vmatpush1.msra.mxu0 0.0
        %4406 = vmatprep.subr.mxu0 0.0
        %4407 = vmatpush1.msra.mxu0 0.0
        %4408 = vmatprep.subr.mxu0 0.0
        %4409 = vmatpush1.msra.mxu0 0.0
        %4410 = vmatprep.subr.mxu0 0.0
        %4411 = vmatpush1.msra.mxu0 0.0
        %4412 = vmatprep.subr.mxu0 0.0
        %4413 = vmatpush1.msra.mxu0 0.0
        %4414 = vmatprep.subr.mxu0 0.0
        %4415 = vmatpush1.msra.mxu0 0.0
        %4416 = vmatprep.subr.mxu0 0.0
        %4417 = vmatpush1.msra.mxu0 0.0
        %4418 = vmatprep.subr.mxu0 0.0
        %4419 = vmatpush1.msra.mxu0 0.0
        %4420 = vmatprep.subr.mxu0 0.0
        %4421 = vmatpush1.msra.mxu0 0.0
        %4422 = vmatprep.subr.mxu0 0.0
        %4423 = vmatpush1.msra.mxu0 0.0
        %4424 = vmatprep.subr.mxu0 0.0
        %4425 = vmatpush1.msra.mxu0 0.0
        %4426 = vmatprep.subr.mxu0 0.0
        %4427 = vmatpush1.msra.mxu0 0.0
        %4428 = vmatprep.subr.mxu0 0.0
        %4429 = vmatpush1.msra.mxu0 0.0
        %4430 = vmatprep.mubr.f32.mxu0 0.0
        %4431 = vmatmul.mubr.f32.gmra.mrb[0].mxu0 %v4343
        %v4432 = vpop.f32.mrb[0].mxu0
        %v4433 = vadd.f32 0.0, %v4432
        %v4434 = vpop.f32.mrb[0].mxu0
        %4435 = vmatprep.mubr.f32.mxu0 0.0
        %4436 = vmatmul.mubr.f32.gmra.mrb[0].mxu0 %v4346
        %v4437 = vpop.f32.mrb[0].mxu0
        %v4438 = vadd.f32 0.0, %v4437
        %v4439 = vpop.f32.mrb[0].mxu0
        %4440 = vmatprep.mubr.f32.mxu0 0.0
        %4441 = vmatmul.mubr.f32.gmra.mrb[0].mxu0 %v4349
        %v4442 = vpop.f32.mrb[0].mxu0
        %v4443 = vadd.f32 0.0, %v4442
        %v4444 = vpop.f32.mrb[0].mxu0
        %4445 = vmatprep.mubr.f32.mxu0 0.0
        %4446 = vmatmul.mubr.f32.gmra.mrb[0].mxu0 %v4352
        %v4447 = vpop.f32.mrb[0].mxu0
        %v4448 = vadd.f32 0.0, %v4447
        %v4449 = vpop.f32.mrb[0].mxu0
        %4450 = vmatprep.mubr.f32.mxu0 0.0
        %4451 = vmatmul.mubr.f32.gmra.mrb[0].mxu0 %v4355
        %v4452 = vpop.f32.mrb[0].mxu0
        %v4453 = vadd.f32 0.0, %v4452
        %v4454 = vpop.f32.mrb[0].mxu0
        %4455 = vmatprep.mubr.f32.mxu0 0.0
        %4456 = vmatmul.mubr.f32.gmra.mrb[0].mxu0 %v4358
        %v4457 = vpop.f32.mrb[0].mxu0
        %v4458 = vadd.f32 0.0, %v4457
        %v4459 = vpop.f32.mrb[0].mxu0
        %4460 = vmatprep.mubr.f32.mxu0 0.0
        %4461 = vmatmul.mubr.f32.gmra.mrb[0].mxu0 %v4361
        %v4462 = vpop.f32.mrb[0].mxu0
        %v4463 = vadd.f32 0.0, %v4462
        %v4464 = vpop.f32.mrb[0].mxu0
        %4465 = vmatprep.mubr.f32.mxu0 0.0
        %4466 = vmatmul.mubr.f32.gmra.mrb[0].mxu0 %v4364
        %v4467 = vpop.f32.mrb[0].mxu0
        %v4468 = vadd.f32 0.0, %v4467
        %v4469 = vpop.f32.mrb[0].mxu0
        %4470 = vdwg.mxu0
        %v4471 = vadd.f32 %v4296, %v4433
        %v4472 = vadd.f32 %v4301, %v4438
        %v4473 = vadd.f32 %v4306, %v4443
        %v4474 = vadd.f32 %v4311, %v4448
        %v4475 = vadd.f32 %v4316, %v4453
        %v4476 = vadd.f32 %v4321, %v4458
        %v4477 = vadd.f32 %v4326, %v4463
        %v4478 = vadd.f32 %v4331, %v4468
        %v4479 = vld [vmem:[%s556] sm:$0xff]
        %v4480 = vld [vmem:[%s556 + $0x10] sm:$0xff]
        %v4481 = vld [vmem:[%s556 + $0x20] sm:$0xff]
        %v4482 = vld [vmem:[%s556 + $0x30] sm:$0xff]
        %v4483 = vld [vmem:[%s556 + $0x40] sm:$0xff]
        %v4484 = vld [vmem:[%s556 + $0x50] sm:$0xff]
        %v4485 = vld [vmem:[%s556 + $0x60] sm:$0xff]
        %v4486 = vld [vmem:[%s556 + $0x70] sm:$0xff]
        %v4488 = vsel %vm454, %v4479, 0
        %v4491 = vsel %vm454, %v4480, 0
        %v4494 = vsel %vm454, %v4481, 0
        %v4497 = vsel %vm454, %v4482, 0
        %v4500 = vsel %vm454, %v4483, 0
        %v4503 = vsel %vm454, %v4484, 0
        %v4506 = vsel %vm454, %v4485, 0
        %v4509 = vsel %vm454, %v4486, 0
        %4511 = vmatprep.subr.mxu0 0.0
        %4512 = vmatpush1.msra.mxu0 %v527
        %4513 = vmatprep.subr.mxu0 0.0
        %4514 = vmatpush1.msra.mxu0 0.0
        %4515 = vmatprep.subr.mxu0 0.0
        %4516 = vmatpush1.msra.mxu0 0.0
        %4517 = vmatprep.subr.mxu0 0.0
        %4518 = vmatpush1.msra.mxu0 0.0
        %4519 = vmatprep.subr.mxu0 0.0
        %4520 = vmatpush1.msra.mxu0 0.0
        %4521 = vmatprep.subr.mxu0 0.0
        %4522 = vmatpush1.msra.mxu0 0.0
        %4523 = vmatprep.subr.mxu0 0.0
        %4524 = vmatpush1.msra.mxu0 0.0
        %4525 = vmatprep.subr.mxu0 0.0
        %4526 = vmatpush1.msra.mxu0 0.0
        %4527 = vmatprep.subr.mxu0 0.0
        %4528 = vmatpush1.msra.mxu0 0.0
        %4529 = vmatprep.subr.mxu0 0.0
        %4530 = vmatpush1.msra.mxu0 0.0
        %4531 = vmatprep.subr.mxu0 0.0
        %4532 = vmatpush1.msra.mxu0 0.0
        %4533 = vmatprep.subr.mxu0 0.0
        %4534 = vmatpush1.msra.mxu0 0.0
        %4535 = vmatprep.subr.mxu0 0.0
        %4536 = vmatpush1.msra.mxu0 0.0
        %4537 = vmatprep.subr.mxu0 0.0
        %4538 = vmatpush1.msra.mxu0 0.0
        %4539 = vmatprep.subr.mxu0 0.0
        %4540 = vmatpush1.msra.mxu0 0.0
        %4541 = vmatprep.subr.mxu0 0.0
        %4542 = vmatpush1.msra.mxu0 0.0
        %4543 = vmatprep.subr.mxu0 0.0
        %4544 = vmatpush1.msra.mxu0 0.0
        %4545 = vmatprep.subr.mxu0 0.0
        %4546 = vmatpush1.msra.mxu0 0.0
        %4547 = vmatprep.subr.mxu0 0.0
        %4548 = vmatpush1.msra.mxu0 0.0
        %4549 = vmatprep.subr.mxu0 0.0
        %4550 = vmatpush1.msra.mxu0 0.0
        %4551 = vmatprep.subr.mxu0 0.0
        %4552 = vmatpush1.msra.mxu0 0.0
        %4553 = vmatprep.subr.mxu0 0.0
        %4554 = vmatpush1.msra.mxu0 0.0
        %4555 = vmatprep.subr.mxu0 0.0
        %4556 = vmatpush1.msra.mxu0 0.0
        %4557 = vmatprep.subr.mxu0 0.0
        %4558 = vmatpush1.msra.mxu0 0.0
        %4559 = vmatprep.subr.mxu0 0.0
        %4560 = vmatpush1.msra.mxu0 0.0
        %4561 = vmatprep.subr.mxu0 0.0
        %4562 = vmatpush1.msra.mxu0 0.0
        %4563 = vmatprep.subr.mxu0 0.0
        %4564 = vmatpush1.msra.mxu0 0.0
        %4565 = vmatprep.subr.mxu0 0.0
        %4566 = vmatpush1.msra.mxu0 0.0
        %4567 = vmatprep.subr.mxu0 0.0
        %4568 = vmatpush1.msra.mxu0 0.0
        %4569 = vmatprep.subr.mxu0 0.0
        %4570 = vmatpush1.msra.mxu0 0.0
        %4571 = vmatprep.subr.mxu0 0.0
        %4572 = vmatpush1.msra.mxu0 0.0
        %4573 = vmatprep.subr.mxu0 0.0
        %4574 = vmatpush1.msra.mxu0 0.0
        %4575 = vmatprep.mubr.f32.mxu0 0.0
        %4576 = vmatmul.mubr.f32.gmra.mrb[0].mxu0 %v4488
        %v4577 = vpop.f32.mrb[0].mxu0
        %v4578 = vadd.f32 0.0, %v4577
        %v4579 = vpop.f32.mrb[0].mxu0
        %4580 = vmatprep.mubr.f32.mxu0 0.0
        %4581 = vmatmul.mubr.f32.gmra.mrb[0].mxu0 %v4491
        %v4582 = vpop.f32.mrb[0].mxu0
        %v4583 = vadd.f32 0.0, %v4582
        %v4584 = vpop.f32.mrb[0].mxu0
        %4585 = vmatprep.mubr.f32.mxu0 0.0
        %4586 = vmatmul.mubr.f32.gmra.mrb[0].mxu0 %v4494
        %v4587 = vpop.f32.mrb[0].mxu0
        %v4588 = vadd.f32 0.0, %v4587
        %v4589 = vpop.f32.mrb[0].mxu0
        %4590 = vmatprep.mubr.f32.mxu0 0.0
        %4591 = vmatmul.mubr.f32.gmra.mrb[0].mxu0 %v4497
        %v4592 = vpop.f32.mrb[0].mxu0
        %v4593 = vadd.f32 0.0, %v4592
        %v4594 = vpop.f32.mrb[0].mxu0
        %4595 = vmatprep.mubr.f32.mxu0 0.0
        %4596 = vmatmul.mubr.f32.gmra.mrb[0].mxu0 %v4500
        %v4597 = vpop.f32.mrb[0].mxu0
        %v4598 = vadd.f32 0.0, %v4597
        %v4599 = vpop.f32.mrb[0].mxu0
        %4600 = vmatprep.mubr.f32.mxu0 0.0
        %4601 = vmatmul.mubr.f32.gmra.mrb[0].mxu0 %v4503
        %v4602 = vpop.f32.mrb[0].mxu0
        %v4603 = vadd.f32 0.0, %v4602
        %v4604 = vpop.f32.mrb[0].mxu0
        %4605 = vmatprep.mubr.f32.mxu0 0.0
        %4606 = vmatmul.mubr.f32.gmra.mrb[0].mxu0 %v4506
        %v4607 = vpop.f32.mrb[0].mxu0
        %v4608 = vadd.f32 0.0, %v4607
        %v4609 = vpop.f32.mrb[0].mxu0
        %4610 = vmatprep.mubr.f32.mxu0 0.0
        %4611 = vmatmul.mubr.f32.gmra.mrb[0].mxu0 %v4509
        %v4612 = vpop.f32.mrb[0].mxu0
        %v4613 = vadd.f32 0.0, %v4612
        %v4614 = vpop.f32.mrb[0].mxu0
        %4615 = vdwg.mxu0
        %v4616 = vadd.f32 %v4471, %v4578
        %v4617 = vadd.f32 %v4472, %v4583
        %v4618 = vadd.f32 %v4473, %v4588
        %v4619 = vadd.f32 %v4474, %v4593
        %v4620 = vadd.f32 %v4475, %v4598
        %v4621 = vadd.f32 %v4476, %v4603
        %v4622 = vadd.f32 %v4477, %v4608
        %v4623 = vadd.f32 %v4478, %v4613
        %v4624 = vld [vmem:[%s556 + $0x1] sm:$0xff]
        %v4625 = vld [vmem:[%s556 + $0x11] sm:$0xff]
        %v4626 = vld [vmem:[%s556 + $0x21] sm:$0xff]
        %v4627 = vld [vmem:[%s556 + $0x31] sm:$0xff]
        %v4628 = vld [vmem:[%s556 + $0x41] sm:$0xff]
        %v4629 = vld [vmem:[%s556 + $0x51] sm:$0xff]
        %v4630 = vld [vmem:[%s556 + $0x61] sm:$0xff]
        %v4631 = vld [vmem:[%s556 + $0x71] sm:$0xff]
        %v4633 = vsel %vm454, %v4624, 0
        %v4636 = vsel %vm454, %v4625, 0
        %v4639 = vsel %vm454, %v4626, 0
        %v4642 = vsel %vm454, %v4627, 0
        %v4645 = vsel %vm454, %v4628, 0
        %v4648 = vsel %vm454, %v4629, 0
        %v4651 = vsel %vm454, %v4630, 0
        %v4654 = vsel %vm454, %v4631, 0
        %4656 = vmatprep.subr.mxu0 0.0
        %4657 = vmatpush1.msra.mxu0 %v528
        %4658 = vmatprep.subr.mxu0 0.0
        %4659 = vmatpush1.msra.mxu0 0.0
        %4660 = vmatprep.subr.mxu0 0.0
        %4661 = vmatpush1.msra.mxu0 0.0
        %4662 = vmatprep.subr.mxu0 0.0
        %4663 = vmatpush1.msra.mxu0 0.0
        %4664 = vmatprep.subr.mxu0 0.0
        %4665 = vmatpush1.msra.mxu0 0.0
        %4666 = vmatprep.subr.mxu0 0.0
        %4667 = vmatpush1.msra.mxu0 0.0
        %4668 = vmatprep.subr.mxu0 0.0
        %4669 = vmatpush1.msra.mxu0 0.0
        %4670 = vmatprep.subr.mxu0 0.0
        %4671 = vmatpush1.msra.mxu0 0.0
        %4672 = vmatprep.subr.mxu0 0.0
        %4673 = vmatpush1.msra.mxu0 0.0
        %4674 = vmatprep.subr.mxu0 0.0
        %4675 = vmatpush1.msra.mxu0 0.0
        %4676 = vmatprep.subr.mxu0 0.0
        %4677 = vmatpush1.msra.mxu0 0.0
        %4678 = vmatprep.subr.mxu0 0.0
        %4679 = vmatpush1.msra.mxu0 0.0
        %4680 = vmatprep.subr.mxu0 0.0
        %4681 = vmatpush1.msra.mxu0 0.0
        %4682 = vmatprep.subr.mxu0 0.0
        %4683 = vmatpush1.msra.mxu0 0.0
        %4684 = vmatprep.subr.mxu0 0.0
        %4685 = vmatpush1.msra.mxu0 0.0
        %4686 = vmatprep.subr.mxu0 0.0
        %4687 = vmatpush1.msra.mxu0 0.0
        %4688 = vmatprep.subr.mxu0 0.0
        %4689 = vmatpush1.msra.mxu0 0.0
        %4690 = vmatprep.subr.mxu0 0.0
        %4691 = vmatpush1.msra.mxu0 0.0
        %4692 = vmatprep.subr.mxu0 0.0
        %4693 = vmatpush1.msra.mxu0 0.0
        %4694 = vmatprep.subr.mxu0 0.0
        %4695 = vmatpush1.msra.mxu0 0.0
        %4696 = vmatprep.subr.mxu0 0.0
        %4697 = vmatpush1.msra.mxu0 0.0
        %4698 = vmatprep.subr.mxu0 0.0
        %4699 = vmatpush1.msra.mxu0 0.0
        %4700 = vmatprep.subr.mxu0 0.0
        %4701 = vmatpush1.msra.mxu0 0.0
        %4702 = vmatprep.subr.mxu0 0.0
        %4703 = vmatpush1.msra.mxu0 0.0
        %4704 = vmatprep.subr.mxu0 0.0
        %4705 = vmatpush1.msra.mxu0 0.0
        %4706 = vmatprep.subr.mxu0 0.0
        %4707 = vmatpush1.msra.mxu0 0.0
        %4708 = vmatprep.subr.mxu0 0.0
        %4709 = vmatpush1.msra.mxu0 0.0
        %4710 = vmatprep.subr.mxu0 0.0
        %4711 = vmatpush1.msra.mxu0 0.0
        %4712 = vmatprep.subr.mxu0 0.0
        %4713 = vmatpush1.msra.mxu0 0.0
        %4714 = vmatprep.subr.mxu0 0.0
        %4715 = vmatpush1.msra.mxu0 0.0
        %4716 = vmatprep.subr.mxu0 0.0
        %4717 = vmatpush1.msra.mxu0 0.0
        %4718 = vmatprep.subr.mxu0 0.0
        %4719 = vmatpush1.msra.mxu0 0.0
        %4720 = vmatprep.mubr.f32.mxu0 0.0
        %4721 = vmatmul.mubr.f32.gmra.mrb[0].mxu0 %v4633
        %v4722 = vpop.f32.mrb[0].mxu0
        %v4723 = vadd.f32 0.0, %v4722
        %v4724 = vpop.f32.mrb[0].mxu0
        %4725 = vmatprep.mubr.f32.mxu0 0.0
        %4726 = vmatmul.mubr.f32.gmra.mrb[0].mxu0 %v4636
        %v4727 = vpop.f32.mrb[0].mxu0
        %v4728 = vadd.f32 0.0, %v4727
        %v4729 = vpop.f32.mrb[0].mxu0
        %4730 = vmatprep.mubr.f32.mxu0 0.0
        %4731 = vmatmul.mubr.f32.gmra.mrb[0].mxu0 %v4639
        %v4732 = vpop.f32.mrb[0].mxu0
        %v4733 = vadd.f32 0.0, %v4732
        %v4734 = vpop.f32.mrb[0].mxu0
        %4735 = vmatprep.mubr.f32.mxu0 0.0
        %4736 = vmatmul.mubr.f32.gmra.mrb[0].mxu0 %v4642
        %v4737 = vpop.f32.mrb[0].mxu0
        %v4738 = vadd.f32 0.0, %v4737
        %v4739 = vpop.f32.mrb[0].mxu0
        %4740 = vmatprep.mubr.f32.mxu0 0.0
        %4741 = vmatmul.mubr.f32.gmra.mrb[0].mxu0 %v4645
        %v4742 = vpop.f32.mrb[0].mxu0
        %v4743 = vadd.f32 0.0, %v4742
        %v4744 = vpop.f32.mrb[0].mxu0
        %4745 = vmatprep.mubr.f32.mxu0 0.0
        %4746 = vmatmul.mubr.f32.gmra.mrb[0].mxu0 %v4648
        %v4747 = vpop.f32.mrb[0].mxu0
        %v4748 = vadd.f32 0.0, %v4747
        %v4749 = vpop.f32.mrb[0].mxu0
        %4750 = vmatprep.mubr.f32.mxu0 0.0
        %4751 = vmatmul.mubr.f32.gmra.mrb[0].mxu0 %v4651
        %v4752 = vpop.f32.mrb[0].mxu0
        %v4753 = vadd.f32 0.0, %v4752
        %v4754 = vpop.f32.mrb[0].mxu0
        %4755 = vmatprep.mubr.f32.mxu0 0.0
        %4756 = vmatmul.mubr.f32.gmra.mrb[0].mxu0 %v4654
        %v4757 = vpop.f32.mrb[0].mxu0
        %v4758 = vadd.f32 0.0, %v4757
        %v4759 = vpop.f32.mrb[0].mxu0
        %4760 = vdwg.mxu0
        %v4761 = vadd.f32 %v4616, %v4723
        %v4762 = vadd.f32 %v4617, %v4728
        %v4763 = vadd.f32 %v4618, %v4733
        %v4764 = vadd.f32 %v4619, %v4738
        %v4765 = vadd.f32 %v4620, %v4743
        %v4766 = vadd.f32 %v4621, %v4748
        %v4767 = vadd.f32 %v4622, %v4753
        %v4768 = vadd.f32 %v4623, %v4758
        %v4769 = vld [vmem:[%s556 + $0x2] sm:$0xff]
        %v4770 = vld [vmem:[%s556 + $0x12] sm:$0xff]
        %v4771 = vld [vmem:[%s556 + $0x22] sm:$0xff]
        %v4772 = vld [vmem:[%s556 + $0x32] sm:$0xff]
        %v4773 = vld [vmem:[%s556 + $0x42] sm:$0xff]
        %v4774 = vld [vmem:[%s556 + $0x52] sm:$0xff]
        %v4775 = vld [vmem:[%s556 + $0x62] sm:$0xff]
        %v4776 = vld [vmem:[%s556 + $0x72] sm:$0xff]
        %v4778 = vsel %vm454, %v4769, 0
        %v4781 = vsel %vm454, %v4770, 0
        %v4784 = vsel %vm454, %v4771, 0
        %v4787 = vsel %vm454, %v4772, 0
        %v4790 = vsel %vm454, %v4773, 0
        %v4793 = vsel %vm454, %v4774, 0
        %v4796 = vsel %vm454, %v4775, 0
        %v4799 = vsel %vm454, %v4776, 0
        %4801 = vmatprep.subr.mxu0 0.0
        %4802 = vmatpush1.msra.mxu0 %v529
        %4803 = vmatprep.subr.mxu0 0.0
        %4804 = vmatpush1.msra.mxu0 0.0
        %4805 = vmatprep.subr.mxu0 0.0
        %4806 = vmatpush1.msra.mxu0 0.0
        %4807 = vmatprep.subr.mxu0 0.0
        %4808 = vmatpush1.msra.mxu0 0.0
        %4809 = vmatprep.subr.mxu0 0.0
        %4810 = vmatpush1.msra.mxu0 0.0
        %4811 = vmatprep.subr.mxu0 0.0
        %4812 = vmatpush1.msra.mxu0 0.0
        %4813 = vmatprep.subr.mxu0 0.0
        %4814 = vmatpush1.msra.mxu0 0.0
        %4815 = vmatprep.subr.mxu0 0.0
        %4816 = vmatpush1.msra.mxu0 0.0
        %4817 = vmatprep.subr.mxu0 0.0
        %4818 = vmatpush1.msra.mxu0 0.0
        %4819 = vmatprep.subr.mxu0 0.0
        %4820 = vmatpush1.msra.mxu0 0.0
        %4821 = vmatprep.subr.mxu0 0.0
        %4822 = vmatpush1.msra.mxu0 0.0
        %4823 = vmatprep.subr.mxu0 0.0
        %4824 = vmatpush1.msra.mxu0 0.0
        %4825 = vmatprep.subr.mxu0 0.0
        %4826 = vmatpush1.msra.mxu0 0.0
        %4827 = vmatprep.subr.mxu0 0.0
        %4828 = vmatpush1.msra.mxu0 0.0
        %4829 = vmatprep.subr.mxu0 0.0
        %4830 = vmatpush1.msra.mxu0 0.0
        %4831 = vmatprep.subr.mxu0 0.0
        %4832 = vmatpush1.msra.mxu0 0.0
        %4833 = vmatprep.subr.mxu0 0.0
        %4834 = vmatpush1.msra.mxu0 0.0
        %4835 = vmatprep.subr.mxu0 0.0
        %4836 = vmatpush1.msra.mxu0 0.0
        %4837 = vmatprep.subr.mxu0 0.0
        %4838 = vmatpush1.msra.mxu0 0.0
        %4839 = vmatprep.subr.mxu0 0.0
        %4840 = vmatpush1.msra.mxu0 0.0
        %4841 = vmatprep.subr.mxu0 0.0
        %4842 = vmatpush1.msra.mxu0 0.0
        %4843 = vmatprep.subr.mxu0 0.0
        %4844 = vmatpush1.msra.mxu0 0.0
        %4845 = vmatprep.subr.mxu0 0.0
        %4846 = vmatpush1.msra.mxu0 0.0
        %4847 = vmatprep.subr.mxu0 0.0
        %4848 = vmatpush1.msra.mxu0 0.0
        %4849 = vmatprep.subr.mxu0 0.0
        %4850 = vmatpush1.msra.mxu0 0.0
        %4851 = vmatprep.subr.mxu0 0.0
        %4852 = vmatpush1.msra.mxu0 0.0
        %4853 = vmatprep.subr.mxu0 0.0
        %4854 = vmatpush1.msra.mxu0 0.0
        %4855 = vmatprep.subr.mxu0 0.0
        %4856 = vmatpush1.msra.mxu0 0.0
        %4857 = vmatprep.subr.mxu0 0.0
        %4858 = vmatpush1.msra.mxu0 0.0
        %4859 = vmatprep.subr.mxu0 0.0
        %4860 = vmatpush1.msra.mxu0 0.0
        %4861 = vmatprep.subr.mxu0 0.0
        %4862 = vmatpush1.msra.mxu0 0.0
        %4863 = vmatprep.subr.mxu0 0.0
        %4864 = vmatpush1.msra.mxu0 0.0
        %4865 = vmatprep.mubr.f32.mxu0 0.0
        %4866 = vmatmul.mubr.f32.gmra.mrb[0].mxu0 %v4778
        %v4867 = vpop.f32.mrb[0].mxu0
        %v4868 = vadd.f32 0.0, %v4867
        %v4869 = vpop.f32.mrb[0].mxu0
        %4870 = vmatprep.mubr.f32.mxu0 0.0
        %4871 = vmatmul.mubr.f32.gmra.mrb[0].mxu0 %v4781
        %v4872 = vpop.f32.mrb[0].mxu0
        %v4873 = vadd.f32 0.0, %v4872
        %v4874 = vpop.f32.mrb[0].mxu0
        %4875 = vmatprep.mubr.f32.mxu0 0.0
        %4876 = vmatmul.mubr.f32.gmra.mrb[0].mxu0 %v4784
        %v4877 = vpop.f32.mrb[0].mxu0
        %v4878 = vadd.f32 0.0, %v4877
        %v4879 = vpop.f32.mrb[0].mxu0
        %4880 = vmatprep.mubr.f32.mxu0 0.0
        %4881 = vmatmul.mubr.f32.gmra.mrb[0].mxu0 %v4787
        %v4882 = vpop.f32.mrb[0].mxu0
        %v4883 = vadd.f32 0.0, %v4882
        %v4884 = vpop.f32.mrb[0].mxu0
        %4885 = vmatprep.mubr.f32.mxu0 0.0
        %4886 = vmatmul.mubr.f32.gmra.mrb[0].mxu0 %v4790
        %v4887 = vpop.f32.mrb[0].mxu0
        %v4888 = vadd.f32 0.0, %v4887
        %v4889 = vpop.f32.mrb[0].mxu0
        %4890 = vmatprep.mubr.f32.mxu0 0.0
        %4891 = vmatmul.mubr.f32.gmra.mrb[0].mxu0 %v4793
        %v4892 = vpop.f32.mrb[0].mxu0
        %v4893 = vadd.f32 0.0, %v4892
        %v4894 = vpop.f32.mrb[0].mxu0
        %4895 = vmatprep.mubr.f32.mxu0 0.0
        %4896 = vmatmul.mubr.f32.gmra.mrb[0].mxu0 %v4796
        %v4897 = vpop.f32.mrb[0].mxu0
        %v4898 = vadd.f32 0.0, %v4897
        %v4899 = vpop.f32.mrb[0].mxu0
        %4900 = vmatprep.mubr.f32.mxu0 0.0
        %4901 = vmatmul.mubr.f32.gmra.mrb[0].mxu0 %v4799
        %v4902 = vpop.f32.mrb[0].mxu0
        %v4903 = vadd.f32 0.0, %v4902
        %v4904 = vpop.f32.mrb[0].mxu0
        %4905 = vdwg.mxu0
        %v4906 = vadd.f32 %v4761, %v4868
        %v4907 = vadd.f32 %v4762, %v4873
        %v4908 = vadd.f32 %v4763, %v4878
        %v4909 = vadd.f32 %v4764, %v4883
        %v4910 = vadd.f32 %v4765, %v4888
        %v4911 = vadd.f32 %v4766, %v4893
        %v4912 = vadd.f32 %v4767, %v4898
        %v4913 = vadd.f32 %v4768, %v4903
        %v4914 = vld [vmem:[%s1419] sm:$0xff]
        %v4915 = vld [vmem:[%s1419 + $0x10] sm:$0xff]
        %v4916 = vld [vmem:[%s1419 + $0x20] sm:$0xff]
        %v4917 = vld [vmem:[%s1419 + $0x30] sm:$0xff]
        %v4918 = vld [vmem:[%s1419 + $0x40] sm:$0xff]
        %v4919 = vld [vmem:[%s1419 + $0x50] sm:$0xff]
        %v4920 = vld [vmem:[%s1419 + $0x60] sm:$0xff]
        %v4921 = vld [vmem:[%s1419 + $0x70] sm:$0xff]
        %v4923 = vsel %vm454, %v4914, 0
        %v4926 = vsel %vm454, %v4915, 0
        %v4929 = vsel %vm454, %v4916, 0
        %v4932 = vsel %vm454, %v4917, 0
        %v4935 = vsel %vm454, %v4918, 0
        %v4938 = vsel %vm454, %v4919, 0
        %v4941 = vsel %vm454, %v4920, 0
        %v4944 = vsel %vm454, %v4921, 0
        %4946 = vmatprep.subr.mxu0 0.0
        %4947 = vmatpush1.msra.mxu0 %v530
        %4948 = vmatprep.subr.mxu0 0.0
        %4949 = vmatpush1.msra.mxu0 0.0
        %4950 = vmatprep.subr.mxu0 0.0
        %4951 = vmatpush1.msra.mxu0 0.0
        %4952 = vmatprep.subr.mxu0 0.0
        %4953 = vmatpush1.msra.mxu0 0.0
        %4954 = vmatprep.subr.mxu0 0.0
        %4955 = vmatpush1.msra.mxu0 0.0
        %4956 = vmatprep.subr.mxu0 0.0
        %4957 = vmatpush1.msra.mxu0 0.0
        %4958 = vmatprep.subr.mxu0 0.0
        %4959 = vmatpush1.msra.mxu0 0.0
        %4960 = vmatprep.subr.mxu0 0.0
        %4961 = vmatpush1.msra.mxu0 0.0
        %4962 = vmatprep.subr.mxu0 0.0
        %4963 = vmatpush1.msra.mxu0 0.0
        %4964 = vmatprep.subr.mxu0 0.0
        %4965 = vmatpush1.msra.mxu0 0.0
        %4966 = vmatprep.subr.mxu0 0.0
        %4967 = vmatpush1.msra.mxu0 0.0
        %4968 = vmatprep.subr.mxu0 0.0
        %4969 = vmatpush1.msra.mxu0 0.0
        %4970 = vmatprep.subr.mxu0 0.0
        %4971 = vmatpush1.msra.mxu0 0.0
        %4972 = vmatprep.subr.mxu0 0.0
        %4973 = vmatpush1.msra.mxu0 0.0
        %4974 = vmatprep.subr.mxu0 0.0
        %4975 = vmatpush1.msra.mxu0 0.0
        %4976 = vmatprep.subr.mxu0 0.0
        %4977 = vmatpush1.msra.mxu0 0.0
        %4978 = vmatprep.subr.mxu0 0.0
        %4979 = vmatpush1.msra.mxu0 0.0
        %4980 = vmatprep.subr.mxu0 0.0
        %4981 = vmatpush1.msra.mxu0 0.0
        %4982 = vmatprep.subr.mxu0 0.0
        %4983 = vmatpush1.msra.mxu0 0.0
        %4984 = vmatprep.subr.mxu0 0.0
        %4985 = vmatpush1.msra.mxu0 0.0
        %4986 = vmatprep.subr.mxu0 0.0
        %4987 = vmatpush1.msra.mxu0 0.0
        %4988 = vmatprep.subr.mxu0 0.0
        %4989 = vmatpush1.msra.mxu0 0.0
        %4990 = vmatprep.subr.mxu0 0.0
        %4991 = vmatpush1.msra.mxu0 0.0
        %4992 = vmatprep.subr.mxu0 0.0
        %4993 = vmatpush1.msra.mxu0 0.0
        %4994 = vmatprep.subr.mxu0 0.0
        %4995 = vmatpush1.msra.mxu0 0.0
        %4996 = vmatprep.subr.mxu0 0.0
        %4997 = vmatpush1.msra.mxu0 0.0
        %4998 = vmatprep.subr.mxu0 0.0
        %4999 = vmatpush1.msra.mxu0 0.0
        %5000 = vmatprep.subr.mxu0 0.0
        %5001 = vmatpush1.msra.mxu0 0.0
        %5002 = vmatprep.subr.mxu0 0.0
        %5003 = vmatpush1.msra.mxu0 0.0
        %5004 = vmatprep.subr.mxu0 0.0
        %5005 = vmatpush1.msra.mxu0 0.0
        %5006 = vmatprep.subr.mxu0 0.0
        %5007 = vmatpush1.msra.mxu0 0.0
        %5008 = vmatprep.subr.mxu0 0.0
        %5009 = vmatpush1.msra.mxu0 0.0
        %5010 = vmatprep.mubr.f32.mxu0 0.0
        %5011 = vmatmul.mubr.f32.gmra.mrb[0].mxu0 %v4923
        %v5012 = vpop.f32.mrb[0].mxu0
        %v5013 = vadd.f32 0.0, %v5012
        %v5014 = vpop.f32.mrb[0].mxu0
        %5015 = vmatprep.mubr.f32.mxu0 0.0
        %5016 = vmatmul.mubr.f32.gmra.mrb[0].mxu0 %v4926
        %v5017 = vpop.f32.mrb[0].mxu0
        %v5018 = vadd.f32 0.0, %v5017
        %v5019 = vpop.f32.mrb[0].mxu0
        %5020 = vmatprep.mubr.f32.mxu0 0.0
        %5021 = vmatmul.mubr.f32.gmra.mrb[0].mxu0 %v4929
        %v5022 = vpop.f32.mrb[0].mxu0
        %v5023 = vadd.f32 0.0, %v5022
        %v5024 = vpop.f32.mrb[0].mxu0
        %5025 = vmatprep.mubr.f32.mxu0 0.0
        %5026 = vmatmul.mubr.f32.gmra.mrb[0].mxu0 %v4932
        %v5027 = vpop.f32.mrb[0].mxu0
        %v5028 = vadd.f32 0.0, %v5027
        %v5029 = vpop.f32.mrb[0].mxu0
        %5030 = vmatprep.mubr.f32.mxu0 0.0
        %5031 = vmatmul.mubr.f32.gmra.mrb[0].mxu0 %v4935
        %v5032 = vpop.f32.mrb[0].mxu0
        %v5033 = vadd.f32 0.0, %v5032
        %v5034 = vpop.f32.mrb[0].mxu0
        %5035 = vmatprep.mubr.f32.mxu0 0.0
        %5036 = vmatmul.mubr.f32.gmra.mrb[0].mxu0 %v4938
        %v5037 = vpop.f32.mrb[0].mxu0
        %v5038 = vadd.f32 0.0, %v5037
        %v5039 = vpop.f32.mrb[0].mxu0
        %5040 = vmatprep.mubr.f32.mxu0 0.0
        %5041 = vmatmul.mubr.f32.gmra.mrb[0].mxu0 %v4941
        %v5042 = vpop.f32.mrb[0].mxu0
        %v5043 = vadd.f32 0.0, %v5042
        %v5044 = vpop.f32.mrb[0].mxu0
        %5045 = vmatprep.mubr.f32.mxu0 0.0
        %5046 = vmatmul.mubr.f32.gmra.mrb[0].mxu0 %v4944
        %v5047 = vpop.f32.mrb[0].mxu0
        %v5048 = vadd.f32 0.0, %v5047
        %v5049 = vpop.f32.mrb[0].mxu0
        %5050 = vdwg.mxu0
        %v5051 = vadd.f32 %v4906, %v5013
        %v5052 = vadd.f32 %v4907, %v5018
        %v5053 = vadd.f32 %v4908, %v5023
        %v5054 = vadd.f32 %v4909, %v5028
        %v5055 = vadd.f32 %v4910, %v5033
        %v5056 = vadd.f32 %v4911, %v5038
        %v5057 = vadd.f32 %v4912, %v5043
        %v5058 = vadd.f32 %v4913, %v5048
        %v5059 = vld [vmem:[%s1419 + $0x1] sm:$0xff]
        %v5060 = vld [vmem:[%s1419 + $0x11] sm:$0xff]
        %v5061 = vld [vmem:[%s1419 + $0x21] sm:$0xff]
        %v5062 = vld [vmem:[%s1419 + $0x31] sm:$0xff]
        %v5063 = vld [vmem:[%s1419 + $0x41] sm:$0xff]
        %v5064 = vld [vmem:[%s1419 + $0x51] sm:$0xff]
        %v5065 = vld [vmem:[%s1419 + $0x61] sm:$0xff]
        %v5066 = vld [vmem:[%s1419 + $0x71] sm:$0xff]
        %v5068 = vsel %vm454, %v5059, 0
        %v5071 = vsel %vm454, %v5060, 0
        %v5074 = vsel %vm454, %v5061, 0
        %v5077 = vsel %vm454, %v5062, 0
        %v5080 = vsel %vm454, %v5063, 0
        %v5083 = vsel %vm454, %v5064, 0
        %v5086 = vsel %vm454, %v5065, 0
        %v5089 = vsel %vm454, %v5066, 0
        %5091 = vmatprep.subr.mxu0 0.0
        %5092 = vmatpush1.msra.mxu0 %v531
        %5093 = vmatprep.subr.mxu0 0.0
        %5094 = vmatpush1.msra.mxu0 0.0
        %5095 = vmatprep.subr.mxu0 0.0
        %5096 = vmatpush1.msra.mxu0 0.0
        %5097 = vmatprep.subr.mxu0 0.0
        %5098 = vmatpush1.msra.mxu0 0.0
        %5099 = vmatprep.subr.mxu0 0.0
        %5100 = vmatpush1.msra.mxu0 0.0
        %5101 = vmatprep.subr.mxu0 0.0
        %5102 = vmatpush1.msra.mxu0 0.0
        %5103 = vmatprep.subr.mxu0 0.0
        %5104 = vmatpush1.msra.mxu0 0.0
        %5105 = vmatprep.subr.mxu0 0.0
        %5106 = vmatpush1.msra.mxu0 0.0
        %5107 = vmatprep.subr.mxu0 0.0
        %5108 = vmatpush1.msra.mxu0 0.0
        %5109 = vmatprep.subr.mxu0 0.0
        %5110 = vmatpush1.msra.mxu0 0.0
        %5111 = vmatprep.subr.mxu0 0.0
        %5112 = vmatpush1.msra.mxu0 0.0
        %5113 = vmatprep.subr.mxu0 0.0
        %5114 = vmatpush1.msra.mxu0 0.0
        %5115 = vmatprep.subr.mxu0 0.0
        %5116 = vmatpush1.msra.mxu0 0.0
        %5117 = vmatprep.subr.mxu0 0.0
        %5118 = vmatpush1.msra.mxu0 0.0
        %5119 = vmatprep.subr.mxu0 0.0
        %5120 = vmatpush1.msra.mxu0 0.0
        %5121 = vmatprep.subr.mxu0 0.0
        %5122 = vmatpush1.msra.mxu0 0.0
        %5123 = vmatprep.subr.mxu0 0.0
        %5124 = vmatpush1.msra.mxu0 0.0
        %5125 = vmatprep.subr.mxu0 0.0
        %5126 = vmatpush1.msra.mxu0 0.0
        %5127 = vmatprep.subr.mxu0 0.0
        %5128 = vmatpush1.msra.mxu0 0.0
        %5129 = vmatprep.subr.mxu0 0.0
        %5130 = vmatpush1.msra.mxu0 0.0
        %5131 = vmatprep.subr.mxu0 0.0
        %5132 = vmatpush1.msra.mxu0 0.0
        %5133 = vmatprep.subr.mxu0 0.0
        %5134 = vmatpush1.msra.mxu0 0.0
        %5135 = vmatprep.subr.mxu0 0.0
        %5136 = vmatpush1.msra.mxu0 0.0
        %5137 = vmatprep.subr.mxu0 0.0
        %5138 = vmatpush1.msra.mxu0 0.0
        %5139 = vmatprep.subr.mxu0 0.0
        %5140 = vmatpush1.msra.mxu0 0.0
        %5141 = vmatprep.subr.mxu0 0.0
        %5142 = vmatpush1.msra.mxu0 0.0
        %5143 = vmatprep.subr.mxu0 0.0
        %5144 = vmatpush1.msra.mxu0 0.0
        %5145 = vmatprep.subr.mxu0 0.0
        %5146 = vmatpush1.msra.mxu0 0.0
        %5147 = vmatprep.subr.mxu0 0.0
        %5148 = vmatpush1.msra.mxu0 0.0
        %5149 = vmatprep.subr.mxu0 0.0
        %5150 = vmatpush1.msra.mxu0 0.0
        %5151 = vmatprep.subr.mxu0 0.0
        %5152 = vmatpush1.msra.mxu0 0.0
        %5153 = vmatprep.subr.mxu0 0.0
        %5154 = vmatpush1.msra.mxu0 0.0
        %5155 = vmatprep.mubr.f32.mxu0 0.0
        %5156 = vmatmul.mubr.f32.gmra.mrb[0].mxu0 %v5068
        %v5157 = vpop.f32.mrb[0].mxu0
        %v5158 = vadd.f32 0.0, %v5157
        %v5159 = vpop.f32.mrb[0].mxu0
        %5160 = vmatprep.mubr.f32.mxu0 0.0
        %5161 = vmatmul.mubr.f32.gmra.mrb[0].mxu0 %v5071
        %v5162 = vpop.f32.mrb[0].mxu0
        %v5163 = vadd.f32 0.0, %v5162
        %v5164 = vpop.f32.mrb[0].mxu0
        %5165 = vmatprep.mubr.f32.mxu0 0.0
        %5166 = vmatmul.mubr.f32.gmra.mrb[0].mxu0 %v5074
        %v5167 = vpop.f32.mrb[0].mxu0
        %v5168 = vadd.f32 0.0, %v5167
        %v5169 = vpop.f32.mrb[0].mxu0
        %5170 = vmatprep.mubr.f32.mxu0 0.0
        %5171 = vmatmul.mubr.f32.gmra.mrb[0].mxu0 %v5077
        %v5172 = vpop.f32.mrb[0].mxu0
        %v5173 = vadd.f32 0.0, %v5172
        %v5174 = vpop.f32.mrb[0].mxu0
        %5175 = vmatprep.mubr.f32.mxu0 0.0
        %5176 = vmatmul.mubr.f32.gmra.mrb[0].mxu0 %v5080
        %v5177 = vpop.f32.mrb[0].mxu0
        %v5178 = vadd.f32 0.0, %v5177
        %v5179 = vpop.f32.mrb[0].mxu0
        %5180 = vmatprep.mubr.f32.mxu0 0.0
        %5181 = vmatmul.mubr.f32.gmra.mrb[0].mxu0 %v5083
        %v5182 = vpop.f32.mrb[0].mxu0
        %v5183 = vadd.f32 0.0, %v5182
        %v5184 = vpop.f32.mrb[0].mxu0
        %5185 = vmatprep.mubr.f32.mxu0 0.0
        %5186 = vmatmul.mubr.f32.gmra.mrb[0].mxu0 %v5086
        %v5187 = vpop.f32.mrb[0].mxu0
        %v5188 = vadd.f32 0.0, %v5187
        %v5189 = vpop.f32.mrb[0].mxu0
        %5190 = vmatprep.mubr.f32.mxu0 0.0
        %5191 = vmatmul.mubr.f32.gmra.mrb[0].mxu0 %v5089
        %v5192 = vpop.f32.mrb[0].mxu0
        %v5193 = vadd.f32 0.0, %v5192
        %v5194 = vpop.f32.mrb[0].mxu0
        %5195 = vdwg.mxu0
        %v5196 = vadd.f32 %v5051, %v5158
        %v5197 = vadd.f32 %v5052, %v5163
        %v5198 = vadd.f32 %v5053, %v5168
        %v5199 = vadd.f32 %v5054, %v5173
        %v5200 = vadd.f32 %v5055, %v5178
        %v5201 = vadd.f32 %v5056, %v5183
        %v5202 = vadd.f32 %v5057, %v5188
        %v5203 = vadd.f32 %v5058, %v5193
        %v5204 = vld [vmem:[%s1419 + $0x2] sm:$0xff]
        %v5205 = vld [vmem:[%s1419 + $0x12] sm:$0xff]
        %v5206 = vld [vmem:[%s1419 + $0x22] sm:$0xff]
        %v5207 = vld [vmem:[%s1419 + $0x32] sm:$0xff]
        %v5208 = vld [vmem:[%s1419 + $0x42] sm:$0xff]
        %v5209 = vld [vmem:[%s1419 + $0x52] sm:$0xff]
        %v5210 = vld [vmem:[%s1419 + $0x62] sm:$0xff]
        %v5211 = vld [vmem:[%s1419 + $0x72] sm:$0xff]
        %v5213 = vsel %vm454, %v5204, 0
        %v5216 = vsel %vm454, %v5205, 0
        %v5219 = vsel %vm454, %v5206, 0
        %v5222 = vsel %vm454, %v5207, 0
        %v5225 = vsel %vm454, %v5208, 0
        %v5228 = vsel %vm454, %v5209, 0
        %v5231 = vsel %vm454, %v5210, 0
        %v5234 = vsel %vm454, %v5211, 0
        %5236 = vmatprep.subr.mxu0 0.0
        %5237 = vmatpush1.msra.mxu0 %v532
        %5238 = vmatprep.subr.mxu0 0.0
        %5239 = vmatpush1.msra.mxu0 0.0
        %5240 = vmatprep.subr.mxu0 0.0
        %5241 = vmatpush1.msra.mxu0 0.0
        %5242 = vmatprep.subr.mxu0 0.0
        %5243 = vmatpush1.msra.mxu0 0.0
        %5244 = vmatprep.subr.mxu0 0.0
        %5245 = vmatpush1.msra.mxu0 0.0
        %5246 = vmatprep.subr.mxu0 0.0
        %5247 = vmatpush1.msra.mxu0 0.0
        %5248 = vmatprep.subr.mxu0 0.0
        %5249 = vmatpush1.msra.mxu0 0.0
        %5250 = vmatprep.subr.mxu0 0.0
        %5251 = vmatpush1.msra.mxu0 0.0
        %5252 = vmatprep.subr.mxu0 0.0
        %5253 = vmatpush1.msra.mxu0 0.0
        %5254 = vmatprep.subr.mxu0 0.0
        %5255 = vmatpush1.msra.mxu0 0.0
        %5256 = vmatprep.subr.mxu0 0.0
        %5257 = vmatpush1.msra.mxu0 0.0
        %5258 = vmatprep.subr.mxu0 0.0
        %5259 = vmatpush1.msra.mxu0 0.0
        %5260 = vmatprep.subr.mxu0 0.0
        %5261 = vmatpush1.msra.mxu0 0.0
        %5262 = vmatprep.subr.mxu0 0.0
        %5263 = vmatpush1.msra.mxu0 0.0
        %5264 = vmatprep.subr.mxu0 0.0
        %5265 = vmatpush1.msra.mxu0 0.0
        %5266 = vmatprep.subr.mxu0 0.0
        %5267 = vmatpush1.msra.mxu0 0.0
        %5268 = vmatprep.subr.mxu0 0.0
        %5269 = vmatpush1.msra.mxu0 0.0
        %5270 = vmatprep.subr.mxu0 0.0
        %5271 = vmatpush1.msra.mxu0 0.0
        %5272 = vmatprep.subr.mxu0 0.0
        %5273 = vmatpush1.msra.mxu0 0.0
        %5274 = vmatprep.subr.mxu0 0.0
        %5275 = vmatpush1.msra.mxu0 0.0
        %5276 = vmatprep.subr.mxu0 0.0
        %5277 = vmatpush1.msra.mxu0 0.0
        %5278 = vmatprep.subr.mxu0 0.0
        %5279 = vmatpush1.msra.mxu0 0.0
        %5280 = vmatprep.subr.mxu0 0.0
        %5281 = vmatpush1.msra.mxu0 0.0
        %5282 = vmatprep.subr.mxu0 0.0
        %5283 = vmatpush1.msra.mxu0 0.0
        %5284 = vmatprep.subr.mxu0 0.0
        %5285 = vmatpush1.msra.mxu0 0.0
        %5286 = vmatprep.subr.mxu0 0.0
        %5287 = vmatpush1.msra.mxu0 0.0
        %5288 = vmatprep.subr.mxu0 0.0
        %5289 = vmatpush1.msra.mxu0 0.0
        %5290 = vmatprep.subr.mxu0 0.0
        %5291 = vmatpush1.msra.mxu0 0.0
        %5292 = vmatprep.subr.mxu0 0.0
        %5293 = vmatpush1.msra.mxu0 0.0
        %5294 = vmatprep.subr.mxu0 0.0
        %5295 = vmatpush1.msra.mxu0 0.0
        %5296 = vmatprep.subr.mxu0 0.0
        %5297 = vmatpush1.msra.mxu0 0.0
        %5298 = vmatprep.subr.mxu0 0.0
        %5299 = vmatpush1.msra.mxu0 0.0
        %5300 = vmatprep.mubr.f32.mxu0 0.0
        %5301 = vmatmul.mubr.f32.gmra.mrb[0].mxu0 %v5213
        %v5302 = vpop.f32.mrb[0].mxu0
        %v5303 = vadd.f32 0.0, %v5302
        %v5304 = vpop.f32.mrb[0].mxu0
        %5305 = vmatprep.mubr.f32.mxu0 0.0
        %5306 = vmatmul.mubr.f32.gmra.mrb[0].mxu0 %v5216
        %v5307 = vpop.f32.mrb[0].mxu0
        %v5308 = vadd.f32 0.0, %v5307
        %v5309 = vpop.f32.mrb[0].mxu0
        %5310 = vmatprep.mubr.f32.mxu0 0.0
        %5311 = vmatmul.mubr.f32.gmra.mrb[0].mxu0 %v5219
        %v5312 = vpop.f32.mrb[0].mxu0
        %v5313 = vadd.f32 0.0, %v5312
        %v5314 = vpop.f32.mrb[0].mxu0
        %5315 = vmatprep.mubr.f32.mxu0 0.0
        %5316 = vmatmul.mubr.f32.gmra.mrb[0].mxu0 %v5222
        %v5317 = vpop.f32.mrb[0].mxu0
        %v5318 = vadd.f32 0.0, %v5317
        %v5319 = vpop.f32.mrb[0].mxu0
        %5320 = vmatprep.mubr.f32.mxu0 0.0
        %5321 = vmatmul.mubr.f32.gmra.mrb[0].mxu0 %v5225
        %v5322 = vpop.f32.mrb[0].mxu0
        %v5323 = vadd.f32 0.0, %v5322
        %v5324 = vpop.f32.mrb[0].mxu0
        %5325 = vmatprep.mubr.f32.mxu0 0.0
        %5326 = vmatmul.mubr.f32.gmra.mrb[0].mxu0 %v5228
        %v5327 = vpop.f32.mrb[0].mxu0
        %v5328 = vadd.f32 0.0, %v5327
        %v5329 = vpop.f32.mrb[0].mxu0
        %5330 = vmatprep.mubr.f32.mxu0 0.0
        %5331 = vmatmul.mubr.f32.gmra.mrb[0].mxu0 %v5231
        %v5332 = vpop.f32.mrb[0].mxu0
        %v5333 = vadd.f32 0.0, %v5332
        %v5334 = vpop.f32.mrb[0].mxu0
        %5335 = vmatprep.mubr.f32.mxu0 0.0
        %5336 = vmatmul.mubr.f32.gmra.mrb[0].mxu0 %v5234
        %v5337 = vpop.f32.mrb[0].mxu0
        %v5338 = vadd.f32 0.0, %v5337
        %v5339 = vpop.f32.mrb[0].mxu0
        %5340 = vdwg.mxu0
        %v5341 = vadd.f32 %v5196, %v5303
        %v5342 = vadd.f32 %v5197, %v5308
        %v5343 = vadd.f32 %v5198, %v5313
        %v5344 = vadd.f32 %v5199, %v5318
        %v5345 = vadd.f32 %v5200, %v5323
        %v5346 = vadd.f32 %v5201, %v5328
        %v5347 = vadd.f32 %v5202, %v5333
        %v5348 = vadd.f32 %v5203, %v5338
        %v5349 = vld [vmem:[#allocation7] sm:$0x1]
        %v5351 = vlaneseq
        %v5352 = vshrl.u32 %v5351, 7
        %v5353 = vsub.s32 0, %v5352
        %v5354 = vrot.slane %v5349, %v5353
        %v5356 = vadd.f32 %v5341, %v5354
        %v5357 = vadd.f32 %v5342, %v5354
        %v5358 = vadd.f32 %v5343, %v5354
        %v5359 = vadd.f32 %v5344, %v5354
        %v5360 = vadd.f32 %v5345, %v5354
        %v5361 = vadd.f32 %v5346, %v5354
        %v5362 = vadd.f32 %v5347, %v5354
        %v5363 = vadd.f32 %v5348, %v5354
        %s5364 = scalar_lea.vmem [#allocation7], 1
        %v5365 = vld [vmem:[%s5364] sm:$0x1]
        %s5366 = scalar_lea.vmem [#allocation7], 2
        %v5367 = vld [vmem:[%s5366] sm:$0x1]
        %v5368 = vsel %vm476, %v5356, 0.0
        %v5369 = vsel %vm476, %v5357, 0.0
        %v5370 = vadd.f32 %v5368, %v5369
        %v5371 = vsel %vm476, %v5358, 0.0
        %v5372 = vadd.f32 %v5370, %v5371
        %v5373 = vsel %vm476, %v5359, 0.0
        %v5374 = vadd.f32 %v5372, %v5373
        %v5375 = vsel %vm476, %v5360, 0.0
        %v5376 = vadd.f32 %v5374, %v5375
        %v5377 = vsel %vm476, %v5361, 0.0
        %v5378 = vadd.f32 %v5376, %v5377
        %v5379 = vsel %vm476, %v5362, 0.0
        %v5380 = vadd.f32 %v5378, %v5379
        %v5381 = vsel %vm476, %v5363, 0.0
        %v5382 = vadd.f32 %v5380, %v5381
        %v5383 = vrot.slane %v5382, 4
        %v5384 = vadd.f32 %v5382, %v5383
        %v5385 = vrot.slane %v5384, 2
        %v5386 = vadd.f32 %v5384, %v5385
        %v5387 = vrot.slane %v5386, 1
        %v5388 = vadd.f32 %v5386, %v5387
        %v5390 = vsel %vm476, %v5388, 0
        %5392 = vmatprep.subr.mxu0 0.0
        %5393 = vmatpush1.msra.mxu0 %v553
        %5394 = vmatprep.subr.mxu0 0.0
        %5395 = vmatpush1.msra.mxu0 %v554
        %5396 = vmatprep.subr.mxu0 0.0
        %5397 = vmatpush1.msra.mxu0 0.0
        %5398 = vmatprep.subr.mxu0 0.0
        %5399 = vmatpush1.msra.mxu0 0.0
        %5400 = vmatprep.subr.mxu0 0.0
        %5401 = vmatpush1.msra.mxu0 0.0
        %5402 = vmatprep.subr.mxu0 0.0
        %5403 = vmatpush1.msra.mxu0 0.0
        %5404 = vmatprep.subr.mxu0 0.0
        %5405 = vmatpush1.msra.mxu0 0.0
        %5406 = vmatprep.subr.mxu0 0.0
        %5407 = vmatpush1.msra.mxu0 0.0
        %5408 = vmatprep.subr.mxu0 0.0
        %5409 = vmatpush1.msra.mxu0 0.0
        %5410 = vmatprep.subr.mxu0 0.0
        %5411 = vmatpush1.msra.mxu0 0.0
        %5412 = vmatprep.subr.mxu0 0.0
        %5413 = vmatpush1.msra.mxu0 0.0
        %5414 = vmatprep.subr.mxu0 0.0
        %5415 = vmatpush1.msra.mxu0 0.0
        %5416 = vmatprep.subr.mxu0 0.0
        %5417 = vmatpush1.msra.mxu0 0.0
        %5418 = vmatprep.subr.mxu0 0.0
        %5419 = vmatpush1.msra.mxu0 0.0
        %5420 = vmatprep.subr.mxu0 0.0
        %5421 = vmatpush1.msra.mxu0 0.0
        %5422 = vmatprep.subr.mxu0 0.0
        %5423 = vmatpush1.msra.mxu0 0.0
        %5424 = vmatprep.subr.mxu0 0.0
        %5425 = vmatpush1.msra.mxu0 0.0
        %5426 = vmatprep.subr.mxu0 0.0
        %5427 = vmatpush1.msra.mxu0 0.0
        %5428 = vmatprep.subr.mxu0 0.0
        %5429 = vmatpush1.msra.mxu0 0.0
        %5430 = vmatprep.subr.mxu0 0.0
        %5431 = vmatpush1.msra.mxu0 0.0
        %5432 = vmatprep.subr.mxu0 0.0
        %5433 = vmatpush1.msra.mxu0 0.0
        %5434 = vmatprep.subr.mxu0 0.0
        %5435 = vmatpush1.msra.mxu0 0.0
        %5436 = vmatprep.subr.mxu0 0.0
        %5437 = vmatpush1.msra.mxu0 0.0
        %5438 = vmatprep.subr.mxu0 0.0
        %5439 = vmatpush1.msra.mxu0 0.0
        %5440 = vmatprep.subr.mxu0 0.0
        %5441 = vmatpush1.msra.mxu0 0.0
        %5442 = vmatprep.subr.mxu0 0.0
        %5443 = vmatpush1.msra.mxu0 0.0
        %5444 = vmatprep.subr.mxu0 0.0
        %5445 = vmatpush1.msra.mxu0 0.0
        %5446 = vmatprep.subr.mxu0 0.0
        %5447 = vmatpush1.msra.mxu0 0.0
        %5448 = vmatprep.subr.mxu0 0.0
        %5449 = vmatpush1.msra.mxu0 0.0
        %5450 = vmatprep.subr.mxu0 0.0
        %5451 = vmatpush1.msra.mxu0 0.0
        %5452 = vmatprep.subr.mxu0 0.0
        %5453 = vmatpush1.msra.mxu0 0.0
        %5454 = vmatprep.subr.mxu0 0.0
        %5455 = vmatpush1.msra.mxu0 0.0
        %5456 = vmatprep.mubr.f32.mxu0 0.0
        %5457 = vmatmul.mubr.f32.gmra.mrb[0].mxu0 %v5390
        %v5458 = vpop.f32.mrb[0].mxu0
        %v5459 = vadd.f32 0.0, %v5458
        %v5460 = vpop.f32.mrb[0].mxu0
        %5461 = vdwg.mxu0
        %v5462 = vrcp.pop 128.0
        %v5463 = vmul.f32 %v5459, %v5462
        %v5465 = vsel %vm454, %v5463, 0
        %5467 = vmatprep.subr.mxu0 0.0
        %5468 = vmatpush1.msra.mxu0 %v555
        %5469 = vmatprep.subr.mxu0 0.0
        %5470 = vmatpush1.msra.mxu0 0.0
        %5471 = vmatprep.subr.mxu0 0.0
        %5472 = vmatpush1.msra.mxu0 0.0
        %5473 = vmatprep.subr.mxu0 0.0
        %5474 = vmatpush1.msra.mxu0 0.0
        %5475 = vmatprep.subr.mxu0 0.0
        %5476 = vmatpush1.msra.mxu0 0.0
        %5477 = vmatprep.subr.mxu0 0.0
        %5478 = vmatpush1.msra.mxu0 0.0
        %5479 = vmatprep.subr.mxu0 0.0
        %5480 = vmatpush1.msra.mxu0 0.0
        %5481 = vmatprep.subr.mxu0 0.0
        %5482 = vmatpush1.msra.mxu0 0.0
        %5483 = vmatprep.subr.mxu0 0.0
        %5484 = vmatpush1.msra.mxu0 0.0
        %5485 = vmatprep.subr.mxu0 0.0
        %5486 = vmatpush1.msra.mxu0 0.0
        %5487 = vmatprep.subr.mxu0 0.0
        %5488 = vmatpush1.msra.mxu0 0.0
        %5489 = vmatprep.subr.mxu0 0.0
        %5490 = vmatpush1.msra.mxu0 0.0
        %5491 = vmatprep.subr.mxu0 0.0
        %5492 = vmatpush1.msra.mxu0 0.0
        %5493 = vmatprep.subr.mxu0 0.0
        %5494 = vmatpush1.msra.mxu0 0.0
        %5495 = vmatprep.subr.mxu0 0.0
        %5496 = vmatpush1.msra.mxu0 0.0
        %5497 = vmatprep.subr.mxu0 0.0
        %5498 = vmatpush1.msra.mxu0 0.0
        %5499 = vmatprep.subr.mxu0 0.0
        %5500 = vmatpush1.msra.mxu0 0.0
        %5501 = vmatprep.subr.mxu0 0.0
        %5502 = vmatpush1.msra.mxu0 0.0
        %5503 = vmatprep.subr.mxu0 0.0
        %5504 = vmatpush1.msra.mxu0 0.0
        %5505 = vmatprep.subr.mxu0 0.0
        %5506 = vmatpush1.msra.mxu0 0.0
        %5507 = vmatprep.subr.mxu0 0.0
        %5508 = vmatpush1.msra.mxu0 0.0
        %5509 = vmatprep.subr.mxu0 0.0
        %5510 = vmatpush1.msra.mxu0 0.0
        %5511 = vmatprep.subr.mxu0 0.0
        %5512 = vmatpush1.msra.mxu0 0.0
        %5513 = vmatprep.subr.mxu0 0.0
        %5514 = vmatpush1.msra.mxu0 0.0
        %5515 = vmatprep.subr.mxu0 0.0
        %5516 = vmatpush1.msra.mxu0 0.0
        %5517 = vmatprep.subr.mxu0 0.0
        %5518 = vmatpush1.msra.mxu0 0.0
        %5519 = vmatprep.subr.mxu0 0.0
        %5520 = vmatpush1.msra.mxu0 0.0
        %5521 = vmatprep.subr.mxu0 0.0
        %5522 = vmatpush1.msra.mxu0 0.0
        %5523 = vmatprep.subr.mxu0 0.0
        %5524 = vmatpush1.msra.mxu0 0.0
        %5525 = vmatprep.subr.mxu0 0.0
        %5526 = vmatpush1.msra.mxu0 0.0
        %5527 = vmatprep.subr.mxu0 0.0
        %5528 = vmatpush1.msra.mxu0 0.0
        %5529 = vmatprep.subr.mxu0 0.0
        %5530 = vmatpush1.msra.mxu0 0.0
        %5531 = vmatprep.mubr.f32.mxu0 0.0
        %5532 = vmatmul.mubr.f32.gmra.mrb[0].mxu0 %v5465
        %v5533 = vpop.f32.mrb[0].mxu0
        %v5534 = vadd.f32 0.0, %v5533
        %v5535 = vpop.f32.mrb[0].mxu0
        %5536 = vdwg.mxu0
        %v5537 = vlaneseq
        %v5538 = vshrl.u32 %v5537, 7
        %v5539 = vsub.s32 0, %v5538
        %v5540 = vrot.slane %v5534, %v5539
        %v5541 = vsub.f32 %v5356, %v5540
        %v5542 = vsub.f32 %v5357, %v5540
        %v5543 = vsub.f32 %v5358, %v5540
        %v5544 = vsub.f32 %v5359, %v5540
        %v5545 = vsub.f32 %v5360, %v5540
        %v5546 = vsub.f32 %v5361, %v5540
        %v5547 = vsub.f32 %v5362, %v5540
        %v5548 = vsub.f32 %v5363, %v5540
        %v5549 = vmul.f32 %v5541, %v5541
        %v5550 = vmul.f32 %v5542, %v5542
        %v5551 = vmul.f32 %v5543, %v5543
        %v5552 = vmul.f32 %v5544, %v5544
        %v5553 = vmul.f32 %v5545, %v5545
        %v5554 = vmul.f32 %v5546, %v5546
        %v5555 = vmul.f32 %v5547, %v5547
        %v5556 = vmul.f32 %v5548, %v5548
        %v5557 = vsel %vm476, %v5549, 0.0
        %v5558 = vsel %vm476, %v5550, 0.0
        %v5559 = vadd.f32 %v5557, %v5558
        %v5560 = vsel %vm476, %v5551, 0.0
        %v5561 = vadd.f32 %v5559, %v5560
        %v5562 = vsel %vm476, %v5552, 0.0
        %v5563 = vadd.f32 %v5561, %v5562
        %v5564 = vsel %vm476, %v5553, 0.0
        %v5565 = vadd.f32 %v5563, %v5564
        %v5566 = vsel %vm476, %v5554, 0.0
        %v5567 = vadd.f32 %v5565, %v5566
        %v5568 = vsel %vm476, %v5555, 0.0
        %v5569 = vadd.f32 %v5567, %v5568
        %v5570 = vsel %vm476, %v5556, 0.0
        %v5571 = vadd.f32 %v5569, %v5570
        %v5572 = vrot.slane %v5571, 4
        %v5573 = vadd.f32 %v5571, %v5572
        %v5574 = vrot.slane %v5573, 2
        %v5575 = vadd.f32 %v5573, %v5574
        %v5576 = vrot.slane %v5575, 1
        %v5577 = vadd.f32 %v5575, %v5576
        %v5579 = vsel %vm476, %v5577, 0
        %5581 = vmatprep.subr.mxu0 0.0
        %5582 = vmatpush1.msra.mxu0 %v553
        %5583 = vmatprep.subr.mxu0 0.0
        %5584 = vmatpush1.msra.mxu0 %v554
        %5585 = vmatprep.subr.mxu0 0.0
        %5586 = vmatpush1.msra.mxu0 0.0
        %5587 = vmatprep.subr.mxu0 0.0
        %5588 = vmatpush1.msra.mxu0 0.0
        %5589 = vmatprep.subr.mxu0 0.0
        %5590 = vmatpush1.msra.mxu0 0.0
        %5591 = vmatprep.subr.mxu0 0.0
        %5592 = vmatpush1.msra.mxu0 0.0
        %5593 = vmatprep.subr.mxu0 0.0
        %5594 = vmatpush1.msra.mxu0 0.0
        %5595 = vmatprep.subr.mxu0 0.0
        %5596 = vmatpush1.msra.mxu0 0.0
        %5597 = vmatprep.subr.mxu0 0.0
        %5598 = vmatpush1.msra.mxu0 0.0
        %5599 = vmatprep.subr.mxu0 0.0
        %5600 = vmatpush1.msra.mxu0 0.0
        %5601 = vmatprep.subr.mxu0 0.0
        %5602 = vmatpush1.msra.mxu0 0.0
        %5603 = vmatprep.subr.mxu0 0.0
        %5604 = vmatpush1.msra.mxu0 0.0
        %5605 = vmatprep.subr.mxu0 0.0
        %5606 = vmatpush1.msra.mxu0 0.0
        %5607 = vmatprep.subr.mxu0 0.0
        %5608 = vmatpush1.msra.mxu0 0.0
        %5609 = vmatprep.subr.mxu0 0.0
        %5610 = vmatpush1.msra.mxu0 0.0
        %5611 = vmatprep.subr.mxu0 0.0
        %5612 = vmatpush1.msra.mxu0 0.0
        %5613 = vmatprep.subr.mxu0 0.0
        %5614 = vmatpush1.msra.mxu0 0.0
        %5615 = vmatprep.subr.mxu0 0.0
        %5616 = vmatpush1.msra.mxu0 0.0
        %5617 = vmatprep.subr.mxu0 0.0
        %5618 = vmatpush1.msra.mxu0 0.0
        %5619 = vmatprep.subr.mxu0 0.0
        %5620 = vmatpush1.msra.mxu0 0.0
        %5621 = vmatprep.subr.mxu0 0.0
        %5622 = vmatpush1.msra.mxu0 0.0
        %5623 = vmatprep.subr.mxu0 0.0
        %5624 = vmatpush1.msra.mxu0 0.0
        %5625 = vmatprep.subr.mxu0 0.0
        %5626 = vmatpush1.msra.mxu0 0.0
        %5627 = vmatprep.subr.mxu0 0.0
        %5628 = vmatpush1.msra.mxu0 0.0
        %5629 = vmatprep.subr.mxu0 0.0
        %5630 = vmatpush1.msra.mxu0 0.0
        %5631 = vmatprep.subr.mxu0 0.0
        %5632 = vmatpush1.msra.mxu0 0.0
        %5633 = vmatprep.subr.mxu0 0.0
        %5634 = vmatpush1.msra.mxu0 0.0
        %5635 = vmatprep.subr.mxu0 0.0
        %5636 = vmatpush1.msra.mxu0 0.0
        %5637 = vmatprep.subr.mxu0 0.0
        %5638 = vmatpush1.msra.mxu0 0.0
        %5639 = vmatprep.subr.mxu0 0.0
        %5640 = vmatpush1.msra.mxu0 0.0
        %5641 = vmatprep.subr.mxu0 0.0
        %5642 = vmatpush1.msra.mxu0 0.0
        %5643 = vmatprep.subr.mxu0 0.0
        %5644 = vmatpush1.msra.mxu0 0.0
        %5645 = vmatprep.mubr.f32.mxu0 0.0
        %5646 = vmatmul.mubr.f32.gmra.mrb[0].mxu0 %v5579
        %v5647 = vpop.f32.mrb[0].mxu0
        %v5648 = vadd.f32 0.0, %v5647
        %v5649 = vpop.f32.mrb[0].mxu0
        %5650 = vdwg.mxu0
        %v5651 = vmul.f32 %v5648, %v5462
        %v5652 = vadd.f32 %v5651, 1e-05
        %v5653 = vrsqrt.pop %v5652
        %v5655 = vsel %vm454, %v5653, 0
        %5657 = vmatprep.subr.mxu0 0.0
        %5658 = vmatpush1.msra.mxu0 %v555
        %5659 = vmatprep.subr.mxu0 0.0
        %5660 = vmatpush1.msra.mxu0 0.0
        %5661 = vmatprep.subr.mxu0 0.0
        %5662 = vmatpush1.msra.mxu0 0.0
        %5663 = vmatprep.subr.mxu0 0.0
        %5664 = vmatpush1.msra.mxu0 0.0
        %5665 = vmatprep.subr.mxu0 0.0
        %5666 = vmatpush1.msra.mxu0 0.0
        %5667 = vmatprep.subr.mxu0 0.0
        %5668 = vmatpush1.msra.mxu0 0.0
        %5669 = vmatprep.subr.mxu0 0.0
        %5670 = vmatpush1.msra.mxu0 0.0
        %5671 = vmatprep.subr.mxu0 0.0
        %5672 = vmatpush1.msra.mxu0 0.0
        %5673 = vmatprep.subr.mxu0 0.0
        %5674 = vmatpush1.msra.mxu0 0.0
        %5675 = vmatprep.subr.mxu0 0.0
        %5676 = vmatpush1.msra.mxu0 0.0
        %5677 = vmatprep.subr.mxu0 0.0
        %5678 = vmatpush1.msra.mxu0 0.0
        %5679 = vmatprep.subr.mxu0 0.0
        %5680 = vmatpush1.msra.mxu0 0.0
        %5681 = vmatprep.subr.mxu0 0.0
        %5682 = vmatpush1.msra.mxu0 0.0
        %5683 = vmatprep.subr.mxu0 0.0
        %5684 = vmatpush1.msra.mxu0 0.0
        %5685 = vmatprep.subr.mxu0 0.0
        %5686 = vmatpush1.msra.mxu0 0.0
        %5687 = vmatprep.subr.mxu0 0.0
        %5688 = vmatpush1.msra.mxu0 0.0
        %5689 = vmatprep.subr.mxu0 0.0
        %5690 = vmatpush1.msra.mxu0 0.0
        %5691 = vmatprep.subr.mxu0 0.0
        %5692 = vmatpush1.msra.mxu0 0.0
        %5693 = vmatprep.subr.mxu0 0.0
        %5694 = vmatpush1.msra.mxu0 0.0
        %5695 = vmatprep.subr.mxu0 0.0
        %5696 = vmatpush1.msra.mxu0 0.0
        %5697 = vmatprep.subr.mxu0 0.0
        %5698 = vmatpush1.msra.mxu0 0.0
        %5699 = vmatprep.subr.mxu0 0.0
        %5700 = vmatpush1.msra.mxu0 0.0
        %5701 = vmatprep.subr.mxu0 0.0
        %5702 = vmatpush1.msra.mxu0 0.0
        %5703 = vmatprep.subr.mxu0 0.0
        %5704 = vmatpush1.msra.mxu0 0.0
        %5705 = vmatprep.subr.mxu0 0.0
        %5706 = vmatpush1.msra.mxu0 0.0
        %5707 = vmatprep.subr.mxu0 0.0
        %5708 = vmatpush1.msra.mxu0 0.0
        %5709 = vmatprep.subr.mxu0 0.0
        %5710 = vmatpush1.msra.mxu0 0.0
        %5711 = vmatprep.subr.mxu0 0.0
        %5712 = vmatpush1.msra.mxu0 0.0
        %5713 = vmatprep.subr.mxu0 0.0
        %5714 = vmatpush1.msra.mxu0 0.0
        %5715 = vmatprep.subr.mxu0 0.0
        %5716 = vmatpush1.msra.mxu0 0.0
        %5717 = vmatprep.subr.mxu0 0.0
        %5718 = vmatpush1.msra.mxu0 0.0
        %5719 = vmatprep.subr.mxu0 0.0
        %5720 = vmatpush1.msra.mxu0 0.0
        %5721 = vmatprep.mubr.f32.mxu0 0.0
        %5722 = vmatmul.mubr.f32.gmra.mrb[0].mxu0 %v5655
        %v5723 = vpop.f32.mrb[0].mxu0
        %v5724 = vadd.f32 0.0, %v5723
        %v5725 = vpop.f32.mrb[0].mxu0
        %5726 = vdwg.mxu0
        %v5727 = vlaneseq
        %v5728 = vshrl.u32 %v5727, 7
        %v5729 = vsub.s32 0, %v5728
        %v5730 = vrot.slane %v5724, %v5729
        %v5731 = vmul.f32 %v5541, %v5730
        %v5732 = vmul.f32 %v5542, %v5730
        %v5733 = vmul.f32 %v5543, %v5730
        %v5734 = vmul.f32 %v5544, %v5730
        %v5735 = vmul.f32 %v5545, %v5730
        %v5736 = vmul.f32 %v5546, %v5730
        %v5737 = vmul.f32 %v5547, %v5730
        %v5738 = vmul.f32 %v5548, %v5730
        %v5740 = vlaneseq
        %v5741 = vshrl.u32 %v5740, 7
        %v5742 = vsub.s32 0, %v5741
        %v5743 = vrot.slane %v5365, %v5742
        %v5745 = vmul.f32 %v5731, %v5743
        %v5746 = vmul.f32 %v5732, %v5743
        %v5747 = vmul.f32 %v5733, %v5743
        %v5748 = vmul.f32 %v5734, %v5743
        %v5749 = vmul.f32 %v5735, %v5743
        %v5750 = vmul.f32 %v5736, %v5743
        %v5751 = vmul.f32 %v5737, %v5743
        %v5752 = vmul.f32 %v5738, %v5743
        %v5754 = vlaneseq
        %v5755 = vshrl.u32 %v5754, 7
        %v5756 = vsub.s32 0, %v5755
        %v5757 = vrot.slane %v5367, %v5756
        %v5759 = vadd.f32 %v5745, %v5757
        %v5760 = vadd.f32 %v5746, %v5757
        %v5761 = vadd.f32 %v5747, %v5757
        %v5762 = vadd.f32 %v5748, %v5757
        %v5763 = vadd.f32 %v5749, %v5757
        %v5764 = vadd.f32 %v5750, %v5757
        %v5765 = vadd.f32 %v5751, %v5757
        %v5766 = vadd.f32 %v5752, %v5757
        %v5767 = vxor.u32 %v5759, 2147483648
        %v5768 = vxor.u32 %v5760, 2147483648
        %v5769 = vxor.u32 %v5761, 2147483648
        %v5770 = vxor.u32 %v5762, 2147483648
        %v5771 = vxor.u32 %v5763, 2147483648
        %v5772 = vxor.u32 %v5764, 2147483648
        %v5773 = vxor.u32 %v5765, 2147483648
        %v5774 = vxor.u32 %v5766, 2147483648
        %v5775 = vmul.f32 %v5767, 1.442695
        %v5776 = vpow.pop %v5775
        %v5777 = vmul.f32 %v5768, 1.442695
        %v5778 = vpow.pop %v5777
        %v5779 = vmul.f32 %v5769, 1.442695
        %v5780 = vpow.pop %v5779
        %v5781 = vmul.f32 %v5770, 1.442695
        %v5782 = vpow.pop %v5781
        %v5783 = vmul.f32 %v5771, 1.442695
        %v5784 = vpow.pop %v5783
        %v5785 = vmul.f32 %v5772, 1.442695
        %v5786 = vpow.pop %v5785
        %v5787 = vmul.f32 %v5773, 1.442695
        %v5788 = vpow.pop %v5787
        %v5789 = vmul.f32 %v5774, 1.442695
        %v5790 = vpow.pop %v5789
        %v5791 = vadd.f32 %v5776, 1.0
        %v5792 = vadd.f32 %v5778, 1.0
        %v5793 = vadd.f32 %v5780, 1.0
        %v5794 = vadd.f32 %v5782, 1.0
        %v5795 = vadd.f32 %v5784, 1.0
        %v5796 = vadd.f32 %v5786, 1.0
        %v5797 = vadd.f32 %v5788, 1.0
        %v5798 = vadd.f32 %v5790, 1.0
        %v5799 = vrcp.pop %v5791
        %v5800 = vmul.f32 1.0, %v5799
        %v5801 = vrcp.pop %v5792
        %v5802 = vmul.f32 1.0, %v5801
        %v5803 = vrcp.pop %v5793
        %v5804 = vmul.f32 1.0, %v5803
        %v5805 = vrcp.pop %v5794
        %v5806 = vmul.f32 1.0, %v5805
        %v5807 = vrcp.pop %v5795
        %v5808 = vmul.f32 1.0, %v5807
        %v5809 = vrcp.pop %v5796
        %v5810 = vmul.f32 1.0, %v5809
        %v5811 = vrcp.pop %v5797
        %v5812 = vmul.f32 1.0, %v5811
        %v5813 = vrcp.pop %v5798
        %v5814 = vmul.f32 1.0, %v5813
        %v5815 = vmul.f32 %v5759, %v5800
        %v5816 = vmul.f32 %v5760, %v5802
        %v5817 = vmul.f32 %v5761, %v5804
        %v5818 = vmul.f32 %v5762, %v5806
        %v5819 = vmul.f32 %v5763, %v5808
        %v5820 = vmul.f32 %v5764, %v5810
        %v5821 = vmul.f32 %v5765, %v5812
        %v5822 = vmul.f32 %v5766, %v5814
        %s5823 = scalar_lea.vmem [#allocation3], 16
        %5824 = vst.msk [vmem:[%s5823 + $0x1] sm:$0xff] %vm476, %v5815
        %5825 = vst.msk [vmem:[%s5823 + $0x11] sm:$0xff] %vm476, %v5816
        %5826 = vst.msk [vmem:[%s5823 + $0x21] sm:$0xff] %vm476, %v5817
        %5827 = vst.msk [vmem:[%s5823 + $0x31] sm:$0xff] %vm476, %v5818
        %5828 = vst.msk [vmem:[%s5823 + $0x41] sm:$0xff] %vm476, %v5819
        %5829 = vst.msk [vmem:[%s5823 + $0x51] sm:$0xff] %vm476, %v5820
        %5830 = vst.msk [vmem:[%s5823 + $0x61] sm:$0xff] %vm476, %v5821
        %5831 = vst.msk [vmem:[%s5823 + $0x71] sm:$0xff] %vm476, %v5822
        %v5832 = vld [vmem:[#allocation3] sm:$0xff]
        %v5833 = vld [vmem:[#allocation3 + $0x10] sm:$0xff]
        %v5834 = vld [vmem:[#allocation3 + $0x20] sm:$0xff]
        %v5835 = vld [vmem:[#allocation3 + $0x30] sm:$0xff]
        %v5836 = vld [vmem:[#allocation3 + $0x40] sm:$0xff]
        %v5837 = vld [vmem:[#allocation3 + $0x50] sm:$0xff]
        %v5838 = vld [vmem:[#allocation3 + $0x60] sm:$0xff]
        %v5839 = vld [vmem:[#allocation3 + $0x70] sm:$0xff]
        %v5840 = vld [vmem:[#allocation3 + $0x1] sm:$0xff]
        %v5841 = vld [vmem:[#allocation3 + $0x11] sm:$0xff]
        %v5842 = vld [vmem:[#allocation3 + $0x21] sm:$0xff]
        %v5843 = vld [vmem:[#allocation3 + $0x31] sm:$0xff]
        %v5844 = vld [vmem:[#allocation3 + $0x41] sm:$0xff]
        %v5845 = vld [vmem:[#allocation3 + $0x51] sm:$0xff]
        %v5846 = vld [vmem:[#allocation3 + $0x61] sm:$0xff]
        %v5847 = vld [vmem:[#allocation3 + $0x71] sm:$0xff]
        %v5849 = vsel %vm476, %v5840, 0
        %v5852 = vsel %vm476, %v5841, 0
        %v5855 = vsel %vm476, %v5842, 0
        %v5858 = vsel %vm476, %v5843, 0
        %v5861 = vsel %vm476, %v5844, 0
        %v5864 = vsel %vm476, %v5845, 0
        %v5867 = vsel %vm476, %v5846, 0
        %v5870 = vsel %vm476, %v5847, 0
        %5872 = vmatprep.subr.mxu0 0.0
        %5873 = vmatpush1.msra.mxu0 %v535
        %5874 = vmatprep.subr.mxu0 0.0
        %5875 = vmatpush1.msra.mxu0 %v536
        %5876 = vmatprep.subr.mxu0 0.0
        %5877 = vmatpush1.msra.mxu0 0.0
        %5878 = vmatprep.subr.mxu0 0.0
        %5879 = vmatpush1.msra.mxu0 0.0
        %5880 = vmatprep.subr.mxu0 0.0
        %5881 = vmatpush1.msra.mxu0 0.0
        %5882 = vmatprep.subr.mxu0 0.0
        %5883 = vmatpush1.msra.mxu0 0.0
        %5884 = vmatprep.subr.mxu0 0.0
        %5885 = vmatpush1.msra.mxu0 0.0
        %5886 = vmatprep.subr.mxu0 0.0
        %5887 = vmatpush1.msra.mxu0 0.0
        %5888 = vmatprep.subr.mxu0 0.0
        %5889 = vmatpush1.msra.mxu0 0.0
        %5890 = vmatprep.subr.mxu0 0.0
        %5891 = vmatpush1.msra.mxu0 0.0
        %5892 = vmatprep.subr.mxu0 0.0
        %5893 = vmatpush1.msra.mxu0 0.0
        %5894 = vmatprep.subr.mxu0 0.0
        %5895 = vmatpush1.msra.mxu0 0.0
        %5896 = vmatprep.subr.mxu0 0.0
        %5897 = vmatpush1.msra.mxu0 0.0
        %5898 = vmatprep.subr.mxu0 0.0
        %5899 = vmatpush1.msra.mxu0 0.0
        %5900 = vmatprep.subr.mxu0 0.0
        %5901 = vmatpush1.msra.mxu0 0.0
        %5902 = vmatprep.subr.mxu0 0.0
        %5903 = vmatpush1.msra.mxu0 0.0
        %5904 = vmatprep.subr.mxu0 0.0
        %5905 = vmatpush1.msra.mxu0 0.0
        %5906 = vmatprep.subr.mxu0 0.0
        %5907 = vmatpush1.msra.mxu0 0.0
        %5908 = vmatprep.subr.mxu0 0.0
        %5909 = vmatpush1.msra.mxu0 0.0
        %5910 = vmatprep.subr.mxu0 0.0
        %5911 = vmatpush1.msra.mxu0 0.0
        %5912 = vmatprep.subr.mxu0 0.0
        %5913 = vmatpush1.msra.mxu0 0.0
        %5914 = vmatprep.subr.mxu0 0.0
        %5915 = vmatpush1.msra.mxu0 0.0
        %5916 = vmatprep.subr.mxu0 0.0
        %5917 = vmatpush1.msra.mxu0 0.0
        %5918 = vmatprep.subr.mxu0 0.0
        %5919 = vmatpush1.msra.mxu0 0.0
        %5920 = vmatprep.subr.mxu0 0.0
        %5921 = vmatpush1.msra.mxu0 0.0
        %5922 = vmatprep.subr.mxu0 0.0
        %5923 = vmatpush1.msra.mxu0 0.0
        %5924 = vmatprep.subr.mxu0 0.0
        %5925 = vmatpush1.msra.mxu0 0.0
        %5926 = vmatprep.subr.mxu0 0.0
        %5927 = vmatpush1.msra.mxu0 0.0
        %5928 = vmatprep.subr.mxu0 0.0
        %5929 = vmatpush1.msra.mxu0 0.0
        %5930 = vmatprep.subr.mxu0 0.0
        %5931 = vmatpush1.msra.mxu0 0.0
        %5932 = vmatprep.subr.mxu0 0.0
        %5933 = vmatpush1.msra.mxu0 0.0
        %5934 = vmatprep.subr.mxu0 0.0
        %5935 = vmatpush1.msra.mxu0 0.0
        %5936 = vmatprep.mubr.f32.mxu0 0.0
        %5937 = vmatmul.mubr.f32.gmra.mrb[0].mxu0 %v5849
        %v5938 = vpop.f32.mrb[0].mxu0
        %v5939 = vadd.f32 0.0, %v5938
        %v5940 = vpop.f32.mrb[0].mxu0
        %5941 = vmatprep.mubr.f32.mxu0 0.0
        %5942 = vmatmul.mubr.f32.gmra.mrb[0].mxu0 %v5852
        %v5943 = vpop.f32.mrb[0].mxu0
        %v5944 = vadd.f32 0.0, %v5943
        %v5945 = vpop.f32.mrb[0].mxu0
        %5946 = vmatprep.mubr.f32.mxu0 0.0
        %5947 = vmatmul.mubr.f32.gmra.mrb[0].mxu0 %v5855
        %v5948 = vpop.f32.mrb[0].mxu0
        %v5949 = vadd.f32 0.0, %v5948
        %v5950 = vpop.f32.mrb[0].mxu0
        %5951 = vmatprep.mubr.f32.mxu0 0.0
        %5952 = vmatmul.mubr.f32.gmra.mrb[0].mxu0 %v5858
        %v5953 = vpop.f32.mrb[0].mxu0
        %v5954 = vadd.f32 0.0, %v5953
        %v5955 = vpop.f32.mrb[0].mxu0
        %5956 = vmatprep.mubr.f32.mxu0 0.0
        %5957 = vmatmul.mubr.f32.gmra.mrb[0].mxu0 %v5861
        %v5958 = vpop.f32.mrb[0].mxu0
        %v5959 = vadd.f32 0.0, %v5958
        %v5960 = vpop.f32.mrb[0].mxu0
        %5961 = vmatprep.mubr.f32.mxu0 0.0
        %5962 = vmatmul.mubr.f32.gmra.mrb[0].mxu0 %v5864
        %v5963 = vpop.f32.mrb[0].mxu0
        %v5964 = vadd.f32 0.0, %v5963
        %v5965 = vpop.f32.mrb[0].mxu0
        %5966 = vmatprep.mubr.f32.mxu0 0.0
        %5967 = vmatmul.mubr.f32.gmra.mrb[0].mxu0 %v5867
        %v5968 = vpop.f32.mrb[0].mxu0
        %v5969 = vadd.f32 0.0, %v5968
        %v5970 = vpop.f32.mrb[0].mxu0
        %5971 = vmatprep.mubr.f32.mxu0 0.0
        %5972 = vmatmul.mubr.f32.gmra.mrb[0].mxu0 %v5870
        %v5973 = vpop.f32.mrb[0].mxu0
        %v5974 = vadd.f32 0.0, %v5973
        %v5975 = vpop.f32.mrb[0].mxu0
        %5976 = vdwg.mxu0
        %v5978 = vsel %vm476, %v5832, 0
        %v5981 = vsel %vm476, %v5833, 0
        %v5984 = vsel %vm476, %v5834, 0
        %v5987 = vsel %vm476, %v5835, 0
        %v5990 = vsel %vm476, %v5836, 0
        %v5993 = vsel %vm476, %v5837, 0
        %v5996 = vsel %vm476, %v5838, 0
        %v5999 = vsel %vm476, %v5839, 0
        %6001 = vmatprep.subr.mxu0 0.0
        %6002 = vmatpush1.msra.mxu0 %v533
        %6003 = vmatprep.subr.mxu0 0.0
        %6004 = vmatpush1.msra.mxu0 %v534
        %6005 = vmatprep.subr.mxu0 0.0
        %6006 = vmatpush1.msra.mxu0 0.0
        %6007 = vmatprep.subr.mxu0 0.0
        %6008 = vmatpush1.msra.mxu0 0.0
        %6009 = vmatprep.subr.mxu0 0.0
        %6010 = vmatpush1.msra.mxu0 0.0
        %6011 = vmatprep.subr.mxu0 0.0
        %6012 = vmatpush1.msra.mxu0 0.0
        %6013 = vmatprep.subr.mxu0 0.0
        %6014 = vmatpush1.msra.mxu0 0.0
        %6015 = vmatprep.subr.mxu0 0.0
        %6016 = vmatpush1.msra.mxu0 0.0
        %6017 = vmatprep.subr.mxu0 0.0
        %6018 = vmatpush1.msra.mxu0 0.0
        %6019 = vmatprep.subr.mxu0 0.0
        %6020 = vmatpush1.msra.mxu0 0.0
        %6021 = vmatprep.subr.mxu0 0.0
        %6022 = vmatpush1.msra.mxu0 0.0
        %6023 = vmatprep.subr.mxu0 0.0
        %6024 = vmatpush1.msra.mxu0 0.0
        %6025 = vmatprep.subr.mxu0 0.0
        %6026 = vmatpush1.msra.mxu0 0.0
        %6027 = vmatprep.subr.mxu0 0.0
        %6028 = vmatpush1.msra.mxu0 0.0
        %6029 = vmatprep.subr.mxu0 0.0
        %6030 = vmatpush1.msra.mxu0 0.0
        %6031 = vmatprep.subr.mxu0 0.0
        %6032 = vmatpush1.msra.mxu0 0.0
        %6033 = vmatprep.subr.mxu0 0.0
        %6034 = vmatpush1.msra.mxu0 0.0
        %6035 = vmatprep.subr.mxu0 0.0
        %6036 = vmatpush1.msra.mxu0 0.0
        %6037 = vmatprep.subr.mxu0 0.0
        %6038 = vmatpush1.msra.mxu0 0.0
        %6039 = vmatprep.subr.mxu0 0.0
        %6040 = vmatpush1.msra.mxu0 0.0
        %6041 = vmatprep.subr.mxu0 0.0
        %6042 = vmatpush1.msra.mxu0 0.0
        %6043 = vmatprep.subr.mxu0 0.0
        %6044 = vmatpush1.msra.mxu0 0.0
        %6045 = vmatprep.subr.mxu0 0.0
        %6046 = vmatpush1.msra.mxu0 0.0
        %6047 = vmatprep.subr.mxu0 0.0
        %6048 = vmatpush1.msra.mxu0 0.0
        %6049 = vmatprep.subr.mxu0 0.0
        %6050 = vmatpush1.msra.mxu0 0.0
        %6051 = vmatprep.subr.mxu0 0.0
        %6052 = vmatpush1.msra.mxu0 0.0
        %6053 = vmatprep.subr.mxu0 0.0
        %6054 = vmatpush1.msra.mxu0 0.0
        %6055 = vmatprep.subr.mxu0 0.0
        %6056 = vmatpush1.msra.mxu0 0.0
        %6057 = vmatprep.subr.mxu0 0.0
        %6058 = vmatpush1.msra.mxu0 0.0
        %6059 = vmatprep.subr.mxu0 0.0
        %6060 = vmatpush1.msra.mxu0 0.0
        %6061 = vmatprep.subr.mxu0 0.0
        %6062 = vmatpush1.msra.mxu0 0.0
        %6063 = vmatprep.subr.mxu0 0.0
        %6064 = vmatpush1.msra.mxu0 0.0
        %6065 = vmatprep.mubr.f32.mxu0 0.0
        %6066 = vmatmul.mubr.f32.gmra.mrb[0].mxu0 %v5978
        %v6067 = vpop.f32.mrb[0].mxu0
        %v6068 = vadd.f32 %v5939, %v6067
        %v6069 = vpop.f32.mrb[0].mxu0
        %6070 = vmatprep.mubr.f32.mxu0 0.0
        %6071 = vmatmul.mubr.f32.gmra.mrb[0].mxu0 %v5981
        %v6072 = vpop.f32.mrb[0].mxu0
        %v6073 = vadd.f32 %v5944, %v6072
        %v6074 = vpop.f32.mrb[0].mxu0
        %6075 = vmatprep.mubr.f32.mxu0 0.0
        %6076 = vmatmul.mubr.f32.gmra.mrb[0].mxu0 %v5984
        %v6077 = vpop.f32.mrb[0].mxu0
        %v6078 = vadd.f32 %v5949, %v6077
        %v6079 = vpop.f32.mrb[0].mxu0
        %6080 = vmatprep.mubr.f32.mxu0 0.0
        %6081 = vmatmul.mubr.f32.gmra.mrb[0].mxu0 %v5987
        %v6082 = vpop.f32.mrb[0].mxu0
        %v6083 = vadd.f32 %v5954, %v6082
        %v6084 = vpop.f32.mrb[0].mxu0
        %6085 = vmatprep.mubr.f32.mxu0 0.0
        %6086 = vmatmul.mubr.f32.gmra.mrb[0].mxu0 %v5990
        %v6087 = vpop.f32.mrb[0].mxu0
        %v6088 = vadd.f32 %v5959, %v6087
        %v6089 = vpop.f32.mrb[0].mxu0
        %6090 = vmatprep.mubr.f32.mxu0 0.0
        %6091 = vmatmul.mubr.f32.gmra.mrb[0].mxu0 %v5993
        %v6092 = vpop.f32.mrb[0].mxu0
        %v6093 = vadd.f32 %v5964, %v6092
        %v6094 = vpop.f32.mrb[0].mxu0
        %6095 = vmatprep.mubr.f32.mxu0 0.0
        %6096 = vmatmul.mubr.f32.gmra.mrb[0].mxu0 %v5996
        %v6097 = vpop.f32.mrb[0].mxu0
        %v6098 = vadd.f32 %v5969, %v6097
        %v6099 = vpop.f32.mrb[0].mxu0
        %6100 = vmatprep.mubr.f32.mxu0 0.0
        %6101 = vmatmul.mubr.f32.gmra.mrb[0].mxu0 %v5999
        %v6102 = vpop.f32.mrb[0].mxu0
        %v6103 = vadd.f32 %v5974, %v6102
        %v6104 = vpop.f32.mrb[0].mxu0
        %6105 = vdwg.mxu0
        %v6106 = vld [vmem:[#allocation3 + $0x2] sm:$0xff]
        %v6107 = vld [vmem:[#allocation3 + $0x12] sm:$0xff]
        %v6108 = vld [vmem:[#allocation3 + $0x22] sm:$0xff]
        %v6109 = vld [vmem:[#allocation3 + $0x32] sm:$0xff]
        %v6110 = vld [vmem:[#allocation3 + $0x42] sm:$0xff]
        %v6111 = vld [vmem:[#allocation3 + $0x52] sm:$0xff]
        %v6112 = vld [vmem:[#allocation3 + $0x62] sm:$0xff]
        %v6113 = vld [vmem:[#allocation3 + $0x72] sm:$0xff]
        %v6115 = vsel %vm476, %v6106, 0
        %v6118 = vsel %vm476, %v6107, 0
        %v6121 = vsel %vm476, %v6108, 0
        %v6124 = vsel %vm476, %v6109, 0
        %v6127 = vsel %vm476, %v6110, 0
        %v6130 = vsel %vm476, %v6111, 0
        %v6133 = vsel %vm476, %v6112, 0
        %v6136 = vsel %vm476, %v6113, 0
        %6138 = vmatprep.subr.mxu0 0.0
        %6139 = vmatpush1.msra.mxu0 %v537
        %6140 = vmatprep.subr.mxu0 0.0
        %6141 = vmatpush1.msra.mxu0 %v538
        %6142 = vmatprep.subr.mxu0 0.0
        %6143 = vmatpush1.msra.mxu0 0.0
        %6144 = vmatprep.subr.mxu0 0.0
        %6145 = vmatpush1.msra.mxu0 0.0
        %6146 = vmatprep.subr.mxu0 0.0
        %6147 = vmatpush1.msra.mxu0 0.0
        %6148 = vmatprep.subr.mxu0 0.0
        %6149 = vmatpush1.msra.mxu0 0.0
        %6150 = vmatprep.subr.mxu0 0.0
        %6151 = vmatpush1.msra.mxu0 0.0
        %6152 = vmatprep.subr.mxu0 0.0
        %6153 = vmatpush1.msra.mxu0 0.0
        %6154 = vmatprep.subr.mxu0 0.0
        %6155 = vmatpush1.msra.mxu0 0.0
        %6156 = vmatprep.subr.mxu0 0.0
        %6157 = vmatpush1.msra.mxu0 0.0
        %6158 = vmatprep.subr.mxu0 0.0
        %6159 = vmatpush1.msra.mxu0 0.0
        %6160 = vmatprep.subr.mxu0 0.0
        %6161 = vmatpush1.msra.mxu0 0.0
        %6162 = vmatprep.subr.mxu0 0.0
        %6163 = vmatpush1.msra.mxu0 0.0
        %6164 = vmatprep.subr.mxu0 0.0
        %6165 = vmatpush1.msra.mxu0 0.0
        %6166 = vmatprep.subr.mxu0 0.0
        %6167 = vmatpush1.msra.mxu0 0.0
        %6168 = vmatprep.subr.mxu0 0.0
        %6169 = vmatpush1.msra.mxu0 0.0
        %6170 = vmatprep.subr.mxu0 0.0
        %6171 = vmatpush1.msra.mxu0 0.0
        %6172 = vmatprep.subr.mxu0 0.0
        %6173 = vmatpush1.msra.mxu0 0.0
        %6174 = vmatprep.subr.mxu0 0.0
        %6175 = vmatpush1.msra.mxu0 0.0
        %6176 = vmatprep.subr.mxu0 0.0
        %6177 = vmatpush1.msra.mxu0 0.0
        %6178 = vmatprep.subr.mxu0 0.0
        %6179 = vmatpush1.msra.mxu0 0.0
        %6180 = vmatprep.subr.mxu0 0.0
        %6181 = vmatpush1.msra.mxu0 0.0
        %6182 = vmatprep.subr.mxu0 0.0
        %6183 = vmatpush1.msra.mxu0 0.0
        %6184 = vmatprep.subr.mxu0 0.0
        %6185 = vmatpush1.msra.mxu0 0.0
        %6186 = vmatprep.subr.mxu0 0.0
        %6187 = vmatpush1.msra.mxu0 0.0
        %6188 = vmatprep.subr.mxu0 0.0
        %6189 = vmatpush1.msra.mxu0 0.0
        %6190 = vmatprep.subr.mxu0 0.0
        %6191 = vmatpush1.msra.mxu0 0.0
        %6192 = vmatprep.subr.mxu0 0.0
        %6193 = vmatpush1.msra.mxu0 0.0
        %6194 = vmatprep.subr.mxu0 0.0
        %6195 = vmatpush1.msra.mxu0 0.0
        %6196 = vmatprep.subr.mxu0 0.0
        %6197 = vmatpush1.msra.mxu0 0.0
        %6198 = vmatprep.subr.mxu0 0.0
        %6199 = vmatpush1.msra.mxu0 0.0
        %6200 = vmatprep.subr.mxu0 0.0
        %6201 = vmatpush1.msra.mxu0 0.0
        %6202 = vmatprep.mubr.f32.mxu0 0.0
        %6203 = vmatmul.mubr.f32.gmra.mrb[0].mxu0 %v6115
        %v6204 = vpop.f32.mrb[0].mxu0
        %v6205 = vadd.f32 0.0, %v6204
        %v6206 = vpop.f32.mrb[0].mxu0
        %6207 = vmatprep.mubr.f32.mxu0 0.0
        %6208 = vmatmul.mubr.f32.gmra.mrb[0].mxu0 %v6118
        %v6209 = vpop.f32.mrb[0].mxu0
        %v6210 = vadd.f32 0.0, %v6209
        %v6211 = vpop.f32.mrb[0].mxu0
        %6212 = vmatprep.mubr.f32.mxu0 0.0
        %6213 = vmatmul.mubr.f32.gmra.mrb[0].mxu0 %v6121
        %v6214 = vpop.f32.mrb[0].mxu0
        %v6215 = vadd.f32 0.0, %v6214
        %v6216 = vpop.f32.mrb[0].mxu0
        %6217 = vmatprep.mubr.f32.mxu0 0.0
        %6218 = vmatmul.mubr.f32.gmra.mrb[0].mxu0 %v6124
        %v6219 = vpop.f32.mrb[0].mxu0
        %v6220 = vadd.f32 0.0, %v6219
        %v6221 = vpop.f32.mrb[0].mxu0
        %6222 = vmatprep.mubr.f32.mxu0 0.0
        %6223 = vmatmul.mubr.f32.gmra.mrb[0].mxu0 %v6127
        %v6224 = vpop.f32.mrb[0].mxu0
        %v6225 = vadd.f32 0.0, %v6224
        %v6226 = vpop.f32.mrb[0].mxu0
        %6227 = vmatprep.mubr.f32.mxu0 0.0
        %6228 = vmatmul.mubr.f32.gmra.mrb[0].mxu0 %v6130
        %v6229 = vpop.f32.mrb[0].mxu0
        %v6230 = vadd.f32 0.0, %v6229
        %v6231 = vpop.f32.mrb[0].mxu0
        %6232 = vmatprep.mubr.f32.mxu0 0.0
        %6233 = vmatmul.mubr.f32.gmra.mrb[0].mxu0 %v6133
        %v6234 = vpop.f32.mrb[0].mxu0
        %v6235 = vadd.f32 0.0, %v6234
        %v6236 = vpop.f32.mrb[0].mxu0
        %6237 = vmatprep.mubr.f32.mxu0 0.0
        %6238 = vmatmul.mubr.f32.gmra.mrb[0].mxu0 %v6136
        %v6239 = vpop.f32.mrb[0].mxu0
        %v6240 = vadd.f32 0.0, %v6239
        %v6241 = vpop.f32.mrb[0].mxu0
        %6242 = vdwg.mxu0
        %v6243 = vadd.f32 %v6068, %v6205
        %v6244 = vadd.f32 %v6073, %v6210
        %v6245 = vadd.f32 %v6078, %v6215
        %v6246 = vadd.f32 %v6083, %v6220
        %v6247 = vadd.f32 %v6088, %v6225
        %v6248 = vadd.f32 %v6093, %v6230
        %v6249 = vadd.f32 %v6098, %v6235
        %v6250 = vadd.f32 %v6103, %v6240
        %v6251 = vld [vmem:[%s5823] sm:$0xff]
        %v6252 = vld [vmem:[%s5823 + $0x10] sm:$0xff]
        %v6253 = vld [vmem:[%s5823 + $0x20] sm:$0xff]
        %v6254 = vld [vmem:[%s5823 + $0x30] sm:$0xff]
        %v6255 = vld [vmem:[%s5823 + $0x40] sm:$0xff]
        %v6256 = vld [vmem:[%s5823 + $0x50] sm:$0xff]
        %v6257 = vld [vmem:[%s5823 + $0x60] sm:$0xff]
        %v6258 = vld [vmem:[%s5823 + $0x70] sm:$0xff]
        %v6260 = vsel %vm476, %v6251, 0
        %v6263 = vsel %vm476, %v6252, 0
        %v6266 = vsel %vm476, %v6253, 0
        %v6269 = vsel %vm476, %v6254, 0
        %v6272 = vsel %vm476, %v6255, 0
        %v6275 = vsel %vm476, %v6256, 0
        %v6278 = vsel %vm476, %v6257, 0
        %v6281 = vsel %vm476, %v6258, 0
        %6283 = vmatprep.subr.mxu0 0.0
        %6284 = vmatpush1.msra.mxu0 %v539
        %6285 = vmatprep.subr.mxu0 0.0
        %6286 = vmatpush1.msra.mxu0 %v540
        %6287 = vmatprep.subr.mxu0 0.0
        %6288 = vmatpush1.msra.mxu0 0.0
        %6289 = vmatprep.subr.mxu0 0.0
        %6290 = vmatpush1.msra.mxu0 0.0
        %6291 = vmatprep.subr.mxu0 0.0
        %6292 = vmatpush1.msra.mxu0 0.0
        %6293 = vmatprep.subr.mxu0 0.0
        %6294 = vmatpush1.msra.mxu0 0.0
        %6295 = vmatprep.subr.mxu0 0.0
        %6296 = vmatpush1.msra.mxu0 0.0
        %6297 = vmatprep.subr.mxu0 0.0
        %6298 = vmatpush1.msra.mxu0 0.0
        %6299 = vmatprep.subr.mxu0 0.0
        %6300 = vmatpush1.msra.mxu0 0.0
        %6301 = vmatprep.subr.mxu0 0.0
        %6302 = vmatpush1.msra.mxu0 0.0
        %6303 = vmatprep.subr.mxu0 0.0
        %6304 = vmatpush1.msra.mxu0 0.0
        %6305 = vmatprep.subr.mxu0 0.0
        %6306 = vmatpush1.msra.mxu0 0.0
        %6307 = vmatprep.subr.mxu0 0.0
        %6308 = vmatpush1.msra.mxu0 0.0
        %6309 = vmatprep.subr.mxu0 0.0
        %6310 = vmatpush1.msra.mxu0 0.0
        %6311 = vmatprep.subr.mxu0 0.0
        %6312 = vmatpush1.msra.mxu0 0.0
        %6313 = vmatprep.subr.mxu0 0.0
        %6314 = vmatpush1.msra.mxu0 0.0
        %6315 = vmatprep.subr.mxu0 0.0
        %6316 = vmatpush1.msra.mxu0 0.0
        %6317 = vmatprep.subr.mxu0 0.0
        %6318 = vmatpush1.msra.mxu0 0.0
        %6319 = vmatprep.subr.mxu0 0.0
        %6320 = vmatpush1.msra.mxu0 0.0
        %6321 = vmatprep.subr.mxu0 0.0
        %6322 = vmatpush1.msra.mxu0 0.0
        %6323 = vmatprep.subr.mxu0 0.0
        %6324 = vmatpush1.msra.mxu0 0.0
        %6325 = vmatprep.subr.mxu0 0.0
        %6326 = vmatpush1.msra.mxu0 0.0
        %6327 = vmatprep.subr.mxu0 0.0
        %6328 = vmatpush1.msra.mxu0 0.0
        %6329 = vmatprep.subr.mxu0 0.0
        %6330 = vmatpush1.msra.mxu0 0.0
        %6331 = vmatprep.subr.mxu0 0.0
        %6332 = vmatpush1.msra.mxu0 0.0
        %6333 = vmatprep.subr.mxu0 0.0
        %6334 = vmatpush1.msra.mxu0 0.0
        %6335 = vmatprep.subr.mxu0 0.0
        %6336 = vmatpush1.msra.mxu0 0.0
        %6337 = vmatprep.subr.mxu0 0.0
        %6338 = vmatpush1.msra.mxu0 0.0
        %6339 = vmatprep.subr.mxu0 0.0
        %6340 = vmatpush1.msra.mxu0 0.0
        %6341 = vmatprep.subr.mxu0 0.0
        %6342 = vmatpush1.msra.mxu0 0.0
        %6343 = vmatprep.subr.mxu0 0.0
        %6344 = vmatpush1.msra.mxu0 0.0
        %6345 = vmatprep.subr.mxu0 0.0
        %6346 = vmatpush1.msra.mxu0 0.0
        %6347 = vmatprep.mubr.f32.mxu0 0.0
        %6348 = vmatmul.mubr.f32.gmra.mrb[0].mxu0 %v6260
        %v6349 = vpop.f32.mrb[0].mxu0
        %v6350 = vadd.f32 0.0, %v6349
        %v6351 = vpop.f32.mrb[0].mxu0
        %6352 = vmatprep.mubr.f32.mxu0 0.0
        %6353 = vmatmul.mubr.f32.gmra.mrb[0].mxu0 %v6263
        %v6354 = vpop.f32.mrb[0].mxu0
        %v6355 = vadd.f32 0.0, %v6354
        %v6356 = vpop.f32.mrb[0].mxu0
        %6357 = vmatprep.mubr.f32.mxu0 0.0
        %6358 = vmatmul.mubr.f32.gmra.mrb[0].mxu0 %v6266
        %v6359 = vpop.f32.mrb[0].mxu0
        %v6360 = vadd.f32 0.0, %v6359
        %v6361 = vpop.f32.mrb[0].mxu0
        %6362 = vmatprep.mubr.f32.mxu0 0.0
        %6363 = vmatmul.mubr.f32.gmra.mrb[0].mxu0 %v6269
        %v6364 = vpop.f32.mrb[0].mxu0
        %v6365 = vadd.f32 0.0, %v6364
        %v6366 = vpop.f32.mrb[0].mxu0
        %6367 = vmatprep.mubr.f32.mxu0 0.0
        %6368 = vmatmul.mubr.f32.gmra.mrb[0].mxu0 %v6272
        %v6369 = vpop.f32.mrb[0].mxu0
        %v6370 = vadd.f32 0.0, %v6369
        %v6371 = vpop.f32.mrb[0].mxu0
        %6372 = vmatprep.mubr.f32.mxu0 0.0
        %6373 = vmatmul.mubr.f32.gmra.mrb[0].mxu0 %v6275
        %v6374 = vpop.f32.mrb[0].mxu0
        %v6375 = vadd.f32 0.0, %v6374
        %v6376 = vpop.f32.mrb[0].mxu0
        %6377 = vmatprep.mubr.f32.mxu0 0.0
        %6378 = vmatmul.mubr.f32.gmra.mrb[0].mxu0 %v6278
        %v6379 = vpop.f32.mrb[0].mxu0
        %v6380 = vadd.f32 0.0, %v6379
        %v6381 = vpop.f32.mrb[0].mxu0
        %6382 = vmatprep.mubr.f32.mxu0 0.0
        %6383 = vmatmul.mubr.f32.gmra.mrb[0].mxu0 %v6281
        %v6384 = vpop.f32.mrb[0].mxu0
        %v6385 = vadd.f32 0.0, %v6384
        %v6386 = vpop.f32.mrb[0].mxu0
        %6387 = vdwg.mxu0
        %v6388 = vadd.f32 %v6243, %v6350
        %v6389 = vadd.f32 %v6244, %v6355
        %v6390 = vadd.f32 %v6245, %v6360
        %v6391 = vadd.f32 %v6246, %v6365
        %v6392 = vadd.f32 %v6247, %v6370
        %v6393 = vadd.f32 %v6248, %v6375
        %v6394 = vadd.f32 %v6249, %v6380
        %v6395 = vadd.f32 %v6250, %v6385
        %v6396 = vld [vmem:[%s5823 + $0x1] sm:$0xff]
        %v6397 = vld [vmem:[%s5823 + $0x11] sm:$0xff]
        %v6398 = vld [vmem:[%s5823 + $0x21] sm:$0xff]
        %v6399 = vld [vmem:[%s5823 + $0x31] sm:$0xff]
        %v6400 = vld [vmem:[%s5823 + $0x41] sm:$0xff]
        %v6401 = vld [vmem:[%s5823 + $0x51] sm:$0xff]
        %v6402 = vld [vmem:[%s5823 + $0x61] sm:$0xff]
        %v6403 = vld [vmem:[%s5823 + $0x71] sm:$0xff]
        %v6405 = vsel %vm476, %v6396, 0
        %v6408 = vsel %vm476, %v6397, 0
        %v6411 = vsel %vm476, %v6398, 0
        %v6414 = vsel %vm476, %v6399, 0
        %v6417 = vsel %vm476, %v6400, 0
        %v6420 = vsel %vm476, %v6401, 0
        %v6423 = vsel %vm476, %v6402, 0
        %v6426 = vsel %vm476, %v6403, 0
        %6428 = vmatprep.subr.mxu0 0.0
        %6429 = vmatpush1.msra.mxu0 %v541
        %6430 = vmatprep.subr.mxu0 0.0
        %6431 = vmatpush1.msra.mxu0 %v542
        %6432 = vmatprep.subr.mxu0 0.0
        %6433 = vmatpush1.msra.mxu0 0.0
        %6434 = vmatprep.subr.mxu0 0.0
        %6435 = vmatpush1.msra.mxu0 0.0
        %6436 = vmatprep.subr.mxu0 0.0
        %6437 = vmatpush1.msra.mxu0 0.0
        %6438 = vmatprep.subr.mxu0 0.0
        %6439 = vmatpush1.msra.mxu0 0.0
        %6440 = vmatprep.subr.mxu0 0.0
        %6441 = vmatpush1.msra.mxu0 0.0
        %6442 = vmatprep.subr.mxu0 0.0
        %6443 = vmatpush1.msra.mxu0 0.0
        %6444 = vmatprep.subr.mxu0 0.0
        %6445 = vmatpush1.msra.mxu0 0.0
        %6446 = vmatprep.subr.mxu0 0.0
        %6447 = vmatpush1.msra.mxu0 0.0
        %6448 = vmatprep.subr.mxu0 0.0
        %6449 = vmatpush1.msra.mxu0 0.0
        %6450 = vmatprep.subr.mxu0 0.0
        %6451 = vmatpush1.msra.mxu0 0.0
        %6452 = vmatprep.subr.mxu0 0.0
        %6453 = vmatpush1.msra.mxu0 0.0
        %6454 = vmatprep.subr.mxu0 0.0
        %6455 = vmatpush1.msra.mxu0 0.0
        %6456 = vmatprep.subr.mxu0 0.0
        %6457 = vmatpush1.msra.mxu0 0.0
        %6458 = vmatprep.subr.mxu0 0.0
        %6459 = vmatpush1.msra.mxu0 0.0
        %6460 = vmatprep.subr.mxu0 0.0
        %6461 = vmatpush1.msra.mxu0 0.0
        %6462 = vmatprep.subr.mxu0 0.0
        %6463 = vmatpush1.msra.mxu0 0.0
        %6464 = vmatprep.subr.mxu0 0.0
        %6465 = vmatpush1.msra.mxu0 0.0
        %6466 = vmatprep.subr.mxu0 0.0
        %6467 = vmatpush1.msra.mxu0 0.0
        %6468 = vmatprep.subr.mxu0 0.0
        %6469 = vmatpush1.msra.mxu0 0.0
        %6470 = vmatprep.subr.mxu0 0.0
        %6471 = vmatpush1.msra.mxu0 0.0
        %6472 = vmatprep.subr.mxu0 0.0
        %6473 = vmatpush1.msra.mxu0 0.0
        %6474 = vmatprep.subr.mxu0 0.0
        %6475 = vmatpush1.msra.mxu0 0.0
        %6476 = vmatprep.subr.mxu0 0.0
        %6477 = vmatpush1.msra.mxu0 0.0
        %6478 = vmatprep.subr.mxu0 0.0
        %6479 = vmatpush1.msra.mxu0 0.0
        %6480 = vmatprep.subr.mxu0 0.0
        %6481 = vmatpush1.msra.mxu0 0.0
        %6482 = vmatprep.subr.mxu0 0.0
        %6483 = vmatpush1.msra.mxu0 0.0
        %6484 = vmatprep.subr.mxu0 0.0
        %6485 = vmatpush1.msra.mxu0 0.0
        %6486 = vmatprep.subr.mxu0 0.0
        %6487 = vmatpush1.msra.mxu0 0.0
        %6488 = vmatprep.subr.mxu0 0.0
        %6489 = vmatpush1.msra.mxu0 0.0
        %6490 = vmatprep.subr.mxu0 0.0
        %6491 = vmatpush1.msra.mxu0 0.0
        %6492 = vmatprep.mubr.f32.mxu0 0.0
        %6493 = vmatmul.mubr.f32.gmra.mrb[0].mxu0 %v6405
        %v6494 = vpop.f32.mrb[0].mxu0
        %v6495 = vadd.f32 0.0, %v6494
        %v6496 = vpop.f32.mrb[0].mxu0
        %6497 = vmatprep.mubr.f32.mxu0 0.0
        %6498 = vmatmul.mubr.f32.gmra.mrb[0].mxu0 %v6408
        %v6499 = vpop.f32.mrb[0].mxu0
        %v6500 = vadd.f32 0.0, %v6499
        %v6501 = vpop.f32.mrb[0].mxu0
        %6502 = vmatprep.mubr.f32.mxu0 0.0
        %6503 = vmatmul.mubr.f32.gmra.mrb[0].mxu0 %v6411
        %v6504 = vpop.f32.mrb[0].mxu0
        %v6505 = vadd.f32 0.0, %v6504
        %v6506 = vpop.f32.mrb[0].mxu0
        %6507 = vmatprep.mubr.f32.mxu0 0.0
        %6508 = vmatmul.mubr.f32.gmra.mrb[0].mxu0 %v6414
        %v6509 = vpop.f32.mrb[0].mxu0
        %v6510 = vadd.f32 0.0, %v6509
        %v6511 = vpop.f32.mrb[0].mxu0
        %6512 = vmatprep.mubr.f32.mxu0 0.0
        %6513 = vmatmul.mubr.f32.gmra.mrb[0].mxu0 %v6417
        %v6514 = vpop.f32.mrb[0].mxu0
        %v6515 = vadd.f32 0.0, %v6514
        %v6516 = vpop.f32.mrb[0].mxu0
        %6517 = vmatprep.mubr.f32.mxu0 0.0
        %6518 = vmatmul.mubr.f32.gmra.mrb[0].mxu0 %v6420
        %v6519 = vpop.f32.mrb[0].mxu0
        %v6520 = vadd.f32 0.0, %v6519
        %v6521 = vpop.f32.mrb[0].mxu0
        %6522 = vmatprep.mubr.f32.mxu0 0.0
        %6523 = vmatmul.mubr.f32.gmra.mrb[0].mxu0 %v6423
        %v6524 = vpop.f32.mrb[0].mxu0
        %v6525 = vadd.f32 0.0, %v6524
        %v6526 = vpop.f32.mrb[0].mxu0
        %6527 = vmatprep.mubr.f32.mxu0 0.0
        %6528 = vmatmul.mubr.f32.gmra.mrb[0].mxu0 %v6426
        %v6529 = vpop.f32.mrb[0].mxu0
        %v6530 = vadd.f32 0.0, %v6529
        %v6531 = vpop.f32.mrb[0].mxu0
        %6532 = vdwg.mxu0
        %v6533 = vadd.f32 %v6388, %v6495
        %v6534 = vadd.f32 %v6389, %v6500
        %v6535 = vadd.f32 %v6390, %v6505
        %v6536 = vadd.f32 %v6391, %v6510
        %v6537 = vadd.f32 %v6392, %v6515
        %v6538 = vadd.f32 %v6393, %v6520
        %v6539 = vadd.f32 %v6394, %v6525
        %v6540 = vadd.f32 %v6395, %v6530
        %v6541 = vld [vmem:[%s5823 + $0x2] sm:$0xff]
        %v6542 = vld [vmem:[%s5823 + $0x12] sm:$0xff]
        %v6543 = vld [vmem:[%s5823 + $0x22] sm:$0xff]
        %v6544 = vld [vmem:[%s5823 + $0x32] sm:$0xff]
        %v6545 = vld [vmem:[%s5823 + $0x42] sm:$0xff]
        %v6546 = vld [vmem:[%s5823 + $0x52] sm:$0xff]
        %v6547 = vld [vmem:[%s5823 + $0x62] sm:$0xff]
        %v6548 = vld [vmem:[%s5823 + $0x72] sm:$0xff]
        %v6550 = vsel %vm476, %v6541, 0
        %v6553 = vsel %vm476, %v6542, 0
        %v6556 = vsel %vm476, %v6543, 0
        %v6559 = vsel %vm476, %v6544, 0
        %v6562 = vsel %vm476, %v6545, 0
        %v6565 = vsel %vm476, %v6546, 0
        %v6568 = vsel %vm476, %v6547, 0
        %v6571 = vsel %vm476, %v6548, 0
        %6573 = vmatprep.subr.mxu0 0.0
        %6574 = vmatpush1.msra.mxu0 %v543
        %6575 = vmatprep.subr.mxu0 0.0
        %6576 = vmatpush1.msra.mxu0 %v544
        %6577 = vmatprep.subr.mxu0 0.0
        %6578 = vmatpush1.msra.mxu0 0.0
        %6579 = vmatprep.subr.mxu0 0.0
        %6580 = vmatpush1.msra.mxu0 0.0
        %6581 = vmatprep.subr.mxu0 0.0
        %6582 = vmatpush1.msra.mxu0 0.0
        %6583 = vmatprep.subr.mxu0 0.0
        %6584 = vmatpush1.msra.mxu0 0.0
        %6585 = vmatprep.subr.mxu0 0.0
        %6586 = vmatpush1.msra.mxu0 0.0
        %6587 = vmatprep.subr.mxu0 0.0
        %6588 = vmatpush1.msra.mxu0 0.0
        %6589 = vmatprep.subr.mxu0 0.0
        %6590 = vmatpush1.msra.mxu0 0.0
        %6591 = vmatprep.subr.mxu0 0.0
        %6592 = vmatpush1.msra.mxu0 0.0
        %6593 = vmatprep.subr.mxu0 0.0
        %6594 = vmatpush1.msra.mxu0 0.0
        %6595 = vmatprep.subr.mxu0 0.0
        %6596 = vmatpush1.msra.mxu0 0.0
        %6597 = vmatprep.subr.mxu0 0.0
        %6598 = vmatpush1.msra.mxu0 0.0
        %6599 = vmatprep.subr.mxu0 0.0
        %6600 = vmatpush1.msra.mxu0 0.0
        %6601 = vmatprep.subr.mxu0 0.0
        %6602 = vmatpush1.msra.mxu0 0.0
        %6603 = vmatprep.subr.mxu0 0.0
        %6604 = vmatpush1.msra.mxu0 0.0
        %6605 = vmatprep.subr.mxu0 0.0
        %6606 = vmatpush1.msra.mxu0 0.0
        %6607 = vmatprep.subr.mxu0 0.0
        %6608 = vmatpush1.msra.mxu0 0.0
        %6609 = vmatprep.subr.mxu0 0.0
        %6610 = vmatpush1.msra.mxu0 0.0
        %6611 = vmatprep.subr.mxu0 0.0
        %6612 = vmatpush1.msra.mxu0 0.0
        %6613 = vmatprep.subr.mxu0 0.0
        %6614 = vmatpush1.msra.mxu0 0.0
        %6615 = vmatprep.subr.mxu0 0.0
        %6616 = vmatpush1.msra.mxu0 0.0
        %6617 = vmatprep.subr.mxu0 0.0
        %6618 = vmatpush1.msra.mxu0 0.0
        %6619 = vmatprep.subr.mxu0 0.0
        %6620 = vmatpush1.msra.mxu0 0.0
        %6621 = vmatprep.subr.mxu0 0.0
        %6622 = vmatpush1.msra.mxu0 0.0
        %6623 = vmatprep.subr.mxu0 0.0
        %6624 = vmatpush1.msra.mxu0 0.0
        %6625 = vmatprep.subr.mxu0 0.0
        %6626 = vmatpush1.msra.mxu0 0.0
        %6627 = vmatprep.subr.mxu0 0.0
        %6628 = vmatpush1.msra.mxu0 0.0
        %6629 = vmatprep.subr.mxu0 0.0
        %6630 = vmatpush1.msra.mxu0 0.0
        %6631 = vmatprep.subr.mxu0 0.0
        %6632 = vmatpush1.msra.mxu0 0.0
        %6633 = vmatprep.subr.mxu0 0.0
        %6634 = vmatpush1.msra.mxu0 0.0
        %6635 = vmatprep.subr.mxu0 0.0
        %6636 = vmatpush1.msra.mxu0 0.0
        %6637 = vmatprep.mubr.f32.mxu0 0.0
        %6638 = vmatmul.mubr.f32.gmra.mrb[0].mxu0 %v6550
        %v6639 = vpop.f32.mrb[0].mxu0
        %v6640 = vadd.f32 0.0, %v6639
        %v6641 = vpop.f32.mrb[0].mxu0
        %6642 = vmatprep.mubr.f32.mxu0 0.0
        %6643 = vmatmul.mubr.f32.gmra.mrb[0].mxu0 %v6553
        %v6644 = vpop.f32.mrb[0].mxu0
        %v6645 = vadd.f32 0.0, %v6644
        %v6646 = vpop.f32.mrb[0].mxu0
        %6647 = vmatprep.mubr.f32.mxu0 0.0
        %6648 = vmatmul.mubr.f32.gmra.mrb[0].mxu0 %v6556
        %v6649 = vpop.f32.mrb[0].mxu0
        %v6650 = vadd.f32 0.0, %v6649
        %v6651 = vpop.f32.mrb[0].mxu0
        %6652 = vmatprep.mubr.f32.mxu0 0.0
        %6653 = vmatmul.mubr.f32.gmra.mrb[0].mxu0 %v6559
        %v6654 = vpop.f32.mrb[0].mxu0
        %v6655 = vadd.f32 0.0, %v6654
        %v6656 = vpop.f32.mrb[0].mxu0
        %6657 = vmatprep.mubr.f32.mxu0 0.0
        %6658 = vmatmul.mubr.f32.gmra.mrb[0].mxu0 %v6562
        %v6659 = vpop.f32.mrb[0].mxu0
        %v6660 = vadd.f32 0.0, %v6659
        %v6661 = vpop.f32.mrb[0].mxu0
        %6662 = vmatprep.mubr.f32.mxu0 0.0
        %6663 = vmatmul.mubr.f32.gmra.mrb[0].mxu0 %v6565
        %v6664 = vpop.f32.mrb[0].mxu0
        %v6665 = vadd.f32 0.0, %v6664
        %v6666 = vpop.f32.mrb[0].mxu0
        %6667 = vmatprep.mubr.f32.mxu0 0.0
        %6668 = vmatmul.mubr.f32.gmra.mrb[0].mxu0 %v6568
        %v6669 = vpop.f32.mrb[0].mxu0
        %v6670 = vadd.f32 0.0, %v6669
        %v6671 = vpop.f32.mrb[0].mxu0
        %6672 = vmatprep.mubr.f32.mxu0 0.0
        %6673 = vmatmul.mubr.f32.gmra.mrb[0].mxu0 %v6571
        %v6674 = vpop.f32.mrb[0].mxu0
        %v6675 = vadd.f32 0.0, %v6674
        %v6676 = vpop.f32.mrb[0].mxu0
        %6677 = vdwg.mxu0
        %v6678 = vadd.f32 %v6533, %v6640
        %v6679 = vadd.f32 %v6534, %v6645
        %v6680 = vadd.f32 %v6535, %v6650
        %v6681 = vadd.f32 %v6536, %v6655
        %v6682 = vadd.f32 %v6537, %v6660
        %v6683 = vadd.f32 %v6538, %v6665
        %v6684 = vadd.f32 %v6539, %v6670
        %v6685 = vadd.f32 %v6540, %v6675
        %s6686 = scalar_lea.vmem [#allocation3], 32
        %v6687 = vld [vmem:[%s6686] sm:$0xff]
        %v6688 = vld [vmem:[%s6686 + $0x10] sm:$0xff]
        %v6689 = vld [vmem:[%s6686 + $0x20] sm:$0xff]
        %v6690 = vld [vmem:[%s6686 + $0x30] sm:$0xff]
        %v6691 = vld [vmem:[%s6686 + $0x40] sm:$0xff]
        %v6692 = vld [vmem:[%s6686 + $0x50] sm:$0xff]
        %v6693 = vld [vmem:[%s6686 + $0x60] sm:$0xff]
        %v6694 = vld [vmem:[%s6686 + $0x70] sm:$0xff]
        %v6696 = vsel %vm476, %v6687, 0
        %v6699 = vsel %vm476, %v6688, 0
        %v6702 = vsel %vm476, %v6689, 0
        %v6705 = vsel %vm476, %v6690, 0
        %v6708 = vsel %vm476, %v6691, 0
        %v6711 = vsel %vm476, %v6692, 0
        %v6714 = vsel %vm476, %v6693, 0
        %v6717 = vsel %vm476, %v6694, 0
        %6719 = vmatprep.subr.mxu0 0.0
        %6720 = vmatpush1.msra.mxu0 %v545
        %6721 = vmatprep.subr.mxu0 0.0
        %6722 = vmatpush1.msra.mxu0 %v546
        %6723 = vmatprep.subr.mxu0 0.0
        %6724 = vmatpush1.msra.mxu0 0.0
        %6725 = vmatprep.subr.mxu0 0.0
        %6726 = vmatpush1.msra.mxu0 0.0
        %6727 = vmatprep.subr.mxu0 0.0
        %6728 = vmatpush1.msra.mxu0 0.0
        %6729 = vmatprep.subr.mxu0 0.0
        %6730 = vmatpush1.msra.mxu0 0.0
        %6731 = vmatprep.subr.mxu0 0.0
        %6732 = vmatpush1.msra.mxu0 0.0
        %6733 = vmatprep.subr.mxu0 0.0
        %6734 = vmatpush1.msra.mxu0 0.0
        %6735 = vmatprep.subr.mxu0 0.0
        %6736 = vmatpush1.msra.mxu0 0.0
        %6737 = vmatprep.subr.mxu0 0.0
        %6738 = vmatpush1.msra.mxu0 0.0
        %6739 = vmatprep.subr.mxu0 0.0
        %6740 = vmatpush1.msra.mxu0 0.0
        %6741 = vmatprep.subr.mxu0 0.0
        %6742 = vmatpush1.msra.mxu0 0.0
        %6743 = vmatprep.subr.mxu0 0.0
        %6744 = vmatpush1.msra.mxu0 0.0
        %6745 = vmatprep.subr.mxu0 0.0
        %6746 = vmatpush1.msra.mxu0 0.0
        %6747 = vmatprep.subr.mxu0 0.0
        %6748 = vmatpush1.msra.mxu0 0.0
        %6749 = vmatprep.subr.mxu0 0.0
        %6750 = vmatpush1.msra.mxu0 0.0
        %6751 = vmatprep.subr.mxu0 0.0
        %6752 = vmatpush1.msra.mxu0 0.0
        %6753 = vmatprep.subr.mxu0 0.0
        %6754 = vmatpush1.msra.mxu0 0.0
        %6755 = vmatprep.subr.mxu0 0.0
        %6756 = vmatpush1.msra.mxu0 0.0
        %6757 = vmatprep.subr.mxu0 0.0
        %6758 = vmatpush1.msra.mxu0 0.0
        %6759 = vmatprep.subr.mxu0 0.0
        %6760 = vmatpush1.msra.mxu0 0.0
        %6761 = vmatprep.subr.mxu0 0.0
        %6762 = vmatpush1.msra.mxu0 0.0
        %6763 = vmatprep.subr.mxu0 0.0
        %6764 = vmatpush1.msra.mxu0 0.0
        %6765 = vmatprep.subr.mxu0 0.0
        %6766 = vmatpush1.msra.mxu0 0.0
        %6767 = vmatprep.subr.mxu0 0.0
        %6768 = vmatpush1.msra.mxu0 0.0
        %6769 = vmatprep.subr.mxu0 0.0
        %6770 = vmatpush1.msra.mxu0 0.0
        %6771 = vmatprep.subr.mxu0 0.0
        %6772 = vmatpush1.msra.mxu0 0.0
        %6773 = vmatprep.subr.mxu0 0.0
        %6774 = vmatpush1.msra.mxu0 0.0
        %6775 = vmatprep.subr.mxu0 0.0
        %6776 = vmatpush1.msra.mxu0 0.0
        %6777 = vmatprep.subr.mxu0 0.0
        %6778 = vmatpush1.msra.mxu0 0.0
        %6779 = vmatprep.subr.mxu0 0.0
        %6780 = vmatpush1.msra.mxu0 0.0
        %6781 = vmatprep.subr.mxu0 0.0
        %6782 = vmatpush1.msra.mxu0 0.0
        %6783 = vmatprep.mubr.f32.mxu0 0.0
        %6784 = vmatmul.mubr.f32.gmra.mrb[0].mxu0 %v6696
        %v6785 = vpop.f32.mrb[0].mxu0
        %v6786 = vadd.f32 0.0, %v6785
        %v6787 = vpop.f32.mrb[0].mxu0
        %6788 = vmatprep.mubr.f32.mxu0 0.0
        %6789 = vmatmul.mubr.f32.gmra.mrb[0].mxu0 %v6699
        %v6790 = vpop.f32.mrb[0].mxu0
        %v6791 = vadd.f32 0.0, %v6790
        %v6792 = vpop.f32.mrb[0].mxu0
        %6793 = vmatprep.mubr.f32.mxu0 0.0
        %6794 = vmatmul.mubr.f32.gmra.mrb[0].mxu0 %v6702
        %v6795 = vpop.f32.mrb[0].mxu0
        %v6796 = vadd.f32 0.0, %v6795
        %v6797 = vpop.f32.mrb[0].mxu0
        %6798 = vmatprep.mubr.f32.mxu0 0.0
        %6799 = vmatmul.mubr.f32.gmra.mrb[0].mxu0 %v6705
        %v6800 = vpop.f32.mrb[0].mxu0
        %v6801 = vadd.f32 0.0, %v6800
        %v6802 = vpop.f32.mrb[0].mxu0
        %6803 = vmatprep.mubr.f32.mxu0 0.0
        %6804 = vmatmul.mubr.f32.gmra.mrb[0].mxu0 %v6708
        %v6805 = vpop.f32.mrb[0].mxu0
        %v6806 = vadd.f32 0.0, %v6805
        %v6807 = vpop.f32.mrb[0].mxu0
        %6808 = vmatprep.mubr.f32.mxu0 0.0
        %6809 = vmatmul.mubr.f32.gmra.mrb[0].mxu0 %v6711
        %v6810 = vpop.f32.mrb[0].mxu0
        %v6811 = vadd.f32 0.0, %v6810
        %v6812 = vpop.f32.mrb[0].mxu0
        %6813 = vmatprep.mubr.f32.mxu0 0.0
        %6814 = vmatmul.mubr.f32.gmra.mrb[0].mxu0 %v6714
        %v6815 = vpop.f32.mrb[0].mxu0
        %v6816 = vadd.f32 0.0, %v6815
        %v6817 = vpop.f32.mrb[0].mxu0
        %6818 = vmatprep.mubr.f32.mxu0 0.0
        %6819 = vmatmul.mubr.f32.gmra.mrb[0].mxu0 %v6717
        %v6820 = vpop.f32.mrb[0].mxu0
        %v6821 = vadd.f32 0.0, %v6820
        %v6822 = vpop.f32.mrb[0].mxu0
        %6823 = vdwg.mxu0
        %v6824 = vadd.f32 %v6678, %v6786
        %v6825 = vadd.f32 %v6679, %v6791
        %v6826 = vadd.f32 %v6680, %v6796
        %v6827 = vadd.f32 %v6681, %v6801
        %v6828 = vadd.f32 %v6682, %v6806
        %v6829 = vadd.f32 %v6683, %v6811
        %v6830 = vadd.f32 %v6684, %v6816
        %v6831 = vadd.f32 %v6685, %v6821
        %v6832 = vld [vmem:[%s6686 + $0x1] sm:$0xff]
        %v6833 = vld [vmem:[%s6686 + $0x11] sm:$0xff]
        %v6834 = vld [vmem:[%s6686 + $0x21] sm:$0xff]
        %v6835 = vld [vmem:[%s6686 + $0x31] sm:$0xff]
        %v6836 = vld [vmem:[%s6686 + $0x41] sm:$0xff]
        %v6837 = vld [vmem:[%s6686 + $0x51] sm:$0xff]
        %v6838 = vld [vmem:[%s6686 + $0x61] sm:$0xff]
        %v6839 = vld [vmem:[%s6686 + $0x71] sm:$0xff]
        %v6841 = vsel %vm476, %v6832, 0
        %v6844 = vsel %vm476, %v6833, 0
        %v6847 = vsel %vm476, %v6834, 0
        %v6850 = vsel %vm476, %v6835, 0
        %v6853 = vsel %vm476, %v6836, 0
        %v6856 = vsel %vm476, %v6837, 0
        %v6859 = vsel %vm476, %v6838, 0
        %v6862 = vsel %vm476, %v6839, 0
        %6864 = vmatprep.subr.mxu0 0.0
        %6865 = vmatpush1.msra.mxu0 %v547
        %6866 = vmatprep.subr.mxu0 0.0
        %6867 = vmatpush1.msra.mxu0 %v548
        %6868 = vmatprep.subr.mxu0 0.0
        %6869 = vmatpush1.msra.mxu0 0.0
        %6870 = vmatprep.subr.mxu0 0.0
        %6871 = vmatpush1.msra.mxu0 0.0
        %6872 = vmatprep.subr.mxu0 0.0
        %6873 = vmatpush1.msra.mxu0 0.0
        %6874 = vmatprep.subr.mxu0 0.0
        %6875 = vmatpush1.msra.mxu0 0.0
        %6876 = vmatprep.subr.mxu0 0.0
        %6877 = vmatpush1.msra.mxu0 0.0
        %6878 = vmatprep.subr.mxu0 0.0
        %6879 = vmatpush1.msra.mxu0 0.0
        %6880 = vmatprep.subr.mxu0 0.0
        %6881 = vmatpush1.msra.mxu0 0.0
        %6882 = vmatprep.subr.mxu0 0.0
        %6883 = vmatpush1.msra.mxu0 0.0
        %6884 = vmatprep.subr.mxu0 0.0
        %6885 = vmatpush1.msra.mxu0 0.0
        %6886 = vmatprep.subr.mxu0 0.0
        %6887 = vmatpush1.msra.mxu0 0.0
        %6888 = vmatprep.subr.mxu0 0.0
        %6889 = vmatpush1.msra.mxu0 0.0
        %6890 = vmatprep.subr.mxu0 0.0
        %6891 = vmatpush1.msra.mxu0 0.0
        %6892 = vmatprep.subr.mxu0 0.0
        %6893 = vmatpush1.msra.mxu0 0.0
        %6894 = vmatprep.subr.mxu0 0.0
        %6895 = vmatpush1.msra.mxu0 0.0
        %6896 = vmatprep.subr.mxu0 0.0
        %6897 = vmatpush1.msra.mxu0 0.0
        %6898 = vmatprep.subr.mxu0 0.0
        %6899 = vmatpush1.msra.mxu0 0.0
        %6900 = vmatprep.subr.mxu0 0.0
        %6901 = vmatpush1.msra.mxu0 0.0
        %6902 = vmatprep.subr.mxu0 0.0
        %6903 = vmatpush1.msra.mxu0 0.0
        %6904 = vmatprep.subr.mxu0 0.0
        %6905 = vmatpush1.msra.mxu0 0.0
        %6906 = vmatprep.subr.mxu0 0.0
        %6907 = vmatpush1.msra.mxu0 0.0
        %6908 = vmatprep.subr.mxu0 0.0
        %6909 = vmatpush1.msra.mxu0 0.0
        %6910 = vmatprep.subr.mxu0 0.0
        %6911 = vmatpush1.msra.mxu0 0.0
        %6912 = vmatprep.subr.mxu0 0.0
        %6913 = vmatpush1.msra.mxu0 0.0
        %6914 = vmatprep.subr.mxu0 0.0
        %6915 = vmatpush1.msra.mxu0 0.0
        %6916 = vmatprep.subr.mxu0 0.0
        %6917 = vmatpush1.msra.mxu0 0.0
        %6918 = vmatprep.subr.mxu0 0.0
        %6919 = vmatpush1.msra.mxu0 0.0
        %6920 = vmatprep.subr.mxu0 0.0
        %6921 = vmatpush1.msra.mxu0 0.0
        %6922 = vmatprep.subr.mxu0 0.0
        %6923 = vmatpush1.msra.mxu0 0.0
        %6924 = vmatprep.subr.mxu0 0.0
        %6925 = vmatpush1.msra.mxu0 0.0
        %6926 = vmatprep.subr.mxu0 0.0
        %6927 = vmatpush1.msra.mxu0 0.0
        %6928 = vmatprep.mubr.f32.mxu0 0.0
        %6929 = vmatmul.mubr.f32.gmra.mrb[0].mxu0 %v6841
        %v6930 = vpop.f32.mrb[0].mxu0
        %v6931 = vadd.f32 0.0, %v6930
        %v6932 = vpop.f32.mrb[0].mxu0
        %6933 = vmatprep.mubr.f32.mxu0 0.0
        %6934 = vmatmul.mubr.f32.gmra.mrb[0].mxu0 %v6844
        %v6935 = vpop.f32.mrb[0].mxu0
        %v6936 = vadd.f32 0.0, %v6935
        %v6937 = vpop.f32.mrb[0].mxu0
        %6938 = vmatprep.mubr.f32.mxu0 0.0
        %6939 = vmatmul.mubr.f32.gmra.mrb[0].mxu0 %v6847
        %v6940 = vpop.f32.mrb[0].mxu0
        %v6941 = vadd.f32 0.0, %v6940
        %v6942 = vpop.f32.mrb[0].mxu0
        %6943 = vmatprep.mubr.f32.mxu0 0.0
        %6944 = vmatmul.mubr.f32.gmra.mrb[0].mxu0 %v6850
        %v6945 = vpop.f32.mrb[0].mxu0
        %v6946 = vadd.f32 0.0, %v6945
        %v6947 = vpop.f32.mrb[0].mxu0
        %6948 = vmatprep.mubr.f32.mxu0 0.0
        %6949 = vmatmul.mubr.f32.gmra.mrb[0].mxu0 %v6853
        %v6950 = vpop.f32.mrb[0].mxu0
        %v6951 = vadd.f32 0.0, %v6950
        %v6952 = vpop.f32.mrb[0].mxu0
        %6953 = vmatprep.mubr.f32.mxu0 0.0
        %6954 = vmatmul.mubr.f32.gmra.mrb[0].mxu0 %v6856
        %v6955 = vpop.f32.mrb[0].mxu0
        %v6956 = vadd.f32 0.0, %v6955
        %v6957 = vpop.f32.mrb[0].mxu0
        %6958 = vmatprep.mubr.f32.mxu0 0.0
        %6959 = vmatmul.mubr.f32.gmra.mrb[0].mxu0 %v6859
        %v6960 = vpop.f32.mrb[0].mxu0
        %v6961 = vadd.f32 0.0, %v6960
        %v6962 = vpop.f32.mrb[0].mxu0
        %6963 = vmatprep.mubr.f32.mxu0 0.0
        %6964 = vmatmul.mubr.f32.gmra.mrb[0].mxu0 %v6862
        %v6965 = vpop.f32.mrb[0].mxu0
        %v6966 = vadd.f32 0.0, %v6965
        %v6967 = vpop.f32.mrb[0].mxu0
        %6968 = vdwg.mxu0
        %v6969 = vadd.f32 %v6824, %v6931
        %v6970 = vadd.f32 %v6825, %v6936
        %v6971 = vadd.f32 %v6826, %v6941
        %v6972 = vadd.f32 %v6827, %v6946
        %v6973 = vadd.f32 %v6828, %v6951
        %v6974 = vadd.f32 %v6829, %v6956
        %v6975 = vadd.f32 %v6830, %v6961
        %v6976 = vadd.f32 %v6831, %v6966
        %v6977 = vld [vmem:[%s6686 + $0x2] sm:$0xff]
        %v6978 = vld [vmem:[%s6686 + $0x12] sm:$0xff]
        %v6979 = vld [vmem:[%s6686 + $0x22] sm:$0xff]
        %v6980 = vld [vmem:[%s6686 + $0x32] sm:$0xff]
        %v6981 = vld [vmem:[%s6686 + $0x42] sm:$0xff]
        %v6982 = vld [vmem:[%s6686 + $0x52] sm:$0xff]
        %v6983 = vld [vmem:[%s6686 + $0x62] sm:$0xff]
        %v6984 = vld [vmem:[%s6686 + $0x72] sm:$0xff]
        %v6986 = vsel %vm476, %v6977, 0
        %v6989 = vsel %vm476, %v6978, 0
        %v6992 = vsel %vm476, %v6979, 0
        %v6995 = vsel %vm476, %v6980, 0
        %v6998 = vsel %vm476, %v6981, 0
        %v7001 = vsel %vm476, %v6982, 0
        %v7004 = vsel %vm476, %v6983, 0
        %v7007 = vsel %vm476, %v6984, 0
        %7009 = vmatprep.subr.mxu0 0.0
        %7010 = vmatpush1.msra.mxu0 %v549
        %7011 = vmatprep.subr.mxu0 0.0
        %7012 = vmatpush1.msra.mxu0 %v550
        %7013 = vmatprep.subr.mxu0 0.0
        %7014 = vmatpush1.msra.mxu0 0.0
        %7015 = vmatprep.subr.mxu0 0.0
        %7016 = vmatpush1.msra.mxu0 0.0
        %7017 = vmatprep.subr.mxu0 0.0
        %7018 = vmatpush1.msra.mxu0 0.0
        %7019 = vmatprep.subr.mxu0 0.0
        %7020 = vmatpush1.msra.mxu0 0.0
        %7021 = vmatprep.subr.mxu0 0.0
        %7022 = vmatpush1.msra.mxu0 0.0
        %7023 = vmatprep.subr.mxu0 0.0
        %7024 = vmatpush1.msra.mxu0 0.0
        %7025 = vmatprep.subr.mxu0 0.0
        %7026 = vmatpush1.msra.mxu0 0.0
        %7027 = vmatprep.subr.mxu0 0.0
        %7028 = vmatpush1.msra.mxu0 0.0
        %7029 = vmatprep.subr.mxu0 0.0
        %7030 = vmatpush1.msra.mxu0 0.0
        %7031 = vmatprep.subr.mxu0 0.0
        %7032 = vmatpush1.msra.mxu0 0.0
        %7033 = vmatprep.subr.mxu0 0.0
        %7034 = vmatpush1.msra.mxu0 0.0
        %7035 = vmatprep.subr.mxu0 0.0
        %7036 = vmatpush1.msra.mxu0 0.0
        %7037 = vmatprep.subr.mxu0 0.0
        %7038 = vmatpush1.msra.mxu0 0.0
        %7039 = vmatprep.subr.mxu0 0.0
        %7040 = vmatpush1.msra.mxu0 0.0
        %7041 = vmatprep.subr.mxu0 0.0
        %7042 = vmatpush1.msra.mxu0 0.0
        %7043 = vmatprep.subr.mxu0 0.0
        %7044 = vmatpush1.msra.mxu0 0.0
        %7045 = vmatprep.subr.mxu0 0.0
        %7046 = vmatpush1.msra.mxu0 0.0
        %7047 = vmatprep.subr.mxu0 0.0
        %7048 = vmatpush1.msra.mxu0 0.0
        %7049 = vmatprep.subr.mxu0 0.0
        %7050 = vmatpush1.msra.mxu0 0.0
        %7051 = vmatprep.subr.mxu0 0.0
        %7052 = vmatpush1.msra.mxu0 0.0
        %7053 = vmatprep.subr.mxu0 0.0
        %7054 = vmatpush1.msra.mxu0 0.0
        %7055 = vmatprep.subr.mxu0 0.0
        %7056 = vmatpush1.msra.mxu0 0.0
        %7057 = vmatprep.subr.mxu0 0.0
        %7058 = vmatpush1.msra.mxu0 0.0
        %7059 = vmatprep.subr.mxu0 0.0
        %7060 = vmatpush1.msra.mxu0 0.0
        %7061 = vmatprep.subr.mxu0 0.0
        %7062 = vmatpush1.msra.mxu0 0.0
        %7063 = vmatprep.subr.mxu0 0.0
        %7064 = vmatpush1.msra.mxu0 0.0
        %7065 = vmatprep.subr.mxu0 0.0
        %7066 = vmatpush1.msra.mxu0 0.0
        %7067 = vmatprep.subr.mxu0 0.0
        %7068 = vmatpush1.msra.mxu0 0.0
        %7069 = vmatprep.subr.mxu0 0.0
        %7070 = vmatpush1.msra.mxu0 0.0
        %7071 = vmatprep.subr.mxu0 0.0
        %7072 = vmatpush1.msra.mxu0 0.0
        %7073 = vmatprep.mubr.f32.mxu0 0.0
        %7074 = vmatmul.mubr.f32.gmra.mrb[0].mxu0 %v6986
        %v7075 = vpop.f32.mrb[0].mxu0
        %v7076 = vadd.f32 0.0, %v7075
        %v7077 = vpop.f32.mrb[0].mxu0
        %7078 = vmatprep.mubr.f32.mxu0 0.0
        %7079 = vmatmul.mubr.f32.gmra.mrb[0].mxu0 %v6989
        %v7080 = vpop.f32.mrb[0].mxu0
        %v7081 = vadd.f32 0.0, %v7080
        %v7082 = vpop.f32.mrb[0].mxu0
        %7083 = vmatprep.mubr.f32.mxu0 0.0
        %7084 = vmatmul.mubr.f32.gmra.mrb[0].mxu0 %v6992
        %v7085 = vpop.f32.mrb[0].mxu0
        %v7086 = vadd.f32 0.0, %v7085
        %v7087 = vpop.f32.mrb[0].mxu0
        %7088 = vmatprep.mubr.f32.mxu0 0.0
        %7089 = vmatmul.mubr.f32.gmra.mrb[0].mxu0 %v6995
        %v7090 = vpop.f32.mrb[0].mxu0
        %v7091 = vadd.f32 0.0, %v7090
        %v7092 = vpop.f32.mrb[0].mxu0
        %7093 = vmatprep.mubr.f32.mxu0 0.0
        %7094 = vmatmul.mubr.f32.gmra.mrb[0].mxu0 %v6998
        %v7095 = vpop.f32.mrb[0].mxu0
        %v7096 = vadd.f32 0.0, %v7095
        %v7097 = vpop.f32.mrb[0].mxu0
        %7098 = vmatprep.mubr.f32.mxu0 0.0
        %7099 = vmatmul.mubr.f32.gmra.mrb[0].mxu0 %v7001
        %v7100 = vpop.f32.mrb[0].mxu0
        %v7101 = vadd.f32 0.0, %v7100
        %v7102 = vpop.f32.mrb[0].mxu0
        %7103 = vmatprep.mubr.f32.mxu0 0.0
        %7104 = vmatmul.mubr.f32.gmra.mrb[0].mxu0 %v7004
        %v7105 = vpop.f32.mrb[0].mxu0
        %v7106 = vadd.f32 0.0, %v7105
        %v7107 = vpop.f32.mrb[0].mxu0
        %7108 = vmatprep.mubr.f32.mxu0 0.0
        %7109 = vmatmul.mubr.f32.gmra.mrb[0].mxu0 %v7007
        %v7110 = vpop.f32.mrb[0].mxu0
        %v7111 = vadd.f32 0.0, %v7110
        %v7112 = vpop.f32.mrb[0].mxu0
        %7113 = vdwg.mxu0
        %v7114 = vadd.f32 %v6969, %v7076
        %v7115 = vadd.f32 %v6970, %v7081
        %v7116 = vadd.f32 %v6971, %v7086
        %v7117 = vadd.f32 %v6972, %v7091
        %v7118 = vadd.f32 %v6973, %v7096
        %v7119 = vadd.f32 %v6974, %v7101
        %v7120 = vadd.f32 %v6975, %v7106
        %v7121 = vadd.f32 %v6976, %v7111
        %s7122 = scalar_lea.vmem [#allocation7], 3
        %v7123 = vld [vmem:[%s7122] sm:$0x1]
        %v7125 = vlaneseq
        %v7126 = vshrl.u32 %v7125, 7
        %v7127 = vsub.s32 0, %v7126
        %v7128 = vrot.slane %v7123, %v7127
        %v7130 = vadd.f32 %v7114, %v7128
        %v7131 = vadd.f32 %v7115, %v7128
        %v7132 = vadd.f32 %v7116, %v7128
        %v7133 = vadd.f32 %v7117, %v7128
        %v7134 = vadd.f32 %v7118, %v7128
        %v7135 = vadd.f32 %v7119, %v7128
        %v7136 = vadd.f32 %v7120, %v7128
        %v7137 = vadd.f32 %v7121, %v7128
        %s7138 = scalar_lea.vmem [#allocation7], 4
        %v7139 = vld [vmem:[%s7138] sm:$0x1]
        %s7140 = scalar_lea.vmem [#allocation7], 5
        %v7141 = vld [vmem:[%s7140] sm:$0x1]
        %v7142 = vsel %vm476, %v7130, 0.0
        %v7143 = vsel %vm476, %v7131, 0.0
        %v7144 = vadd.f32 %v7142, %v7143
        %v7145 = vsel %vm476, %v7132, 0.0
        %v7146 = vadd.f32 %v7144, %v7145
        %v7147 = vsel %vm476, %v7133, 0.0
        %v7148 = vadd.f32 %v7146, %v7147
        %v7149 = vsel %vm476, %v7134, 0.0
        %v7150 = vadd.f32 %v7148, %v7149
        %v7151 = vsel %vm476, %v7135, 0.0
        %v7152 = vadd.f32 %v7150, %v7151
        %v7153 = vsel %vm476, %v7136, 0.0
        %v7154 = vadd.f32 %v7152, %v7153
        %v7155 = vsel %vm476, %v7137, 0.0
        %v7156 = vadd.f32 %v7154, %v7155
        %v7157 = vrot.slane %v7156, 4
        %v7158 = vadd.f32 %v7156, %v7157
        %v7159 = vrot.slane %v7158, 2
        %v7160 = vadd.f32 %v7158, %v7159
        %v7161 = vrot.slane %v7160, 1
        %v7162 = vadd.f32 %v7160, %v7161
        %v7164 = vsel %vm476, %v7162, 0
        %7166 = vmatprep.subr.mxu0 0.0
        %7167 = vmatpush1.msra.mxu0 %v553
        %7168 = vmatprep.subr.mxu0 0.0
        %7169 = vmatpush1.msra.mxu0 %v554
        %7170 = vmatprep.subr.mxu0 0.0
        %7171 = vmatpush1.msra.mxu0 0.0
        %7172 = vmatprep.subr.mxu0 0.0
        %7173 = vmatpush1.msra.mxu0 0.0
        %7174 = vmatprep.subr.mxu0 0.0
        %7175 = vmatpush1.msra.mxu0 0.0
        %7176 = vmatprep.subr.mxu0 0.0
        %7177 = vmatpush1.msra.mxu0 0.0
        %7178 = vmatprep.subr.mxu0 0.0
        %7179 = vmatpush1.msra.mxu0 0.0
        %7180 = vmatprep.subr.mxu0 0.0
        %7181 = vmatpush1.msra.mxu0 0.0
        %7182 = vmatprep.subr.mxu0 0.0
        %7183 = vmatpush1.msra.mxu0 0.0
        %7184 = vmatprep.subr.mxu0 0.0
        %7185 = vmatpush1.msra.mxu0 0.0
        %7186 = vmatprep.subr.mxu0 0.0
        %7187 = vmatpush1.msra.mxu0 0.0
        %7188 = vmatprep.subr.mxu0 0.0
        %7189 = vmatpush1.msra.mxu0 0.0
        %7190 = vmatprep.subr.mxu0 0.0
        %7191 = vmatpush1.msra.mxu0 0.0
        %7192 = vmatprep.subr.mxu0 0.0
        %7193 = vmatpush1.msra.mxu0 0.0
        %7194 = vmatprep.subr.mxu0 0.0
        %7195 = vmatpush1.msra.mxu0 0.0
        %7196 = vmatprep.subr.mxu0 0.0
        %7197 = vmatpush1.msra.mxu0 0.0
        %7198 = vmatprep.subr.mxu0 0.0
        %7199 = vmatpush1.msra.mxu0 0.0
        %7200 = vmatprep.subr.mxu0 0.0
        %7201 = vmatpush1.msra.mxu0 0.0
        %7202 = vmatprep.subr.mxu0 0.0
        %7203 = vmatpush1.msra.mxu0 0.0
        %7204 = vmatprep.subr.mxu0 0.0
        %7205 = vmatpush1.msra.mxu0 0.0
        %7206 = vmatprep.subr.mxu0 0.0
        %7207 = vmatpush1.msra.mxu0 0.0
        %7208 = vmatprep.subr.mxu0 0.0
        %7209 = vmatpush1.msra.mxu0 0.0
        %7210 = vmatprep.subr.mxu0 0.0
        %7211 = vmatpush1.msra.mxu0 0.0
        %7212 = vmatprep.subr.mxu0 0.0
        %7213 = vmatpush1.msra.mxu0 0.0
        %7214 = vmatprep.subr.mxu0 0.0
        %7215 = vmatpush1.msra.mxu0 0.0
        %7216 = vmatprep.subr.mxu0 0.0
        %7217 = vmatpush1.msra.mxu0 0.0
        %7218 = vmatprep.subr.mxu0 0.0
        %7219 = vmatpush1.msra.mxu0 0.0
        %7220 = vmatprep.subr.mxu0 0.0
        %7221 = vmatpush1.msra.mxu0 0.0
        %7222 = vmatprep.subr.mxu0 0.0
        %7223 = vmatpush1.msra.mxu0 0.0
        %7224 = vmatprep.subr.mxu0 0.0
        %7225 = vmatpush1.msra.mxu0 0.0
        %7226 = vmatprep.subr.mxu0 0.0
        %7227 = vmatpush1.msra.mxu0 0.0
        %7228 = vmatprep.subr.mxu0 0.0
        %7229 = vmatpush1.msra.mxu0 0.0
        %7230 = vmatprep.mubr.f32.mxu0 0.0
        %7231 = vmatmul.mubr.f32.gmra.mrb[0].mxu0 %v7164
        %v7232 = vpop.f32.mrb[0].mxu0
        %v7233 = vadd.f32 0.0, %v7232
        %v7234 = vpop.f32.mrb[0].mxu0
        %7235 = vdwg.mxu0
        %v7236 = vmul.f32 %v7233, %v5462
        %v7238 = vsel %vm454, %v7236, 0
        %7240 = vmatprep.subr.mxu0 0.0
        %7241 = vmatpush1.msra.mxu0 %v555
        %7242 = vmatprep.subr.mxu0 0.0
        %7243 = vmatpush1.msra.mxu0 0.0
        %7244 = vmatprep.subr.mxu0 0.0
        %7245 = vmatpush1.msra.mxu0 0.0
        %7246 = vmatprep.subr.mxu0 0.0
        %7247 = vmatpush1.msra.mxu0 0.0
        %7248 = vmatprep.subr.mxu0 0.0
        %7249 = vmatpush1.msra.mxu0 0.0
        %7250 = vmatprep.subr.mxu0 0.0
        %7251 = vmatpush1.msra.mxu0 0.0
        %7252 = vmatprep.subr.mxu0 0.0
        %7253 = vmatpush1.msra.mxu0 0.0
        %7254 = vmatprep.subr.mxu0 0.0
        %7255 = vmatpush1.msra.mxu0 0.0
        %7256 = vmatprep.subr.mxu0 0.0
        %7257 = vmatpush1.msra.mxu0 0.0
        %7258 = vmatprep.subr.mxu0 0.0
        %7259 = vmatpush1.msra.mxu0 0.0
        %7260 = vmatprep.subr.mxu0 0.0
        %7261 = vmatpush1.msra.mxu0 0.0
        %7262 = vmatprep.subr.mxu0 0.0
        %7263 = vmatpush1.msra.mxu0 0.0
        %7264 = vmatprep.subr.mxu0 0.0
        %7265 = vmatpush1.msra.mxu0 0.0
        %7266 = vmatprep.subr.mxu0 0.0
        %7267 = vmatpush1.msra.mxu0 0.0
        %7268 = vmatprep.subr.mxu0 0.0
        %7269 = vmatpush1.msra.mxu0 0.0
        %7270 = vmatprep.subr.mxu0 0.0
        %7271 = vmatpush1.msra.mxu0 0.0
        %7272 = vmatprep.subr.mxu0 0.0
        %7273 = vmatpush1.msra.mxu0 0.0
        %7274 = vmatprep.subr.mxu0 0.0
        %7275 = vmatpush1.msra.mxu0 0.0
        %7276 = vmatprep.subr.mxu0 0.0
        %7277 = vmatpush1.msra.mxu0 0.0
        %7278 = vmatprep.subr.mxu0 0.0
        %7279 = vmatpush1.msra.mxu0 0.0
        %7280 = vmatprep.subr.mxu0 0.0
        %7281 = vmatpush1.msra.mxu0 0.0
        %7282 = vmatprep.subr.mxu0 0.0
        %7283 = vmatpush1.msra.mxu0 0.0
        %7284 = vmatprep.subr.mxu0 0.0
        %7285 = vmatpush1.msra.mxu0 0.0
        %7286 = vmatprep.subr.mxu0 0.0
        %7287 = vmatpush1.msra.mxu0 0.0
        %7288 = vmatprep.subr.mxu0 0.0
        %7289 = vmatpush1.msra.mxu0 0.0
        %7290 = vmatprep.subr.mxu0 0.0
        %7291 = vmatpush1.msra.mxu0 0.0
        %7292 = vmatprep.subr.mxu0 0.0
        %7293 = vmatpush1.msra.mxu0 0.0
        %7294 = vmatprep.subr.mxu0 0.0
        %7295 = vmatpush1.msra.mxu0 0.0
        %7296 = vmatprep.subr.mxu0 0.0
        %7297 = vmatpush1.msra.mxu0 0.0
        %7298 = vmatprep.subr.mxu0 0.0
        %7299 = vmatpush1.msra.mxu0 0.0
        %7300 = vmatprep.subr.mxu0 0.0
        %7301 = vmatpush1.msra.mxu0 0.0
        %7302 = vmatprep.subr.mxu0 0.0
        %7303 = vmatpush1.msra.mxu0 0.0
        %7304 = vmatprep.mubr.f32.mxu0 0.0
        %7305 = vmatmul.mubr.f32.gmra.mrb[0].mxu0 %v7238
        %v7306 = vpop.f32.mrb[0].mxu0
        %v7307 = vadd.f32 0.0, %v7306
        %v7308 = vpop.f32.mrb[0].mxu0
        %7309 = vdwg.mxu0
        %v7310 = vlaneseq
        %v7311 = vshrl.u32 %v7310, 7
        %v7312 = vsub.s32 0, %v7311
        %v7313 = vrot.slane %v7307, %v7312
        %v7314 = vsub.f32 %v7130, %v7313
        %v7315 = vsub.f32 %v7131, %v7313
        %v7316 = vsub.f32 %v7132, %v7313
        %v7317 = vsub.f32 %v7133, %v7313
        %v7318 = vsub.f32 %v7134, %v7313
        %v7319 = vsub.f32 %v7135, %v7313
        %v7320 = vsub.f32 %v7136, %v7313
        %v7321 = vsub.f32 %v7137, %v7313
        %v7322 = vmul.f32 %v7314, %v7314
        %v7323 = vmul.f32 %v7315, %v7315
        %v7324 = vmul.f32 %v7316, %v7316
        %v7325 = vmul.f32 %v7317, %v7317
        %v7326 = vmul.f32 %v7318, %v7318
        %v7327 = vmul.f32 %v7319, %v7319
        %v7328 = vmul.f32 %v7320, %v7320
        %v7329 = vmul.f32 %v7321, %v7321
        %v7330 = vsel %vm476, %v7322, 0.0
        %v7331 = vsel %vm476, %v7323, 0.0
        %v7332 = vadd.f32 %v7330, %v7331
        %v7333 = vsel %vm476, %v7324, 0.0
        %v7334 = vadd.f32 %v7332, %v7333
        %v7335 = vsel %vm476, %v7325, 0.0
        %v7336 = vadd.f32 %v7334, %v7335
        %v7337 = vsel %vm476, %v7326, 0.0
        %v7338 = vadd.f32 %v7336, %v7337
        %v7339 = vsel %vm476, %v7327, 0.0
        %v7340 = vadd.f32 %v7338, %v7339
        %v7341 = vsel %vm476, %v7328, 0.0
        %v7342 = vadd.f32 %v7340, %v7341
        %v7343 = vsel %vm476, %v7329, 0.0
        %v7344 = vadd.f32 %v7342, %v7343
        %v7345 = vrot.slane %v7344, 4
        %v7346 = vadd.f32 %v7344, %v7345
        %v7347 = vrot.slane %v7346, 2
        %v7348 = vadd.f32 %v7346, %v7347
        %v7349 = vrot.slane %v7348, 1
        %v7350 = vadd.f32 %v7348, %v7349
        %v7352 = vsel %vm476, %v7350, 0
        %7354 = vmatprep.subr.mxu0 0.0
        %7355 = vmatpush1.msra.mxu0 %v553
        %7356 = vmatprep.subr.mxu0 0.0
        %7357 = vmatpush1.msra.mxu0 %v554
        %7358 = vmatprep.subr.mxu0 0.0
        %7359 = vmatpush1.msra.mxu0 0.0
        %7360 = vmatprep.subr.mxu0 0.0
        %7361 = vmatpush1.msra.mxu0 0.0
        %7362 = vmatprep.subr.mxu0 0.0
        %7363 = vmatpush1.msra.mxu0 0.0
        %7364 = vmatprep.subr.mxu0 0.0
        %7365 = vmatpush1.msra.mxu0 0.0
        %7366 = vmatprep.subr.mxu0 0.0
        %7367 = vmatpush1.msra.mxu0 0.0
        %7368 = vmatprep.subr.mxu0 0.0
        %7369 = vmatpush1.msra.mxu0 0.0
        %7370 = vmatprep.subr.mxu0 0.0
        %7371 = vmatpush1.msra.mxu0 0.0
        %7372 = vmatprep.subr.mxu0 0.0
        %7373 = vmatpush1.msra.mxu0 0.0
        %7374 = vmatprep.subr.mxu0 0.0
        %7375 = vmatpush1.msra.mxu0 0.0
        %7376 = vmatprep.subr.mxu0 0.0
        %7377 = vmatpush1.msra.mxu0 0.0
        %7378 = vmatprep.subr.mxu0 0.0
        %7379 = vmatpush1.msra.mxu0 0.0
        %7380 = vmatprep.subr.mxu0 0.0
        %7381 = vmatpush1.msra.mxu0 0.0
        %7382 = vmatprep.subr.mxu0 0.0
        %7383 = vmatpush1.msra.mxu0 0.0
        %7384 = vmatprep.subr.mxu0 0.0
        %7385 = vmatpush1.msra.mxu0 0.0
        %7386 = vmatprep.subr.mxu0 0.0
        %7387 = vmatpush1.msra.mxu0 0.0
        %7388 = vmatprep.subr.mxu0 0.0
        %7389 = vmatpush1.msra.mxu0 0.0
        %7390 = vmatprep.subr.mxu0 0.0
        %7391 = vmatpush1.msra.mxu0 0.0
        %7392 = vmatprep.subr.mxu0 0.0
        %7393 = vmatpush1.msra.mxu0 0.0
        %7394 = vmatprep.subr.mxu0 0.0
        %7395 = vmatpush1.msra.mxu0 0.0
        %7396 = vmatprep.subr.mxu0 0.0
        %7397 = vmatpush1.msra.mxu0 0.0
        %7398 = vmatprep.subr.mxu0 0.0
        %7399 = vmatpush1.msra.mxu0 0.0
        %7400 = vmatprep.subr.mxu0 0.0
        %7401 = vmatpush1.msra.mxu0 0.0
        %7402 = vmatprep.subr.mxu0 0.0
        %7403 = vmatpush1.msra.mxu0 0.0
        %7404 = vmatprep.subr.mxu0 0.0
        %7405 = vmatpush1.msra.mxu0 0.0
        %7406 = vmatprep.subr.mxu0 0.0
        %7407 = vmatpush1.msra.mxu0 0.0
        %7408 = vmatprep.subr.mxu0 0.0
        %7409 = vmatpush1.msra.mxu0 0.0
        %7410 = vmatprep.subr.mxu0 0.0
        %7411 = vmatpush1.msra.mxu0 0.0
        %7412 = vmatprep.subr.mxu0 0.0
        %7413 = vmatpush1.msra.mxu0 0.0
        %7414 = vmatprep.subr.mxu0 0.0
        %7415 = vmatpush1.msra.mxu0 0.0
        %7416 = vmatprep.subr.mxu0 0.0
        %7417 = vmatpush1.msra.mxu0 0.0
        %7418 = vmatprep.mubr.f32.mxu0 0.0
        %7419 = vmatmul.mubr.f32.gmra.mrb[0].mxu0 %v7352
        %v7420 = vpop.f32.mrb[0].mxu0
        %v7421 = vadd.f32 0.0, %v7420
        %v7422 = vpop.f32.mrb[0].mxu0
        %7423 = vdwg.mxu0
        %v7424 = vmul.f32 %v7421, %v5462
        %v7425 = vadd.f32 %v7424, 1e-05
        %v7426 = vrsqrt.pop %v7425
        %v7428 = vsel %vm454, %v7426, 0
        %7430 = vmatprep.subr.mxu0 0.0
        %7431 = vmatpush1.msra.mxu0 %v555
        %7432 = vmatprep.subr.mxu0 0.0
        %7433 = vmatpush1.msra.mxu0 0.0
        %7434 = vmatprep.subr.mxu0 0.0
        %7435 = vmatpush1.msra.mxu0 0.0
        %7436 = vmatprep.subr.mxu0 0.0
        %7437 = vmatpush1.msra.mxu0 0.0
        %7438 = vmatprep.subr.mxu0 0.0
        %7439 = vmatpush1.msra.mxu0 0.0
        %7440 = vmatprep.subr.mxu0 0.0
        %7441 = vmatpush1.msra.mxu0 0.0
        %7442 = vmatprep.subr.mxu0 0.0
        %7443 = vmatpush1.msra.mxu0 0.0
        %7444 = vmatprep.subr.mxu0 0.0
        %7445 = vmatpush1.msra.mxu0 0.0
        %7446 = vmatprep.subr.mxu0 0.0
        %7447 = vmatpush1.msra.mxu0 0.0
        %7448 = vmatprep.subr.mxu0 0.0
        %7449 = vmatpush1.msra.mxu0 0.0
        %7450 = vmatprep.subr.mxu0 0.0
        %7451 = vmatpush1.msra.mxu0 0.0
        %7452 = vmatprep.subr.mxu0 0.0
        %7453 = vmatpush1.msra.mxu0 0.0
        %7454 = vmatprep.subr.mxu0 0.0
        %7455 = vmatpush1.msra.mxu0 0.0
        %7456 = vmatprep.subr.mxu0 0.0
        %7457 = vmatpush1.msra.mxu0 0.0
        %7458 = vmatprep.subr.mxu0 0.0
        %7459 = vmatpush1.msra.mxu0 0.0
        %7460 = vmatprep.subr.mxu0 0.0
        %7461 = vmatpush1.msra.mxu0 0.0
        %7462 = vmatprep.subr.mxu0 0.0
        %7463 = vmatpush1.msra.mxu0 0.0
        %7464 = vmatprep.subr.mxu0 0.0
        %7465 = vmatpush1.msra.mxu0 0.0
        %7466 = vmatprep.subr.mxu0 0.0
        %7467 = vmatpush1.msra.mxu0 0.0
        %7468 = vmatprep.subr.mxu0 0.0
        %7469 = vmatpush1.msra.mxu0 0.0
        %7470 = vmatprep.subr.mxu0 0.0
        %7471 = vmatpush1.msra.mxu0 0.0
        %7472 = vmatprep.subr.mxu0 0.0
        %7473 = vmatpush1.msra.mxu0 0.0
        %7474 = vmatprep.subr.mxu0 0.0
        %7475 = vmatpush1.msra.mxu0 0.0
        %7476 = vmatprep.subr.mxu0 0.0
        %7477 = vmatpush1.msra.mxu0 0.0
        %7478 = vmatprep.subr.mxu0 0.0
        %7479 = vmatpush1.msra.mxu0 0.0
        %7480 = vmatprep.subr.mxu0 0.0
        %7481 = vmatpush1.msra.mxu0 0.0
        %7482 = vmatprep.subr.mxu0 0.0
        %7483 = vmatpush1.msra.mxu0 0.0
        %7484 = vmatprep.subr.mxu0 0.0
        %7485 = vmatpush1.msra.mxu0 0.0
        %7486 = vmatprep.subr.mxu0 0.0
        %7487 = vmatpush1.msra.mxu0 0.0
        %7488 = vmatprep.subr.mxu0 0.0
        %7489 = vmatpush1.msra.mxu0 0.0
        %7490 = vmatprep.subr.mxu0 0.0
        %7491 = vmatpush1.msra.mxu0 0.0
        %7492 = vmatprep.subr.mxu0 0.0
        %7493 = vmatpush1.msra.mxu0 0.0
        %7494 = vmatprep.mubr.f32.mxu0 0.0
        %7495 = vmatmul.mubr.f32.gmra.mrb[0].mxu0 %v7428
        %v7496 = vpop.f32.mrb[0].mxu0
        %v7497 = vadd.f32 0.0, %v7496
        %v7498 = vpop.f32.mrb[0].mxu0
        %7499 = vdwg.mxu0
        %v7500 = vlaneseq
        %v7501 = vshrl.u32 %v7500, 7
        %v7502 = vsub.s32 0, %v7501
        %v7503 = vrot.slane %v7497, %v7502
        %v7504 = vmul.f32 %v7314, %v7503
        %v7505 = vmul.f32 %v7315, %v7503
        %v7506 = vmul.f32 %v7316, %v7503
        %v7507 = vmul.f32 %v7317, %v7503
        %v7508 = vmul.f32 %v7318, %v7503
        %v7509 = vmul.f32 %v7319, %v7503
        %v7510 = vmul.f32 %v7320, %v7503
        %v7511 = vmul.f32 %v7321, %v7503
        %v7513 = vlaneseq
        %v7514 = vshrl.u32 %v7513, 7
        %v7515 = vsub.s32 0, %v7514
        %v7516 = vrot.slane %v7139, %v7515
        %v7518 = vmul.f32 %v7504, %v7516
        %v7519 = vmul.f32 %v7505, %v7516
        %v7520 = vmul.f32 %v7506, %v7516
        %v7521 = vmul.f32 %v7507, %v7516
        %v7522 = vmul.f32 %v7508, %v7516
        %v7523 = vmul.f32 %v7509, %v7516
        %v7524 = vmul.f32 %v7510, %v7516
        %v7525 = vmul.f32 %v7511, %v7516
        %v7527 = vlaneseq
        %v7528 = vshrl.u32 %v7527, 7
        %v7529 = vsub.s32 0, %v7528
        %v7530 = vrot.slane %v7141, %v7529
        %v7532 = vadd.f32 %v7518, %v7530
        %v7533 = vadd.f32 %v7519, %v7530
        %v7534 = vadd.f32 %v7520, %v7530
        %v7535 = vadd.f32 %v7521, %v7530
        %v7536 = vadd.f32 %v7522, %v7530
        %v7537 = vadd.f32 %v7523, %v7530
        %v7538 = vadd.f32 %v7524, %v7530
        %v7539 = vadd.f32 %v7525, %v7530
        %s7540 = scalar_lea.vmem %s1, %s28
        %v7541 = vld [vmem:[%s7540] sm:$0x1]
        %v7542 = vxor.u32 %v7541, 2147483648
        %v7543 = vmul.f32 %v7542, 1.442695
        %v7544 = vpow.pop %v7543
        %v7545 = vadd.f32 %v7544, 1.0
        %v7546 = vrcp.pop %v7545
        %v7547 = vmul.f32 1.0, %v7546
        %v7548 = vmul.f32 %v7541, %v7547
        %v7549 = vld [vmem:[%s11] sm:$0xff]
        %v7550 = vld [vmem:[%s11 + $0x8] sm:$0xff]
        %v7551 = vld [vmem:[%s11 + $0x10] sm:$0xff]
        %v7552 = vld [vmem:[%s11 + $0x18] sm:$0xff]
        %s7553 = scalar_lea.vmem [#allocation7], 6
        %v7554 = vld [vmem:[%s7553] sm:$0x1]
        %vm7555 = vcmask 261120
        %v7557 = vsel %vm7555, %v7548, 0
        %7559 = vmatprep.subr.mxu0 0.0
        %7560 = vmatpush1.msra.mxu0 %v7549
        %7561 = vmatprep.subr.mxu0 0.0
        %7562 = vmatpush1.msra.mxu0 %v7550
        %7563 = vmatprep.subr.mxu0 0.0
        %7564 = vmatpush1.msra.mxu0 %v7551
        %7565 = vmatprep.subr.mxu0 0.0
        %7566 = vmatpush1.msra.mxu0 %v7552
        %7567 = vmatprep.subr.mxu0 0.0
        %7568 = vmatpush1.msra.mxu0 0.0
        %7569 = vmatprep.subr.mxu0 0.0
        %7570 = vmatpush1.msra.mxu0 0.0
        %7571 = vmatprep.subr.mxu0 0.0
        %7572 = vmatpush1.msra.mxu0 0.0
        %7573 = vmatprep.subr.mxu0 0.0
        %7574 = vmatpush1.msra.mxu0 0.0
        %7575 = vmatprep.subr.mxu0 0.0
        %7576 = vmatpush1.msra.mxu0 0.0
        %7577 = vmatprep.subr.mxu0 0.0
        %7578 = vmatpush1.msra.mxu0 0.0
        %7579 = vmatprep.subr.mxu0 0.0
        %7580 = vmatpush1.msra.mxu0 0.0
        %7581 = vmatprep.subr.mxu0 0.0
        %7582 = vmatpush1.msra.mxu0 0.0
        %7583 = vmatprep.subr.mxu0 0.0
        %7584 = vmatpush1.msra.mxu0 0.0
        %7585 = vmatprep.subr.mxu0 0.0
        %7586 = vmatpush1.msra.mxu0 0.0
        %7587 = vmatprep.subr.mxu0 0.0
        %7588 = vmatpush1.msra.mxu0 0.0
        %7589 = vmatprep.subr.mxu0 0.0
        %7590 = vmatpush1.msra.mxu0 0.0
        %7591 = vmatprep.subr.mxu0 0.0
        %7592 = vmatpush1.msra.mxu0 0.0
        %7593 = vmatprep.subr.mxu0 0.0
        %7594 = vmatpush1.msra.mxu0 0.0
        %7595 = vmatprep.subr.mxu0 0.0
        %7596 = vmatpush1.msra.mxu0 0.0
        %7597 = vmatprep.subr.mxu0 0.0
        %7598 = vmatpush1.msra.mxu0 0.0
        %7599 = vmatprep.subr.mxu0 0.0
        %7600 = vmatpush1.msra.mxu0 0.0
        %7601 = vmatprep.subr.mxu0 0.0
        %7602 = vmatpush1.msra.mxu0 0.0
        %7603 = vmatprep.subr.mxu0 0.0
        %7604 = vmatpush1.msra.mxu0 0.0
        %7605 = vmatprep.subr.mxu0 0.0
        %7606 = vmatpush1.msra.mxu0 0.0
        %7607 = vmatprep.subr.mxu0 0.0
        %7608 = vmatpush1.msra.mxu0 0.0
        %7609 = vmatprep.subr.mxu0 0.0
        %7610 = vmatpush1.msra.mxu0 0.0
        %7611 = vmatprep.subr.mxu0 0.0
        %7612 = vmatpush1.msra.mxu0 0.0
        %7613 = vmatprep.subr.mxu0 0.0
        %7614 = vmatpush1.msra.mxu0 0.0
        %7615 = vmatprep.subr.mxu0 0.0
        %7616 = vmatpush1.msra.mxu0 0.0
        %7617 = vmatprep.subr.mxu0 0.0
        %7618 = vmatpush1.msra.mxu0 0.0
        %7619 = vmatprep.subr.mxu0 0.0
        %7620 = vmatpush1.msra.mxu0 0.0
        %7621 = vmatprep.subr.mxu0 0.0
        %7622 = vmatpush1.msra.mxu0 0.0
        %7623 = vmatprep.mubr.f32.mxu0 0.0
        %7624 = vmatmul.mubr.f32.gmra.mrb[0].mxu0 %v7557
        %v7625 = vpop.f32.mrb[0].mxu0
        %v7626 = vadd.f32 %v7554, %v7625
        %v7627 = vpop.f32.mrb[0].mxu0
        %7628 = vdwg.mxu0
        %v7629 = vlaneseq
        %v7630 = vshrl.u32 %v7629, 7
        %v7631 = vsub.s32 0, %v7630
        %v7632 = vrot.slane %v7626, %v7631
        %v7633 = vadd.f32 %v7532, %v7632
        %v7634 = vadd.f32 %v7533, %v7632
        %v7635 = vadd.f32 %v7534, %v7632
        %v7636 = vadd.f32 %v7535, %v7632
        %v7637 = vadd.f32 %v7536, %v7632
        %v7638 = vadd.f32 %v7537, %v7632
        %v7639 = vadd.f32 %v7538, %v7632
        %v7640 = vadd.f32 %v7539, %v7632
        %7641 = vst.msk [vmem:[%s448] sm:$0xff] %vm476, %v7633
        %7642 = vst.msk [vmem:[%s448 + $0x8] sm:$0xff] %vm476, %v7634
        %7643 = vst.msk [vmem:[%s448 + $0x10] sm:$0xff] %vm476, %v7635
        %7644 = vst.msk [vmem:[%s448 + $0x18] sm:$0xff] %vm476, %v7636
        %7645 = vst.msk [vmem:[%s448 + $0x20] sm:$0xff] %vm476, %v7637
        %7646 = vst.msk [vmem:[%s448 + $0x28] sm:$0xff] %vm476, %v7638
        %7647 = vst.msk [vmem:[%s448 + $0x30] sm:$0xff] %vm476, %v7639
        %7648 = vst.msk [vmem:[%s448 + $0x38] sm:$0xff] %vm476, %v7640
        %s7649 = sand.u32 %s293, 1
        %s7650 = scalar_lea.sflag [#allocation6], %s7649
        %s7651 = sand.u32 %s293, 1
        %s7652 = smul.addr %s7651, 64
        %s7653 = scalar_lea.vmem [#allocation10], %s7652
        // Predicated region
        $region81: #{tpu_custom_call.1} parent=67 // pred_check
          %p7654 = pneg %p303
        $region82: #{tpu_custom_call.1} parent=67 // pred_check_branch
          %7656 = sbr.rel (%p7654) target = $region84
        $region83: #{tpu_custom_call.1} parent=67 // pred_region
          %s7658 = ssub.s32 1024, 1024
          %7659 = vsyncadd %s7650, %s7658
          %s7660 = smul.addr %s28, 8
          %s7661 = smul.addr %s7660, 128
          %s7662 = scalar_lea.hbm %s12, %s7661
          %s7663 = sshll.u32 %s7653, 4
          %s7664 = int_to_ptr.vmem [resolvable:$true] %s7663
          %7669 = dma.vmem_to_hbm [thread:$0]  %s7664, 1024, %s7662, %s7650, 128, 128, 8
        $region84: #{tpu_custom_call.1} parent=67 // pred_fallthru
          _
      $region68: #{tpu_custom_call.1} parent=5 // pred_fallthru
        _
      %p7670 = scmp.le.s32.totalorder 2, %s23
      // Predicated region
      $region85: #{tpu_custom_call.1} parent=5 // pred_check
        %p7671 = pneg %p7670
      $region86: #{tpu_custom_call.1} parent=5 // pred_check_branch
        %7673 = sbr.rel (%p7671) target = $region88
      $region87: #{tpu_custom_call.1} parent=5 // pred_region
        %s7674 = ssub.s32 %s23, 2
        // Predicated region
        $region89: #{tpu_custom_call.1} parent=87 // pred_check
          %p7675 = pneg %p309
        $region90: #{tpu_custom_call.1} parent=87 // pred_check_branch
          %7677 = sbr.rel (%p7675) target = $region92
        $region91: #{tpu_custom_call.1} parent=87 // pred_region
          %s7678 = sand.u32 %s294, 1
          %s7679 = scalar_lea.sflag [#allocation6], %s7678
          %s7680 = sand.u32 %s294, 1
          %s7681 = smul.addr %s7680, 64
          %s7682 = scalar_lea.vmem [#allocation10], %s7681
          %7683 = dma.done %s7679, 1024
        $region92: #{tpu_custom_call.1} parent=87 // pred_fallthru
          _
      $region88: #{tpu_custom_call.1} parent=5 // pred_fallthru
        _
    $region6: #{tpu_custom_call.1} parent=1 // loop_footer
      %s27 = sadd.s32 1, %s23
    $region7: #{tpu_custom_call.1} parent=1 // loop_footer_branch
      %22 = sbr.rel target = $region3
    $region8: #{tpu_custom_call.1} parent=1 // loop_exit
      _
    %7684 = vsyncpa [#allocation5], 1
    %s7685 = scalar_lea.sflag [#allocation5], 1
    %7686 = vsyncpa %s7685, 1
    %7687 = vsyncpa [#allocation8], 1
    %7688 = vsyncpa [#allocation6], 1
    %s7689 = scalar_lea.sflag [#allocation6], 1
    %7690 = vsyncpa %s7689, 1

</llo_original>
